<compile_context>
chip_gen: v6e
topology: v6e:2x2x1
jax: 0.10.0
libtpu: 0.0.40
codegen_flags: <defaults>
</compile_context>

<pallas_src>
import functools

import jax
import jax.numpy as jnp
from jax.experimental import pallas as pl
from jax.experimental.pallas import tpu as pltpu


# 3x3 taps, (dy, dx) row-major.  Weight packing, masks and the in-kernel slab
# all use this order.
_TAPS = tuple((dy, dx) for dy in (-1, 0, 1) for dx in (-1, 0, 1))


# ----------------------------------------------------------------------------
# Fused 3-layer SpatialGRU kernel (one grid step == one timestep, all layers)
# ----------------------------------------------------------------------------
def _gru_stack_kernel(*refs, C, W, L, n_layers):
    """Ref layout:
        refs[0]              x block   (1, C, L) f32, L = B*H*W (lane-dense)
        refs[1]              tap masks (9, L) f32 (conv zero-padding validity)
        refs[2 : 2+4L]       per-layer (wa, ba, wb, wc):
                               wa (3C, 9C) bf16  [update_x; reset_x; tilde_x*BN]
                               ba (3C, 1)  f32   [b_u; b_r; BN shift]
                               wb (2C, 9C) bf16  [update_s; reset_s]
                               wc ( C, 9C) bf16  tilde_s * BN scale
        refs[2+4L]           out block (1, C, L) f32
        scratch              slab_x (9C, L) f32, slab_s (9C, L) f32,
                             per-layer GRU state (C, L) f32
    """
    x_ref, m_ref = refs[0], refs[1]
    w_refs = refs[2:2 + 4 * n_layers]
    o_ref = refs[2 + 4 * n_layers]
    slab_x, slab_s = refs[3 + 4 * n_layers], refs[4 + 4 * n_layers]
    state_refs = refs[5 + 4 * n_layers:]

    t = pl.program_id(0)

    # States persist in VMEM scratch across the (sequential) time grid.
    @pl.when(t == 0)
    def _init():
        for st in state_refs:
            st[...] = jnp.zeros_like(st)

    def shift_lanes(img, off):
        # out[:, q] = img[:, q + off] if 0 <= q+off < L else 0   (static shift)
        if off == 0:
            return img
        pad = jnp.zeros((C, abs(off)), jnp.float32)
        if off > 0:
            return jnp.concatenate([img[:, off:], pad], axis=1)
        return jnp.concatenate([pad, img[:, :off]], axis=1)

    def fill_slab(slab_ref, img):
        # Transposed im2col: row block k holds tap (dy, dx) for all C channels,
        # masked so out-of-image (zero-padding) positions contribute 0.  Every
        # store is an aligned, lane-dense (C, L) block.
        for k, (dy, dx) in enumerate(_TAPS):
            rows = slice(k * C, (k + 1) * C)
            if dy == 0 and dx == 0:
                slab_ref[rows, :] = img
            else:
                tap = shift_lanes(img, dy * W + dx)
                slab_ref[rows, :] = tap * m_ref[k:k + 1, :]

    def mm(w_ref, slab_ref):
        # MXU matmul, bf16 inputs / f32 accumulation; result is lane-dense
        # (output channels on sublanes, all B*H*W pixels on lanes).
        return jnp.dot(w_ref[...], slab_ref[...].astype(jnp.bfloat16),
                       preferred_element_type=jnp.float32)

    x_img = x_ref[0]                                    # (C, L) f32
    for l in range(n_layers):
        wa_ref, ba_ref, wb_ref, wc_ref = w_refs[4 * l:4 * l + 4]
        st_ref = state_refs[l]
        s = st_ref[...]                                 # (C, L) f32

        fill_slab(slab_x, x_img)
        fill_slab(slab_s, s)

        a = mm(wa_ref, slab_x) + ba_ref[...]            # (3C, L): x-side of all 3 convs
        g = mm(wb_ref, slab_s)                          # (2C, L): s-side of the gates
        u = jax.nn.sigmoid(a[:C] + g[:C])               # update gate
        r = jax.nn.sigmoid(a[C:2 * C] + g[C:2 * C])     # reset gate

        fill_slab(slab_s, (1.0 - r) * s)                # reset-modulated state taps
        tilde = jnp.maximum(a[2 * C:] + mm(wc_ref, slab_s), 0.0)   # ReLU(BN(conv))

        new_s = (1.0 - u) * s + u * tilde
        st_ref[...] = new_s
        x_img = new_s                                   # input to next GRU layer

    o_ref[0] = x_img                                    # last layer's state at t


# ----------------------------------------------------------------------------
# Wrapper: one pallas_call for the whole stacked-GRU forward
# ----------------------------------------------------------------------------
def _tap_masks(B, H, W):
    """(9, B*H*W) 0/1 masks: tap (dy,dx) valid at pixel (h,w) iff in-image."""
    h = jnp.arange(H)
    w = jnp.arange(W)
    rows = []
    for dy, dx in _TAPS:
        ok = ((h + dy >= 0) & (h + dy < H))[:, None] & \
             ((w + dx >= 0) & (w + dx < W))[None, :]
        rows.append(jnp.tile(ok.reshape(1, H * W), (B, 1)).reshape(B * H * W))
    return jnp.stack(rows).astype(jnp.float32)


def spatial_gru_stack(x, params):
    """x: (B, T, C, H, W) f32 -> (B, T, C, H, W) f32."""
    B, T, C, H, W = x.shape
    n_layers = len(params)
    L = B * H * W

    # Channels on sublanes, pixels (batch-major, then h, then w) on lanes.
    x_t = jnp.transpose(x, (1, 2, 0, 3, 4)).reshape(T, C, L)
    masks = _tap_masks(B, H, W)

    flat_w = []
    in_specs = [pl.BlockSpec((1, C, L), lambda t: (t, 0, 0)),
                pl.BlockSpec((9, L), lambda t: (0, 0))]
    for p in params:
        for nm in ("wa", "ba", "wb", "wc"):
            a = p[nm]
            flat_w.append(a)
            in_specs.append(pl.BlockSpec(a.shape, lambda t: (0, 0)))

    kern = functools.partial(_gru_stack_kernel, C=C, W=W, L=L,
                             n_layers=n_layers)

    out = pl.pallas_call(
        kern,
        out_shape=jax.ShapeDtypeStruct((T, C, L), jnp.float32),
        grid=(T,),
        in_specs=in_specs,
        out_specs=pl.BlockSpec((1, C, L), lambda t: (t, 0, 0)),
        scratch_shapes=(
            [pltpu.VMEM((9 * C, L), jnp.float32),     # im2col slab: x taps
             pltpu.VMEM((9 * C, L), jnp.float32)]     # im2col slab: state taps
            + [pltpu.VMEM((C, L), jnp.float32)        # per-layer GRU state
               for _ in range(n_layers)]),
        compiler_params=pltpu.CompilerParams(
            dimension_semantics=("arbitrary",)),      # time recurrence: sequential
    )(x_t, masks, *flat_w)

    out = out.reshape(T, C, B, H, W)
    return jnp.transpose(out, (2, 0, 1, 3, 4))        # back to (B, T, C, H, W)


def temporal_model_forward(x, params, *, name="gru"):
    """TemporalModel.forward.  x: (B, T, C, H, W)."""
    if name == "gru":
        return spatial_gru_stack(x, params)
    if name == "identity":
        return x
    # TODO(synk): 'temporal_block' path needs TemporalBlock / Bottleneck3D /
    # pyramid pooling, which are not defined in the reference source.
    raise NotImplementedError("temporal_block path not implemented")


# ----------------------------------------------------------------------------
# Deterministic parameter init (conv weights + folded eval-mode BatchNorm),
# pre-packed into the (Cout, 9*Cin) lhs layout used by the kernel.
# ----------------------------------------------------------------------------
def init_spatial_gru_stack_params(key, channels, n_layers=3, eps=1e-5):
    C = channels
    params = []
    for lkey in jax.random.split(key, n_layers):
        k = jax.random.split(lkey, 8)
        bound = 1.0 / float((9 * 2 * C) ** 0.5)

        def u(kk, shape):
            return jax.random.uniform(kk, shape, jnp.float32, -bound, bound)

        # conv weights over the concatenated [x, state] input: (tap, ci, co)
        wu, bu = u(k[0], (9, 2 * C, C)), u(k[1], (C,))
        wr, br = u(k[2], (9, 2 * C, C)), u(k[3], (C,))
        wt = u(k[4], (9, 2 * C, C))                    # tilde conv, no bias
        gamma = 1.0 + 0.1 * jax.random.normal(k[5], (C,), jnp.float32)
        beta = 0.1 * jax.random.normal(k[6], (C,), jnp.float32)
        mean = jnp.zeros((C,), jnp.float32)
        var = jnp.ones((C,), jnp.float32)
        scale = gamma / jnp.sqrt(var + eps)            # fold eval-mode BN
        shift = beta - mean * scale

        def lhs(w, part):
            # (9, 2C, Cout) -> (Cout, 9C) with column index = tap*C + ci
            ws = w[:, :C, :] if part == "x" else w[:, C:, :]
            return jnp.transpose(ws, (2, 0, 1)).reshape(C, 9 * C)

        wa = jnp.concatenate([lhs(wu, "x"), lhs(wr, "x"),
                              lhs(wt, "x") * scale[:, None]], axis=0)   # (3C, 9C)
        ba = jnp.concatenate([bu, br, shift])[:, None]                  # (3C, 1)
        wb = jnp.concatenate([lhs(wu, "s"), lhs(wr, "s")], axis=0)      # (2C, 9C)
        wc = lhs(wt, "s") * scale[:, None]                              # (C, 9C)

        params.append(dict(wa=wa.astype(jnp.bfloat16), ba=ba,
                           wb=wb.astype(jnp.bfloat16),
                           wc=wc.astype(jnp.bfloat16)))
    return params


# ----------------------------------------------------------------------------
# Pure-JAX reference (explicit pad + im2col) with the same packed weights.
# ----------------------------------------------------------------------------
def _gru_stack_reference(x, params):
    B, T, C, H, W = x.shape

    def taps(img):                                     # (B,C,H,W) -> (B,9C,H,W)
        p = jnp.pad(img, ((0, 0), (0, 0), (1, 1), (1, 1)))
        cols = [p[:, :, 1 + dy:1 + dy + H, 1 + dx:1 + dx + W]
                for dy, dx in _TAPS]
        return jnp.concatenate(cols, axis=1)

    states = [jnp.zeros((B, C, H, W), jnp.float32) for _ in params]
    outs = []
    for t in range(T):
        inp = x[:, t]
        for l, p in enumerate(params):
            wa = p["wa"].astype(jnp.float32)
            wb = p["wb"].astype(jnp.float32)
            wc = p["wc"].astype(jnp.float32)
            ba = p["ba"][:, 0]
            s = states[l]
            a = jnp.einsum("ok,bkhw->bohw", wa, taps(inp)) \
                + ba[None, :, None, None]
            g = jnp.einsum("ok,bkhw->bohw", wb, taps(s))
            uu = jax.nn.sigmoid(a[:, :C] + g[:, :C])
            rr = jax.nn.sigmoid(a[:, C:2 * C] + g[:, C:2 * C])
            cc = jnp.einsum("ok,bkhw->bohw", wc, taps((1.0 - rr) * s))
            tilde = jnp.maximum(a[:, 2 * C:] + cc, 0.0)
            s = (1.0 - uu) * s + uu * tilde
            states[l] = s
            inp = s
        outs.append(inp)
    return jnp.stack(outs, axis=1)                     # (B, T, C, H, W)


# ----------------------------------------------------------------------------
if __name__ == "__main__":
    B, T, C, H, W = 2, 4, 8, 16, 16          # TemporalModel(name='gru'), small

    key = jax.random.PRNGKey(0)
    k_x, k_p = jax.random.split(key)
    x = jax.random.normal(k_x, (B, T, C, H, W), jnp.float32)
    params = init_spatial_gru_stack_params(k_p, C, n_layers=3)

    fwd = jax.jit(functools.partial(temporal_model_forward, name="gru"))
    out = fwd(x, params)
    jax.block_until_ready(out)

    assert out.shape == (B, T, C, H, W)
    assert bool(jnp.all(jnp.isfinite(out)))

    # Correctness check against a plain-JAX pad+im2col reference (bf16 matmul
    # operands in the kernel -> loose tolerance).
    ref = jax.jit(_gru_stack_reference)(x, params)
    jax.block_until_ready(ref)
    max_err = float(jnp.max(jnp.abs(out - ref)))
    assert max_err < 0.1, f"kernel/reference mismatch: max abs err {max_err}"

    print("KERNEL_OK")
</pallas_src>

<mosaic_0001>
module attributes {stable_mosaic.version = 11 : i64} {
  func.func @_gru_stack_kernel(%arg0: i32, %arg1: memref<1x8x512xf32, #tpu.memory_space<vmem>>, %arg2: memref<9x512xf32, #tpu.memory_space<vmem>>, %arg3: memref<24x72xbf16, #tpu.memory_space<vmem>>, %arg4: memref<24x1xf32, #tpu.memory_space<vmem>>, %arg5: memref<16x72xbf16, #tpu.memory_space<vmem>>, %arg6: memref<8x72xbf16, #tpu.memory_space<vmem>>, %arg7: memref<24x72xbf16, #tpu.memory_space<vmem>>, %arg8: memref<24x1xf32, #tpu.memory_space<vmem>>, %arg9: memref<16x72xbf16, #tpu.memory_space<vmem>>, %arg10: memref<8x72xbf16, #tpu.memory_space<vmem>>, %arg11: memref<24x72xbf16, #tpu.memory_space<vmem>>, %arg12: memref<24x1xf32, #tpu.memory_space<vmem>>, %arg13: memref<16x72xbf16, #tpu.memory_space<vmem>>, %arg14: memref<8x72xbf16, #tpu.memory_space<vmem>>, %arg15: memref<1x8x512xf32, #tpu.memory_space<vmem>>, %arg16: memref<72x512xf32, #tpu.memory_space<vmem>>, %arg17: memref<72x512xf32, #tpu.memory_space<vmem>>, %arg18: memref<8x512xf32, #tpu.memory_space<vmem>>, %arg19: memref<8x512xf32, #tpu.memory_space<vmem>>, %arg20: memref<8x512xf32, #tpu.memory_space<vmem>>) attributes {dimension_semantics = [#tpu.dimension_semantics<arbitrary>], iteration_bounds = array<i64: 4>, scalar_prefetch = 0 : i64, scratch_operands = 5 : i64, tpu.core_type = #tpu.core_type<tc>, window_params = [{transform_indices = @transform_0, window_bounds = array<i64: 1, 8, 512>}, {pipeline_mode = #tpu.pipeline_mode<synchronous>, transform_indices = @transform_1, window_bounds = array<i64: 9, 512>}, {pipeline_mode = #tpu.pipeline_mode<synchronous>, transform_indices = @transform_2, window_bounds = array<i64: 24, 72>}, {pipeline_mode = #tpu.pipeline_mode<synchronous>, transform_indices = @transform_3, window_bounds = array<i64: 24, 1>}, {pipeline_mode = #tpu.pipeline_mode<synchronous>, transform_indices = @transform_4, window_bounds = array<i64: 16, 72>}, {pipeline_mode = #tpu.pipeline_mode<synchronous>, transform_indices = @transform_5, window_bounds = array<i64: 8, 72>}, {pipeline_mode = #tpu.pipeline_mode<synchronous>, transform_indices = @transform_6, window_bounds = array<i64: 24, 72>}, {pipeline_mode = #tpu.pipeline_mode<synchronous>, transform_indices = @transform_7, window_bounds = array<i64: 24, 1>}, {pipeline_mode = #tpu.pipeline_mode<synchronous>, transform_indices = @transform_8, window_bounds = array<i64: 16, 72>}, {pipeline_mode = #tpu.pipeline_mode<synchronous>, transform_indices = @transform_9, window_bounds = array<i64: 8, 72>}, {pipeline_mode = #tpu.pipeline_mode<synchronous>, transform_indices = @transform_10, window_bounds = array<i64: 24, 72>}, {pipeline_mode = #tpu.pipeline_mode<synchronous>, transform_indices = @transform_11, window_bounds = array<i64: 24, 1>}, {pipeline_mode = #tpu.pipeline_mode<synchronous>, transform_indices = @transform_12, window_bounds = array<i64: 16, 72>}, {pipeline_mode = #tpu.pipeline_mode<synchronous>, transform_indices = @transform_13, window_bounds = array<i64: 8, 72>}, {transform_indices = @transform_14, window_bounds = array<i64: 1, 8, 512>}]} {
    %c0_i32 = arith.constant 0 : i32
    %0 = arith.cmpi eq, %arg0, %c0_i32 : i32
    %1 = arith.extui %0 : i1 to i32
    %c0_i32_0 = arith.constant 0 : i32
    %2 = arith.cmpi ne, %1, %c0_i32_0 : i32
    scf.if %2 {
      %cst_447 = arith.constant 0.000000e+00 : f32
      %656 = vector.broadcast %cst_447 : f32 to vector<8x512xf32>
      %c0_448 = arith.constant 0 : index
      %c0_449 = arith.constant 0 : index
      %657 = vector.load %arg18[%c0_448, %c0_449] : memref<8x512xf32, #tpu.memory_space<vmem>>, vector<8x512xf32>
      tpu.vector_store %arg18[%c0_448, %c0_449], %656 {strides = array<i32>} : memref<8x512xf32, #tpu.memory_space<vmem>>, vector<8x512xf32>,
      %cst_450 = arith.constant 0.000000e+00 : f32
      %658 = vector.broadcast %cst_450 : f32 to vector<8x512xf32>
      %c0_451 = arith.constant 0 : index
      %c0_452 = arith.constant 0 : index
      %659 = vector.load %arg19[%c0_451, %c0_452] : memref<8x512xf32, #tpu.memory_space<vmem>>, vector<8x512xf32>
      tpu.vector_store %arg19[%c0_451, %c0_452], %658 {strides = array<i32>} : memref<8x512xf32, #tpu.memory_space<vmem>>, vector<8x512xf32>,
      %cst_453 = arith.constant 0.000000e+00 : f32
      %660 = vector.broadcast %cst_453 : f32 to vector<8x512xf32>
      %c0_454 = arith.constant 0 : index
      %c0_455 = arith.constant 0 : index
      %661 = vector.load %arg20[%c0_454, %c0_455] : memref<8x512xf32, #tpu.memory_space<vmem>>, vector<8x512xf32>
      tpu.vector_store %arg20[%c0_454, %c0_455], %660 {strides = array<i32>} : memref<8x512xf32, #tpu.memory_space<vmem>>, vector<8x512xf32>,
    } else {
    }
    %c0 = arith.constant 0 : index
    %c0_1 = arith.constant 0 : index
    %c0_2 = arith.constant 0 : index
    %3 = vector.load %arg1[%c0, %c0_1, %c0_2] : memref<1x8x512xf32, #tpu.memory_space<vmem>>, vector<1x8x512xf32>
    %4 = vector.shape_cast %3 : vector<1x8x512xf32> to vector<8x512xf32>
    %c0_3 = arith.constant 0 : index
    %c0_4 = arith.constant 0 : index
    %5 = vector.load %arg18[%c0_3, %c0_4] : memref<8x512xf32, #tpu.memory_space<vmem>>, vector<8x512xf32>
    %cst = arith.constant 0.000000e+00 : f32
    %6 = vector.broadcast %cst : f32 to vector<8x17xf32>
    %7 = vector.extract_strided_slice %4 {offsets = [0, 0], sizes = [8, 495], strides = [1, 1]} : vector<8x512xf32> to vector<8x495xf32>
    %8 = tpu.concatenate %6, %7 in 1 : vector<8x17xf32>, vector<8x495xf32> -> vector<8x512xf32>
    %c0_5 = arith.constant 0 : index
    %c0_6 = arith.constant 0 : index
    %9 = vector.load %arg2[%c0_5, %c0_6] : memref<9x512xf32, #tpu.memory_space<vmem>>, vector<1x512xf32>
    %10 = vector.broadcast %9 : vector<1x512xf32> to vector<8x512xf32>
    %11 = arith.mulf %8, %10 : vector<8x512xf32>
    %c0_7 = arith.constant 0 : index
    %c0_8 = arith.constant 0 : index
    %12 = vector.load %arg16[%c0_7, %c0_8] : memref<72x512xf32, #tpu.memory_space<vmem>>, vector<8x512xf32>
    tpu.vector_store %arg16[%c0_7, %c0_8], %11 {strides = array<i32>} : memref<72x512xf32, #tpu.memory_space<vmem>>, vector<8x512xf32>,
    %cst_9 = arith.constant 0.000000e+00 : f32
    %13 = vector.broadcast %cst_9 : f32 to vector<8x16xf32>
    %14 = vector.extract_strided_slice %4 {offsets = [0, 0], sizes = [8, 496], strides = [1, 1]} : vector<8x512xf32> to vector<8x496xf32>
    %15 = tpu.concatenate %13, %14 in 1 : vector<8x16xf32>, vector<8x496xf32> -> vector<8x512xf32>
    %c1 = arith.constant 1 : index
    %c0_10 = arith.constant 0 : index
    %16 = vector.load %arg2[%c1, %c0_10] : memref<9x512xf32, #tpu.memory_space<vmem>>, vector<1x512xf32>
    %17 = vector.broadcast %16 : vector<1x512xf32> to vector<8x512xf32>
    %18 = arith.mulf %15, %17 : vector<8x512xf32>
    %c8 = arith.constant 8 : index
    %c0_11 = arith.constant 0 : index
    %19 = vector.load %arg16[%c8, %c0_11] : memref<72x512xf32, #tpu.memory_space<vmem>>, vector<8x512xf32>
    tpu.vector_store %arg16[%c8, %c0_11], %18 {strides = array<i32>} : memref<72x512xf32, #tpu.memory_space<vmem>>, vector<8x512xf32>,
    %cst_12 = arith.constant 0.000000e+00 : f32
    %20 = vector.broadcast %cst_12 : f32 to vector<8x15xf32>
    %21 = vector.extract_strided_slice %4 {offsets = [0, 0], sizes = [8, 497], strides = [1, 1]} : vector<8x512xf32> to vector<8x497xf32>
    %22 = tpu.concatenate %20, %21 in 1 : vector<8x15xf32>, vector<8x497xf32> -> vector<8x512xf32>
    %c2 = arith.constant 2 : index
    %c0_13 = arith.constant 0 : index
    %23 = vector.load %arg2[%c2, %c0_13] : memref<9x512xf32, #tpu.memory_space<vmem>>, vector<1x512xf32>
    %24 = vector.broadcast %23 : vector<1x512xf32> to vector<8x512xf32>
    %25 = arith.mulf %22, %24 : vector<8x512xf32>
    %c16 = arith.constant 16 : index
    %c0_14 = arith.constant 0 : index
    %26 = vector.load %arg16[%c16, %c0_14] : memref<72x512xf32, #tpu.memory_space<vmem>>, vector<8x512xf32>
    tpu.vector_store %arg16[%c16, %c0_14], %25 {strides = array<i32>} : memref<72x512xf32, #tpu.memory_space<vmem>>, vector<8x512xf32>,
    %cst_15 = arith.constant 0.000000e+00 : f32
    %27 = vector.broadcast %cst_15 : f32 to vector<8x1xf32>
    %28 = vector.extract_strided_slice %4 {offsets = [0, 0], sizes = [8, 511], strides = [1, 1]} : vector<8x512xf32> to vector<8x511xf32>
    %29 = tpu.concatenate %27, %28 in 1 : vector<8x1xf32>, vector<8x511xf32> -> vector<8x512xf32>
    %c3 = arith.constant 3 : index
    %c0_16 = arith.constant 0 : index
    %30 = vector.load %arg2[%c3, %c0_16] : memref<9x512xf32, #tpu.memory_space<vmem>>, vector<1x512xf32>
    %31 = vector.broadcast %30 : vector<1x512xf32> to vector<8x512xf32>
    %32 = arith.mulf %29, %31 : vector<8x512xf32>
    %c24 = arith.constant 24 : index
    %c0_17 = arith.constant 0 : index
    %33 = vector.load %arg16[%c24, %c0_17] : memref<72x512xf32, #tpu.memory_space<vmem>>, vector<8x512xf32>
    tpu.vector_store %arg16[%c24, %c0_17], %32 {strides = array<i32>} : memref<72x512xf32, #tpu.memory_space<vmem>>, vector<8x512xf32>,
    %c32 = arith.constant 32 : index
    %c0_18 = arith.constant 0 : index
    %34 = vector.load %arg16[%c32, %c0_18] : memref<72x512xf32, #tpu.memory_space<vmem>>, vector<8x512xf32>
    tpu.vector_store %arg16[%c32, %c0_18], %4 {strides = array<i32>} : memref<72x512xf32, #tpu.memory_space<vmem>>, vector<8x512xf32>,
    %cst_19 = arith.constant 0.000000e+00 : f32
    %35 = vector.broadcast %cst_19 : f32 to vector<8x1xf32>
    %36 = vector.extract_strided_slice %4 {offsets = [0, 1], sizes = [8, 511], strides = [1, 1]} : vector<8x512xf32> to vector<8x511xf32>
    %37 = tpu.concatenate %36, %35 in 1 : vector<8x511xf32>, vector<8x1xf32> -> vector<8x512xf32>
    %c5 = arith.constant 5 : index
    %c0_20 = arith.constant 0 : index
    %38 = vector.load %arg2[%c5, %c0_20] : memref<9x512xf32, #tpu.memory_space<vmem>>, vector<1x512xf32>
    %39 = vector.broadcast %38 : vector<1x512xf32> to vector<8x512xf32>
    %40 = arith.mulf %37, %39 : vector<8x512xf32>
    %c40 = arith.constant 40 : index
    %c0_21 = arith.constant 0 : index
    %41 = vector.load %arg16[%c40, %c0_21] : memref<72x512xf32, #tpu.memory_space<vmem>>, vector<8x512xf32>
    tpu.vector_store %arg16[%c40, %c0_21], %40 {strides = array<i32>} : memref<72x512xf32, #tpu.memory_space<vmem>>, vector<8x512xf32>,
    %cst_22 = arith.constant 0.000000e+00 : f32
    %42 = vector.broadcast %cst_22 : f32 to vector<8x15xf32>
    %43 = vector.extract_strided_slice %4 {offsets = [0, 15], sizes = [8, 497], strides = [1, 1]} : vector<8x512xf32> to vector<8x497xf32>
    %44 = tpu.concatenate %43, %42 in 1 : vector<8x497xf32>, vector<8x15xf32> -> vector<8x512xf32>
    %c6 = arith.constant 6 : index
    %c0_23 = arith.constant 0 : index
    %45 = vector.load %arg2[%c6, %c0_23] : memref<9x512xf32, #tpu.memory_space<vmem>>, vector<1x512xf32>
    %46 = vector.broadcast %45 : vector<1x512xf32> to vector<8x512xf32>
    %47 = arith.mulf %44, %46 : vector<8x512xf32>
    %c48 = arith.constant 48 : index
    %c0_24 = arith.constant 0 : index
    %48 = vector.load %arg16[%c48, %c0_24] : memref<72x512xf32, #tpu.memory_space<vmem>>, vector<8x512xf32>
    tpu.vector_store %arg16[%c48, %c0_24], %47 {strides = array<i32>} : memref<72x512xf32, #tpu.memory_space<vmem>>, vector<8x512xf32>,
    %cst_25 = arith.constant 0.000000e+00 : f32
    %49 = vector.broadcast %cst_25 : f32 to vector<8x16xf32>
    %50 = vector.extract_strided_slice %4 {offsets = [0, 16], sizes = [8, 496], strides = [1, 1]} : vector<8x512xf32> to vector<8x496xf32>
    %51 = tpu.concatenate %50, %49 in 1 : vector<8x496xf32>, vector<8x16xf32> -> vector<8x512xf32>
    %c7 = arith.constant 7 : index
    %c0_26 = arith.constant 0 : index
    %52 = vector.load %arg2[%c7, %c0_26] : memref<9x512xf32, #tpu.memory_space<vmem>>, vector<1x512xf32>
    %53 = vector.broadcast %52 : vector<1x512xf32> to vector<8x512xf32>
    %54 = arith.mulf %51, %53 : vector<8x512xf32>
    %c56 = arith.constant 56 : index
    %c0_27 = arith.constant 0 : index
    %55 = vector.load %arg16[%c56, %c0_27] : memref<72x512xf32, #tpu.memory_space<vmem>>, vector<8x512xf32>
    tpu.vector_store %arg16[%c56, %c0_27], %54 {strides = array<i32>} : memref<72x512xf32, #tpu.memory_space<vmem>>, vector<8x512xf32>,
    %cst_28 = arith.constant 0.000000e+00 : f32
    %56 = vector.broadcast %cst_28 : f32 to vector<8x17xf32>
    %57 = vector.extract_strided_slice %4 {offsets = [0, 17], sizes = [8, 495], strides = [1, 1]} : vector<8x512xf32> to vector<8x495xf32>
    %58 = tpu.concatenate %57, %56 in 1 : vector<8x495xf32>, vector<8x17xf32> -> vector<8x512xf32>
    %c8_29 = arith.constant 8 : index
    %c0_30 = arith.constant 0 : index
    %59 = vector.load %arg2[%c8_29, %c0_30] : memref<9x512xf32, #tpu.memory_space<vmem>>, vector<1x512xf32>
    %60 = vector.broadcast %59 : vector<1x512xf32> to vector<8x512xf32>
    %61 = arith.mulf %58, %60 : vector<8x512xf32>
    %c64 = arith.constant 64 : index
    %c0_31 = arith.constant 0 : index
    %62 = vector.load %arg16[%c64, %c0_31] : memref<72x512xf32, #tpu.memory_space<vmem>>, vector<8x512xf32>
    tpu.vector_store %arg16[%c64, %c0_31], %61 {strides = array<i32>} : memref<72x512xf32, #tpu.memory_space<vmem>>, vector<8x512xf32>,
    %cst_32 = arith.constant 0.000000e+00 : f32
    %63 = vector.broadcast %cst_32 : f32 to vector<8x17xf32>
    %64 = vector.extract_strided_slice %5 {offsets = [0, 0], sizes = [8, 495], strides = [1, 1]} : vector<8x512xf32> to vector<8x495xf32>
    %65 = tpu.concatenate %63, %64 in 1 : vector<8x17xf32>, vector<8x495xf32> -> vector<8x512xf32>
    %c0_33 = arith.constant 0 : index
    %c0_34 = arith.constant 0 : index
    %66 = vector.load %arg2[%c0_33, %c0_34] : memref<9x512xf32, #tpu.memory_space<vmem>>, vector<1x512xf32>
    %67 = vector.broadcast %66 : vector<1x512xf32> to vector<8x512xf32>
    %68 = arith.mulf %65, %67 : vector<8x512xf32>
    %c0_35 = arith.constant 0 : index
    %c0_36 = arith.constant 0 : index
    %69 = vector.load %arg17[%c0_35, %c0_36] : memref<72x512xf32, #tpu.memory_space<vmem>>, vector<8x512xf32>
    tpu.vector_store %arg17[%c0_35, %c0_36], %68 {strides = array<i32>} : memref<72x512xf32, #tpu.memory_space<vmem>>, vector<8x512xf32>,
    %cst_37 = arith.constant 0.000000e+00 : f32
    %70 = vector.broadcast %cst_37 : f32 to vector<8x16xf32>
    %71 = vector.extract_strided_slice %5 {offsets = [0, 0], sizes = [8, 496], strides = [1, 1]} : vector<8x512xf32> to vector<8x496xf32>
    %72 = tpu.concatenate %70, %71 in 1 : vector<8x16xf32>, vector<8x496xf32> -> vector<8x512xf32>
    %c1_38 = arith.constant 1 : index
    %c0_39 = arith.constant 0 : index
    %73 = vector.load %arg2[%c1_38, %c0_39] : memref<9x512xf32, #tpu.memory_space<vmem>>, vector<1x512xf32>
    %74 = vector.broadcast %73 : vector<1x512xf32> to vector<8x512xf32>
    %75 = arith.mulf %72, %74 : vector<8x512xf32>
    %c8_40 = arith.constant 8 : index
    %c0_41 = arith.constant 0 : index
    %76 = vector.load %arg17[%c8_40, %c0_41] : memref<72x512xf32, #tpu.memory_space<vmem>>, vector<8x512xf32>
    tpu.vector_store %arg17[%c8_40, %c0_41], %75 {strides = array<i32>} : memref<72x512xf32, #tpu.memory_space<vmem>>, vector<8x512xf32>,
    %cst_42 = arith.constant 0.000000e+00 : f32
    %77 = vector.broadcast %cst_42 : f32 to vector<8x15xf32>
    %78 = vector.extract_strided_slice %5 {offsets = [0, 0], sizes = [8, 497], strides = [1, 1]} : vector<8x512xf32> to vector<8x497xf32>
    %79 = tpu.concatenate %77, %78 in 1 : vector<8x15xf32>, vector<8x497xf32> -> vector<8x512xf32>
    %c2_43 = arith.constant 2 : index
    %c0_44 = arith.constant 0 : index
    %80 = vector.load %arg2[%c2_43, %c0_44] : memref<9x512xf32, #tpu.memory_space<vmem>>, vector<1x512xf32>
    %81 = vector.broadcast %80 : vector<1x512xf32> to vector<8x512xf32>
    %82 = arith.mulf %79, %81 : vector<8x512xf32>
    %c16_45 = arith.constant 16 : index
    %c0_46 = arith.constant 0 : index
    %83 = vector.load %arg17[%c16_45, %c0_46] : memref<72x512xf32, #tpu.memory_space<vmem>>, vector<8x512xf32>
    tpu.vector_store %arg17[%c16_45, %c0_46], %82 {strides = array<i32>} : memref<72x512xf32, #tpu.memory_space<vmem>>, vector<8x512xf32>,
    %cst_47 = arith.constant 0.000000e+00 : f32
    %84 = vector.broadcast %cst_47 : f32 to vector<8x1xf32>
    %85 = vector.extract_strided_slice %5 {offsets = [0, 0], sizes = [8, 511], strides = [1, 1]} : vector<8x512xf32> to vector<8x511xf32>
    %86 = tpu.concatenate %84, %85 in 1 : vector<8x1xf32>, vector<8x511xf32> -> vector<8x512xf32>
    %c3_48 = arith.constant 3 : index
    %c0_49 = arith.constant 0 : index
    %87 = vector.load %arg2[%c3_48, %c0_49] : memref<9x512xf32, #tpu.memory_space<vmem>>, vector<1x512xf32>
    %88 = vector.broadcast %87 : vector<1x512xf32> to vector<8x512xf32>
    %89 = arith.mulf %86, %88 : vector<8x512xf32>
    %c24_50 = arith.constant 24 : index
    %c0_51 = arith.constant 0 : index
    %90 = vector.load %arg17[%c24_50, %c0_51] : memref<72x512xf32, #tpu.memory_space<vmem>>, vector<8x512xf32>
    tpu.vector_store %arg17[%c24_50, %c0_51], %89 {strides = array<i32>} : memref<72x512xf32, #tpu.memory_space<vmem>>, vector<8x512xf32>,
    %c32_52 = arith.constant 32 : index
    %c0_53 = arith.constant 0 : index
    %91 = vector.load %arg17[%c32_52, %c0_53] : memref<72x512xf32, #tpu.memory_space<vmem>>, vector<8x512xf32>
    tpu.vector_store %arg17[%c32_52, %c0_53], %5 {strides = array<i32>} : memref<72x512xf32, #tpu.memory_space<vmem>>, vector<8x512xf32>,
    %cst_54 = arith.constant 0.000000e+00 : f32
    %92 = vector.broadcast %cst_54 : f32 to vector<8x1xf32>
    %93 = vector.extract_strided_slice %5 {offsets = [0, 1], sizes = [8, 511], strides = [1, 1]} : vector<8x512xf32> to vector<8x511xf32>
    %94 = tpu.concatenate %93, %92 in 1 : vector<8x511xf32>, vector<8x1xf32> -> vector<8x512xf32>
    %c5_55 = arith.constant 5 : index
    %c0_56 = arith.constant 0 : index
    %95 = vector.load %arg2[%c5_55, %c0_56] : memref<9x512xf32, #tpu.memory_space<vmem>>, vector<1x512xf32>
    %96 = vector.broadcast %95 : vector<1x512xf32> to vector<8x512xf32>
    %97 = arith.mulf %94, %96 : vector<8x512xf32>
    %c40_57 = arith.constant 40 : index
    %c0_58 = arith.constant 0 : index
    %98 = vector.load %arg17[%c40_57, %c0_58] : memref<72x512xf32, #tpu.memory_space<vmem>>, vector<8x512xf32>
    tpu.vector_store %arg17[%c40_57, %c0_58], %97 {strides = array<i32>} : memref<72x512xf32, #tpu.memory_space<vmem>>, vector<8x512xf32>,
    %cst_59 = arith.constant 0.000000e+00 : f32
    %99 = vector.broadcast %cst_59 : f32 to vector<8x15xf32>
    %100 = vector.extract_strided_slice %5 {offsets = [0, 15], sizes = [8, 497], strides = [1, 1]} : vector<8x512xf32> to vector<8x497xf32>
    %101 = tpu.concatenate %100, %99 in 1 : vector<8x497xf32>, vector<8x15xf32> -> vector<8x512xf32>
    %c6_60 = arith.constant 6 : index
    %c0_61 = arith.constant 0 : index
    %102 = vector.load %arg2[%c6_60, %c0_61] : memref<9x512xf32, #tpu.memory_space<vmem>>, vector<1x512xf32>
    %103 = vector.broadcast %102 : vector<1x512xf32> to vector<8x512xf32>
    %104 = arith.mulf %101, %103 : vector<8x512xf32>
    %c48_62 = arith.constant 48 : index
    %c0_63 = arith.constant 0 : index
    %105 = vector.load %arg17[%c48_62, %c0_63] : memref<72x512xf32, #tpu.memory_space<vmem>>, vector<8x512xf32>
    tpu.vector_store %arg17[%c48_62, %c0_63], %104 {strides = array<i32>} : memref<72x512xf32, #tpu.memory_space<vmem>>, vector<8x512xf32>,
    %cst_64 = arith.constant 0.000000e+00 : f32
    %106 = vector.broadcast %cst_64 : f32 to vector<8x16xf32>
    %107 = vector.extract_strided_slice %5 {offsets = [0, 16], sizes = [8, 496], strides = [1, 1]} : vector<8x512xf32> to vector<8x496xf32>
    %108 = tpu.concatenate %107, %106 in 1 : vector<8x496xf32>, vector<8x16xf32> -> vector<8x512xf32>
    %c7_65 = arith.constant 7 : index
    %c0_66 = arith.constant 0 : index
    %109 = vector.load %arg2[%c7_65, %c0_66] : memref<9x512xf32, #tpu.memory_space<vmem>>, vector<1x512xf32>
    %110 = vector.broadcast %109 : vector<1x512xf32> to vector<8x512xf32>
    %111 = arith.mulf %108, %110 : vector<8x512xf32>
    %c56_67 = arith.constant 56 : index
    %c0_68 = arith.constant 0 : index
    %112 = vector.load %arg17[%c56_67, %c0_68] : memref<72x512xf32, #tpu.memory_space<vmem>>, vector<8x512xf32>
    tpu.vector_store %arg17[%c56_67, %c0_68], %111 {strides = array<i32>} : memref<72x512xf32, #tpu.memory_space<vmem>>, vector<8x512xf32>,
    %cst_69 = arith.constant 0.000000e+00 : f32
    %113 = vector.broadcast %cst_69 : f32 to vector<8x17xf32>
    %114 = vector.extract_strided_slice %5 {offsets = [0, 17], sizes = [8, 495], strides = [1, 1]} : vector<8x512xf32> to vector<8x495xf32>
    %115 = tpu.concatenate %114, %113 in 1 : vector<8x495xf32>, vector<8x17xf32> -> vector<8x512xf32>
    %c8_70 = arith.constant 8 : index
    %c0_71 = arith.constant 0 : index
    %116 = vector.load %arg2[%c8_70, %c0_71] : memref<9x512xf32, #tpu.memory_space<vmem>>, vector<1x512xf32>
    %117 = vector.broadcast %116 : vector<1x512xf32> to vector<8x512xf32>
    %118 = arith.mulf %115, %117 : vector<8x512xf32>
    %c64_72 = arith.constant 64 : index
    %c0_73 = arith.constant 0 : index
    %119 = vector.load %arg17[%c64_72, %c0_73] : memref<72x512xf32, #tpu.memory_space<vmem>>, vector<8x512xf32>
    tpu.vector_store %arg17[%c64_72, %c0_73], %118 {strides = array<i32>} : memref<72x512xf32, #tpu.memory_space<vmem>>, vector<8x512xf32>,
    %c0_74 = arith.constant 0 : index
    %c0_75 = arith.constant 0 : index
    %120 = vector.load %arg3[%c0_74, %c0_75] : memref<24x72xbf16, #tpu.memory_space<vmem>>, vector<24x72xbf16>
    %c0_76 = arith.constant 0 : index
    %c0_77 = arith.constant 0 : index
    %121 = vector.load %arg16[%c0_76, %c0_77] : memref<72x512xf32, #tpu.memory_space<vmem>>, vector<72x512xf32>
    %122 = arith.truncf %121 : vector<72x512xf32> to vector<72x512xbf16>
    %cst_78 = arith.constant dense<0.000000e+00> : vector<24x512xf32>
    %123 = tpu.matmul %120, %122, %cst_78 {dimension_numbers = #tpu.dot_dimension_numbers<[1], [0], [0], [1], [0, 0, 1, 1], [], []>} : vector<24x72xbf16>, vector<72x512xbf16>, vector<24x512xf32> -> vector<24x512xf32>
    %c0_79 = arith.constant 0 : index
    %c0_80 = arith.constant 0 : index
    %124 = vector.load %arg4[%c0_79, %c0_80] : memref<24x1xf32, #tpu.memory_space<vmem>>, vector<24x1xf32>
    %125 = vector.broadcast %124 : vector<24x1xf32> to vector<24x512xf32>
    %126 = arith.addf %123, %125 : vector<24x512xf32>
    %c0_81 = arith.constant 0 : index
    %c0_82 = arith.constant 0 : index
    %127 = vector.load %arg5[%c0_81, %c0_82] : memref<16x72xbf16, #tpu.memory_space<vmem>>, vector<16x72xbf16>
    %c0_83 = arith.constant 0 : index
    %c0_84 = arith.constant 0 : index
    %128 = vector.load %arg17[%c0_83, %c0_84] : memref<72x512xf32, #tpu.memory_space<vmem>>, vector<72x512xf32>
    %129 = arith.truncf %128 : vector<72x512xf32> to vector<72x512xbf16>
    %cst_85 = arith.constant dense<0.000000e+00> : vector<16x512xf32>
    %130 = tpu.matmul %127, %129, %cst_85 {dimension_numbers = #tpu.dot_dimension_numbers<[1], [0], [0], [1], [0, 0, 1, 1], [], []>} : vector<16x72xbf16>, vector<72x512xbf16>, vector<16x512xf32> -> vector<16x512xf32>
    %131 = vector.extract_strided_slice %126 {offsets = [0, 0], sizes = [8, 512], strides = [1, 1]} : vector<24x512xf32> to vector<8x512xf32>
    %132 = vector.extract_strided_slice %130 {offsets = [0, 0], sizes = [8, 512], strides = [1, 1]} : vector<16x512xf32> to vector<8x512xf32>
    %133 = arith.addf %131, %132 : vector<8x512xf32>
    %134 = arith.negf %133 : vector<8x512xf32>
    %135 = math.exp %134 : vector<8x512xf32>
    %cst_86 = arith.constant 1.000000e+00 : f32
    %136 = vector.broadcast %cst_86 : f32 to vector<8x512xf32>
    %137 = arith.addf %136, %135 : vector<8x512xf32>
    %138 = arith.divf %136, %137 : vector<8x512xf32>
    %139 = vector.extract_strided_slice %126 {offsets = [8, 0], sizes = [8, 512], strides = [1, 1]} : vector<24x512xf32> to vector<8x512xf32>
    %140 = vector.extract_strided_slice %130 {offsets = [8, 0], sizes = [8, 512], strides = [1, 1]} : vector<16x512xf32> to vector<8x512xf32>
    %141 = arith.addf %139, %140 : vector<8x512xf32>
    %142 = arith.negf %141 : vector<8x512xf32>
    %143 = math.exp %142 : vector<8x512xf32>
    %cst_87 = arith.constant 1.000000e+00 : f32
    %144 = vector.broadcast %cst_87 : f32 to vector<8x512xf32>
    %145 = arith.addf %144, %143 : vector<8x512xf32>
    %146 = arith.divf %144, %145 : vector<8x512xf32>
    %cst_88 = arith.constant 1.000000e+00 : f32
    %147 = vector.broadcast %cst_88 : f32 to vector<8x512xf32>
    %148 = arith.subf %147, %146 : vector<8x512xf32>
    %149 = arith.mulf %148, %5 : vector<8x512xf32>
    %cst_89 = arith.constant 0.000000e+00 : f32
    %150 = vector.broadcast %cst_89 : f32 to vector<8x17xf32>
    %151 = vector.extract_strided_slice %149 {offsets = [0, 0], sizes = [8, 495], strides = [1, 1]} : vector<8x512xf32> to vector<8x495xf32>
    %152 = tpu.concatenate %150, %151 in 1 : vector<8x17xf32>, vector<8x495xf32> -> vector<8x512xf32>
    %c0_90 = arith.constant 0 : index
    %c0_91 = arith.constant 0 : index
    %153 = vector.load %arg2[%c0_90, %c0_91] : memref<9x512xf32, #tpu.memory_space<vmem>>, vector<1x512xf32>
    %154 = vector.broadcast %153 : vector<1x512xf32> to vector<8x512xf32>
    %155 = arith.mulf %152, %154 : vector<8x512xf32>
    %c0_92 = arith.constant 0 : index
    %c0_93 = arith.constant 0 : index
    %156 = vector.load %arg17[%c0_92, %c0_93] : memref<72x512xf32, #tpu.memory_space<vmem>>, vector<8x512xf32>
    tpu.vector_store %arg17[%c0_92, %c0_93], %155 {strides = array<i32>} : memref<72x512xf32, #tpu.memory_space<vmem>>, vector<8x512xf32>,
    %cst_94 = arith.constant 0.000000e+00 : f32
    %157 = vector.broadcast %cst_94 : f32 to vector<8x16xf32>
    %158 = vector.extract_strided_slice %149 {offsets = [0, 0], sizes = [8, 496], strides = [1, 1]} : vector<8x512xf32> to vector<8x496xf32>
    %159 = tpu.concatenate %157, %158 in 1 : vector<8x16xf32>, vector<8x496xf32> -> vector<8x512xf32>
    %c1_95 = arith.constant 1 : index
    %c0_96 = arith.constant 0 : index
    %160 = vector.load %arg2[%c1_95, %c0_96] : memref<9x512xf32, #tpu.memory_space<vmem>>, vector<1x512xf32>
    %161 = vector.broadcast %160 : vector<1x512xf32> to vector<8x512xf32>
    %162 = arith.mulf %159, %161 : vector<8x512xf32>
    %c8_97 = arith.constant 8 : index
    %c0_98 = arith.constant 0 : index
    %163 = vector.load %arg17[%c8_97, %c0_98] : memref<72x512xf32, #tpu.memory_space<vmem>>, vector<8x512xf32>
    tpu.vector_store %arg17[%c8_97, %c0_98], %162 {strides = array<i32>} : memref<72x512xf32, #tpu.memory_space<vmem>>, vector<8x512xf32>,
    %cst_99 = arith.constant 0.000000e+00 : f32
    %164 = vector.broadcast %cst_99 : f32 to vector<8x15xf32>
    %165 = vector.extract_strided_slice %149 {offsets = [0, 0], sizes = [8, 497], strides = [1, 1]} : vector<8x512xf32> to vector<8x497xf32>
    %166 = tpu.concatenate %164, %165 in 1 : vector<8x15xf32>, vector<8x497xf32> -> vector<8x512xf32>
    %c2_100 = arith.constant 2 : index
    %c0_101 = arith.constant 0 : index
    %167 = vector.load %arg2[%c2_100, %c0_101] : memref<9x512xf32, #tpu.memory_space<vmem>>, vector<1x512xf32>
    %168 = vector.broadcast %167 : vector<1x512xf32> to vector<8x512xf32>
    %169 = arith.mulf %166, %168 : vector<8x512xf32>
    %c16_102 = arith.constant 16 : index
    %c0_103 = arith.constant 0 : index
    %170 = vector.load %arg17[%c16_102, %c0_103] : memref<72x512xf32, #tpu.memory_space<vmem>>, vector<8x512xf32>
    tpu.vector_store %arg17[%c16_102, %c0_103], %169 {strides = array<i32>} : memref<72x512xf32, #tpu.memory_space<vmem>>, vector<8x512xf32>,
    %cst_104 = arith.constant 0.000000e+00 : f32
    %171 = vector.broadcast %cst_104 : f32 to vector<8x1xf32>
    %172 = vector.extract_strided_slice %149 {offsets = [0, 0], sizes = [8, 511], strides = [1, 1]} : vector<8x512xf32> to vector<8x511xf32>
    %173 = tpu.concatenate %171, %172 in 1 : vector<8x1xf32>, vector<8x511xf32> -> vector<8x512xf32>
    %c3_105 = arith.constant 3 : index
    %c0_106 = arith.constant 0 : index
    %174 = vector.load %arg2[%c3_105, %c0_106] : memref<9x512xf32, #tpu.memory_space<vmem>>, vector<1x512xf32>
    %175 = vector.broadcast %174 : vector<1x512xf32> to vector<8x512xf32>
    %176 = arith.mulf %173, %175 : vector<8x512xf32>
    %c24_107 = arith.constant 24 : index
    %c0_108 = arith.constant 0 : index
    %177 = vector.load %arg17[%c24_107, %c0_108] : memref<72x512xf32, #tpu.memory_space<vmem>>, vector<8x512xf32>
    tpu.vector_store %arg17[%c24_107, %c0_108], %176 {strides = array<i32>} : memref<72x512xf32, #tpu.memory_space<vmem>>, vector<8x512xf32>,
    %c32_109 = arith.constant 32 : index
    %c0_110 = arith.constant 0 : index
    %178 = vector.load %arg17[%c32_109, %c0_110] : memref<72x512xf32, #tpu.memory_space<vmem>>, vector<8x512xf32>
    tpu.vector_store %arg17[%c32_109, %c0_110], %149 {strides = array<i32>} : memref<72x512xf32, #tpu.memory_space<vmem>>, vector<8x512xf32>,
    %cst_111 = arith.constant 0.000000e+00 : f32
    %179 = vector.broadcast %cst_111 : f32 to vector<8x1xf32>
    %180 = vector.extract_strided_slice %149 {offsets = [0, 1], sizes = [8, 511], strides = [1, 1]} : vector<8x512xf32> to vector<8x511xf32>
    %181 = tpu.concatenate %180, %179 in 1 : vector<8x511xf32>, vector<8x1xf32> -> vector<8x512xf32>
    %c5_112 = arith.constant 5 : index
    %c0_113 = arith.constant 0 : index
    %182 = vector.load %arg2[%c5_112, %c0_113] : memref<9x512xf32, #tpu.memory_space<vmem>>, vector<1x512xf32>
    %183 = vector.broadcast %182 : vector<1x512xf32> to vector<8x512xf32>
    %184 = arith.mulf %181, %183 : vector<8x512xf32>
    %c40_114 = arith.constant 40 : index
    %c0_115 = arith.constant 0 : index
    %185 = vector.load %arg17[%c40_114, %c0_115] : memref<72x512xf32, #tpu.memory_space<vmem>>, vector<8x512xf32>
    tpu.vector_store %arg17[%c40_114, %c0_115], %184 {strides = array<i32>} : memref<72x512xf32, #tpu.memory_space<vmem>>, vector<8x512xf32>,
    %cst_116 = arith.constant 0.000000e+00 : f32
    %186 = vector.broadcast %cst_116 : f32 to vector<8x15xf32>
    %187 = vector.extract_strided_slice %149 {offsets = [0, 15], sizes = [8, 497], strides = [1, 1]} : vector<8x512xf32> to vector<8x497xf32>
    %188 = tpu.concatenate %187, %186 in 1 : vector<8x497xf32>, vector<8x15xf32> -> vector<8x512xf32>
    %c6_117 = arith.constant 6 : index
    %c0_118 = arith.constant 0 : index
    %189 = vector.load %arg2[%c6_117, %c0_118] : memref<9x512xf32, #tpu.memory_space<vmem>>, vector<1x512xf32>
    %190 = vector.broadcast %189 : vector<1x512xf32> to vector<8x512xf32>
    %191 = arith.mulf %188, %190 : vector<8x512xf32>
    %c48_119 = arith.constant 48 : index
    %c0_120 = arith.constant 0 : index
    %192 = vector.load %arg17[%c48_119, %c0_120] : memref<72x512xf32, #tpu.memory_space<vmem>>, vector<8x512xf32>
    tpu.vector_store %arg17[%c48_119, %c0_120], %191 {strides = array<i32>} : memref<72x512xf32, #tpu.memory_space<vmem>>, vector<8x512xf32>,
    %cst_121 = arith.constant 0.000000e+00 : f32
    %193 = vector.broadcast %cst_121 : f32 to vector<8x16xf32>
    %194 = vector.extract_strided_slice %149 {offsets = [0, 16], sizes = [8, 496], strides = [1, 1]} : vector<8x512xf32> to vector<8x496xf32>
    %195 = tpu.concatenate %194, %193 in 1 : vector<8x496xf32>, vector<8x16xf32> -> vector<8x512xf32>
    %c7_122 = arith.constant 7 : index
    %c0_123 = arith.constant 0 : index
    %196 = vector.load %arg2[%c7_122, %c0_123] : memref<9x512xf32, #tpu.memory_space<vmem>>, vector<1x512xf32>
    %197 = vector.broadcast %196 : vector<1x512xf32> to vector<8x512xf32>
    %198 = arith.mulf %195, %197 : vector<8x512xf32>
    %c56_124 = arith.constant 56 : index
    %c0_125 = arith.constant 0 : index
    %199 = vector.load %arg17[%c56_124, %c0_125] : memref<72x512xf32, #tpu.memory_space<vmem>>, vector<8x512xf32>
    tpu.vector_store %arg17[%c56_124, %c0_125], %198 {strides = array<i32>} : memref<72x512xf32, #tpu.memory_space<vmem>>, vector<8x512xf32>,
    %cst_126 = arith.constant 0.000000e+00 : f32
    %200 = vector.broadcast %cst_126 : f32 to vector<8x17xf32>
    %201 = vector.extract_strided_slice %149 {offsets = [0, 17], sizes = [8, 495], strides = [1, 1]} : vector<8x512xf32> to vector<8x495xf32>
    %202 = tpu.concatenate %201, %200 in 1 : vector<8x495xf32>, vector<8x17xf32> -> vector<8x512xf32>
    %c8_127 = arith.constant 8 : index
    %c0_128 = arith.constant 0 : index
    %203 = vector.load %arg2[%c8_127, %c0_128] : memref<9x512xf32, #tpu.memory_space<vmem>>, vector<1x512xf32>
    %204 = vector.broadcast %203 : vector<1x512xf32> to vector<8x512xf32>
    %205 = arith.mulf %202, %204 : vector<8x512xf32>
    %c64_129 = arith.constant 64 : index
    %c0_130 = arith.constant 0 : index
    %206 = vector.load %arg17[%c64_129, %c0_130] : memref<72x512xf32, #tpu.memory_space<vmem>>, vector<8x512xf32>
    tpu.vector_store %arg17[%c64_129, %c0_130], %205 {strides = array<i32>} : memref<72x512xf32, #tpu.memory_space<vmem>>, vector<8x512xf32>,
    %207 = vector.extract_strided_slice %126 {offsets = [16, 0], sizes = [8, 512], strides = [1, 1]} : vector<24x512xf32> to vector<8x512xf32>
    %c0_131 = arith.constant 0 : index
    %c0_132 = arith.constant 0 : index
    %208 = vector.load %arg6[%c0_131, %c0_132] : memref<8x72xbf16, #tpu.memory_space<vmem>>, vector<8x72xbf16>
    %c0_133 = arith.constant 0 : index
    %c0_134 = arith.constant 0 : index
    %209 = vector.load %arg17[%c0_133, %c0_134] : memref<72x512xf32, #tpu.memory_space<vmem>>, vector<72x512xf32>
    %210 = arith.truncf %209 : vector<72x512xf32> to vector<72x512xbf16>
    %cst_135 = arith.constant dense<0.000000e+00> : vector<8x512xf32>
    %211 = tpu.matmul %208, %210, %cst_135 {dimension_numbers = #tpu.dot_dimension_numbers<[1], [0], [0], [1], [0, 0, 1, 1], [], []>} : vector<8x72xbf16>, vector<72x512xbf16>, vector<8x512xf32> -> vector<8x512xf32>
    %212 = arith.addf %207, %211 : vector<8x512xf32>
    %cst_136 = arith.constant 0.000000e+00 : f32
    %213 = vector.broadcast %cst_136 : f32 to vector<8x512xf32>
    %214 = arith.maximumf %212, %213 : vector<8x512xf32>
    %cst_137 = arith.constant 1.000000e+00 : f32
    %215 = vector.broadcast %cst_137 : f32 to vector<8x512xf32>
    %216 = arith.subf %215, %138 : vector<8x512xf32>
    %217 = arith.mulf %216, %5 : vector<8x512xf32>
    %218 = arith.mulf %138, %214 : vector<8x512xf32>
    %219 = arith.addf %217, %218 : vector<8x512xf32>
    %c0_138 = arith.constant 0 : index
    %c0_139 = arith.constant 0 : index
    %220 = vector.load %arg18[%c0_138, %c0_139] : memref<8x512xf32, #tpu.memory_space<vmem>>, vector<8x512xf32>
    tpu.vector_store %arg18[%c0_138, %c0_139], %219 {strides = array<i32>} : memref<8x512xf32, #tpu.memory_space<vmem>>, vector<8x512xf32>,
    %c0_140 = arith.constant 0 : index
    %c0_141 = arith.constant 0 : index
    %221 = vector.load %arg19[%c0_140, %c0_141] : memref<8x512xf32, #tpu.memory_space<vmem>>, vector<8x512xf32>
    %cst_142 = arith.constant 0.000000e+00 : f32
    %222 = vector.broadcast %cst_142 : f32 to vector<8x17xf32>
    %223 = vector.extract_strided_slice %219 {offsets = [0, 0], sizes = [8, 495], strides = [1, 1]} : vector<8x512xf32> to vector<8x495xf32>
    %224 = tpu.concatenate %222, %223 in 1 : vector<8x17xf32>, vector<8x495xf32> -> vector<8x512xf32>
    %c0_143 = arith.constant 0 : index
    %c0_144 = arith.constant 0 : index
    %225 = vector.load %arg2[%c0_143, %c0_144] : memref<9x512xf32, #tpu.memory_space<vmem>>, vector<1x512xf32>
    %226 = vector.broadcast %225 : vector<1x512xf32> to vector<8x512xf32>
    %227 = arith.mulf %224, %226 : vector<8x512xf32>
    %c0_145 = arith.constant 0 : index
    %c0_146 = arith.constant 0 : index
    %228 = vector.load %arg16[%c0_145, %c0_146] : memref<72x512xf32, #tpu.memory_space<vmem>>, vector<8x512xf32>
    tpu.vector_store %arg16[%c0_145, %c0_146], %227 {strides = array<i32>} : memref<72x512xf32, #tpu.memory_space<vmem>>, vector<8x512xf32>,
    %cst_147 = arith.constant 0.000000e+00 : f32
    %229 = vector.broadcast %cst_147 : f32 to vector<8x16xf32>
    %230 = vector.extract_strided_slice %219 {offsets = [0, 0], sizes = [8, 496], strides = [1, 1]} : vector<8x512xf32> to vector<8x496xf32>
    %231 = tpu.concatenate %229, %230 in 1 : vector<8x16xf32>, vector<8x496xf32> -> vector<8x512xf32>
    %c1_148 = arith.constant 1 : index
    %c0_149 = arith.constant 0 : index
    %232 = vector.load %arg2[%c1_148, %c0_149] : memref<9x512xf32, #tpu.memory_space<vmem>>, vector<1x512xf32>
    %233 = vector.broadcast %232 : vector<1x512xf32> to vector<8x512xf32>
    %234 = arith.mulf %231, %233 : vector<8x512xf32>
    %c8_150 = arith.constant 8 : index
    %c0_151 = arith.constant 0 : index
    %235 = vector.load %arg16[%c8_150, %c0_151] : memref<72x512xf32, #tpu.memory_space<vmem>>, vector<8x512xf32>
    tpu.vector_store %arg16[%c8_150, %c0_151], %234 {strides = array<i32>} : memref<72x512xf32, #tpu.memory_space<vmem>>, vector<8x512xf32>,
    %cst_152 = arith.constant 0.000000e+00 : f32
    %236 = vector.broadcast %cst_152 : f32 to vector<8x15xf32>
    %237 = vector.extract_strided_slice %219 {offsets = [0, 0], sizes = [8, 497], strides = [1, 1]} : vector<8x512xf32> to vector<8x497xf32>
    %238 = tpu.concatenate %236, %237 in 1 : vector<8x15xf32>, vector<8x497xf32> -> vector<8x512xf32>
    %c2_153 = arith.constant 2 : index
    %c0_154 = arith.constant 0 : index
    %239 = vector.load %arg2[%c2_153, %c0_154] : memref<9x512xf32, #tpu.memory_space<vmem>>, vector<1x512xf32>
    %240 = vector.broadcast %239 : vector<1x512xf32> to vector<8x512xf32>
    %241 = arith.mulf %238, %240 : vector<8x512xf32>
    %c16_155 = arith.constant 16 : index
    %c0_156 = arith.constant 0 : index
    %242 = vector.load %arg16[%c16_155, %c0_156] : memref<72x512xf32, #tpu.memory_space<vmem>>, vector<8x512xf32>
    tpu.vector_store %arg16[%c16_155, %c0_156], %241 {strides = array<i32>} : memref<72x512xf32, #tpu.memory_space<vmem>>, vector<8x512xf32>,
    %cst_157 = arith.constant 0.000000e+00 : f32
    %243 = vector.broadcast %cst_157 : f32 to vector<8x1xf32>
    %244 = vector.extract_strided_slice %219 {offsets = [0, 0], sizes = [8, 511], strides = [1, 1]} : vector<8x512xf32> to vector<8x511xf32>
    %245 = tpu.concatenate %243, %244 in 1 : vector<8x1xf32>, vector<8x511xf32> -> vector<8x512xf32>
    %c3_158 = arith.constant 3 : index
    %c0_159 = arith.constant 0 : index
    %246 = vector.load %arg2[%c3_158, %c0_159] : memref<9x512xf32, #tpu.memory_space<vmem>>, vector<1x512xf32>
    %247 = vector.broadcast %246 : vector<1x512xf32> to vector<8x512xf32>
    %248 = arith.mulf %245, %247 : vector<8x512xf32>
    %c24_160 = arith.constant 24 : index
    %c0_161 = arith.constant 0 : index
    %249 = vector.load %arg16[%c24_160, %c0_161] : memref<72x512xf32, #tpu.memory_space<vmem>>, vector<8x512xf32>
    tpu.vector_store %arg16[%c24_160, %c0_161], %248 {strides = array<i32>} : memref<72x512xf32, #tpu.memory_space<vmem>>, vector<8x512xf32>,
    %c32_162 = arith.constant 32 : index
    %c0_163 = arith.constant 0 : index
    %250 = vector.load %arg16[%c32_162, %c0_163] : memref<72x512xf32, #tpu.memory_space<vmem>>, vector<8x512xf32>
    tpu.vector_store %arg16[%c32_162, %c0_163], %219 {strides = array<i32>} : memref<72x512xf32, #tpu.memory_space<vmem>>, vector<8x512xf32>,
    %cst_164 = arith.constant 0.000000e+00 : f32
    %251 = vector.broadcast %cst_164 : f32 to vector<8x1xf32>
    %252 = vector.extract_strided_slice %219 {offsets = [0, 1], sizes = [8, 511], strides = [1, 1]} : vector<8x512xf32> to vector<8x511xf32>
    %253 = tpu.concatenate %252, %251 in 1 : vector<8x511xf32>, vector<8x1xf32> -> vector<8x512xf32>
    %c5_165 = arith.constant 5 : index
    %c0_166 = arith.constant 0 : index
    %254 = vector.load %arg2[%c5_165, %c0_166] : memref<9x512xf32, #tpu.memory_space<vmem>>, vector<1x512xf32>
    %255 = vector.broadcast %254 : vector<1x512xf32> to vector<8x512xf32>
    %256 = arith.mulf %253, %255 : vector<8x512xf32>
    %c40_167 = arith.constant 40 : index
    %c0_168 = arith.constant 0 : index
    %257 = vector.load %arg16[%c40_167, %c0_168] : memref<72x512xf32, #tpu.memory_space<vmem>>, vector<8x512xf32>
    tpu.vector_store %arg16[%c40_167, %c0_168], %256 {strides = array<i32>} : memref<72x512xf32, #tpu.memory_space<vmem>>, vector<8x512xf32>,
    %cst_169 = arith.constant 0.000000e+00 : f32
    %258 = vector.broadcast %cst_169 : f32 to vector<8x15xf32>
    %259 = vector.extract_strided_slice %219 {offsets = [0, 15], sizes = [8, 497], strides = [1, 1]} : vector<8x512xf32> to vector<8x497xf32>
    %260 = tpu.concatenate %259, %258 in 1 : vector<8x497xf32>, vector<8x15xf32> -> vector<8x512xf32>
    %c6_170 = arith.constant 6 : index
    %c0_171 = arith.constant 0 : index
    %261 = vector.load %arg2[%c6_170, %c0_171] : memref<9x512xf32, #tpu.memory_space<vmem>>, vector<1x512xf32>
    %262 = vector.broadcast %261 : vector<1x512xf32> to vector<8x512xf32>
    %263 = arith.mulf %260, %262 : vector<8x512xf32>
    %c48_172 = arith.constant 48 : index
    %c0_173 = arith.constant 0 : index
    %264 = vector.load %arg16[%c48_172, %c0_173] : memref<72x512xf32, #tpu.memory_space<vmem>>, vector<8x512xf32>
    tpu.vector_store %arg16[%c48_172, %c0_173], %263 {strides = array<i32>} : memref<72x512xf32, #tpu.memory_space<vmem>>, vector<8x512xf32>,
    %cst_174 = arith.constant 0.000000e+00 : f32
    %265 = vector.broadcast %cst_174 : f32 to vector<8x16xf32>
    %266 = vector.extract_strided_slice %219 {offsets = [0, 16], sizes = [8, 496], strides = [1, 1]} : vector<8x512xf32> to vector<8x496xf32>
    %267 = tpu.concatenate %266, %265 in 1 : vector<8x496xf32>, vector<8x16xf32> -> vector<8x512xf32>
    %c7_175 = arith.constant 7 : index
    %c0_176 = arith.constant 0 : index
    %268 = vector.load %arg2[%c7_175, %c0_176] : memref<9x512xf32, #tpu.memory_space<vmem>>, vector<1x512xf32>
    %269 = vector.broadcast %268 : vector<1x512xf32> to vector<8x512xf32>
    %270 = arith.mulf %267, %269 : vector<8x512xf32>
    %c56_177 = arith.constant 56 : index
    %c0_178 = arith.constant 0 : index
    %271 = vector.load %arg16[%c56_177, %c0_178] : memref<72x512xf32, #tpu.memory_space<vmem>>, vector<8x512xf32>
    tpu.vector_store %arg16[%c56_177, %c0_178], %270 {strides = array<i32>} : memref<72x512xf32, #tpu.memory_space<vmem>>, vector<8x512xf32>,
    %cst_179 = arith.constant 0.000000e+00 : f32
    %272 = vector.broadcast %cst_179 : f32 to vector<8x17xf32>
    %273 = vector.extract_strided_slice %219 {offsets = [0, 17], sizes = [8, 495], strides = [1, 1]} : vector<8x512xf32> to vector<8x495xf32>
    %274 = tpu.concatenate %273, %272 in 1 : vector<8x495xf32>, vector<8x17xf32> -> vector<8x512xf32>
    %c8_180 = arith.constant 8 : index
    %c0_181 = arith.constant 0 : index
    %275 = vector.load %arg2[%c8_180, %c0_181] : memref<9x512xf32, #tpu.memory_space<vmem>>, vector<1x512xf32>
    %276 = vector.broadcast %275 : vector<1x512xf32> to vector<8x512xf32>
    %277 = arith.mulf %274, %276 : vector<8x512xf32>
    %c64_182 = arith.constant 64 : index
    %c0_183 = arith.constant 0 : index
    %278 = vector.load %arg16[%c64_182, %c0_183] : memref<72x512xf32, #tpu.memory_space<vmem>>, vector<8x512xf32>
    tpu.vector_store %arg16[%c64_182, %c0_183], %277 {strides = array<i32>} : memref<72x512xf32, #tpu.memory_space<vmem>>, vector<8x512xf32>,
    %cst_184 = arith.constant 0.000000e+00 : f32
    %279 = vector.broadcast %cst_184 : f32 to vector<8x17xf32>
    %280 = vector.extract_strided_slice %221 {offsets = [0, 0], sizes = [8, 495], strides = [1, 1]} : vector<8x512xf32> to vector<8x495xf32>
    %281 = tpu.concatenate %279, %280 in 1 : vector<8x17xf32>, vector<8x495xf32> -> vector<8x512xf32>
    %c0_185 = arith.constant 0 : index
    %c0_186 = arith.constant 0 : index
    %282 = vector.load %arg2[%c0_185, %c0_186] : memref<9x512xf32, #tpu.memory_space<vmem>>, vector<1x512xf32>
    %283 = vector.broadcast %282 : vector<1x512xf32> to vector<8x512xf32>
    %284 = arith.mulf %281, %283 : vector<8x512xf32>
    %c0_187 = arith.constant 0 : index
    %c0_188 = arith.constant 0 : index
    %285 = vector.load %arg17[%c0_187, %c0_188] : memref<72x512xf32, #tpu.memory_space<vmem>>, vector<8x512xf32>
    tpu.vector_store %arg17[%c0_187, %c0_188], %284 {strides = array<i32>} : memref<72x512xf32, #tpu.memory_space<vmem>>, vector<8x512xf32>,
    %cst_189 = arith.constant 0.000000e+00 : f32
    %286 = vector.broadcast %cst_189 : f32 to vector<8x16xf32>
    %287 = vector.extract_strided_slice %221 {offsets = [0, 0], sizes = [8, 496], strides = [1, 1]} : vector<8x512xf32> to vector<8x496xf32>
    %288 = tpu.concatenate %286, %287 in 1 : vector<8x16xf32>, vector<8x496xf32> -> vector<8x512xf32>
    %c1_190 = arith.constant 1 : index
    %c0_191 = arith.constant 0 : index
    %289 = vector.load %arg2[%c1_190, %c0_191] : memref<9x512xf32, #tpu.memory_space<vmem>>, vector<1x512xf32>
    %290 = vector.broadcast %289 : vector<1x512xf32> to vector<8x512xf32>
    %291 = arith.mulf %288, %290 : vector<8x512xf32>
    %c8_192 = arith.constant 8 : index
    %c0_193 = arith.constant 0 : index
    %292 = vector.load %arg17[%c8_192, %c0_193] : memref<72x512xf32, #tpu.memory_space<vmem>>, vector<8x512xf32>
    tpu.vector_store %arg17[%c8_192, %c0_193], %291 {strides = array<i32>} : memref<72x512xf32, #tpu.memory_space<vmem>>, vector<8x512xf32>,
    %cst_194 = arith.constant 0.000000e+00 : f32
    %293 = vector.broadcast %cst_194 : f32 to vector<8x15xf32>
    %294 = vector.extract_strided_slice %221 {offsets = [0, 0], sizes = [8, 497], strides = [1, 1]} : vector<8x512xf32> to vector<8x497xf32>
    %295 = tpu.concatenate %293, %294 in 1 : vector<8x15xf32>, vector<8x497xf32> -> vector<8x512xf32>
    %c2_195 = arith.constant 2 : index
    %c0_196 = arith.constant 0 : index
    %296 = vector.load %arg2[%c2_195, %c0_196] : memref<9x512xf32, #tpu.memory_space<vmem>>, vector<1x512xf32>
    %297 = vector.broadcast %296 : vector<1x512xf32> to vector<8x512xf32>
    %298 = arith.mulf %295, %297 : vector<8x512xf32>
    %c16_197 = arith.constant 16 : index
    %c0_198 = arith.constant 0 : index
    %299 = vector.load %arg17[%c16_197, %c0_198] : memref<72x512xf32, #tpu.memory_space<vmem>>, vector<8x512xf32>
    tpu.vector_store %arg17[%c16_197, %c0_198], %298 {strides = array<i32>} : memref<72x512xf32, #tpu.memory_space<vmem>>, vector<8x512xf32>,
    %cst_199 = arith.constant 0.000000e+00 : f32
    %300 = vector.broadcast %cst_199 : f32 to vector<8x1xf32>
    %301 = vector.extract_strided_slice %221 {offsets = [0, 0], sizes = [8, 511], strides = [1, 1]} : vector<8x512xf32> to vector<8x511xf32>
    %302 = tpu.concatenate %300, %301 in 1 : vector<8x1xf32>, vector<8x511xf32> -> vector<8x512xf32>
    %c3_200 = arith.constant 3 : index
    %c0_201 = arith.constant 0 : index
    %303 = vector.load %arg2[%c3_200, %c0_201] : memref<9x512xf32, #tpu.memory_space<vmem>>, vector<1x512xf32>
    %304 = vector.broadcast %303 : vector<1x512xf32> to vector<8x512xf32>
    %305 = arith.mulf %302, %304 : vector<8x512xf32>
    %c24_202 = arith.constant 24 : index
    %c0_203 = arith.constant 0 : index
    %306 = vector.load %arg17[%c24_202, %c0_203] : memref<72x512xf32, #tpu.memory_space<vmem>>, vector<8x512xf32>
    tpu.vector_store %arg17[%c24_202, %c0_203], %305 {strides = array<i32>} : memref<72x512xf32, #tpu.memory_space<vmem>>, vector<8x512xf32>,
    %c32_204 = arith.constant 32 : index
    %c0_205 = arith.constant 0 : index
    %307 = vector.load %arg17[%c32_204, %c0_205] : memref<72x512xf32, #tpu.memory_space<vmem>>, vector<8x512xf32>
    tpu.vector_store %arg17[%c32_204, %c0_205], %221 {strides = array<i32>} : memref<72x512xf32, #tpu.memory_space<vmem>>, vector<8x512xf32>,
    %cst_206 = arith.constant 0.000000e+00 : f32
    %308 = vector.broadcast %cst_206 : f32 to vector<8x1xf32>
    %309 = vector.extract_strided_slice %221 {offsets = [0, 1], sizes = [8, 511], strides = [1, 1]} : vector<8x512xf32> to vector<8x511xf32>
    %310 = tpu.concatenate %309, %308 in 1 : vector<8x511xf32>, vector<8x1xf32> -> vector<8x512xf32>
    %c5_207 = arith.constant 5 : index
    %c0_208 = arith.constant 0 : index
    %311 = vector.load %arg2[%c5_207, %c0_208] : memref<9x512xf32, #tpu.memory_space<vmem>>, vector<1x512xf32>
    %312 = vector.broadcast %311 : vector<1x512xf32> to vector<8x512xf32>
    %313 = arith.mulf %310, %312 : vector<8x512xf32>
    %c40_209 = arith.constant 40 : index
    %c0_210 = arith.constant 0 : index
    %314 = vector.load %arg17[%c40_209, %c0_210] : memref<72x512xf32, #tpu.memory_space<vmem>>, vector<8x512xf32>
    tpu.vector_store %arg17[%c40_209, %c0_210], %313 {strides = array<i32>} : memref<72x512xf32, #tpu.memory_space<vmem>>, vector<8x512xf32>,
    %cst_211 = arith.constant 0.000000e+00 : f32
    %315 = vector.broadcast %cst_211 : f32 to vector<8x15xf32>
    %316 = vector.extract_strided_slice %221 {offsets = [0, 15], sizes = [8, 497], strides = [1, 1]} : vector<8x512xf32> to vector<8x497xf32>
    %317 = tpu.concatenate %316, %315 in 1 : vector<8x497xf32>, vector<8x15xf32> -> vector<8x512xf32>
    %c6_212 = arith.constant 6 : index
    %c0_213 = arith.constant 0 : index
    %318 = vector.load %arg2[%c6_212, %c0_213] : memref<9x512xf32, #tpu.memory_space<vmem>>, vector<1x512xf32>
    %319 = vector.broadcast %318 : vector<1x512xf32> to vector<8x512xf32>
    %320 = arith.mulf %317, %319 : vector<8x512xf32>
    %c48_214 = arith.constant 48 : index
    %c0_215 = arith.constant 0 : index
    %321 = vector.load %arg17[%c48_214, %c0_215] : memref<72x512xf32, #tpu.memory_space<vmem>>, vector<8x512xf32>
    tpu.vector_store %arg17[%c48_214, %c0_215], %320 {strides = array<i32>} : memref<72x512xf32, #tpu.memory_space<vmem>>, vector<8x512xf32>,
    %cst_216 = arith.constant 0.000000e+00 : f32
    %322 = vector.broadcast %cst_216 : f32 to vector<8x16xf32>
    %323 = vector.extract_strided_slice %221 {offsets = [0, 16], sizes = [8, 496], strides = [1, 1]} : vector<8x512xf32> to vector<8x496xf32>
    %324 = tpu.concatenate %323, %322 in 1 : vector<8x496xf32>, vector<8x16xf32> -> vector<8x512xf32>
    %c7_217 = arith.constant 7 : index
    %c0_218 = arith.constant 0 : index
    %325 = vector.load %arg2[%c7_217, %c0_218] : memref<9x512xf32, #tpu.memory_space<vmem>>, vector<1x512xf32>
    %326 = vector.broadcast %325 : vector<1x512xf32> to vector<8x512xf32>
    %327 = arith.mulf %324, %326 : vector<8x512xf32>
    %c56_219 = arith.constant 56 : index
    %c0_220 = arith.constant 0 : index
    %328 = vector.load %arg17[%c56_219, %c0_220] : memref<72x512xf32, #tpu.memory_space<vmem>>, vector<8x512xf32>
    tpu.vector_store %arg17[%c56_219, %c0_220], %327 {strides = array<i32>} : memref<72x512xf32, #tpu.memory_space<vmem>>, vector<8x512xf32>,
    %cst_221 = arith.constant 0.000000e+00 : f32
    %329 = vector.broadcast %cst_221 : f32 to vector<8x17xf32>
    %330 = vector.extract_strided_slice %221 {offsets = [0, 17], sizes = [8, 495], strides = [1, 1]} : vector<8x512xf32> to vector<8x495xf32>
    %331 = tpu.concatenate %330, %329 in 1 : vector<8x495xf32>, vector<8x17xf32> -> vector<8x512xf32>
    %c8_222 = arith.constant 8 : index
    %c0_223 = arith.constant 0 : index
    %332 = vector.load %arg2[%c8_222, %c0_223] : memref<9x512xf32, #tpu.memory_space<vmem>>, vector<1x512xf32>
    %333 = vector.broadcast %332 : vector<1x512xf32> to vector<8x512xf32>
    %334 = arith.mulf %331, %333 : vector<8x512xf32>
    %c64_224 = arith.constant 64 : index
    %c0_225 = arith.constant 0 : index
    %335 = vector.load %arg17[%c64_224, %c0_225] : memref<72x512xf32, #tpu.memory_space<vmem>>, vector<8x512xf32>
    tpu.vector_store %arg17[%c64_224, %c0_225], %334 {strides = array<i32>} : memref<72x512xf32, #tpu.memory_space<vmem>>, vector<8x512xf32>,
    %c0_226 = arith.constant 0 : index
    %c0_227 = arith.constant 0 : index
    %336 = vector.load %arg7[%c0_226, %c0_227] : memref<24x72xbf16, #tpu.memory_space<vmem>>, vector<24x72xbf16>
    %c0_228 = arith.constant 0 : index
    %c0_229 = arith.constant 0 : index
    %337 = vector.load %arg16[%c0_228, %c0_229] : memref<72x512xf32, #tpu.memory_space<vmem>>, vector<72x512xf32>
    %338 = arith.truncf %337 : vector<72x512xf32> to vector<72x512xbf16>
    %cst_230 = arith.constant dense<0.000000e+00> : vector<24x512xf32>
    %339 = tpu.matmul %336, %338, %cst_230 {dimension_numbers = #tpu.dot_dimension_numbers<[1], [0], [0], [1], [0, 0, 1, 1], [], []>} : vector<24x72xbf16>, vector<72x512xbf16>, vector<24x512xf32> -> vector<24x512xf32>
    %c0_231 = arith.constant 0 : index
    %c0_232 = arith.constant 0 : index
    %340 = vector.load %arg8[%c0_231, %c0_232] : memref<24x1xf32, #tpu.memory_space<vmem>>, vector<24x1xf32>
    %341 = vector.broadcast %340 : vector<24x1xf32> to vector<24x512xf32>
    %342 = arith.addf %339, %341 : vector<24x512xf32>
    %c0_233 = arith.constant 0 : index
    %c0_234 = arith.constant 0 : index
    %343 = vector.load %arg9[%c0_233, %c0_234] : memref<16x72xbf16, #tpu.memory_space<vmem>>, vector<16x72xbf16>
    %c0_235 = arith.constant 0 : index
    %c0_236 = arith.constant 0 : index
    %344 = vector.load %arg17[%c0_235, %c0_236] : memref<72x512xf32, #tpu.memory_space<vmem>>, vector<72x512xf32>
    %345 = arith.truncf %344 : vector<72x512xf32> to vector<72x512xbf16>
    %cst_237 = arith.constant dense<0.000000e+00> : vector<16x512xf32>
    %346 = tpu.matmul %343, %345, %cst_237 {dimension_numbers = #tpu.dot_dimension_numbers<[1], [0], [0], [1], [0, 0, 1, 1], [], []>} : vector<16x72xbf16>, vector<72x512xbf16>, vector<16x512xf32> -> vector<16x512xf32>
    %347 = vector.extract_strided_slice %342 {offsets = [0, 0], sizes = [8, 512], strides = [1, 1]} : vector<24x512xf32> to vector<8x512xf32>
    %348 = vector.extract_strided_slice %346 {offsets = [0, 0], sizes = [8, 512], strides = [1, 1]} : vector<16x512xf32> to vector<8x512xf32>
    %349 = arith.addf %347, %348 : vector<8x512xf32>
    %350 = arith.negf %349 : vector<8x512xf32>
    %351 = math.exp %350 : vector<8x512xf32>
    %cst_238 = arith.constant 1.000000e+00 : f32
    %352 = vector.broadcast %cst_238 : f32 to vector<8x512xf32>
    %353 = arith.addf %352, %351 : vector<8x512xf32>
    %354 = arith.divf %352, %353 : vector<8x512xf32>
    %355 = vector.extract_strided_slice %342 {offsets = [8, 0], sizes = [8, 512], strides = [1, 1]} : vector<24x512xf32> to vector<8x512xf32>
    %356 = vector.extract_strided_slice %346 {offsets = [8, 0], sizes = [8, 512], strides = [1, 1]} : vector<16x512xf32> to vector<8x512xf32>
    %357 = arith.addf %355, %356 : vector<8x512xf32>
    %358 = arith.negf %357 : vector<8x512xf32>
    %359 = math.exp %358 : vector<8x512xf32>
    %cst_239 = arith.constant 1.000000e+00 : f32
    %360 = vector.broadcast %cst_239 : f32 to vector<8x512xf32>
    %361 = arith.addf %360, %359 : vector<8x512xf32>
    %362 = arith.divf %360, %361 : vector<8x512xf32>
    %cst_240 = arith.constant 1.000000e+00 : f32
    %363 = vector.broadcast %cst_240 : f32 to vector<8x512xf32>
    %364 = arith.subf %363, %362 : vector<8x512xf32>
    %365 = arith.mulf %364, %221 : vector<8x512xf32>
    %cst_241 = arith.constant 0.000000e+00 : f32
    %366 = vector.broadcast %cst_241 : f32 to vector<8x17xf32>
    %367 = vector.extract_strided_slice %365 {offsets = [0, 0], sizes = [8, 495], strides = [1, 1]} : vector<8x512xf32> to vector<8x495xf32>
    %368 = tpu.concatenate %366, %367 in 1 : vector<8x17xf32>, vector<8x495xf32> -> vector<8x512xf32>
    %c0_242 = arith.constant 0 : index
    %c0_243 = arith.constant 0 : index
    %369 = vector.load %arg2[%c0_242, %c0_243] : memref<9x512xf32, #tpu.memory_space<vmem>>, vector<1x512xf32>
    %370 = vector.broadcast %369 : vector<1x512xf32> to vector<8x512xf32>
    %371 = arith.mulf %368, %370 : vector<8x512xf32>
    %c0_244 = arith.constant 0 : index
    %c0_245 = arith.constant 0 : index
    %372 = vector.load %arg17[%c0_244, %c0_245] : memref<72x512xf32, #tpu.memory_space<vmem>>, vector<8x512xf32>
    tpu.vector_store %arg17[%c0_244, %c0_245], %371 {strides = array<i32>} : memref<72x512xf32, #tpu.memory_space<vmem>>, vector<8x512xf32>,
    %cst_246 = arith.constant 0.000000e+00 : f32
    %373 = vector.broadcast %cst_246 : f32 to vector<8x16xf32>
    %374 = vector.extract_strided_slice %365 {offsets = [0, 0], sizes = [8, 496], strides = [1, 1]} : vector<8x512xf32> to vector<8x496xf32>
    %375 = tpu.concatenate %373, %374 in 1 : vector<8x16xf32>, vector<8x496xf32> -> vector<8x512xf32>
    %c1_247 = arith.constant 1 : index
    %c0_248 = arith.constant 0 : index
    %376 = vector.load %arg2[%c1_247, %c0_248] : memref<9x512xf32, #tpu.memory_space<vmem>>, vector<1x512xf32>
    %377 = vector.broadcast %376 : vector<1x512xf32> to vector<8x512xf32>
    %378 = arith.mulf %375, %377 : vector<8x512xf32>
    %c8_249 = arith.constant 8 : index
    %c0_250 = arith.constant 0 : index
    %379 = vector.load %arg17[%c8_249, %c0_250] : memref<72x512xf32, #tpu.memory_space<vmem>>, vector<8x512xf32>
    tpu.vector_store %arg17[%c8_249, %c0_250], %378 {strides = array<i32>} : memref<72x512xf32, #tpu.memory_space<vmem>>, vector<8x512xf32>,
    %cst_251 = arith.constant 0.000000e+00 : f32
    %380 = vector.broadcast %cst_251 : f32 to vector<8x15xf32>
    %381 = vector.extract_strided_slice %365 {offsets = [0, 0], sizes = [8, 497], strides = [1, 1]} : vector<8x512xf32> to vector<8x497xf32>
    %382 = tpu.concatenate %380, %381 in 1 : vector<8x15xf32>, vector<8x497xf32> -> vector<8x512xf32>
    %c2_252 = arith.constant 2 : index
    %c0_253 = arith.constant 0 : index
    %383 = vector.load %arg2[%c2_252, %c0_253] : memref<9x512xf32, #tpu.memory_space<vmem>>, vector<1x512xf32>
    %384 = vector.broadcast %383 : vector<1x512xf32> to vector<8x512xf32>
    %385 = arith.mulf %382, %384 : vector<8x512xf32>
    %c16_254 = arith.constant 16 : index
    %c0_255 = arith.constant 0 : index
    %386 = vector.load %arg17[%c16_254, %c0_255] : memref<72x512xf32, #tpu.memory_space<vmem>>, vector<8x512xf32>
    tpu.vector_store %arg17[%c16_254, %c0_255], %385 {strides = array<i32>} : memref<72x512xf32, #tpu.memory_space<vmem>>, vector<8x512xf32>,
    %cst_256 = arith.constant 0.000000e+00 : f32
    %387 = vector.broadcast %cst_256 : f32 to vector<8x1xf32>
    %388 = vector.extract_strided_slice %365 {offsets = [0, 0], sizes = [8, 511], strides = [1, 1]} : vector<8x512xf32> to vector<8x511xf32>
    %389 = tpu.concatenate %387, %388 in 1 : vector<8x1xf32>, vector<8x511xf32> -> vector<8x512xf32>
    %c3_257 = arith.constant 3 : index
    %c0_258 = arith.constant 0 : index
    %390 = vector.load %arg2[%c3_257, %c0_258] : memref<9x512xf32, #tpu.memory_space<vmem>>, vector<1x512xf32>
    %391 = vector.broadcast %390 : vector<1x512xf32> to vector<8x512xf32>
    %392 = arith.mulf %389, %391 : vector<8x512xf32>
    %c24_259 = arith.constant 24 : index
    %c0_260 = arith.constant 0 : index
    %393 = vector.load %arg17[%c24_259, %c0_260] : memref<72x512xf32, #tpu.memory_space<vmem>>, vector<8x512xf32>
    tpu.vector_store %arg17[%c24_259, %c0_260], %392 {strides = array<i32>} : memref<72x512xf32, #tpu.memory_space<vmem>>, vector<8x512xf32>,
    %c32_261 = arith.constant 32 : index
    %c0_262 = arith.constant 0 : index
    %394 = vector.load %arg17[%c32_261, %c0_262] : memref<72x512xf32, #tpu.memory_space<vmem>>, vector<8x512xf32>
    tpu.vector_store %arg17[%c32_261, %c0_262], %365 {strides = array<i32>} : memref<72x512xf32, #tpu.memory_space<vmem>>, vector<8x512xf32>,
    %cst_263 = arith.constant 0.000000e+00 : f32
    %395 = vector.broadcast %cst_263 : f32 to vector<8x1xf32>
    %396 = vector.extract_strided_slice %365 {offsets = [0, 1], sizes = [8, 511], strides = [1, 1]} : vector<8x512xf32> to vector<8x511xf32>
    %397 = tpu.concatenate %396, %395 in 1 : vector<8x511xf32>, vector<8x1xf32> -> vector<8x512xf32>
    %c5_264 = arith.constant 5 : index
    %c0_265 = arith.constant 0 : index
    %398 = vector.load %arg2[%c5_264, %c0_265] : memref<9x512xf32, #tpu.memory_space<vmem>>, vector<1x512xf32>
    %399 = vector.broadcast %398 : vector<1x512xf32> to vector<8x512xf32>
    %400 = arith.mulf %397, %399 : vector<8x512xf32>
    %c40_266 = arith.constant 40 : index
    %c0_267 = arith.constant 0 : index
    %401 = vector.load %arg17[%c40_266, %c0_267] : memref<72x512xf32, #tpu.memory_space<vmem>>, vector<8x512xf32>
    tpu.vector_store %arg17[%c40_266, %c0_267], %400 {strides = array<i32>} : memref<72x512xf32, #tpu.memory_space<vmem>>, vector<8x512xf32>,
    %cst_268 = arith.constant 0.000000e+00 : f32
    %402 = vector.broadcast %cst_268 : f32 to vector<8x15xf32>
    %403 = vector.extract_strided_slice %365 {offsets = [0, 15], sizes = [8, 497], strides = [1, 1]} : vector<8x512xf32> to vector<8x497xf32>
    %404 = tpu.concatenate %403, %402 in 1 : vector<8x497xf32>, vector<8x15xf32> -> vector<8x512xf32>
    %c6_269 = arith.constant 6 : index
    %c0_270 = arith.constant 0 : index
    %405 = vector.load %arg2[%c6_269, %c0_270] : memref<9x512xf32, #tpu.memory_space<vmem>>, vector<1x512xf32>
    %406 = vector.broadcast %405 : vector<1x512xf32> to vector<8x512xf32>
    %407 = arith.mulf %404, %406 : vector<8x512xf32>
    %c48_271 = arith.constant 48 : index
    %c0_272 = arith.constant 0 : index
    %408 = vector.load %arg17[%c48_271, %c0_272] : memref<72x512xf32, #tpu.memory_space<vmem>>, vector<8x512xf32>
    tpu.vector_store %arg17[%c48_271, %c0_272], %407 {strides = array<i32>} : memref<72x512xf32, #tpu.memory_space<vmem>>, vector<8x512xf32>,
    %cst_273 = arith.constant 0.000000e+00 : f32
    %409 = vector.broadcast %cst_273 : f32 to vector<8x16xf32>
    %410 = vector.extract_strided_slice %365 {offsets = [0, 16], sizes = [8, 496], strides = [1, 1]} : vector<8x512xf32> to vector<8x496xf32>
    %411 = tpu.concatenate %410, %409 in 1 : vector<8x496xf32>, vector<8x16xf32> -> vector<8x512xf32>
    %c7_274 = arith.constant 7 : index
    %c0_275 = arith.constant 0 : index
    %412 = vector.load %arg2[%c7_274, %c0_275] : memref<9x512xf32, #tpu.memory_space<vmem>>, vector<1x512xf32>
    %413 = vector.broadcast %412 : vector<1x512xf32> to vector<8x512xf32>
    %414 = arith.mulf %411, %413 : vector<8x512xf32>
    %c56_276 = arith.constant 56 : index
    %c0_277 = arith.constant 0 : index
    %415 = vector.load %arg17[%c56_276, %c0_277] : memref<72x512xf32, #tpu.memory_space<vmem>>, vector<8x512xf32>
    tpu.vector_store %arg17[%c56_276, %c0_277], %414 {strides = array<i32>} : memref<72x512xf32, #tpu.memory_space<vmem>>, vector<8x512xf32>,
    %cst_278 = arith.constant 0.000000e+00 : f32
    %416 = vector.broadcast %cst_278 : f32 to vector<8x17xf32>
    %417 = vector.extract_strided_slice %365 {offsets = [0, 17], sizes = [8, 495], strides = [1, 1]} : vector<8x512xf32> to vector<8x495xf32>
    %418 = tpu.concatenate %417, %416 in 1 : vector<8x495xf32>, vector<8x17xf32> -> vector<8x512xf32>
    %c8_279 = arith.constant 8 : index
    %c0_280 = arith.constant 0 : index
    %419 = vector.load %arg2[%c8_279, %c0_280] : memref<9x512xf32, #tpu.memory_space<vmem>>, vector<1x512xf32>
    %420 = vector.broadcast %419 : vector<1x512xf32> to vector<8x512xf32>
    %421 = arith.mulf %418, %420 : vector<8x512xf32>
    %c64_281 = arith.constant 64 : index
    %c0_282 = arith.constant 0 : index
    %422 = vector.load %arg17[%c64_281, %c0_282] : memref<72x512xf32, #tpu.memory_space<vmem>>, vector<8x512xf32>
    tpu.vector_store %arg17[%c64_281, %c0_282], %421 {strides = array<i32>} : memref<72x512xf32, #tpu.memory_space<vmem>>, vector<8x512xf32>,
    %423 = vector.extract_strided_slice %342 {offsets = [16, 0], sizes = [8, 512], strides = [1, 1]} : vector<24x512xf32> to vector<8x512xf32>
    %c0_283 = arith.constant 0 : index
    %c0_284 = arith.constant 0 : index
    %424 = vector.load %arg10[%c0_283, %c0_284] : memref<8x72xbf16, #tpu.memory_space<vmem>>, vector<8x72xbf16>
    %c0_285 = arith.constant 0 : index
    %c0_286 = arith.constant 0 : index
    %425 = vector.load %arg17[%c0_285, %c0_286] : memref<72x512xf32, #tpu.memory_space<vmem>>, vector<72x512xf32>
    %426 = arith.truncf %425 : vector<72x512xf32> to vector<72x512xbf16>
    %cst_287 = arith.constant dense<0.000000e+00> : vector<8x512xf32>
    %427 = tpu.matmul %424, %426, %cst_287 {dimension_numbers = #tpu.dot_dimension_numbers<[1], [0], [0], [1], [0, 0, 1, 1], [], []>} : vector<8x72xbf16>, vector<72x512xbf16>, vector<8x512xf32> -> vector<8x512xf32>
    %428 = arith.addf %423, %427 : vector<8x512xf32>
    %cst_288 = arith.constant 0.000000e+00 : f32
    %429 = vector.broadcast %cst_288 : f32 to vector<8x512xf32>
    %430 = arith.maximumf %428, %429 : vector<8x512xf32>
    %cst_289 = arith.constant 1.000000e+00 : f32
    %431 = vector.broadcast %cst_289 : f32 to vector<8x512xf32>
    %432 = arith.subf %431, %354 : vector<8x512xf32>
    %433 = arith.mulf %432, %221 : vector<8x512xf32>
    %434 = arith.mulf %354, %430 : vector<8x512xf32>
    %435 = arith.addf %433, %434 : vector<8x512xf32>
    %c0_290 = arith.constant 0 : index
    %c0_291 = arith.constant 0 : index
    %436 = vector.load %arg19[%c0_290, %c0_291] : memref<8x512xf32, #tpu.memory_space<vmem>>, vector<8x512xf32>
    tpu.vector_store %arg19[%c0_290, %c0_291], %435 {strides = array<i32>} : memref<8x512xf32, #tpu.memory_space<vmem>>, vector<8x512xf32>,
    %c0_292 = arith.constant 0 : index
    %c0_293 = arith.constant 0 : index
    %437 = vector.load %arg20[%c0_292, %c0_293] : memref<8x512xf32, #tpu.memory_space<vmem>>, vector<8x512xf32>
    %cst_294 = arith.constant 0.000000e+00 : f32
    %438 = vector.broadcast %cst_294 : f32 to vector<8x17xf32>
    %439 = vector.extract_strided_slice %435 {offsets = [0, 0], sizes = [8, 495], strides = [1, 1]} : vector<8x512xf32> to vector<8x495xf32>
    %440 = tpu.concatenate %438, %439 in 1 : vector<8x17xf32>, vector<8x495xf32> -> vector<8x512xf32>
    %c0_295 = arith.constant 0 : index
    %c0_296 = arith.constant 0 : index
    %441 = vector.load %arg2[%c0_295, %c0_296] : memref<9x512xf32, #tpu.memory_space<vmem>>, vector<1x512xf32>
    %442 = vector.broadcast %441 : vector<1x512xf32> to vector<8x512xf32>
    %443 = arith.mulf %440, %442 : vector<8x512xf32>
    %c0_297 = arith.constant 0 : index
    %c0_298 = arith.constant 0 : index
    %444 = vector.load %arg16[%c0_297, %c0_298] : memref<72x512xf32, #tpu.memory_space<vmem>>, vector<8x512xf32>
    tpu.vector_store %arg16[%c0_297, %c0_298], %443 {strides = array<i32>} : memref<72x512xf32, #tpu.memory_space<vmem>>, vector<8x512xf32>,
    %cst_299 = arith.constant 0.000000e+00 : f32
    %445 = vector.broadcast %cst_299 : f32 to vector<8x16xf32>
    %446 = vector.extract_strided_slice %435 {offsets = [0, 0], sizes = [8, 496], strides = [1, 1]} : vector<8x512xf32> to vector<8x496xf32>
    %447 = tpu.concatenate %445, %446 in 1 : vector<8x16xf32>, vector<8x496xf32> -> vector<8x512xf32>
    %c1_300 = arith.constant 1 : index
    %c0_301 = arith.constant 0 : index
    %448 = vector.load %arg2[%c1_300, %c0_301] : memref<9x512xf32, #tpu.memory_space<vmem>>, vector<1x512xf32>
    %449 = vector.broadcast %448 : vector<1x512xf32> to vector<8x512xf32>
    %450 = arith.mulf %447, %449 : vector<8x512xf32>
    %c8_302 = arith.constant 8 : index
    %c0_303 = arith.constant 0 : index
    %451 = vector.load %arg16[%c8_302, %c0_303] : memref<72x512xf32, #tpu.memory_space<vmem>>, vector<8x512xf32>
    tpu.vector_store %arg16[%c8_302, %c0_303], %450 {strides = array<i32>} : memref<72x512xf32, #tpu.memory_space<vmem>>, vector<8x512xf32>,
    %cst_304 = arith.constant 0.000000e+00 : f32
    %452 = vector.broadcast %cst_304 : f32 to vector<8x15xf32>
    %453 = vector.extract_strided_slice %435 {offsets = [0, 0], sizes = [8, 497], strides = [1, 1]} : vector<8x512xf32> to vector<8x497xf32>
    %454 = tpu.concatenate %452, %453 in 1 : vector<8x15xf32>, vector<8x497xf32> -> vector<8x512xf32>
    %c2_305 = arith.constant 2 : index
    %c0_306 = arith.constant 0 : index
    %455 = vector.load %arg2[%c2_305, %c0_306] : memref<9x512xf32, #tpu.memory_space<vmem>>, vector<1x512xf32>
    %456 = vector.broadcast %455 : vector<1x512xf32> to vector<8x512xf32>
    %457 = arith.mulf %454, %456 : vector<8x512xf32>
    %c16_307 = arith.constant 16 : index
    %c0_308 = arith.constant 0 : index
    %458 = vector.load %arg16[%c16_307, %c0_308] : memref<72x512xf32, #tpu.memory_space<vmem>>, vector<8x512xf32>
    tpu.vector_store %arg16[%c16_307, %c0_308], %457 {strides = array<i32>} : memref<72x512xf32, #tpu.memory_space<vmem>>, vector<8x512xf32>,
    %cst_309 = arith.constant 0.000000e+00 : f32
    %459 = vector.broadcast %cst_309 : f32 to vector<8x1xf32>
    %460 = vector.extract_strided_slice %435 {offsets = [0, 0], sizes = [8, 511], strides = [1, 1]} : vector<8x512xf32> to vector<8x511xf32>
    %461 = tpu.concatenate %459, %460 in 1 : vector<8x1xf32>, vector<8x511xf32> -> vector<8x512xf32>
    %c3_310 = arith.constant 3 : index
    %c0_311 = arith.constant 0 : index
    %462 = vector.load %arg2[%c3_310, %c0_311] : memref<9x512xf32, #tpu.memory_space<vmem>>, vector<1x512xf32>
    %463 = vector.broadcast %462 : vector<1x512xf32> to vector<8x512xf32>
    %464 = arith.mulf %461, %463 : vector<8x512xf32>
    %c24_312 = arith.constant 24 : index
    %c0_313 = arith.constant 0 : index
    %465 = vector.load %arg16[%c24_312, %c0_313] : memref<72x512xf32, #tpu.memory_space<vmem>>, vector<8x512xf32>
    tpu.vector_store %arg16[%c24_312, %c0_313], %464 {strides = array<i32>} : memref<72x512xf32, #tpu.memory_space<vmem>>, vector<8x512xf32>,
    %c32_314 = arith.constant 32 : index
    %c0_315 = arith.constant 0 : index
    %466 = vector.load %arg16[%c32_314, %c0_315] : memref<72x512xf32, #tpu.memory_space<vmem>>, vector<8x512xf32>
    tpu.vector_store %arg16[%c32_314, %c0_315], %435 {strides = array<i32>} : memref<72x512xf32, #tpu.memory_space<vmem>>, vector<8x512xf32>,
    %cst_316 = arith.constant 0.000000e+00 : f32
    %467 = vector.broadcast %cst_316 : f32 to vector<8x1xf32>
    %468 = vector.extract_strided_slice %435 {offsets = [0, 1], sizes = [8, 511], strides = [1, 1]} : vector<8x512xf32> to vector<8x511xf32>
    %469 = tpu.concatenate %468, %467 in 1 : vector<8x511xf32>, vector<8x1xf32> -> vector<8x512xf32>
    %c5_317 = arith.constant 5 : index
    %c0_318 = arith.constant 0 : index
    %470 = vector.load %arg2[%c5_317, %c0_318] : memref<9x512xf32, #tpu.memory_space<vmem>>, vector<1x512xf32>
    %471 = vector.broadcast %470 : vector<1x512xf32> to vector<8x512xf32>
    %472 = arith.mulf %469, %471 : vector<8x512xf32>
    %c40_319 = arith.constant 40 : index
    %c0_320 = arith.constant 0 : index
    %473 = vector.load %arg16[%c40_319, %c0_320] : memref<72x512xf32, #tpu.memory_space<vmem>>, vector<8x512xf32>
    tpu.vector_store %arg16[%c40_319, %c0_320], %472 {strides = array<i32>} : memref<72x512xf32, #tpu.memory_space<vmem>>, vector<8x512xf32>,
    %cst_321 = arith.constant 0.000000e+00 : f32
    %474 = vector.broadcast %cst_321 : f32 to vector<8x15xf32>
    %475 = vector.extract_strided_slice %435 {offsets = [0, 15], sizes = [8, 497], strides = [1, 1]} : vector<8x512xf32> to vector<8x497xf32>
    %476 = tpu.concatenate %475, %474 in 1 : vector<8x497xf32>, vector<8x15xf32> -> vector<8x512xf32>
    %c6_322 = arith.constant 6 : index
    %c0_323 = arith.constant 0 : index
    %477 = vector.load %arg2[%c6_322, %c0_323] : memref<9x512xf32, #tpu.memory_space<vmem>>, vector<1x512xf32>
    %478 = vector.broadcast %477 : vector<1x512xf32> to vector<8x512xf32>
    %479 = arith.mulf %476, %478 : vector<8x512xf32>
    %c48_324 = arith.constant 48 : index
    %c0_325 = arith.constant 0 : index
    %480 = vector.load %arg16[%c48_324, %c0_325] : memref<72x512xf32, #tpu.memory_space<vmem>>, vector<8x512xf32>
    tpu.vector_store %arg16[%c48_324, %c0_325], %479 {strides = array<i32>} : memref<72x512xf32, #tpu.memory_space<vmem>>, vector<8x512xf32>,
    %cst_326 = arith.constant 0.000000e+00 : f32
    %481 = vector.broadcast %cst_326 : f32 to vector<8x16xf32>
    %482 = vector.extract_strided_slice %435 {offsets = [0, 16], sizes = [8, 496], strides = [1, 1]} : vector<8x512xf32> to vector<8x496xf32>
    %483 = tpu.concatenate %482, %481 in 1 : vector<8x496xf32>, vector<8x16xf32> -> vector<8x512xf32>
    %c7_327 = arith.constant 7 : index
    %c0_328 = arith.constant 0 : index
    %484 = vector.load %arg2[%c7_327, %c0_328] : memref<9x512xf32, #tpu.memory_space<vmem>>, vector<1x512xf32>
    %485 = vector.broadcast %484 : vector<1x512xf32> to vector<8x512xf32>
    %486 = arith.mulf %483, %485 : vector<8x512xf32>
    %c56_329 = arith.constant 56 : index
    %c0_330 = arith.constant 0 : index
    %487 = vector.load %arg16[%c56_329, %c0_330] : memref<72x512xf32, #tpu.memory_space<vmem>>, vector<8x512xf32>
    tpu.vector_store %arg16[%c56_329, %c0_330], %486 {strides = array<i32>} : memref<72x512xf32, #tpu.memory_space<vmem>>, vector<8x512xf32>,
    %cst_331 = arith.constant 0.000000e+00 : f32
    %488 = vector.broadcast %cst_331 : f32 to vector<8x17xf32>
    %489 = vector.extract_strided_slice %435 {offsets = [0, 17], sizes = [8, 495], strides = [1, 1]} : vector<8x512xf32> to vector<8x495xf32>
    %490 = tpu.concatenate %489, %488 in 1 : vector<8x495xf32>, vector<8x17xf32> -> vector<8x512xf32>
    %c8_332 = arith.constant 8 : index
    %c0_333 = arith.constant 0 : index
    %491 = vector.load %arg2[%c8_332, %c0_333] : memref<9x512xf32, #tpu.memory_space<vmem>>, vector<1x512xf32>
    %492 = vector.broadcast %491 : vector<1x512xf32> to vector<8x512xf32>
    %493 = arith.mulf %490, %492 : vector<8x512xf32>
    %c64_334 = arith.constant 64 : index
    %c0_335 = arith.constant 0 : index
    %494 = vector.load %arg16[%c64_334, %c0_335] : memref<72x512xf32, #tpu.memory_space<vmem>>, vector<8x512xf32>
    tpu.vector_store %arg16[%c64_334, %c0_335], %493 {strides = array<i32>} : memref<72x512xf32, #tpu.memory_space<vmem>>, vector<8x512xf32>,
    %cst_336 = arith.constant 0.000000e+00 : f32
    %495 = vector.broadcast %cst_336 : f32 to vector<8x17xf32>
    %496 = vector.extract_strided_slice %437 {offsets = [0, 0], sizes = [8, 495], strides = [1, 1]} : vector<8x512xf32> to vector<8x495xf32>
    %497 = tpu.concatenate %495, %496 in 1 : vector<8x17xf32>, vector<8x495xf32> -> vector<8x512xf32>
    %c0_337 = arith.constant 0 : index
    %c0_338 = arith.constant 0 : index
    %498 = vector.load %arg2[%c0_337, %c0_338] : memref<9x512xf32, #tpu.memory_space<vmem>>, vector<1x512xf32>
    %499 = vector.broadcast %498 : vector<1x512xf32> to vector<8x512xf32>
    %500 = arith.mulf %497, %499 : vector<8x512xf32>
    %c0_339 = arith.constant 0 : index
    %c0_340 = arith.constant 0 : index
    %501 = vector.load %arg17[%c0_339, %c0_340] : memref<72x512xf32, #tpu.memory_space<vmem>>, vector<8x512xf32>
    tpu.vector_store %arg17[%c0_339, %c0_340], %500 {strides = array<i32>} : memref<72x512xf32, #tpu.memory_space<vmem>>, vector<8x512xf32>,
    %cst_341 = arith.constant 0.000000e+00 : f32
    %502 = vector.broadcast %cst_341 : f32 to vector<8x16xf32>
    %503 = vector.extract_strided_slice %437 {offsets = [0, 0], sizes = [8, 496], strides = [1, 1]} : vector<8x512xf32> to vector<8x496xf32>
    %504 = tpu.concatenate %502, %503 in 1 : vector<8x16xf32>, vector<8x496xf32> -> vector<8x512xf32>
    %c1_342 = arith.constant 1 : index
    %c0_343 = arith.constant 0 : index
    %505 = vector.load %arg2[%c1_342, %c0_343] : memref<9x512xf32, #tpu.memory_space<vmem>>, vector<1x512xf32>
    %506 = vector.broadcast %505 : vector<1x512xf32> to vector<8x512xf32>
    %507 = arith.mulf %504, %506 : vector<8x512xf32>
    %c8_344 = arith.constant 8 : index
    %c0_345 = arith.constant 0 : index
    %508 = vector.load %arg17[%c8_344, %c0_345] : memref<72x512xf32, #tpu.memory_space<vmem>>, vector<8x512xf32>
    tpu.vector_store %arg17[%c8_344, %c0_345], %507 {strides = array<i32>} : memref<72x512xf32, #tpu.memory_space<vmem>>, vector<8x512xf32>,
    %cst_346 = arith.constant 0.000000e+00 : f32
    %509 = vector.broadcast %cst_346 : f32 to vector<8x15xf32>
    %510 = vector.extract_strided_slice %437 {offsets = [0, 0], sizes = [8, 497], strides = [1, 1]} : vector<8x512xf32> to vector<8x497xf32>
    %511 = tpu.concatenate %509, %510 in 1 : vector<8x15xf32>, vector<8x497xf32> -> vector<8x512xf32>
    %c2_347 = arith.constant 2 : index
    %c0_348 = arith.constant 0 : index
    %512 = vector.load %arg2[%c2_347, %c0_348] : memref<9x512xf32, #tpu.memory_space<vmem>>, vector<1x512xf32>
    %513 = vector.broadcast %512 : vector<1x512xf32> to vector<8x512xf32>
    %514 = arith.mulf %511, %513 : vector<8x512xf32>
    %c16_349 = arith.constant 16 : index
    %c0_350 = arith.constant 0 : index
    %515 = vector.load %arg17[%c16_349, %c0_350] : memref<72x512xf32, #tpu.memory_space<vmem>>, vector<8x512xf32>
    tpu.vector_store %arg17[%c16_349, %c0_350], %514 {strides = array<i32>} : memref<72x512xf32, #tpu.memory_space<vmem>>, vector<8x512xf32>,
    %cst_351 = arith.constant 0.000000e+00 : f32
    %516 = vector.broadcast %cst_351 : f32 to vector<8x1xf32>
    %517 = vector.extract_strided_slice %437 {offsets = [0, 0], sizes = [8, 511], strides = [1, 1]} : vector<8x512xf32> to vector<8x511xf32>
    %518 = tpu.concatenate %516, %517 in 1 : vector<8x1xf32>, vector<8x511xf32> -> vector<8x512xf32>
    %c3_352 = arith.constant 3 : index
    %c0_353 = arith.constant 0 : index
    %519 = vector.load %arg2[%c3_352, %c0_353] : memref<9x512xf32, #tpu.memory_space<vmem>>, vector<1x512xf32>
    %520 = vector.broadcast %519 : vector<1x512xf32> to vector<8x512xf32>
    %521 = arith.mulf %518, %520 : vector<8x512xf32>
    %c24_354 = arith.constant 24 : index
    %c0_355 = arith.constant 0 : index
    %522 = vector.load %arg17[%c24_354, %c0_355] : memref<72x512xf32, #tpu.memory_space<vmem>>, vector<8x512xf32>
    tpu.vector_store %arg17[%c24_354, %c0_355], %521 {strides = array<i32>} : memref<72x512xf32, #tpu.memory_space<vmem>>, vector<8x512xf32>,
    %c32_356 = arith.constant 32 : index
    %c0_357 = arith.constant 0 : index
    %523 = vector.load %arg17[%c32_356, %c0_357] : memref<72x512xf32, #tpu.memory_space<vmem>>, vector<8x512xf32>
    tpu.vector_store %arg17[%c32_356, %c0_357], %437 {strides = array<i32>} : memref<72x512xf32, #tpu.memory_space<vmem>>, vector<8x512xf32>,
    %cst_358 = arith.constant 0.000000e+00 : f32
    %524 = vector.broadcast %cst_358 : f32 to vector<8x1xf32>
    %525 = vector.extract_strided_slice %437 {offsets = [0, 1], sizes = [8, 511], strides = [1, 1]} : vector<8x512xf32> to vector<8x511xf32>
    %526 = tpu.concatenate %525, %524 in 1 : vector<8x511xf32>, vector<8x1xf32> -> vector<8x512xf32>
    %c5_359 = arith.constant 5 : index
    %c0_360 = arith.constant 0 : index
    %527 = vector.load %arg2[%c5_359, %c0_360] : memref<9x512xf32, #tpu.memory_space<vmem>>, vector<1x512xf32>
    %528 = vector.broadcast %527 : vector<1x512xf32> to vector<8x512xf32>
    %529 = arith.mulf %526, %528 : vector<8x512xf32>
    %c40_361 = arith.constant 40 : index
    %c0_362 = arith.constant 0 : index
    %530 = vector.load %arg17[%c40_361, %c0_362] : memref<72x512xf32, #tpu.memory_space<vmem>>, vector<8x512xf32>
    tpu.vector_store %arg17[%c40_361, %c0_362], %529 {strides = array<i32>} : memref<72x512xf32, #tpu.memory_space<vmem>>, vector<8x512xf32>,
    %cst_363 = arith.constant 0.000000e+00 : f32
    %531 = vector.broadcast %cst_363 : f32 to vector<8x15xf32>
    %532 = vector.extract_strided_slice %437 {offsets = [0, 15], sizes = [8, 497], strides = [1, 1]} : vector<8x512xf32> to vector<8x497xf32>
    %533 = tpu.concatenate %532, %531 in 1 : vector<8x497xf32>, vector<8x15xf32> -> vector<8x512xf32>
    %c6_364 = arith.constant 6 : index
    %c0_365 = arith.constant 0 : index
    %534 = vector.load %arg2[%c6_364, %c0_365] : memref<9x512xf32, #tpu.memory_space<vmem>>, vector<1x512xf32>
    %535 = vector.broadcast %534 : vector<1x512xf32> to vector<8x512xf32>
    %536 = arith.mulf %533, %535 : vector<8x512xf32>
    %c48_366 = arith.constant 48 : index
    %c0_367 = arith.constant 0 : index
    %537 = vector.load %arg17[%c48_366, %c0_367] : memref<72x512xf32, #tpu.memory_space<vmem>>, vector<8x512xf32>
    tpu.vector_store %arg17[%c48_366, %c0_367], %536 {strides = array<i32>} : memref<72x512xf32, #tpu.memory_space<vmem>>, vector<8x512xf32>,
    %cst_368 = arith.constant 0.000000e+00 : f32
    %538 = vector.broadcast %cst_368 : f32 to vector<8x16xf32>
    %539 = vector.extract_strided_slice %437 {offsets = [0, 16], sizes = [8, 496], strides = [1, 1]} : vector<8x512xf32> to vector<8x496xf32>
    %540 = tpu.concatenate %539, %538 in 1 : vector<8x496xf32>, vector<8x16xf32> -> vector<8x512xf32>
    %c7_369 = arith.constant 7 : index
    %c0_370 = arith.constant 0 : index
    %541 = vector.load %arg2[%c7_369, %c0_370] : memref<9x512xf32, #tpu.memory_space<vmem>>, vector<1x512xf32>
    %542 = vector.broadcast %541 : vector<1x512xf32> to vector<8x512xf32>
    %543 = arith.mulf %540, %542 : vector<8x512xf32>
    %c56_371 = arith.constant 56 : index
    %c0_372 = arith.constant 0 : index
    %544 = vector.load %arg17[%c56_371, %c0_372] : memref<72x512xf32, #tpu.memory_space<vmem>>, vector<8x512xf32>
    tpu.vector_store %arg17[%c56_371, %c0_372], %543 {strides = array<i32>} : memref<72x512xf32, #tpu.memory_space<vmem>>, vector<8x512xf32>,
    %cst_373 = arith.constant 0.000000e+00 : f32
    %545 = vector.broadcast %cst_373 : f32 to vector<8x17xf32>
    %546 = vector.extract_strided_slice %437 {offsets = [0, 17], sizes = [8, 495], strides = [1, 1]} : vector<8x512xf32> to vector<8x495xf32>
    %547 = tpu.concatenate %546, %545 in 1 : vector<8x495xf32>, vector<8x17xf32> -> vector<8x512xf32>
    %c8_374 = arith.constant 8 : index
    %c0_375 = arith.constant 0 : index
    %548 = vector.load %arg2[%c8_374, %c0_375] : memref<9x512xf32, #tpu.memory_space<vmem>>, vector<1x512xf32>
    %549 = vector.broadcast %548 : vector<1x512xf32> to vector<8x512xf32>
    %550 = arith.mulf %547, %549 : vector<8x512xf32>
    %c64_376 = arith.constant 64 : index
    %c0_377 = arith.constant 0 : index
    %551 = vector.load %arg17[%c64_376, %c0_377] : memref<72x512xf32, #tpu.memory_space<vmem>>, vector<8x512xf32>
    tpu.vector_store %arg17[%c64_376, %c0_377], %550 {strides = array<i32>} : memref<72x512xf32, #tpu.memory_space<vmem>>, vector<8x512xf32>,
    %c0_378 = arith.constant 0 : index
    %c0_379 = arith.constant 0 : index
    %552 = vector.load %arg11[%c0_378, %c0_379] : memref<24x72xbf16, #tpu.memory_space<vmem>>, vector<24x72xbf16>
    %c0_380 = arith.constant 0 : index
    %c0_381 = arith.constant 0 : index
    %553 = vector.load %arg16[%c0_380, %c0_381] : memref<72x512xf32, #tpu.memory_space<vmem>>, vector<72x512xf32>
    %554 = arith.truncf %553 : vector<72x512xf32> to vector<72x512xbf16>
    %cst_382 = arith.constant dense<0.000000e+00> : vector<24x512xf32>
    %555 = tpu.matmul %552, %554, %cst_382 {dimension_numbers = #tpu.dot_dimension_numbers<[1], [0], [0], [1], [0, 0, 1, 1], [], []>} : vector<24x72xbf16>, vector<72x512xbf16>, vector<24x512xf32> -> vector<24x512xf32>
    %c0_383 = arith.constant 0 : index
    %c0_384 = arith.constant 0 : index
    %556 = vector.load %arg12[%c0_383, %c0_384] : memref<24x1xf32, #tpu.memory_space<vmem>>, vector<24x1xf32>
    %557 = vector.broadcast %556 : vector<24x1xf32> to vector<24x512xf32>
    %558 = arith.addf %555, %557 : vector<24x512xf32>
    %c0_385 = arith.constant 0 : index
    %c0_386 = arith.constant 0 : index
    %559 = vector.load %arg13[%c0_385, %c0_386] : memref<16x72xbf16, #tpu.memory_space<vmem>>, vector<16x72xbf16>
    %c0_387 = arith.constant 0 : index
    %c0_388 = arith.constant 0 : index
    %560 = vector.load %arg17[%c0_387, %c0_388] : memref<72x512xf32, #tpu.memory_space<vmem>>, vector<72x512xf32>
    %561 = arith.truncf %560 : vector<72x512xf32> to vector<72x512xbf16>
    %cst_389 = arith.constant dense<0.000000e+00> : vector<16x512xf32>
    %562 = tpu.matmul %559, %561, %cst_389 {dimension_numbers = #tpu.dot_dimension_numbers<[1], [0], [0], [1], [0, 0, 1, 1], [], []>} : vector<16x72xbf16>, vector<72x512xbf16>, vector<16x512xf32> -> vector<16x512xf32>
    %563 = vector.extract_strided_slice %558 {offsets = [0, 0], sizes = [8, 512], strides = [1, 1]} : vector<24x512xf32> to vector<8x512xf32>
    %564 = vector.extract_strided_slice %562 {offsets = [0, 0], sizes = [8, 512], strides = [1, 1]} : vector<16x512xf32> to vector<8x512xf32>
    %565 = arith.addf %563, %564 : vector<8x512xf32>
    %566 = arith.negf %565 : vector<8x512xf32>
    %567 = math.exp %566 : vector<8x512xf32>
    %cst_390 = arith.constant 1.000000e+00 : f32
    %568 = vector.broadcast %cst_390 : f32 to vector<8x512xf32>
    %569 = arith.addf %568, %567 : vector<8x512xf32>
    %570 = arith.divf %568, %569 : vector<8x512xf32>
    %571 = vector.extract_strided_slice %558 {offsets = [8, 0], sizes = [8, 512], strides = [1, 1]} : vector<24x512xf32> to vector<8x512xf32>
    %572 = vector.extract_strided_slice %562 {offsets = [8, 0], sizes = [8, 512], strides = [1, 1]} : vector<16x512xf32> to vector<8x512xf32>
    %573 = arith.addf %571, %572 : vector<8x512xf32>
    %574 = arith.negf %573 : vector<8x512xf32>
    %575 = math.exp %574 : vector<8x512xf32>
    %cst_391 = arith.constant 1.000000e+00 : f32
    %576 = vector.broadcast %cst_391 : f32 to vector<8x512xf32>
    %577 = arith.addf %576, %575 : vector<8x512xf32>
    %578 = arith.divf %576, %577 : vector<8x512xf32>
    %cst_392 = arith.constant 1.000000e+00 : f32
    %579 = vector.broadcast %cst_392 : f32 to vector<8x512xf32>
    %580 = arith.subf %579, %578 : vector<8x512xf32>
    %581 = arith.mulf %580, %437 : vector<8x512xf32>
    %cst_393 = arith.constant 0.000000e+00 : f32
    %582 = vector.broadcast %cst_393 : f32 to vector<8x17xf32>
    %583 = vector.extract_strided_slice %581 {offsets = [0, 0], sizes = [8, 495], strides = [1, 1]} : vector<8x512xf32> to vector<8x495xf32>
    %584 = tpu.concatenate %582, %583 in 1 : vector<8x17xf32>, vector<8x495xf32> -> vector<8x512xf32>
    %c0_394 = arith.constant 0 : index
    %c0_395 = arith.constant 0 : index
    %585 = vector.load %arg2[%c0_394, %c0_395] : memref<9x512xf32, #tpu.memory_space<vmem>>, vector<1x512xf32>
    %586 = vector.broadcast %585 : vector<1x512xf32> to vector<8x512xf32>
    %587 = arith.mulf %584, %586 : vector<8x512xf32>
    %c0_396 = arith.constant 0 : index
    %c0_397 = arith.constant 0 : index
    %588 = vector.load %arg17[%c0_396, %c0_397] : memref<72x512xf32, #tpu.memory_space<vmem>>, vector<8x512xf32>
    tpu.vector_store %arg17[%c0_396, %c0_397], %587 {strides = array<i32>} : memref<72x512xf32, #tpu.memory_space<vmem>>, vector<8x512xf32>,
    %cst_398 = arith.constant 0.000000e+00 : f32
    %589 = vector.broadcast %cst_398 : f32 to vector<8x16xf32>
    %590 = vector.extract_strided_slice %581 {offsets = [0, 0], sizes = [8, 496], strides = [1, 1]} : vector<8x512xf32> to vector<8x496xf32>
    %591 = tpu.concatenate %589, %590 in 1 : vector<8x16xf32>, vector<8x496xf32> -> vector<8x512xf32>
    %c1_399 = arith.constant 1 : index
    %c0_400 = arith.constant 0 : index
    %592 = vector.load %arg2[%c1_399, %c0_400] : memref<9x512xf32, #tpu.memory_space<vmem>>, vector<1x512xf32>
    %593 = vector.broadcast %592 : vector<1x512xf32> to vector<8x512xf32>
    %594 = arith.mulf %591, %593 : vector<8x512xf32>
    %c8_401 = arith.constant 8 : index
    %c0_402 = arith.constant 0 : index
    %595 = vector.load %arg17[%c8_401, %c0_402] : memref<72x512xf32, #tpu.memory_space<vmem>>, vector<8x512xf32>
    tpu.vector_store %arg17[%c8_401, %c0_402], %594 {strides = array<i32>} : memref<72x512xf32, #tpu.memory_space<vmem>>, vector<8x512xf32>,
    %cst_403 = arith.constant 0.000000e+00 : f32
    %596 = vector.broadcast %cst_403 : f32 to vector<8x15xf32>
    %597 = vector.extract_strided_slice %581 {offsets = [0, 0], sizes = [8, 497], strides = [1, 1]} : vector<8x512xf32> to vector<8x497xf32>
    %598 = tpu.concatenate %596, %597 in 1 : vector<8x15xf32>, vector<8x497xf32> -> vector<8x512xf32>
    %c2_404 = arith.constant 2 : index
    %c0_405 = arith.constant 0 : index
    %599 = vector.load %arg2[%c2_404, %c0_405] : memref<9x512xf32, #tpu.memory_space<vmem>>, vector<1x512xf32>
    %600 = vector.broadcast %599 : vector<1x512xf32> to vector<8x512xf32>
    %601 = arith.mulf %598, %600 : vector<8x512xf32>
    %c16_406 = arith.constant 16 : index
    %c0_407 = arith.constant 0 : index
    %602 = vector.load %arg17[%c16_406, %c0_407] : memref<72x512xf32, #tpu.memory_space<vmem>>, vector<8x512xf32>
    tpu.vector_store %arg17[%c16_406, %c0_407], %601 {strides = array<i32>} : memref<72x512xf32, #tpu.memory_space<vmem>>, vector<8x512xf32>,
    %cst_408 = arith.constant 0.000000e+00 : f32
    %603 = vector.broadcast %cst_408 : f32 to vector<8x1xf32>
    %604 = vector.extract_strided_slice %581 {offsets = [0, 0], sizes = [8, 511], strides = [1, 1]} : vector<8x512xf32> to vector<8x511xf32>
    %605 = tpu.concatenate %603, %604 in 1 : vector<8x1xf32>, vector<8x511xf32> -> vector<8x512xf32>
    %c3_409 = arith.constant 3 : index
    %c0_410 = arith.constant 0 : index
    %606 = vector.load %arg2[%c3_409, %c0_410] : memref<9x512xf32, #tpu.memory_space<vmem>>, vector<1x512xf32>
    %607 = vector.broadcast %606 : vector<1x512xf32> to vector<8x512xf32>
    %608 = arith.mulf %605, %607 : vector<8x512xf32>
    %c24_411 = arith.constant 24 : index
    %c0_412 = arith.constant 0 : index
    %609 = vector.load %arg17[%c24_411, %c0_412] : memref<72x512xf32, #tpu.memory_space<vmem>>, vector<8x512xf32>
    tpu.vector_store %arg17[%c24_411, %c0_412], %608 {strides = array<i32>} : memref<72x512xf32, #tpu.memory_space<vmem>>, vector<8x512xf32>,
    %c32_413 = arith.constant 32 : index
    %c0_414 = arith.constant 0 : index
    %610 = vector.load %arg17[%c32_413, %c0_414] : memref<72x512xf32, #tpu.memory_space<vmem>>, vector<8x512xf32>
    tpu.vector_store %arg17[%c32_413, %c0_414], %581 {strides = array<i32>} : memref<72x512xf32, #tpu.memory_space<vmem>>, vector<8x512xf32>,
    %cst_415 = arith.constant 0.000000e+00 : f32
    %611 = vector.broadcast %cst_415 : f32 to vector<8x1xf32>
    %612 = vector.extract_strided_slice %581 {offsets = [0, 1], sizes = [8, 511], strides = [1, 1]} : vector<8x512xf32> to vector<8x511xf32>
    %613 = tpu.concatenate %612, %611 in 1 : vector<8x511xf32>, vector<8x1xf32> -> vector<8x512xf32>
    %c5_416 = arith.constant 5 : index
    %c0_417 = arith.constant 0 : index
    %614 = vector.load %arg2[%c5_416, %c0_417] : memref<9x512xf32, #tpu.memory_space<vmem>>, vector<1x512xf32>
    %615 = vector.broadcast %614 : vector<1x512xf32> to vector<8x512xf32>
    %616 = arith.mulf %613, %615 : vector<8x512xf32>
    %c40_418 = arith.constant 40 : index
    %c0_419 = arith.constant 0 : index
    %617 = vector.load %arg17[%c40_418, %c0_419] : memref<72x512xf32, #tpu.memory_space<vmem>>, vector<8x512xf32>
    tpu.vector_store %arg17[%c40_418, %c0_419], %616 {strides = array<i32>} : memref<72x512xf32, #tpu.memory_space<vmem>>, vector<8x512xf32>,
    %cst_420 = arith.constant 0.000000e+00 : f32
    %618 = vector.broadcast %cst_420 : f32 to vector<8x15xf32>
    %619 = vector.extract_strided_slice %581 {offsets = [0, 15], sizes = [8, 497], strides = [1, 1]} : vector<8x512xf32> to vector<8x497xf32>
    %620 = tpu.concatenate %619, %618 in 1 : vector<8x497xf32>, vector<8x15xf32> -> vector<8x512xf32>
    %c6_421 = arith.constant 6 : index
    %c0_422 = arith.constant 0 : index
    %621 = vector.load %arg2[%c6_421, %c0_422] : memref<9x512xf32, #tpu.memory_space<vmem>>, vector<1x512xf32>
    %622 = vector.broadcast %621 : vector<1x512xf32> to vector<8x512xf32>
    %623 = arith.mulf %620, %622 : vector<8x512xf32>
    %c48_423 = arith.constant 48 : index
    %c0_424 = arith.constant 0 : index
    %624 = vector.load %arg17[%c48_423, %c0_424] : memref<72x512xf32, #tpu.memory_space<vmem>>, vector<8x512xf32>
    tpu.vector_store %arg17[%c48_423, %c0_424], %623 {strides = array<i32>} : memref<72x512xf32, #tpu.memory_space<vmem>>, vector<8x512xf32>,
    %cst_425 = arith.constant 0.000000e+00 : f32
    %625 = vector.broadcast %cst_425 : f32 to vector<8x16xf32>
    %626 = vector.extract_strided_slice %581 {offsets = [0, 16], sizes = [8, 496], strides = [1, 1]} : vector<8x512xf32> to vector<8x496xf32>
    %627 = tpu.concatenate %626, %625 in 1 : vector<8x496xf32>, vector<8x16xf32> -> vector<8x512xf32>
    %c7_426 = arith.constant 7 : index
    %c0_427 = arith.constant 0 : index
    %628 = vector.load %arg2[%c7_426, %c0_427] : memref<9x512xf32, #tpu.memory_space<vmem>>, vector<1x512xf32>
    %629 = vector.broadcast %628 : vector<1x512xf32> to vector<8x512xf32>
    %630 = arith.mulf %627, %629 : vector<8x512xf32>
    %c56_428 = arith.constant 56 : index
    %c0_429 = arith.constant 0 : index
    %631 = vector.load %arg17[%c56_428, %c0_429] : memref<72x512xf32, #tpu.memory_space<vmem>>, vector<8x512xf32>
    tpu.vector_store %arg17[%c56_428, %c0_429], %630 {strides = array<i32>} : memref<72x512xf32, #tpu.memory_space<vmem>>, vector<8x512xf32>,
    %cst_430 = arith.constant 0.000000e+00 : f32
    %632 = vector.broadcast %cst_430 : f32 to vector<8x17xf32>
    %633 = vector.extract_strided_slice %581 {offsets = [0, 17], sizes = [8, 495], strides = [1, 1]} : vector<8x512xf32> to vector<8x495xf32>
    %634 = tpu.concatenate %633, %632 in 1 : vector<8x495xf32>, vector<8x17xf32> -> vector<8x512xf32>
    %c8_431 = arith.constant 8 : index
    %c0_432 = arith.constant 0 : index
    %635 = vector.load %arg2[%c8_431, %c0_432] : memref<9x512xf32, #tpu.memory_space<vmem>>, vector<1x512xf32>
    %636 = vector.broadcast %635 : vector<1x512xf32> to vector<8x512xf32>
    %637 = arith.mulf %634, %636 : vector<8x512xf32>
    %c64_433 = arith.constant 64 : index
    %c0_434 = arith.constant 0 : index
    %638 = vector.load %arg17[%c64_433, %c0_434] : memref<72x512xf32, #tpu.memory_space<vmem>>, vector<8x512xf32>
    tpu.vector_store %arg17[%c64_433, %c0_434], %637 {strides = array<i32>} : memref<72x512xf32, #tpu.memory_space<vmem>>, vector<8x512xf32>,
    %639 = vector.extract_strided_slice %558 {offsets = [16, 0], sizes = [8, 512], strides = [1, 1]} : vector<24x512xf32> to vector<8x512xf32>
    %c0_435 = arith.constant 0 : index
    %c0_436 = arith.constant 0 : index
    %640 = vector.load %arg14[%c0_435, %c0_436] : memref<8x72xbf16, #tpu.memory_space<vmem>>, vector<8x72xbf16>
    %c0_437 = arith.constant 0 : index
    %c0_438 = arith.constant 0 : index
    %641 = vector.load %arg17[%c0_437, %c0_438] : memref<72x512xf32, #tpu.memory_space<vmem>>, vector<72x512xf32>
    %642 = arith.truncf %641 : vector<72x512xf32> to vector<72x512xbf16>
    %cst_439 = arith.constant dense<0.000000e+00> : vector<8x512xf32>
    %643 = tpu.matmul %640, %642, %cst_439 {dimension_numbers = #tpu.dot_dimension_numbers<[1], [0], [0], [1], [0, 0, 1, 1], [], []>} : vector<8x72xbf16>, vector<72x512xbf16>, vector<8x512xf32> -> vector<8x512xf32>
    %644 = arith.addf %639, %643 : vector<8x512xf32>
    %cst_440 = arith.constant 0.000000e+00 : f32
    %645 = vector.broadcast %cst_440 : f32 to vector<8x512xf32>
    %646 = arith.maximumf %644, %645 : vector<8x512xf32>
    %cst_441 = arith.constant 1.000000e+00 : f32
    %647 = vector.broadcast %cst_441 : f32 to vector<8x512xf32>
    %648 = arith.subf %647, %570 : vector<8x512xf32>
    %649 = arith.mulf %648, %437 : vector<8x512xf32>
    %650 = arith.mulf %570, %646 : vector<8x512xf32>
    %651 = arith.addf %649, %650 : vector<8x512xf32>
    %c0_442 = arith.constant 0 : index
    %c0_443 = arith.constant 0 : index
    %652 = vector.load %arg20[%c0_442, %c0_443] : memref<8x512xf32, #tpu.memory_space<vmem>>, vector<8x512xf32>
    tpu.vector_store %arg20[%c0_442, %c0_443], %651 {strides = array<i32>} : memref<8x512xf32, #tpu.memory_space<vmem>>, vector<8x512xf32>,
    %c0_444 = arith.constant 0 : index
    %c0_445 = arith.constant 0 : index
    %c0_446 = arith.constant 0 : index
    %653 = vector.load %arg15[%c0_444, %c0_445, %c0_446] : memref<1x8x512xf32, #tpu.memory_space<vmem>>, vector<1x8x512xf32>
    %654 = vector.shape_cast %653 : vector<1x8x512xf32> to vector<8x512xf32>
    %655 = vector.shape_cast %651 : vector<8x512xf32> to vector<1x8x512xf32>
    tpu.vector_store %arg15[%c0_444, %c0_445, %c0_446], %655 {strides = array<i32>} : memref<1x8x512xf32, #tpu.memory_space<vmem>>, vector<1x8x512xf32>,
    return
  }
  func.func @transform_0(%arg0: i32) -> (i32, i32, i32) {
    %c0_i32 = arith.constant 0 : i32
    %c0_i32_0 = arith.constant 0 : i32
    %c0_i32_1 = arith.constant 0 : i32
    return %arg0, %c0_i32, %c0_i32_0 : i32, i32, i32
  }
  func.func @transform_1(%arg0: i32) -> (i32, i32) {
    %c0_i32 = arith.constant 0 : i32
    %c0_i32_0 = arith.constant 0 : i32
    %c0_i32_1 = arith.constant 0 : i32
    return %c0_i32, %c0_i32_0 : i32, i32
  }
  func.func @transform_2(%arg0: i32) -> (i32, i32) {
    %c0_i32 = arith.constant 0 : i32
    %c0_i32_0 = arith.constant 0 : i32
    %c0_i32_1 = arith.constant 0 : i32
    return %c0_i32, %c0_i32_0 : i32, i32
  }
  func.func @transform_3(%arg0: i32) -> (i32, i32) {
    %c0_i32 = arith.constant 0 : i32
    %c0_i32_0 = arith.constant 0 : i32
    %c0_i32_1 = arith.constant 0 : i32
    return %c0_i32, %c0_i32_0 : i32, i32
  }
  func.func @transform_4(%arg0: i32) -> (i32, i32) {
    %c0_i32 = arith.constant 0 : i32
    %c0_i32_0 = arith.constant 0 : i32
    %c0_i32_1 = arith.constant 0 : i32
    return %c0_i32, %c0_i32_0 : i32, i32
  }
  func.func @transform_5(%arg0: i32) -> (i32, i32) {
    %c0_i32 = arith.constant 0 : i32
    %c0_i32_0 = arith.constant 0 : i32
    %c0_i32_1 = arith.constant 0 : i32
    return %c0_i32, %c0_i32_0 : i32, i32
  }
  func.func @transform_6(%arg0: i32) -> (i32, i32) {
    %c0_i32 = arith.constant 0 : i32
    %c0_i32_0 = arith.constant 0 : i32
    %c0_i32_1 = arith.constant 0 : i32
    return %c0_i32, %c0_i32_0 : i32, i32
  }
  func.func @transform_7(%arg0: i32) -> (i32, i32) {
    %c0_i32 = arith.constant 0 : i32
    %c0_i32_0 = arith.constant 0 : i32
    %c0_i32_1 = arith.constant 0 : i32
    return %c0_i32, %c0_i32_0 : i32, i32
  }
  func.func @transform_8(%arg0: i32) -> (i32, i32) {
    %c0_i32 = arith.constant 0 : i32
    %c0_i32_0 = arith.constant 0 : i32
    %c0_i32_1 = arith.constant 0 : i32
    return %c0_i32, %c0_i32_0 : i32, i32
  }
  func.func @transform_9(%arg0: i32) -> (i32, i32) {
    %c0_i32 = arith.constant 0 : i32
    %c0_i32_0 = arith.constant 0 : i32
    %c0_i32_1 = arith.constant 0 : i32
    return %c0_i32, %c0_i32_0 : i32, i32
  }
  func.func @transform_10(%arg0: i32) -> (i32, i32) {
    %c0_i32 = arith.constant 0 : i32
    %c0_i32_0 = arith.constant 0 : i32
    %c0_i32_1 = arith.constant 0 : i32
    return %c0_i32, %c0_i32_0 : i32, i32
  }
  func.func @transform_11(%arg0: i32) -> (i32, i32) {
    %c0_i32 = arith.constant 0 : i32
    %c0_i32_0 = arith.constant 0 : i32
    %c0_i32_1 = arith.constant 0 : i32
    return %c0_i32, %c0_i32_0 : i32, i32
  }
  func.func @transform_12(%arg0: i32) -> (i32, i32) {
    %c0_i32 = arith.constant 0 : i32
    %c0_i32_0 = arith.constant 0 : i32
    %c0_i32_1 = arith.constant 0 : i32
    return %c0_i32, %c0_i32_0 : i32, i32
  }
  func.func @transform_13(%arg0: i32) -> (i32, i32) {
    %c0_i32 = arith.constant 0 : i32
    %c0_i32_0 = arith.constant 0 : i32
    %c0_i32_1 = arith.constant 0 : i32
    return %c0_i32, %c0_i32_0 : i32, i32
  }
  func.func @transform_14(%arg0: i32) -> (i32, i32, i32) {
    %c0_i32 = arith.constant 0 : i32
    %c0_i32_0 = arith.constant 0 : i32
    %c0_i32_1 = arith.constant 0 : i32
    return %arg0, %c0_i32, %c0_i32_0 : i32, i32, i32
  }
}

</mosaic_0001>

<llo_original>
// kernel: temporal_model_forward.1
$region0: #{temporal_model_forward.1}
  #allocation0 [shape = 'u32[]', space=smem, size = 0x4, offset = 0x4, fixed_abs, tag = 'smem constant byte address 0x4 - core index']
  #allocation1 [shape = 'u32[144,128]{1,0:T(1,128)}', space=vmem, size = 0x12000, scoped, tag = 'internal scratch']
  #allocation2 [shape = 'f32[72,512]{1,0:T(8,128)}', space=vmem, size = 0x24000, scoped, tag = 'scratch operand']
  #allocation3 [shape = 'f32[72,512]{1,0:T(8,128)}', space=vmem, size = 0x24000, scoped, tag = 'scratch operand']
  #allocation4 [shape = 'f32[8,512]{1,0:T(8,128)}', space=vmem, size = 0x4000, scoped, tag = 'scratch operand']
  #allocation5 [shape = 'f32[8,512]{1,0:T(8,128)}', space=vmem, size = 0x4000, scoped, tag = 'scratch operand']
  #allocation6 [shape = 'f32[8,512]{1,0:T(8,128)}', space=vmem, size = 0x4000, scoped, tag = 'scratch operand']
  %s0 = inlined_call_operand.vmem [shape: f32[4,8,512], index: 0, kind: input, shape index: {}]
  %s1 = inlined_call_operand.vmem [shape: f32[9,512], index: 1, kind: input, shape index: {}]
  %s2 = inlined_call_operand.vmem [shape: bf16[24,72], index: 2, kind: input, shape index: {}]
  %s3 = inlined_call_operand.vmem [shape: f32[24,1], index: 3, kind: input, shape index: {}]
  %s4 = inlined_call_operand.vmem [shape: bf16[16,72], index: 4, kind: input, shape index: {}]
  %s5 = inlined_call_operand.vmem [shape: bf16[8,72], index: 5, kind: input, shape index: {}]
  %s6 = inlined_call_operand.vmem [shape: bf16[24,72], index: 6, kind: input, shape index: {}]
  %s7 = inlined_call_operand.vmem [shape: f32[24,1], index: 7, kind: input, shape index: {}]
  %s8 = inlined_call_operand.vmem [shape: bf16[16,72], index: 8, kind: input, shape index: {}]
  %s9 = inlined_call_operand.vmem [shape: bf16[8,72], index: 9, kind: input, shape index: {}]
  %s10 = inlined_call_operand.vmem [shape: bf16[24,72], index: 10, kind: input, shape index: {}]
  %s11 = inlined_call_operand.vmem [shape: f32[24,1], index: 11, kind: input, shape index: {}]
  %s12 = inlined_call_operand.vmem [shape: bf16[16,72], index: 12, kind: input, shape index: {}]
  %s13 = inlined_call_operand.vmem [shape: bf16[8,72], index: 13, kind: input, shape index: {}]
  %s14 = inlined_call_operand.vmem [shape: f32[4,8,512], index: 14, kind: output, shape index: {}]
  %s15 = sld [smem:[#allocation0]]
  $region93: #{temporal_model_forward.1} parent=0
    _
  %s17 = ssub.s32 1, %s15
  %s18 = scalar_select 0, %s17, %s15
  loop: start=0, step=1, limit=6
  $region2: #{temporal_model_forward.1} parent=0 // loop_pre_header
    _
  $region3: #{temporal_model_forward.1} parent=0 // loop_header
    %s20 = sphi 0, %s24
    %p21 = scmp.ge.s32.totalorder %s20, 6
    %s30 = sphi 0, %s32
    %s33 = sphi 0, %s30
    %s34 = sphi 0, %s33
    %s50 = sphi 0, %s34
    %s54 = sphi 0, %s54
    %s56 = sphi 0, %s54
    %s57 = sphi 0, %s56
    %s71 = sphi 0, %s57
    %s75 = sphi 0, %s75
    %s77 = sphi 0, %s75
    %s78 = sphi 0, %s77
    %s92 = sphi 0, %s78
    %s96 = sphi 0, %s96
    %s98 = sphi 0, %s96
    %s99 = sphi 0, %s98
    %s113 = sphi 0, %s99
    %s117 = sphi 0, %s117
    %s119 = sphi 0, %s117
    %s120 = sphi 0, %s119
    %s134 = sphi 0, %s120
    %s138 = sphi 0, %s138
    %s140 = sphi 0, %s138
    %s141 = sphi 0, %s140
    %s155 = sphi 0, %s141
    %s159 = sphi 0, %s159
    %s161 = sphi 0, %s159
    %s162 = sphi 0, %s161
    %s176 = sphi 0, %s162
    %s180 = sphi 0, %s180
    %s182 = sphi 0, %s180
    %s183 = sphi 0, %s182
    %s197 = sphi 0, %s183
    %s201 = sphi 0, %s201
    %s203 = sphi 0, %s201
    %s204 = sphi 0, %s203
    %s218 = sphi 0, %s204
    %s222 = sphi 0, %s222
    %s224 = sphi 0, %s222
    %s225 = sphi 0, %s224
    %s239 = sphi 0, %s225
    %s243 = sphi 0, %s243
    %s245 = sphi 0, %s243
    %s246 = sphi 0, %s245
    %s260 = sphi 0, %s246
    %s264 = sphi 0, %s264
    %s266 = sphi 0, %s264
    %s267 = sphi 0, %s266
    %s281 = sphi 0, %s267
    %s285 = sphi 0, %s285
    %s287 = sphi 0, %s285
    %s288 = sphi 0, %s287
    %s302 = sphi 0, %s288
    %s306 = sphi 0, %s306
    %s308 = sphi 0, %s306
    %s309 = sphi 0, %s308
    %s323 = sphi 0, %s309
    %s329 = sphi 0, %s331
    %s332 = sphi 0, %s329
    %s333 = sphi 0, %s332
    %s349 = sphi 0, %s333
  $region4: #{temporal_model_forward.1} parent=0 // loop_header_branch
    %23 = sbr.rel (%p21) target = $region8
  $region5: #{temporal_model_forward.1} parent=0 // loop_body
    %s25 = ssub.s32 %s20, 1
    %s26 = ssub.s32 %s20, 2
    %s27 = sadd.s32 %s20, 1
    %s28 = ssub.s32 %s20, %s27
    %p29 = scmp.eq.s32.totalorder %s28, 0
    %s31 = sadd.s32 %s30, 1
    %s32 = scalar_select %p29, %s30, %s31
    %p35 = pneg %p29
    %p36 = scmp.eq.s32.totalorder %s20, 3
    %p37 = por %p35, %p36
    %p38 = scmp.ne.s32.totalorder %s30, %s33
    %p39 = scmp.eq.s32.totalorder %s20, 0
    %p40 = por %p38, %p39
    %p41 = scmp.ne.s32.totalorder %s30, %s33
    %p42 = scmp.eq.s32.totalorder %s25, 3
    %p43 = por %p41, %p42
    %p44 = scmp.ne.s32.totalorder %s33, %s34
    %p45 = scmp.eq.s32.totalorder %s25, 0
    %p46 = por %p44, %p45
    %p47 = scmp.ne.s32.totalorder %s33, %s34
    %p48 = scmp.eq.s32.totalorder %s26, 3
    %p49 = por %p47, %p48
    %p51 = scmp.ne.s32.totalorder %s34, %s50
    %p52 = scmp.eq.s32.totalorder %s26, 0
    %p53 = por %p51, %p52
    %s55 = sadd.s32 %s54, 1
    %p58 = scmp.eq.s32.totalorder %s20, 3
    %p59 = scmp.ne.s32.totalorder %s54, %s56
    %p60 = scmp.eq.s32.totalorder %s20, 0
    %p61 = por %p59, %p60
    %p62 = scmp.ne.s32.totalorder %s54, %s56
    %p63 = scmp.eq.s32.totalorder %s25, 3
    %p64 = por %p62, %p63
    %p65 = scmp.ne.s32.totalorder %s56, %s57
    %p66 = scmp.eq.s32.totalorder %s25, 0
    %p67 = por %p65, %p66
    %p68 = scmp.ne.s32.totalorder %s56, %s57
    %p69 = scmp.eq.s32.totalorder %s26, 3
    %p70 = por %p68, %p69
    %p72 = scmp.ne.s32.totalorder %s57, %s71
    %p73 = scmp.eq.s32.totalorder %s26, 0
    %p74 = por %p72, %p73
    %s76 = sadd.s32 %s75, 1
    %p79 = scmp.eq.s32.totalorder %s20, 3
    %p80 = scmp.ne.s32.totalorder %s75, %s77
    %p81 = scmp.eq.s32.totalorder %s20, 0
    %p82 = por %p80, %p81
    %p83 = scmp.ne.s32.totalorder %s75, %s77
    %p84 = scmp.eq.s32.totalorder %s25, 3
    %p85 = por %p83, %p84
    %p86 = scmp.ne.s32.totalorder %s77, %s78
    %p87 = scmp.eq.s32.totalorder %s25, 0
    %p88 = por %p86, %p87
    %p89 = scmp.ne.s32.totalorder %s77, %s78
    %p90 = scmp.eq.s32.totalorder %s26, 3
    %p91 = por %p89, %p90
    %p93 = scmp.ne.s32.totalorder %s78, %s92
    %p94 = scmp.eq.s32.totalorder %s26, 0
    %p95 = por %p93, %p94
    %s97 = sadd.s32 %s96, 1
    %p100 = scmp.eq.s32.totalorder %s20, 3
    %p101 = scmp.ne.s32.totalorder %s96, %s98
    %p102 = scmp.eq.s32.totalorder %s20, 0
    %p103 = por %p101, %p102
    %p104 = scmp.ne.s32.totalorder %s96, %s98
    %p105 = scmp.eq.s32.totalorder %s25, 3
    %p106 = por %p104, %p105
    %p107 = scmp.ne.s32.totalorder %s98, %s99
    %p108 = scmp.eq.s32.totalorder %s25, 0
    %p109 = por %p107, %p108
    %p110 = scmp.ne.s32.totalorder %s98, %s99
    %p111 = scmp.eq.s32.totalorder %s26, 3
    %p112 = por %p110, %p111
    %p114 = scmp.ne.s32.totalorder %s99, %s113
    %p115 = scmp.eq.s32.totalorder %s26, 0
    %p116 = por %p114, %p115
    %s118 = sadd.s32 %s117, 1
    %p121 = scmp.eq.s32.totalorder %s20, 3
    %p122 = scmp.ne.s32.totalorder %s117, %s119
    %p123 = scmp.eq.s32.totalorder %s20, 0
    %p124 = por %p122, %p123
    %p125 = scmp.ne.s32.totalorder %s117, %s119
    %p126 = scmp.eq.s32.totalorder %s25, 3
    %p127 = por %p125, %p126
    %p128 = scmp.ne.s32.totalorder %s119, %s120
    %p129 = scmp.eq.s32.totalorder %s25, 0
    %p130 = por %p128, %p129
    %p131 = scmp.ne.s32.totalorder %s119, %s120
    %p132 = scmp.eq.s32.totalorder %s26, 3
    %p133 = por %p131, %p132
    %p135 = scmp.ne.s32.totalorder %s120, %s134
    %p136 = scmp.eq.s32.totalorder %s26, 0
    %p137 = por %p135, %p136
    %s139 = sadd.s32 %s138, 1
    %p142 = scmp.eq.s32.totalorder %s20, 3
    %p143 = scmp.ne.s32.totalorder %s138, %s140
    %p144 = scmp.eq.s32.totalorder %s20, 0
    %p145 = por %p143, %p144
    %p146 = scmp.ne.s32.totalorder %s138, %s140
    %p147 = scmp.eq.s32.totalorder %s25, 3
    %p148 = por %p146, %p147
    %p149 = scmp.ne.s32.totalorder %s140, %s141
    %p150 = scmp.eq.s32.totalorder %s25, 0
    %p151 = por %p149, %p150
    %p152 = scmp.ne.s32.totalorder %s140, %s141
    %p153 = scmp.eq.s32.totalorder %s26, 3
    %p154 = por %p152, %p153
    %p156 = scmp.ne.s32.totalorder %s141, %s155
    %p157 = scmp.eq.s32.totalorder %s26, 0
    %p158 = por %p156, %p157
    %s160 = sadd.s32 %s159, 1
    %p163 = scmp.eq.s32.totalorder %s20, 3
    %p164 = scmp.ne.s32.totalorder %s159, %s161
    %p165 = scmp.eq.s32.totalorder %s20, 0
    %p166 = por %p164, %p165
    %p167 = scmp.ne.s32.totalorder %s159, %s161
    %p168 = scmp.eq.s32.totalorder %s25, 3
    %p169 = por %p167, %p168
    %p170 = scmp.ne.s32.totalorder %s161, %s162
    %p171 = scmp.eq.s32.totalorder %s25, 0
    %p172 = por %p170, %p171
    %p173 = scmp.ne.s32.totalorder %s161, %s162
    %p174 = scmp.eq.s32.totalorder %s26, 3
    %p175 = por %p173, %p174
    %p177 = scmp.ne.s32.totalorder %s162, %s176
    %p178 = scmp.eq.s32.totalorder %s26, 0
    %p179 = por %p177, %p178
    %s181 = sadd.s32 %s180, 1
    %p184 = scmp.eq.s32.totalorder %s20, 3
    %p185 = scmp.ne.s32.totalorder %s180, %s182
    %p186 = scmp.eq.s32.totalorder %s20, 0
    %p187 = por %p185, %p186
    %p188 = scmp.ne.s32.totalorder %s180, %s182
    %p189 = scmp.eq.s32.totalorder %s25, 3
    %p190 = por %p188, %p189
    %p191 = scmp.ne.s32.totalorder %s182, %s183
    %p192 = scmp.eq.s32.totalorder %s25, 0
    %p193 = por %p191, %p192
    %p194 = scmp.ne.s32.totalorder %s182, %s183
    %p195 = scmp.eq.s32.totalorder %s26, 3
    %p196 = por %p194, %p195
    %p198 = scmp.ne.s32.totalorder %s183, %s197
    %p199 = scmp.eq.s32.totalorder %s26, 0
    %p200 = por %p198, %p199
    %s202 = sadd.s32 %s201, 1
    %p205 = scmp.eq.s32.totalorder %s20, 3
    %p206 = scmp.ne.s32.totalorder %s201, %s203
    %p207 = scmp.eq.s32.totalorder %s20, 0
    %p208 = por %p206, %p207
    %p209 = scmp.ne.s32.totalorder %s201, %s203
    %p210 = scmp.eq.s32.totalorder %s25, 3
    %p211 = por %p209, %p210
    %p212 = scmp.ne.s32.totalorder %s203, %s204
    %p213 = scmp.eq.s32.totalorder %s25, 0
    %p214 = por %p212, %p213
    %p215 = scmp.ne.s32.totalorder %s203, %s204
    %p216 = scmp.eq.s32.totalorder %s26, 3
    %p217 = por %p215, %p216
    %p219 = scmp.ne.s32.totalorder %s204, %s218
    %p220 = scmp.eq.s32.totalorder %s26, 0
    %p221 = por %p219, %p220
    %s223 = sadd.s32 %s222, 1
    %p226 = scmp.eq.s32.totalorder %s20, 3
    %p227 = scmp.ne.s32.totalorder %s222, %s224
    %p228 = scmp.eq.s32.totalorder %s20, 0
    %p229 = por %p227, %p228
    %p230 = scmp.ne.s32.totalorder %s222, %s224
    %p231 = scmp.eq.s32.totalorder %s25, 3
    %p232 = por %p230, %p231
    %p233 = scmp.ne.s32.totalorder %s224, %s225
    %p234 = scmp.eq.s32.totalorder %s25, 0
    %p235 = por %p233, %p234
    %p236 = scmp.ne.s32.totalorder %s224, %s225
    %p237 = scmp.eq.s32.totalorder %s26, 3
    %p238 = por %p236, %p237
    %p240 = scmp.ne.s32.totalorder %s225, %s239
    %p241 = scmp.eq.s32.totalorder %s26, 0
    %p242 = por %p240, %p241
    %s244 = sadd.s32 %s243, 1
    %p247 = scmp.eq.s32.totalorder %s20, 3
    %p248 = scmp.ne.s32.totalorder %s243, %s245
    %p249 = scmp.eq.s32.totalorder %s20, 0
    %p250 = por %p248, %p249
    %p251 = scmp.ne.s32.totalorder %s243, %s245
    %p252 = scmp.eq.s32.totalorder %s25, 3
    %p253 = por %p251, %p252
    %p254 = scmp.ne.s32.totalorder %s245, %s246
    %p255 = scmp.eq.s32.totalorder %s25, 0
    %p256 = por %p254, %p255
    %p257 = scmp.ne.s32.totalorder %s245, %s246
    %p258 = scmp.eq.s32.totalorder %s26, 3
    %p259 = por %p257, %p258
    %p261 = scmp.ne.s32.totalorder %s246, %s260
    %p262 = scmp.eq.s32.totalorder %s26, 0
    %p263 = por %p261, %p262
    %s265 = sadd.s32 %s264, 1
    %p268 = scmp.eq.s32.totalorder %s20, 3
    %p269 = scmp.ne.s32.totalorder %s264, %s266
    %p270 = scmp.eq.s32.totalorder %s20, 0
    %p271 = por %p269, %p270
    %p272 = scmp.ne.s32.totalorder %s264, %s266
    %p273 = scmp.eq.s32.totalorder %s25, 3
    %p274 = por %p272, %p273
    %p275 = scmp.ne.s32.totalorder %s266, %s267
    %p276 = scmp.eq.s32.totalorder %s25, 0
    %p277 = por %p275, %p276
    %p278 = scmp.ne.s32.totalorder %s266, %s267
    %p279 = scmp.eq.s32.totalorder %s26, 3
    %p280 = por %p278, %p279
    %p282 = scmp.ne.s32.totalorder %s267, %s281
    %p283 = scmp.eq.s32.totalorder %s26, 0
    %p284 = por %p282, %p283
    %s286 = sadd.s32 %s285, 1
    %p289 = scmp.eq.s32.totalorder %s20, 3
    %p290 = scmp.ne.s32.totalorder %s285, %s287
    %p291 = scmp.eq.s32.totalorder %s20, 0
    %p292 = por %p290, %p291
    %p293 = scmp.ne.s32.totalorder %s285, %s287
    %p294 = scmp.eq.s32.totalorder %s25, 3
    %p295 = por %p293, %p294
    %p296 = scmp.ne.s32.totalorder %s287, %s288
    %p297 = scmp.eq.s32.totalorder %s25, 0
    %p298 = por %p296, %p297
    %p299 = scmp.ne.s32.totalorder %s287, %s288
    %p300 = scmp.eq.s32.totalorder %s26, 3
    %p301 = por %p299, %p300
    %p303 = scmp.ne.s32.totalorder %s288, %s302
    %p304 = scmp.eq.s32.totalorder %s26, 0
    %p305 = por %p303, %p304
    %s307 = sadd.s32 %s306, 1
    %p310 = scmp.eq.s32.totalorder %s20, 3
    %p311 = scmp.ne.s32.totalorder %s306, %s308
    %p312 = scmp.eq.s32.totalorder %s20, 0
    %p313 = por %p311, %p312
    %p314 = scmp.ne.s32.totalorder %s306, %s308
    %p315 = scmp.eq.s32.totalorder %s25, 3
    %p316 = por %p314, %p315
    %p317 = scmp.ne.s32.totalorder %s308, %s309
    %p318 = scmp.eq.s32.totalorder %s25, 0
    %p319 = por %p317, %p318
    %p320 = scmp.ne.s32.totalorder %s308, %s309
    %p321 = scmp.eq.s32.totalorder %s26, 3
    %p322 = por %p320, %p321
    %p324 = scmp.ne.s32.totalorder %s309, %s323
    %p325 = scmp.eq.s32.totalorder %s26, 0
    %p326 = por %p324, %p325
    %s327 = ssub.s32 %s20, %s27
    %p328 = scmp.eq.s32.totalorder %s327, 0
    %s330 = sadd.s32 %s329, 1
    %s331 = scalar_select %p328, %s329, %s330
    %p334 = pneg %p328
    %p335 = scmp.eq.s32.totalorder %s20, 3
    %p336 = por %p334, %p335
    %p337 = scmp.ne.s32.totalorder %s329, %s332
    %p338 = scmp.eq.s32.totalorder %s20, 0
    %p339 = por %p337, %p338
    %p340 = scmp.ne.s32.totalorder %s329, %s332
    %p341 = scmp.eq.s32.totalorder %s25, 3
    %p342 = por %p340, %p341
    %p343 = scmp.ne.s32.totalorder %s332, %s333
    %p344 = scmp.eq.s32.totalorder %s25, 0
    %p345 = por %p343, %p344
    %p346 = scmp.ne.s32.totalorder %s332, %s333
    %p347 = scmp.eq.s32.totalorder %s26, 3
    %p348 = por %p346, %p347
    %p350 = scmp.ne.s32.totalorder %s333, %s349
    %p351 = scmp.eq.s32.totalorder %s26, 0
    %p352 = por %p350, %p351
    %p353 = scmp.le.s32.totalorder 1, %s20
    %p354 = scmp.lt.s32.totalorder %s20, 5
    %p355 = pnand %p353, %p354
    %p356 = pneg %p355
    // Predicated region
    $region9: #{temporal_model_forward.1} parent=5 // pred_check
      _
    $region10: #{temporal_model_forward.1} parent=5 // pred_check_branch
      %358 = sbr.rel (%p355) target = $region12
    $region11: #{temporal_model_forward.1} parent=5 // pred_region
      %s359 = ssub.s32 %s20, 1
      // Predicated region
      $region13: #{temporal_model_forward.1} parent=11 // pred_check
        %p360 = pneg %p67
      $region14: #{temporal_model_forward.1} parent=11 // pred_check_branch
        %362 = sbr.rel (%p360) target = $region16
      $region15: #{temporal_model_forward.1} parent=11 // pred_region
        _
      $region16: #{temporal_model_forward.1} parent=11 // pred_fallthru
        _
      // Predicated region
      $region17: #{temporal_model_forward.1} parent=11 // pred_check
        %p363 = pneg %p88
      $region18: #{temporal_model_forward.1} parent=11 // pred_check_branch
        %365 = sbr.rel (%p363) target = $region20
      $region19: #{temporal_model_forward.1} parent=11 // pred_region
        _
      $region20: #{temporal_model_forward.1} parent=11 // pred_fallthru
        _
      // Predicated region
      $region21: #{temporal_model_forward.1} parent=11 // pred_check
        %p366 = pneg %p109
      $region22: #{temporal_model_forward.1} parent=11 // pred_check_branch
        %368 = sbr.rel (%p366) target = $region24
      $region23: #{temporal_model_forward.1} parent=11 // pred_region
        _
      $region24: #{temporal_model_forward.1} parent=11 // pred_fallthru
        _
      // Predicated region
      $region25: #{temporal_model_forward.1} parent=11 // pred_check
        %p369 = pneg %p130
      $region26: #{temporal_model_forward.1} parent=11 // pred_check_branch
        %371 = sbr.rel (%p369) target = $region28
      $region27: #{temporal_model_forward.1} parent=11 // pred_region
        _
      $region28: #{temporal_model_forward.1} parent=11 // pred_fallthru
        _
      // Predicated region
      $region29: #{temporal_model_forward.1} parent=11 // pred_check
        %p372 = pneg %p151
      $region30: #{temporal_model_forward.1} parent=11 // pred_check_branch
        %374 = sbr.rel (%p372) target = $region32
      $region31: #{temporal_model_forward.1} parent=11 // pred_region
        _
      $region32: #{temporal_model_forward.1} parent=11 // pred_fallthru
        _
      // Predicated region
      $region33: #{temporal_model_forward.1} parent=11 // pred_check
        %p375 = pneg %p172
      $region34: #{temporal_model_forward.1} parent=11 // pred_check_branch
        %377 = sbr.rel (%p375) target = $region36
      $region35: #{temporal_model_forward.1} parent=11 // pred_region
        _
      $region36: #{temporal_model_forward.1} parent=11 // pred_fallthru
        _
      // Predicated region
      $region37: #{temporal_model_forward.1} parent=11 // pred_check
        %p378 = pneg %p193
      $region38: #{temporal_model_forward.1} parent=11 // pred_check_branch
        %380 = sbr.rel (%p378) target = $region40
      $region39: #{temporal_model_forward.1} parent=11 // pred_region
        _
      $region40: #{temporal_model_forward.1} parent=11 // pred_fallthru
        _
      // Predicated region
      $region41: #{temporal_model_forward.1} parent=11 // pred_check
        %p381 = pneg %p214
      $region42: #{temporal_model_forward.1} parent=11 // pred_check_branch
        %383 = sbr.rel (%p381) target = $region44
      $region43: #{temporal_model_forward.1} parent=11 // pred_region
        _
      $region44: #{temporal_model_forward.1} parent=11 // pred_fallthru
        _
      // Predicated region
      $region45: #{temporal_model_forward.1} parent=11 // pred_check
        %p384 = pneg %p235
      $region46: #{temporal_model_forward.1} parent=11 // pred_check_branch
        %386 = sbr.rel (%p384) target = $region48
      $region47: #{temporal_model_forward.1} parent=11 // pred_region
        _
      $region48: #{temporal_model_forward.1} parent=11 // pred_fallthru
        _
      // Predicated region
      $region49: #{temporal_model_forward.1} parent=11 // pred_check
        %p387 = pneg %p256
      $region50: #{temporal_model_forward.1} parent=11 // pred_check_branch
        %389 = sbr.rel (%p387) target = $region52
      $region51: #{temporal_model_forward.1} parent=11 // pred_region
        _
      $region52: #{temporal_model_forward.1} parent=11 // pred_fallthru
        _
      // Predicated region
      $region53: #{temporal_model_forward.1} parent=11 // pred_check
        %p390 = pneg %p277
      $region54: #{temporal_model_forward.1} parent=11 // pred_check_branch
        %392 = sbr.rel (%p390) target = $region56
      $region55: #{temporal_model_forward.1} parent=11 // pred_region
        _
      $region56: #{temporal_model_forward.1} parent=11 // pred_fallthru
        _
      // Predicated region
      $region57: #{temporal_model_forward.1} parent=11 // pred_check
        %p393 = pneg %p298
      $region58: #{temporal_model_forward.1} parent=11 // pred_check_branch
        %395 = sbr.rel (%p393) target = $region60
      $region59: #{temporal_model_forward.1} parent=11 // pred_region
        _
      $region60: #{temporal_model_forward.1} parent=11 // pred_fallthru
        _
      // Predicated region
      $region61: #{temporal_model_forward.1} parent=11 // pred_check
        %p396 = pneg %p319
      $region62: #{temporal_model_forward.1} parent=11 // pred_check_branch
        %398 = sbr.rel (%p396) target = $region64
      $region63: #{temporal_model_forward.1} parent=11 // pred_region
        _
      $region64: #{temporal_model_forward.1} parent=11 // pred_fallthru
        _
    $region12: #{temporal_model_forward.1} parent=5 // pred_fallthru
      _
    %p399 = scmp.lt.s32.totalorder %s20, 4
    // Predicated region
    $region65: #{temporal_model_forward.1} parent=5 // pred_check
      %p400 = pneg %p399
    $region66: #{temporal_model_forward.1} parent=5 // pred_check_branch
      %402 = sbr.rel (%p400) target = $region68
    $region67: #{temporal_model_forward.1} parent=5 // pred_region
      // Predicated region
      $region69: #{temporal_model_forward.1} parent=67 // pred_check
        %p403 = pneg %p40
      $region70: #{temporal_model_forward.1} parent=67 // pred_check_branch
        %405 = sbr.rel (%p403) target = $region72
      $region71: #{temporal_model_forward.1} parent=67 // pred_region
        %p406 = scmp.lt.s32.totalorder %s20, 3
        %s407 = scalar_select %p406, %s20, 3
        %s408 = smul.addr %s407, 4
        %s409 = smul.addr %s408, 8
        %s410 = scalar_lea.vmem %s0, %s409
      $region72: #{temporal_model_forward.1} parent=67 // pred_fallthru
        _
    $region68: #{temporal_model_forward.1} parent=5 // pred_fallthru
      _
    %p411 = scmp.le.s32.totalorder 1, %s20
    %p412 = scmp.lt.s32.totalorder %s20, 5
    %p413 = pnand %p411, %p412
    %p414 = pneg %p413
    // Predicated region
    $region73: #{temporal_model_forward.1} parent=5 // pred_check
      _
    $region74: #{temporal_model_forward.1} parent=5 // pred_check_branch
      %416 = sbr.rel (%p413) target = $region76
    $region75: #{temporal_model_forward.1} parent=5 // pred_region
      %s417 = ssub.s32 %s20, 1
      %p418 = scmp.lt.s32.totalorder %s25, 3
      %s419 = scalar_select %p418, %s25, 3
      %s420 = smul.addr %s419, 4
      %s421 = smul.addr %s420, 8
      %s422 = scalar_lea.vmem %s0, %s421
      %p423 = pneg %p46
      %p424 = pneg %p43
      %p425 = pneg %p67
      %p426 = pneg %p64
      %p427 = pneg %p88
      %p428 = pneg %p85
      %p429 = pneg %p109
      %p430 = pneg %p106
      %p431 = pneg %p130
      %p432 = pneg %p127
      %p433 = pneg %p151
      %p434 = pneg %p148
      %p435 = pneg %p172
      %p436 = pneg %p169
      %p437 = pneg %p193
      %p438 = pneg %p190
      %p439 = pneg %p214
      %p440 = pneg %p211
      %p441 = pneg %p235
      %p442 = pneg %p232
      %p443 = pneg %p256
      %p444 = pneg %p253
      %p445 = pneg %p277
      %p446 = pneg %p274
      %p447 = pneg %p298
      %p448 = pneg %p295
      %p449 = pneg %p319
      %p450 = pneg %p316
      %p451 = pneg %p345
      %p452 = pneg %p342
      %p453 = scmp.lt.s32.totalorder %s25, 3
      %s454 = scalar_select %p453, %s25, 3
      %s455 = smul.addr %s454, 4
      %s456 = smul.addr %s455, 8
      %s457 = scalar_lea.vmem %s14, %s456
      %p458 = scmp.lt.s32.totalorder %s25, 3
      %s459 = scalar_select %p458, %s25, 3
      %s460 = smul.addr %s459, 4
      %s461 = smul.addr %s460, 8
      %s462 = scalar_lea.vmem %s0, %s461
      %p463 = scmp.lt.s32.totalorder %s25, 3
      %s464 = scalar_select %p463, %s25, 3
      %s465 = smul.addr %s464, 4
      %s466 = smul.addr %s465, 8
      %s467 = scalar_lea.vmem %s14, %s466
      %p469 = scmp.eq.s32.totalorder %s25, 0
      // Predicated region
      $region77: #{temporal_model_forward.1} parent=75 // pred_check
        %p470 = pneg %p469
      $region78: #{temporal_model_forward.1} parent=75 // pred_check_branch
        %472 = sbr.rel (%p470) target = $region80
      $region79: #{temporal_model_forward.1} parent=75 // pred_region
        %473 = vst [vmem:[#allocation4] sm:$0xff] 0.0
        %474 = vst [vmem:[#allocation4 + $0x8] sm:$0xff] 0.0
        %475 = vst [vmem:[#allocation4 + $0x10] sm:$0xff] 0.0
        %476 = vst [vmem:[#allocation4 + $0x18] sm:$0xff] 0.0
        %477 = vst [vmem:[#allocation5] sm:$0xff] 0.0
        %478 = vst [vmem:[#allocation5 + $0x8] sm:$0xff] 0.0
        %479 = vst [vmem:[#allocation5 + $0x10] sm:$0xff] 0.0
        %480 = vst [vmem:[#allocation5 + $0x18] sm:$0xff] 0.0
        %481 = vst [vmem:[#allocation6] sm:$0xff] 0.0
        %482 = vst [vmem:[#allocation6 + $0x8] sm:$0xff] 0.0
        %483 = vst [vmem:[#allocation6 + $0x10] sm:$0xff] 0.0
        %484 = vst [vmem:[#allocation6 + $0x18] sm:$0xff] 0.0
      $region80: #{temporal_model_forward.1} parent=75 // pred_fallthru
        _
      %v485 = vld [vmem:[%s462] sm:$0xff]
      %v486 = vld [vmem:[%s462 + $0x8] sm:$0xff]
      %v487 = vld [vmem:[%s462 + $0x10] sm:$0xff]
      %v488 = vld [vmem:[%s462 + $0x18] sm:$0xff]
      %v489 = vld [vmem:[#allocation4] sm:$0xff]
      %v490 = vld [vmem:[#allocation4 + $0x8] sm:$0xff]
      %v491 = vld [vmem:[#allocation4 + $0x10] sm:$0xff]
      %v492 = vld [vmem:[#allocation4 + $0x18] sm:$0xff]
      %497 = vrot.lane.b32.xlu0 %v485, 17
      %v498 = vpop.permute.xlu0 %497
      %499 = vrot.lane.b32.xlu0 %v486, 17
      %v500 = vpop.permute.xlu0 %499
      %501 = vrot.lane.b32.xlu0 %v487, 17
      %v502 = vpop.permute.xlu0 %501
      %503 = vrot.lane.b32.xlu0 %v488, 17
      %v504 = vpop.permute.xlu0 %503
      %vm505 = vcmask 138240
      %v506 = vsel %vm505, %v498, %v500
      %v507 = vsel %vm505, %v500, %v502
      %v508 = vsel %vm505, %v502, %v504
      %v513 = vsel %vm505, 0.0, %v498
      %v514 = vld [vmem:[%s1] ss:$8 sm:$0xf]
      %v516 = vlaneseq
      %v517 = vshrl.u32 %v516, 7
      %v518 = vsub.s32 0, %v517
      %v519 = vrot.slane %v514, %v518
      %v520 = vlaneseq
      %v521 = vshrl.u32 %v520, 7
      %v522 = vsub.s32 1, %v521
      %v523 = vrot.slane %v514, %v522
      %v524 = vlaneseq
      %v525 = vshrl.u32 %v524, 7
      %v526 = vsub.s32 2, %v525
      %v527 = vrot.slane %v514, %v526
      %v528 = vlaneseq
      %v529 = vshrl.u32 %v528, 7
      %v530 = vsub.s32 3, %v529
      %v531 = vrot.slane %v514, %v530
      %v536 = vmul.f32 %v513, %v519
      %v537 = vmul.f32 %v506, %v523
      %v538 = vmul.f32 %v507, %v527
      %v539 = vmul.f32 %v508, %v531
      %540 = vst [vmem:[#allocation2] sm:$0xff] %v536
      %541 = vst [vmem:[#allocation2 + $0x8] sm:$0xff] %v537
      %542 = vst [vmem:[#allocation2 + $0x10] sm:$0xff] %v538
      %543 = vst [vmem:[#allocation2 + $0x18] sm:$0xff] %v539
      %544 = vrot.lane.b32.xlu0 %v485, 16
      %v545 = vpop.permute.xlu0 %544
      %546 = vrot.lane.b32.xlu0 %v486, 16
      %v547 = vpop.permute.xlu0 %546
      %548 = vrot.lane.b32.xlu0 %v487, 16
      %v549 = vpop.permute.xlu0 %548
      %550 = vrot.lane.b32.xlu0 %v488, 16
      %v551 = vpop.permute.xlu0 %550
      %vm552 = vcmask 130048
      %v553 = vsel %vm552, %v545, %v547
      %v554 = vsel %vm552, %v547, %v549
      %v555 = vsel %vm552, %v549, %v551
      %v560 = vsel %vm552, 0.0, %v545
      %s561 = scalar_lea.vmem %s1, 1
      %v562 = vld [vmem:[%s561] ss:$8 sm:$0xf]
      %v564 = vlaneseq
      %v565 = vshrl.u32 %v564, 7
      %v566 = vsub.s32 0, %v565
      %v567 = vrot.slane %v562, %v566
      %v568 = vlaneseq
      %v569 = vshrl.u32 %v568, 7
      %v570 = vsub.s32 1, %v569
      %v571 = vrot.slane %v562, %v570
      %v572 = vlaneseq
      %v573 = vshrl.u32 %v572, 7
      %v574 = vsub.s32 2, %v573
      %v575 = vrot.slane %v562, %v574
      %v576 = vlaneseq
      %v577 = vshrl.u32 %v576, 7
      %v578 = vsub.s32 3, %v577
      %v579 = vrot.slane %v562, %v578
      %v584 = vmul.f32 %v560, %v567
      %v585 = vmul.f32 %v553, %v571
      %v586 = vmul.f32 %v554, %v575
      %v587 = vmul.f32 %v555, %v579
      %588 = vst [vmem:[#allocation2 + $0x20] sm:$0xff] %v584
      %589 = vst [vmem:[#allocation2 + $0x28] sm:$0xff] %v585
      %590 = vst [vmem:[#allocation2 + $0x30] sm:$0xff] %v586
      %591 = vst [vmem:[#allocation2 + $0x38] sm:$0xff] %v587
      %592 = vrot.lane.b32.xlu0 %v485, 15
      %v593 = vpop.permute.xlu0 %592
      %594 = vrot.lane.b32.xlu0 %v486, 15
      %v595 = vpop.permute.xlu0 %594
      %596 = vrot.lane.b32.xlu0 %v487, 15
      %v597 = vpop.permute.xlu0 %596
      %598 = vrot.lane.b32.xlu0 %v488, 15
      %v599 = vpop.permute.xlu0 %598
      %vm600 = vcmask 121856
      %v601 = vsel %vm600, %v593, %v595
      %v602 = vsel %vm600, %v595, %v597
      %v603 = vsel %vm600, %v597, %v599
      %v608 = vsel %vm600, 0.0, %v593
      %s609 = scalar_lea.vmem %s1, 2
      %v610 = vld [vmem:[%s609] ss:$8 sm:$0xf]
      %v612 = vlaneseq
      %v613 = vshrl.u32 %v612, 7
      %v614 = vsub.s32 0, %v613
      %v615 = vrot.slane %v610, %v614
      %v616 = vlaneseq
      %v617 = vshrl.u32 %v616, 7
      %v618 = vsub.s32 1, %v617
      %v619 = vrot.slane %v610, %v618
      %v620 = vlaneseq
      %v621 = vshrl.u32 %v620, 7
      %v622 = vsub.s32 2, %v621
      %v623 = vrot.slane %v610, %v622
      %v624 = vlaneseq
      %v625 = vshrl.u32 %v624, 7
      %v626 = vsub.s32 3, %v625
      %v627 = vrot.slane %v610, %v626
      %v632 = vmul.f32 %v608, %v615
      %v633 = vmul.f32 %v601, %v619
      %v634 = vmul.f32 %v602, %v623
      %v635 = vmul.f32 %v603, %v627
      %636 = vst [vmem:[#allocation2 + $0x40] sm:$0xff] %v632
      %637 = vst [vmem:[#allocation2 + $0x48] sm:$0xff] %v633
      %638 = vst [vmem:[#allocation2 + $0x50] sm:$0xff] %v634
      %639 = vst [vmem:[#allocation2 + $0x58] sm:$0xff] %v635
      %640 = vrot.lane.b32.xlu0 %v485, 1
      %v641 = vpop.permute.xlu0 %640
      %642 = vrot.lane.b32.xlu0 %v486, 1
      %v643 = vpop.permute.xlu0 %642
      %644 = vrot.lane.b32.xlu0 %v487, 1
      %v645 = vpop.permute.xlu0 %644
      %646 = vrot.lane.b32.xlu0 %v488, 1
      %v647 = vpop.permute.xlu0 %646
      %vm648 = vcmask 7168
      %v649 = vsel %vm648, %v641, %v643
      %v650 = vsel %vm648, %v643, %v645
      %v651 = vsel %vm648, %v645, %v647
      %v656 = vsel %vm648, 0.0, %v641
      %s657 = scalar_lea.vmem %s1, 3
      %v658 = vld [vmem:[%s657] ss:$8 sm:$0xf]
      %v660 = vlaneseq
      %v661 = vshrl.u32 %v660, 7
      %v662 = vsub.s32 0, %v661
      %v663 = vrot.slane %v658, %v662
      %v664 = vlaneseq
      %v665 = vshrl.u32 %v664, 7
      %v666 = vsub.s32 1, %v665
      %v667 = vrot.slane %v658, %v666
      %v668 = vlaneseq
      %v669 = vshrl.u32 %v668, 7
      %v670 = vsub.s32 2, %v669
      %v671 = vrot.slane %v658, %v670
      %v672 = vlaneseq
      %v673 = vshrl.u32 %v672, 7
      %v674 = vsub.s32 3, %v673
      %v675 = vrot.slane %v658, %v674
      %v680 = vmul.f32 %v656, %v663
      %v681 = vmul.f32 %v649, %v667
      %v682 = vmul.f32 %v650, %v671
      %v683 = vmul.f32 %v651, %v675
      %684 = vst [vmem:[#allocation2 + $0x60] sm:$0xff] %v680
      %685 = vst [vmem:[#allocation2 + $0x68] sm:$0xff] %v681
      %686 = vst [vmem:[#allocation2 + $0x70] sm:$0xff] %v682
      %687 = vst [vmem:[#allocation2 + $0x78] sm:$0xff] %v683
      %688 = vst [vmem:[#allocation2 + $0x80] sm:$0xff] %v485
      %689 = vst [vmem:[#allocation2 + $0x88] sm:$0xff] %v486
      %690 = vst [vmem:[#allocation2 + $0x90] sm:$0xff] %v487
      %691 = vst [vmem:[#allocation2 + $0x98] sm:$0xff] %v488
      %692 = vrot.lane.b32.xlu0 %v485, 127
      %v693 = vpop.permute.xlu0 %692
      %694 = vrot.lane.b32.xlu0 %v486, 127
      %v695 = vpop.permute.xlu0 %694
      %696 = vrot.lane.b32.xlu0 %v487, 127
      %v697 = vpop.permute.xlu0 %696
      %698 = vrot.lane.b32.xlu0 %v488, 127
      %v699 = vpop.permute.xlu0 %698
      %vm700 = vcmask 1039360
      %v701 = vsel %vm700, %v693, %v695
      %v702 = vsel %vm700, %v695, %v697
      %v703 = vsel %vm700, %v697, %v699
      %v708 = vsel %vm700, %v699, 0.0
      %s709 = scalar_lea.vmem %s1, 5
      %v710 = vld [vmem:[%s709] ss:$8 sm:$0xf]
      %v712 = vlaneseq
      %v713 = vshrl.u32 %v712, 7
      %v714 = vsub.s32 0, %v713
      %v715 = vrot.slane %v710, %v714
      %v716 = vlaneseq
      %v717 = vshrl.u32 %v716, 7
      %v718 = vsub.s32 1, %v717
      %v719 = vrot.slane %v710, %v718
      %v720 = vlaneseq
      %v721 = vshrl.u32 %v720, 7
      %v722 = vsub.s32 2, %v721
      %v723 = vrot.slane %v710, %v722
      %v724 = vlaneseq
      %v725 = vshrl.u32 %v724, 7
      %v726 = vsub.s32 3, %v725
      %v727 = vrot.slane %v710, %v726
      %v732 = vmul.f32 %v701, %v715
      %v733 = vmul.f32 %v702, %v719
      %v734 = vmul.f32 %v703, %v723
      %v735 = vmul.f32 %v708, %v727
      %736 = vst [vmem:[#allocation2 + $0xa0] sm:$0xff] %v732
      %737 = vst [vmem:[#allocation2 + $0xa8] sm:$0xff] %v733
      %738 = vst [vmem:[#allocation2 + $0xb0] sm:$0xff] %v734
      %739 = vst [vmem:[#allocation2 + $0xb8] sm:$0xff] %v735
      %740 = vrot.lane.b32.xlu0 %v485, 113
      %v741 = vpop.permute.xlu0 %740
      %742 = vrot.lane.b32.xlu0 %v486, 113
      %v743 = vpop.permute.xlu0 %742
      %744 = vrot.lane.b32.xlu0 %v487, 113
      %v745 = vpop.permute.xlu0 %744
      %746 = vrot.lane.b32.xlu0 %v488, 113
      %v747 = vpop.permute.xlu0 %746
      %vm748 = vcmask 924672
      %v749 = vsel %vm748, %v741, %v743
      %v750 = vsel %vm748, %v743, %v745
      %v751 = vsel %vm748, %v745, %v747
      %v756 = vsel %vm748, %v747, 0.0
      %s757 = scalar_lea.vmem %s1, 6
      %v758 = vld [vmem:[%s757] ss:$8 sm:$0xf]
      %v760 = vlaneseq
      %v761 = vshrl.u32 %v760, 7
      %v762 = vsub.s32 0, %v761
      %v763 = vrot.slane %v758, %v762
      %v764 = vlaneseq
      %v765 = vshrl.u32 %v764, 7
      %v766 = vsub.s32 1, %v765
      %v767 = vrot.slane %v758, %v766
      %v768 = vlaneseq
      %v769 = vshrl.u32 %v768, 7
      %v770 = vsub.s32 2, %v769
      %v771 = vrot.slane %v758, %v770
      %v772 = vlaneseq
      %v773 = vshrl.u32 %v772, 7
      %v774 = vsub.s32 3, %v773
      %v775 = vrot.slane %v758, %v774
      %v780 = vmul.f32 %v749, %v763
      %v781 = vmul.f32 %v750, %v767
      %v782 = vmul.f32 %v751, %v771
      %v783 = vmul.f32 %v756, %v775
      %784 = vst [vmem:[#allocation2 + $0xc0] sm:$0xff] %v780
      %785 = vst [vmem:[#allocation2 + $0xc8] sm:$0xff] %v781
      %786 = vst [vmem:[#allocation2 + $0xd0] sm:$0xff] %v782
      %787 = vst [vmem:[#allocation2 + $0xd8] sm:$0xff] %v783
      %788 = vrot.lane.b32.xlu0 %v485, 112
      %v789 = vpop.permute.xlu0 %788
      %790 = vrot.lane.b32.xlu0 %v486, 112
      %v791 = vpop.permute.xlu0 %790
      %792 = vrot.lane.b32.xlu0 %v487, 112
      %v793 = vpop.permute.xlu0 %792
      %794 = vrot.lane.b32.xlu0 %v488, 112
      %v795 = vpop.permute.xlu0 %794
      %vm796 = vcmask 916480
      %v797 = vsel %vm796, %v789, %v791
      %v798 = vsel %vm796, %v791, %v793
      %v799 = vsel %vm796, %v793, %v795
      %v804 = vsel %vm796, %v795, 0.0
      %s805 = scalar_lea.vmem %s1, 7
      %v806 = vld [vmem:[%s805] ss:$8 sm:$0xf]
      %v808 = vlaneseq
      %v809 = vshrl.u32 %v808, 7
      %v810 = vsub.s32 0, %v809
      %v811 = vrot.slane %v806, %v810
      %v812 = vlaneseq
      %v813 = vshrl.u32 %v812, 7
      %v814 = vsub.s32 1, %v813
      %v815 = vrot.slane %v806, %v814
      %v816 = vlaneseq
      %v817 = vshrl.u32 %v816, 7
      %v818 = vsub.s32 2, %v817
      %v819 = vrot.slane %v806, %v818
      %v820 = vlaneseq
      %v821 = vshrl.u32 %v820, 7
      %v822 = vsub.s32 3, %v821
      %v823 = vrot.slane %v806, %v822
      %v828 = vmul.f32 %v797, %v811
      %v829 = vmul.f32 %v798, %v815
      %v830 = vmul.f32 %v799, %v819
      %v831 = vmul.f32 %v804, %v823
      %832 = vst [vmem:[#allocation2 + $0xe0] sm:$0xff] %v828
      %833 = vst [vmem:[#allocation2 + $0xe8] sm:$0xff] %v829
      %834 = vst [vmem:[#allocation2 + $0xf0] sm:$0xff] %v830
      %835 = vst [vmem:[#allocation2 + $0xf8] sm:$0xff] %v831
      %836 = vrot.lane.b32.xlu0 %v485, 111
      %v837 = vpop.permute.xlu0 %836
      %838 = vrot.lane.b32.xlu0 %v486, 111
      %v839 = vpop.permute.xlu0 %838
      %840 = vrot.lane.b32.xlu0 %v487, 111
      %v841 = vpop.permute.xlu0 %840
      %842 = vrot.lane.b32.xlu0 %v488, 111
      %v843 = vpop.permute.xlu0 %842
      %vm844 = vcmask 908288
      %v845 = vsel %vm844, %v837, %v839
      %v846 = vsel %vm844, %v839, %v841
      %v847 = vsel %vm844, %v841, %v843
      %v852 = vsel %vm844, %v843, 0.0
      %s853 = scalar_lea.vmem %s1, 32
      %v854 = vld [vmem:[%s853] ss:$8 sm:$0xf]
      %v856 = vlaneseq
      %v857 = vshrl.u32 %v856, 7
      %v858 = vsub.s32 0, %v857
      %v859 = vrot.slane %v854, %v858
      %v860 = vlaneseq
      %v861 = vshrl.u32 %v860, 7
      %v862 = vsub.s32 1, %v861
      %v863 = vrot.slane %v854, %v862
      %v864 = vlaneseq
      %v865 = vshrl.u32 %v864, 7
      %v866 = vsub.s32 2, %v865
      %v867 = vrot.slane %v854, %v866
      %v868 = vlaneseq
      %v869 = vshrl.u32 %v868, 7
      %v870 = vsub.s32 3, %v869
      %v871 = vrot.slane %v854, %v870
      %v876 = vmul.f32 %v845, %v859
      %v877 = vmul.f32 %v846, %v863
      %v878 = vmul.f32 %v847, %v867
      %v879 = vmul.f32 %v852, %v871
      %880 = vst [vmem:[#allocation2 + $0x100] sm:$0xff] %v876
      %881 = vst [vmem:[#allocation2 + $0x108] sm:$0xff] %v877
      %882 = vst [vmem:[#allocation2 + $0x110] sm:$0xff] %v878
      %883 = vst [vmem:[#allocation2 + $0x118] sm:$0xff] %v879
      %888 = vrot.lane.b32.xlu0 %v489, 17
      %v889 = vpop.permute.xlu0 %888
      %890 = vrot.lane.b32.xlu0 %v490, 17
      %v891 = vpop.permute.xlu0 %890
      %892 = vrot.lane.b32.xlu0 %v491, 17
      %v893 = vpop.permute.xlu0 %892
      %894 = vrot.lane.b32.xlu0 %v492, 17
      %v895 = vpop.permute.xlu0 %894
      %v896 = vsel %vm505, %v889, %v891
      %v897 = vsel %vm505, %v891, %v893
      %v898 = vsel %vm505, %v893, %v895
      %v903 = vsel %vm505, 0.0, %v889
      %v904 = vld [vmem:[%s1] ss:$8 sm:$0xf]
      %v906 = vlaneseq
      %v907 = vshrl.u32 %v906, 7
      %v908 = vsub.s32 0, %v907
      %v909 = vrot.slane %v904, %v908
      %v910 = vlaneseq
      %v911 = vshrl.u32 %v910, 7
      %v912 = vsub.s32 1, %v911
      %v913 = vrot.slane %v904, %v912
      %v914 = vlaneseq
      %v915 = vshrl.u32 %v914, 7
      %v916 = vsub.s32 2, %v915
      %v917 = vrot.slane %v904, %v916
      %v918 = vlaneseq
      %v919 = vshrl.u32 %v918, 7
      %v920 = vsub.s32 3, %v919
      %v921 = vrot.slane %v904, %v920
      %v926 = vmul.f32 %v903, %v909
      %v927 = vmul.f32 %v896, %v913
      %v928 = vmul.f32 %v897, %v917
      %v929 = vmul.f32 %v898, %v921
      %930 = vst [vmem:[#allocation3] sm:$0xff] %v926
      %931 = vst [vmem:[#allocation3 + $0x8] sm:$0xff] %v927
      %932 = vst [vmem:[#allocation3 + $0x10] sm:$0xff] %v928
      %933 = vst [vmem:[#allocation3 + $0x18] sm:$0xff] %v929
      %934 = vrot.lane.b32.xlu0 %v489, 16
      %v935 = vpop.permute.xlu0 %934
      %936 = vrot.lane.b32.xlu0 %v490, 16
      %v937 = vpop.permute.xlu0 %936
      %938 = vrot.lane.b32.xlu0 %v491, 16
      %v939 = vpop.permute.xlu0 %938
      %940 = vrot.lane.b32.xlu0 %v492, 16
      %v941 = vpop.permute.xlu0 %940
      %v942 = vsel %vm552, %v935, %v937
      %v943 = vsel %vm552, %v937, %v939
      %v944 = vsel %vm552, %v939, %v941
      %v949 = vsel %vm552, 0.0, %v935
      %v950 = vld [vmem:[%s561] ss:$8 sm:$0xf]
      %v952 = vlaneseq
      %v953 = vshrl.u32 %v952, 7
      %v954 = vsub.s32 0, %v953
      %v955 = vrot.slane %v950, %v954
      %v956 = vlaneseq
      %v957 = vshrl.u32 %v956, 7
      %v958 = vsub.s32 1, %v957
      %v959 = vrot.slane %v950, %v958
      %v960 = vlaneseq
      %v961 = vshrl.u32 %v960, 7
      %v962 = vsub.s32 2, %v961
      %v963 = vrot.slane %v950, %v962
      %v964 = vlaneseq
      %v965 = vshrl.u32 %v964, 7
      %v966 = vsub.s32 3, %v965
      %v967 = vrot.slane %v950, %v966
      %v972 = vmul.f32 %v949, %v955
      %v973 = vmul.f32 %v942, %v959
      %v974 = vmul.f32 %v943, %v963
      %v975 = vmul.f32 %v944, %v967
      %976 = vst [vmem:[#allocation3 + $0x20] sm:$0xff] %v972
      %977 = vst [vmem:[#allocation3 + $0x28] sm:$0xff] %v973
      %978 = vst [vmem:[#allocation3 + $0x30] sm:$0xff] %v974
      %979 = vst [vmem:[#allocation3 + $0x38] sm:$0xff] %v975
      %980 = vrot.lane.b32.xlu0 %v489, 15
      %v981 = vpop.permute.xlu0 %980
      %982 = vrot.lane.b32.xlu0 %v490, 15
      %v983 = vpop.permute.xlu0 %982
      %984 = vrot.lane.b32.xlu0 %v491, 15
      %v985 = vpop.permute.xlu0 %984
      %986 = vrot.lane.b32.xlu0 %v492, 15
      %v987 = vpop.permute.xlu0 %986
      %v988 = vsel %vm600, %v981, %v983
      %v989 = vsel %vm600, %v983, %v985
      %v990 = vsel %vm600, %v985, %v987
      %v995 = vsel %vm600, 0.0, %v981
      %v996 = vld [vmem:[%s609] ss:$8 sm:$0xf]
      %v998 = vlaneseq
      %v999 = vshrl.u32 %v998, 7
      %v1000 = vsub.s32 0, %v999
      %v1001 = vrot.slane %v996, %v1000
      %v1002 = vlaneseq
      %v1003 = vshrl.u32 %v1002, 7
      %v1004 = vsub.s32 1, %v1003
      %v1005 = vrot.slane %v996, %v1004
      %v1006 = vlaneseq
      %v1007 = vshrl.u32 %v1006, 7
      %v1008 = vsub.s32 2, %v1007
      %v1009 = vrot.slane %v996, %v1008
      %v1010 = vlaneseq
      %v1011 = vshrl.u32 %v1010, 7
      %v1012 = vsub.s32 3, %v1011
      %v1013 = vrot.slane %v996, %v1012
      %v1018 = vmul.f32 %v995, %v1001
      %v1019 = vmul.f32 %v988, %v1005
      %v1020 = vmul.f32 %v989, %v1009
      %v1021 = vmul.f32 %v990, %v1013
      %1022 = vst [vmem:[#allocation3 + $0x40] sm:$0xff] %v1018
      %1023 = vst [vmem:[#allocation3 + $0x48] sm:$0xff] %v1019
      %1024 = vst [vmem:[#allocation3 + $0x50] sm:$0xff] %v1020
      %1025 = vst [vmem:[#allocation3 + $0x58] sm:$0xff] %v1021
      %1026 = vrot.lane.b32.xlu0 %v489, 1
      %v1027 = vpop.permute.xlu0 %1026
      %1028 = vrot.lane.b32.xlu0 %v490, 1
      %v1029 = vpop.permute.xlu0 %1028
      %1030 = vrot.lane.b32.xlu0 %v491, 1
      %v1031 = vpop.permute.xlu0 %1030
      %1032 = vrot.lane.b32.xlu0 %v492, 1
      %v1033 = vpop.permute.xlu0 %1032
      %v1034 = vsel %vm648, %v1027, %v1029
      %v1035 = vsel %vm648, %v1029, %v1031
      %v1036 = vsel %vm648, %v1031, %v1033
      %v1041 = vsel %vm648, 0.0, %v1027
      %v1042 = vld [vmem:[%s657] ss:$8 sm:$0xf]
      %v1044 = vlaneseq
      %v1045 = vshrl.u32 %v1044, 7
      %v1046 = vsub.s32 0, %v1045
      %v1047 = vrot.slane %v1042, %v1046
      %v1048 = vlaneseq
      %v1049 = vshrl.u32 %v1048, 7
      %v1050 = vsub.s32 1, %v1049
      %v1051 = vrot.slane %v1042, %v1050
      %v1052 = vlaneseq
      %v1053 = vshrl.u32 %v1052, 7
      %v1054 = vsub.s32 2, %v1053
      %v1055 = vrot.slane %v1042, %v1054
      %v1056 = vlaneseq
      %v1057 = vshrl.u32 %v1056, 7
      %v1058 = vsub.s32 3, %v1057
      %v1059 = vrot.slane %v1042, %v1058
      %v1064 = vmul.f32 %v1041, %v1047
      %v1065 = vmul.f32 %v1034, %v1051
      %v1066 = vmul.f32 %v1035, %v1055
      %v1067 = vmul.f32 %v1036, %v1059
      %1068 = vst [vmem:[#allocation3 + $0x60] sm:$0xff] %v1064
      %1069 = vst [vmem:[#allocation3 + $0x68] sm:$0xff] %v1065
      %1070 = vst [vmem:[#allocation3 + $0x70] sm:$0xff] %v1066
      %1071 = vst [vmem:[#allocation3 + $0x78] sm:$0xff] %v1067
      %1072 = vst [vmem:[#allocation3 + $0x80] sm:$0xff] %v489
      %1073 = vst [vmem:[#allocation3 + $0x88] sm:$0xff] %v490
      %1074 = vst [vmem:[#allocation3 + $0x90] sm:$0xff] %v491
      %1075 = vst [vmem:[#allocation3 + $0x98] sm:$0xff] %v492
      %1076 = vrot.lane.b32.xlu0 %v489, 127
      %v1077 = vpop.permute.xlu0 %1076
      %1078 = vrot.lane.b32.xlu0 %v490, 127
      %v1079 = vpop.permute.xlu0 %1078
      %1080 = vrot.lane.b32.xlu0 %v491, 127
      %v1081 = vpop.permute.xlu0 %1080
      %1082 = vrot.lane.b32.xlu0 %v492, 127
      %v1083 = vpop.permute.xlu0 %1082
      %v1084 = vsel %vm700, %v1077, %v1079
      %v1085 = vsel %vm700, %v1079, %v1081
      %v1086 = vsel %vm700, %v1081, %v1083
      %v1091 = vsel %vm700, %v1083, 0.0
      %v1092 = vld [vmem:[%s709] ss:$8 sm:$0xf]
      %v1094 = vlaneseq
      %v1095 = vshrl.u32 %v1094, 7
      %v1096 = vsub.s32 0, %v1095
      %v1097 = vrot.slane %v1092, %v1096
      %v1098 = vlaneseq
      %v1099 = vshrl.u32 %v1098, 7
      %v1100 = vsub.s32 1, %v1099
      %v1101 = vrot.slane %v1092, %v1100
      %v1102 = vlaneseq
      %v1103 = vshrl.u32 %v1102, 7
      %v1104 = vsub.s32 2, %v1103
      %v1105 = vrot.slane %v1092, %v1104
      %v1106 = vlaneseq
      %v1107 = vshrl.u32 %v1106, 7
      %v1108 = vsub.s32 3, %v1107
      %v1109 = vrot.slane %v1092, %v1108
      %v1114 = vmul.f32 %v1084, %v1097
      %v1115 = vmul.f32 %v1085, %v1101
      %v1116 = vmul.f32 %v1086, %v1105
      %v1117 = vmul.f32 %v1091, %v1109
      %1118 = vst [vmem:[#allocation3 + $0xa0] sm:$0xff] %v1114
      %1119 = vst [vmem:[#allocation3 + $0xa8] sm:$0xff] %v1115
      %1120 = vst [vmem:[#allocation3 + $0xb0] sm:$0xff] %v1116
      %1121 = vst [vmem:[#allocation3 + $0xb8] sm:$0xff] %v1117
      %1122 = vrot.lane.b32.xlu0 %v489, 113
      %v1123 = vpop.permute.xlu0 %1122
      %1124 = vrot.lane.b32.xlu0 %v490, 113
      %v1125 = vpop.permute.xlu0 %1124
      %1126 = vrot.lane.b32.xlu0 %v491, 113
      %v1127 = vpop.permute.xlu0 %1126
      %1128 = vrot.lane.b32.xlu0 %v492, 113
      %v1129 = vpop.permute.xlu0 %1128
      %v1130 = vsel %vm748, %v1123, %v1125
      %v1131 = vsel %vm748, %v1125, %v1127
      %v1132 = vsel %vm748, %v1127, %v1129
      %v1137 = vsel %vm748, %v1129, 0.0
      %v1138 = vld [vmem:[%s757] ss:$8 sm:$0xf]
      %v1140 = vlaneseq
      %v1141 = vshrl.u32 %v1140, 7
      %v1142 = vsub.s32 0, %v1141
      %v1143 = vrot.slane %v1138, %v1142
      %v1144 = vlaneseq
      %v1145 = vshrl.u32 %v1144, 7
      %v1146 = vsub.s32 1, %v1145
      %v1147 = vrot.slane %v1138, %v1146
      %v1148 = vlaneseq
      %v1149 = vshrl.u32 %v1148, 7
      %v1150 = vsub.s32 2, %v1149
      %v1151 = vrot.slane %v1138, %v1150
      %v1152 = vlaneseq
      %v1153 = vshrl.u32 %v1152, 7
      %v1154 = vsub.s32 3, %v1153
      %v1155 = vrot.slane %v1138, %v1154
      %v1160 = vmul.f32 %v1130, %v1143
      %v1161 = vmul.f32 %v1131, %v1147
      %v1162 = vmul.f32 %v1132, %v1151
      %v1163 = vmul.f32 %v1137, %v1155
      %1164 = vst [vmem:[#allocation3 + $0xc0] sm:$0xff] %v1160
      %1165 = vst [vmem:[#allocation3 + $0xc8] sm:$0xff] %v1161
      %1166 = vst [vmem:[#allocation3 + $0xd0] sm:$0xff] %v1162
      %1167 = vst [vmem:[#allocation3 + $0xd8] sm:$0xff] %v1163
      %1168 = vrot.lane.b32.xlu0 %v489, 112
      %v1169 = vpop.permute.xlu0 %1168
      %1170 = vrot.lane.b32.xlu0 %v490, 112
      %v1171 = vpop.permute.xlu0 %1170
      %1172 = vrot.lane.b32.xlu0 %v491, 112
      %v1173 = vpop.permute.xlu0 %1172
      %1174 = vrot.lane.b32.xlu0 %v492, 112
      %v1175 = vpop.permute.xlu0 %1174
      %v1176 = vsel %vm796, %v1169, %v1171
      %v1177 = vsel %vm796, %v1171, %v1173
      %v1178 = vsel %vm796, %v1173, %v1175
      %v1183 = vsel %vm796, %v1175, 0.0
      %v1184 = vld [vmem:[%s805] ss:$8 sm:$0xf]
      %v1186 = vlaneseq
      %v1187 = vshrl.u32 %v1186, 7
      %v1188 = vsub.s32 0, %v1187
      %v1189 = vrot.slane %v1184, %v1188
      %v1190 = vlaneseq
      %v1191 = vshrl.u32 %v1190, 7
      %v1192 = vsub.s32 1, %v1191
      %v1193 = vrot.slane %v1184, %v1192
      %v1194 = vlaneseq
      %v1195 = vshrl.u32 %v1194, 7
      %v1196 = vsub.s32 2, %v1195
      %v1197 = vrot.slane %v1184, %v1196
      %v1198 = vlaneseq
      %v1199 = vshrl.u32 %v1198, 7
      %v1200 = vsub.s32 3, %v1199
      %v1201 = vrot.slane %v1184, %v1200
      %v1206 = vmul.f32 %v1176, %v1189
      %v1207 = vmul.f32 %v1177, %v1193
      %v1208 = vmul.f32 %v1178, %v1197
      %v1209 = vmul.f32 %v1183, %v1201
      %1210 = vst [vmem:[#allocation3 + $0xe0] sm:$0xff] %v1206
      %1211 = vst [vmem:[#allocation3 + $0xe8] sm:$0xff] %v1207
      %1212 = vst [vmem:[#allocation3 + $0xf0] sm:$0xff] %v1208
      %1213 = vst [vmem:[#allocation3 + $0xf8] sm:$0xff] %v1209
      %1214 = vrot.lane.b32.xlu0 %v489, 111
      %v1215 = vpop.permute.xlu0 %1214
      %1216 = vrot.lane.b32.xlu0 %v490, 111
      %v1217 = vpop.permute.xlu0 %1216
      %1218 = vrot.lane.b32.xlu0 %v491, 111
      %v1219 = vpop.permute.xlu0 %1218
      %1220 = vrot.lane.b32.xlu0 %v492, 111
      %v1221 = vpop.permute.xlu0 %1220
      %v1222 = vsel %vm844, %v1215, %v1217
      %v1223 = vsel %vm844, %v1217, %v1219
      %v1224 = vsel %vm844, %v1219, %v1221
      %v1229 = vsel %vm844, %v1221, 0.0
      %v1230 = vld [vmem:[%s853] ss:$8 sm:$0xf]
      %v1232 = vlaneseq
      %v1233 = vshrl.u32 %v1232, 7
      %v1234 = vsub.s32 0, %v1233
      %v1235 = vrot.slane %v1230, %v1234
      %v1236 = vlaneseq
      %v1237 = vshrl.u32 %v1236, 7
      %v1238 = vsub.s32 1, %v1237
      %v1239 = vrot.slane %v1230, %v1238
      %v1240 = vlaneseq
      %v1241 = vshrl.u32 %v1240, 7
      %v1242 = vsub.s32 2, %v1241
      %v1243 = vrot.slane %v1230, %v1242
      %v1244 = vlaneseq
      %v1245 = vshrl.u32 %v1244, 7
      %v1246 = vsub.s32 3, %v1245
      %v1247 = vrot.slane %v1230, %v1246
      %v1252 = vmul.f32 %v1222, %v1235
      %v1253 = vmul.f32 %v1223, %v1239
      %v1254 = vmul.f32 %v1224, %v1243
      %v1255 = vmul.f32 %v1229, %v1247
      %1256 = vst [vmem:[#allocation3 + $0x100] sm:$0xff] %v1252
      %1257 = vst [vmem:[#allocation3 + $0x108] sm:$0xff] %v1253
      %1258 = vst [vmem:[#allocation3 + $0x110] sm:$0xff] %v1254
      %1259 = vst [vmem:[#allocation3 + $0x118] sm:$0xff] %v1255
      %v1260 = vld [vmem:[%s2] sm:$0xf]
      %v1261 = vld [vmem:[%s2 + $0x4] sm:$0xf]
      %v1262 = vld [vmem:[%s2 + $0x8] sm:$0xf]
      %v1263 = vld [vmem:[#allocation2] sm:$0xff]
      %v1264 = vld [vmem:[#allocation2 + $0x8] sm:$0xff]
      %v1265 = vld [vmem:[#allocation2 + $0x10] sm:$0xff]
      %v1266 = vld [vmem:[#allocation2 + $0x18] sm:$0xff]
      %v1267 = vld [vmem:[#allocation2 + $0x20] sm:$0xff]
      %v1268 = vld [vmem:[#allocation2 + $0x28] sm:$0xff]
      %v1269 = vld [vmem:[#allocation2 + $0x30] sm:$0xff]
      %v1270 = vld [vmem:[#allocation2 + $0x38] sm:$0xff]
      %v1271 = vld [vmem:[#allocation2 + $0x40] sm:$0xff]
      %v1272 = vld [vmem:[#allocation2 + $0x48] sm:$0xff]
      %v1273 = vld [vmem:[#allocation2 + $0x50] sm:$0xff]
      %v1274 = vld [vmem:[#allocation2 + $0x58] sm:$0xff]
      %v1275 = vld [vmem:[#allocation2 + $0x60] sm:$0xff]
      %v1276 = vld [vmem:[#allocation2 + $0x68] sm:$0xff]
      %v1277 = vld [vmem:[#allocation2 + $0x70] sm:$0xff]
      %v1278 = vld [vmem:[#allocation2 + $0x78] sm:$0xff]
      %v1279 = vld [vmem:[#allocation2 + $0x80] sm:$0xff]
      %v1280 = vld [vmem:[#allocation2 + $0x88] sm:$0xff]
      %v1281 = vld [vmem:[#allocation2 + $0x90] sm:$0xff]
      %v1282 = vld [vmem:[#allocation2 + $0x98] sm:$0xff]
      %v1283 = vld [vmem:[#allocation2 + $0xa0] sm:$0xff]
      %v1284 = vld [vmem:[#allocation2 + $0xa8] sm:$0xff]
      %v1285 = vld [vmem:[#allocation2 + $0xb0] sm:$0xff]
      %v1286 = vld [vmem:[#allocation2 + $0xb8] sm:$0xff]
      %v1287 = vld [vmem:[#allocation2 + $0xc0] sm:$0xff]
      %v1288 = vld [vmem:[#allocation2 + $0xc8] sm:$0xff]
      %v1289 = vld [vmem:[#allocation2 + $0xd0] sm:$0xff]
      %v1290 = vld [vmem:[#allocation2 + $0xd8] sm:$0xff]
      %v1291 = vld [vmem:[#allocation2 + $0xe0] sm:$0xff]
      %v1292 = vld [vmem:[#allocation2 + $0xe8] sm:$0xff]
      %v1293 = vld [vmem:[#allocation2 + $0xf0] sm:$0xff]
      %v1294 = vld [vmem:[#allocation2 + $0xf8] sm:$0xff]
      %v1295 = vld [vmem:[#allocation2 + $0x100] sm:$0xff]
      %v1296 = vld [vmem:[#allocation2 + $0x108] sm:$0xff]
      %v1297 = vld [vmem:[#allocation2 + $0x110] sm:$0xff]
      %v1298 = vld [vmem:[#allocation2 + $0x118] sm:$0xff]
      %v1299 = vpack.c.bf16 %v1267, %v1263
      %v1300 = vpack.c.bf16 %v1268, %v1264
      %v1301 = vpack.c.bf16 %v1269, %v1265
      %v1302 = vpack.c.bf16 %v1270, %v1266
      %v1303 = vpack.c.bf16 %v1275, %v1271
      %v1304 = vpack.c.bf16 %v1276, %v1272
      %v1305 = vpack.c.bf16 %v1277, %v1273
      %v1306 = vpack.c.bf16 %v1278, %v1274
      %v1307 = vpack.c.bf16 %v1283, %v1279
      %v1308 = vpack.c.bf16 %v1284, %v1280
      %v1309 = vpack.c.bf16 %v1285, %v1281
      %v1310 = vpack.c.bf16 %v1286, %v1282
      %v1311 = vpack.c.bf16 %v1291, %v1287
      %v1312 = vpack.c.bf16 %v1292, %v1288
      %v1313 = vpack.c.bf16 %v1293, %v1289
      %v1314 = vpack.c.bf16 %v1294, %v1290
      %v1315 = vpack.c.bf16 %v1295, %v1295
      %v1316 = vpack.c.bf16 %v1296, %v1296
      %v1317 = vpack.c.bf16 %v1297, %v1297
      %v1318 = vpack.c.bf16 %v1298, %v1298
      %v1319 = vld [vmem:[%s3] sm:$0xff]
      %v1320 = vld [vmem:[%s3 + $0x8] sm:$0xff]
      %v1321 = vld [vmem:[%s3 + $0x10] sm:$0xff]
      %1323 = vset.pattern.permute.xlu0 0
      %1324 = vperm.xlu0 %1323, %v1319
      %v1325 = vpop.permute.xlu0 %1324
      %1328 = vset.pattern.permute.xlu0 0
      %1329 = vperm.xlu0 %1328, %v1320
      %v1330 = vpop.permute.xlu0 %1329
      %1333 = vset.pattern.permute.xlu0 0
      %1334 = vperm.xlu0 %1333, %v1321
      %v1335 = vpop.permute.xlu0 %1334
      %v1340 = vunpack.c.l.b16 %v1260
      %v1341 = vunpack.c.l.b16 %v1261
      %v1342 = vunpack.c.l.b16 %v1262
      %v1343 = vpack.c.b16 %v1341, %v1340
      %v1344 = vpack.c.b16 %v1342, %v1342
      %vm1345 = vcmask 588800
      %v1347 = vsel %vm1345, %v1343, 0
      %v1350 = vsel %vm1345, %v1344, 0
      %vm1352 = vcmask 1043456
      %v1354 = vsel %vm1352, %v1315, 0
      %v1357 = vsel %vm1352, %v1316, 0
      %v1360 = vsel %vm1352, %v1317, 0
      %v1363 = vsel %vm1352, %v1318, 0
      %1365 = vmatprep.subr.bf16.mxu0 0
      %1366 = vmatpush1.bf16.msra.mxu0 0
      %1367 = vmatprep.subr.bf16.mxu0 0
      %1368 = vmatpush1.bf16.msra.mxu0 0
      %1369 = vmatprep.subr.bf16.mxu0 0
      %1370 = vmatpush1.bf16.msra.mxu0 0
      %1371 = vmatprep.subr.bf16.mxu0 %v1357
      %1372 = vmatpush1.bf16.msra.mxu0 %v1354
      %1373 = vmatprep.subr.bf16.mxu0 %v1312
      %1374 = vmatpush1.bf16.msra.mxu0 %v1311
      %1375 = vmatprep.subr.bf16.mxu0 %v1308
      %1376 = vmatpush1.bf16.msra.mxu0 %v1307
      %1377 = vmatprep.subr.bf16.mxu0 %v1304
      %1378 = vmatpush1.bf16.msra.mxu0 %v1303
      %1379 = vmatprep.subr.bf16.mxu0 %v1300
      %1380 = vmatpush1.bf16.msra.mxu0 %v1299
      %1381 = vmatprep.subr.bf16.mxu0 0
      %1382 = vmatpush2.bf16.msra.mxu0 0
      %1383 = vmatprep.subr.bf16.mxu0 0
      %1384 = vmatpush2.bf16.msra.mxu0 0
      %1385 = vmatprep.subr.bf16.mxu0 0
      %1386 = vmatpush2.bf16.msra.mxu0 0
      %1387 = vmatprep.subr.bf16.mxu0 0
      %1388 = vmatpush2.bf16.msra.mxu0 0
      %1389 = vmatprep.subr.bf16.mxu0 0
      %1390 = vmatpush2.bf16.msra.mxu0 0
      %1391 = vmatprep.subr.bf16.mxu0 0
      %1392 = vmatpush2.bf16.msra.mxu0 0
      %1393 = vmatprep.subr.bf16.mxu0 0
      %1394 = vmatpush2.bf16.msra.mxu0 0
      %1395 = vmatprep.subr.bf16.mxu0 0
      %1396 = vmatpush2.bf16.msra.mxu0 0
      %1397 = vmatprep.mubr.bf16.mxu0 0
      %1398 = vmatmul.mubr.bf16.gmra.mxu0 %v1347
      %v1399 = vpop.f32.mrf.mxu0
      %v1400 = vadd.f32 %v1325, %v1399
      %v1401 = vpop.f32.mrf.mxu0
      %v1402 = vadd.f32 %v1325, %v1401
      %v1403 = vpop.f32.mrf.mxu0
      %v1404 = vadd.f32 %v1330, %v1403
      %v1405 = vpop.f32.mrf.mxu0
      %v1406 = vadd.f32 %v1330, %v1405
      %1407 = vmatprep.mubr.bf16.mxu0 0
      %1408 = vmatmul.mubr.bf16.gmra.mxu0 %v1350
      %v1409 = vpop.f32.mrf.mxu0
      %v1410 = vadd.f32 %v1335, %v1409
      %v1411 = vpop.f32.mrf.mxu0
      %v1412 = vadd.f32 %v1335, %v1411
      %v1413 = vpop.f32.mrf.mxu0
      %v1414 = vpop.f32.mrf.mxu0
      %1415 = vdwg.mxu0
      %1416 = vmatprep.subr.bf16.mxu0 0
      %1417 = vmatpush1.bf16.msra.mxu0 0
      %1418 = vmatprep.subr.bf16.mxu0 0
      %1419 = vmatpush1.bf16.msra.mxu0 0
      %1420 = vmatprep.subr.bf16.mxu0 0
      %1421 = vmatpush1.bf16.msra.mxu0 0
      %1422 = vmatprep.subr.bf16.mxu0 %v1363
      %1423 = vmatpush1.bf16.msra.mxu0 %v1360
      %1424 = vmatprep.subr.bf16.mxu0 %v1314
      %1425 = vmatpush1.bf16.msra.mxu0 %v1313
      %1426 = vmatprep.subr.bf16.mxu0 %v1310
      %1427 = vmatpush1.bf16.msra.mxu0 %v1309
      %1428 = vmatprep.subr.bf16.mxu0 %v1306
      %1429 = vmatpush1.bf16.msra.mxu0 %v1305
      %1430 = vmatprep.subr.bf16.mxu0 %v1302
      %1431 = vmatpush1.bf16.msra.mxu0 %v1301
      %1432 = vmatprep.subr.bf16.mxu0 0
      %1433 = vmatpush2.bf16.msra.mxu0 0
      %1434 = vmatprep.subr.bf16.mxu0 0
      %1435 = vmatpush2.bf16.msra.mxu0 0
      %1436 = vmatprep.subr.bf16.mxu0 0
      %1437 = vmatpush2.bf16.msra.mxu0 0
      %1438 = vmatprep.subr.bf16.mxu0 0
      %1439 = vmatpush2.bf16.msra.mxu0 0
      %1440 = vmatprep.subr.bf16.mxu0 0
      %1441 = vmatpush2.bf16.msra.mxu0 0
      %1442 = vmatprep.subr.bf16.mxu0 0
      %1443 = vmatpush2.bf16.msra.mxu0 0
      %1444 = vmatprep.subr.bf16.mxu0 0
      %1445 = vmatpush2.bf16.msra.mxu0 0
      %1446 = vmatprep.subr.bf16.mxu0 0
      %1447 = vmatpush2.bf16.msra.mxu0 0
      %1448 = vmatprep.mubr.bf16.mxu0 0
      %1449 = vmatmul.mubr.bf16.gmra.mxu0 %v1347
      %v1450 = vpop.f32.mrf.mxu0
      %v1451 = vadd.f32 %v1325, %v1450
      %v1452 = vpop.f32.mrf.mxu0
      %v1453 = vadd.f32 %v1325, %v1452
      %v1454 = vpop.f32.mrf.mxu0
      %v1455 = vadd.f32 %v1330, %v1454
      %v1456 = vpop.f32.mrf.mxu0
      %v1457 = vadd.f32 %v1330, %v1456
      %1458 = vmatprep.mubr.bf16.mxu0 0
      %1459 = vmatmul.mubr.bf16.gmra.mxu0 %v1350
      %v1460 = vpop.f32.mrf.mxu0
      %v1461 = vadd.f32 %v1335, %v1460
      %v1462 = vpop.f32.mrf.mxu0
      %v1463 = vadd.f32 %v1335, %v1462
      %v1464 = vpop.f32.mrf.mxu0
      %v1465 = vpop.f32.mrf.mxu0
      %1466 = vdwg.mxu0
      %v1467 = vld [vmem:[%s4] sm:$0xf]
      %v1468 = vld [vmem:[%s4 + $0x4] sm:$0xf]
      %v1469 = vld [vmem:[#allocation3] sm:$0xff]
      %v1470 = vld [vmem:[#allocation3 + $0x8] sm:$0xff]
      %v1471 = vld [vmem:[#allocation3 + $0x10] sm:$0xff]
      %v1472 = vld [vmem:[#allocation3 + $0x18] sm:$0xff]
      %v1473 = vld [vmem:[#allocation3 + $0x20] sm:$0xff]
      %v1474 = vld [vmem:[#allocation3 + $0x28] sm:$0xff]
      %v1475 = vld [vmem:[#allocation3 + $0x30] sm:$0xff]
      %v1476 = vld [vmem:[#allocation3 + $0x38] sm:$0xff]
      %v1477 = vld [vmem:[#allocation3 + $0x40] sm:$0xff]
      %v1478 = vld [vmem:[#allocation3 + $0x48] sm:$0xff]
      %v1479 = vld [vmem:[#allocation3 + $0x50] sm:$0xff]
      %v1480 = vld [vmem:[#allocation3 + $0x58] sm:$0xff]
      %v1481 = vld [vmem:[#allocation3 + $0x60] sm:$0xff]
      %v1482 = vld [vmem:[#allocation3 + $0x68] sm:$0xff]
      %v1483 = vld [vmem:[#allocation3 + $0x70] sm:$0xff]
      %v1484 = vld [vmem:[#allocation3 + $0x78] sm:$0xff]
      %v1485 = vld [vmem:[#allocation3 + $0x80] sm:$0xff]
      %v1486 = vld [vmem:[#allocation3 + $0x88] sm:$0xff]
      %v1487 = vld [vmem:[#allocation3 + $0x90] sm:$0xff]
      %v1488 = vld [vmem:[#allocation3 + $0x98] sm:$0xff]
      %v1489 = vld [vmem:[#allocation3 + $0xa0] sm:$0xff]
      %v1490 = vld [vmem:[#allocation3 + $0xa8] sm:$0xff]
      %v1491 = vld [vmem:[#allocation3 + $0xb0] sm:$0xff]
      %v1492 = vld [vmem:[#allocation3 + $0xb8] sm:$0xff]
      %v1493 = vld [vmem:[#allocation3 + $0xc0] sm:$0xff]
      %v1494 = vld [vmem:[#allocation3 + $0xc8] sm:$0xff]
      %v1495 = vld [vmem:[#allocation3 + $0xd0] sm:$0xff]
      %v1496 = vld [vmem:[#allocation3 + $0xd8] sm:$0xff]
      %v1497 = vld [vmem:[#allocation3 + $0xe0] sm:$0xff]
      %v1498 = vld [vmem:[#allocation3 + $0xe8] sm:$0xff]
      %v1499 = vld [vmem:[#allocation3 + $0xf0] sm:$0xff]
      %v1500 = vld [vmem:[#allocation3 + $0xf8] sm:$0xff]
      %v1501 = vld [vmem:[#allocation3 + $0x100] sm:$0xff]
      %v1502 = vld [vmem:[#allocation3 + $0x108] sm:$0xff]
      %v1503 = vld [vmem:[#allocation3 + $0x110] sm:$0xff]
      %v1504 = vld [vmem:[#allocation3 + $0x118] sm:$0xff]
      %v1505 = vpack.c.bf16 %v1473, %v1469
      %v1506 = vpack.c.bf16 %v1474, %v1470
      %v1507 = vpack.c.bf16 %v1475, %v1471
      %v1508 = vpack.c.bf16 %v1476, %v1472
      %v1509 = vpack.c.bf16 %v1481, %v1477
      %v1510 = vpack.c.bf16 %v1482, %v1478
      %v1511 = vpack.c.bf16 %v1483, %v1479
      %v1512 = vpack.c.bf16 %v1484, %v1480
      %v1513 = vpack.c.bf16 %v1489, %v1485
      %v1514 = vpack.c.bf16 %v1490, %v1486
      %v1515 = vpack.c.bf16 %v1491, %v1487
      %v1516 = vpack.c.bf16 %v1492, %v1488
      %v1517 = vpack.c.bf16 %v1497, %v1493
      %v1518 = vpack.c.bf16 %v1498, %v1494
      %v1519 = vpack.c.bf16 %v1499, %v1495
      %v1520 = vpack.c.bf16 %v1500, %v1496
      %v1521 = vpack.c.bf16 %v1501, %v1501
      %v1522 = vpack.c.bf16 %v1502, %v1502
      %v1523 = vpack.c.bf16 %v1503, %v1503
      %v1524 = vpack.c.bf16 %v1504, %v1504
      %v1527 = vunpack.c.l.b16 %v1467
      %v1528 = vunpack.c.l.b16 %v1468
      %v1529 = vpack.c.b16 %v1528, %v1527
      %v1531 = vsel %vm1345, %v1529, 0
      %v1534 = vsel %vm1352, %v1521, 0
      %v1537 = vsel %vm1352, %v1522, 0
      %v1540 = vsel %vm1352, %v1523, 0
      %v1543 = vsel %vm1352, %v1524, 0
      %1545 = vmatprep.subr.bf16.mxu0 0
      %1546 = vmatpush1.bf16.msra.mxu0 0
      %1547 = vmatprep.subr.bf16.mxu0 0
      %1548 = vmatpush1.bf16.msra.mxu0 0
      %1549 = vmatprep.subr.bf16.mxu0 0
      %1550 = vmatpush1.bf16.msra.mxu0 0
      %1551 = vmatprep.subr.bf16.mxu0 %v1537
      %1552 = vmatpush1.bf16.msra.mxu0 %v1534
      %1553 = vmatprep.subr.bf16.mxu0 %v1518
      %1554 = vmatpush1.bf16.msra.mxu0 %v1517
      %1555 = vmatprep.subr.bf16.mxu0 %v1514
      %1556 = vmatpush1.bf16.msra.mxu0 %v1513
      %1557 = vmatprep.subr.bf16.mxu0 %v1510
      %1558 = vmatpush1.bf16.msra.mxu0 %v1509
      %1559 = vmatprep.subr.bf16.mxu0 %v1506
      %1560 = vmatpush1.bf16.msra.mxu0 %v1505
      %1561 = vmatprep.subr.bf16.mxu0 0
      %1562 = vmatpush2.bf16.msra.mxu0 0
      %1563 = vmatprep.subr.bf16.mxu0 0
      %1564 = vmatpush2.bf16.msra.mxu0 0
      %1565 = vmatprep.subr.bf16.mxu0 0
      %1566 = vmatpush2.bf16.msra.mxu0 0
      %1567 = vmatprep.subr.bf16.mxu0 0
      %1568 = vmatpush2.bf16.msra.mxu0 0
      %1569 = vmatprep.subr.bf16.mxu0 0
      %1570 = vmatpush2.bf16.msra.mxu0 0
      %1571 = vmatprep.subr.bf16.mxu0 0
      %1572 = vmatpush2.bf16.msra.mxu0 0
      %1573 = vmatprep.subr.bf16.mxu0 0
      %1574 = vmatpush2.bf16.msra.mxu0 0
      %1575 = vmatprep.subr.bf16.mxu0 0
      %1576 = vmatpush2.bf16.msra.mxu0 0
      %1577 = vmatprep.mubr.bf16.mxu0 0
      %1578 = vmatmul.mubr.bf16.gmra.mxu0 %v1531
      %v1579 = vpop.f32.mrf.mxu0
      %v1580 = vadd.f32 0.0, %v1579
      %v1581 = vpop.f32.mrf.mxu0
      %v1582 = vadd.f32 0.0, %v1581
      %v1583 = vpop.f32.mrf.mxu0
      %v1584 = vadd.f32 0.0, %v1583
      %v1585 = vpop.f32.mrf.mxu0
      %v1586 = vadd.f32 0.0, %v1585
      %1587 = vdwg.mxu0
      %1588 = vmatprep.subr.bf16.mxu0 0
      %1589 = vmatpush1.bf16.msra.mxu0 0
      %1590 = vmatprep.subr.bf16.mxu0 0
      %1591 = vmatpush1.bf16.msra.mxu0 0
      %1592 = vmatprep.subr.bf16.mxu0 0
      %1593 = vmatpush1.bf16.msra.mxu0 0
      %1594 = vmatprep.subr.bf16.mxu0 %v1543
      %1595 = vmatpush1.bf16.msra.mxu0 %v1540
      %1596 = vmatprep.subr.bf16.mxu0 %v1520
      %1597 = vmatpush1.bf16.msra.mxu0 %v1519
      %1598 = vmatprep.subr.bf16.mxu0 %v1516
      %1599 = vmatpush1.bf16.msra.mxu0 %v1515
      %1600 = vmatprep.subr.bf16.mxu0 %v1512
      %1601 = vmatpush1.bf16.msra.mxu0 %v1511
      %1602 = vmatprep.subr.bf16.mxu0 %v1508
      %1603 = vmatpush1.bf16.msra.mxu0 %v1507
      %1604 = vmatprep.subr.bf16.mxu0 0
      %1605 = vmatpush2.bf16.msra.mxu0 0
      %1606 = vmatprep.subr.bf16.mxu0 0
      %1607 = vmatpush2.bf16.msra.mxu0 0
      %1608 = vmatprep.subr.bf16.mxu0 0
      %1609 = vmatpush2.bf16.msra.mxu0 0
      %1610 = vmatprep.subr.bf16.mxu0 0
      %1611 = vmatpush2.bf16.msra.mxu0 0
      %1612 = vmatprep.subr.bf16.mxu0 0
      %1613 = vmatpush2.bf16.msra.mxu0 0
      %1614 = vmatprep.subr.bf16.mxu0 0
      %1615 = vmatpush2.bf16.msra.mxu0 0
      %1616 = vmatprep.subr.bf16.mxu0 0
      %1617 = vmatpush2.bf16.msra.mxu0 0
      %1618 = vmatprep.subr.bf16.mxu0 0
      %1619 = vmatpush2.bf16.msra.mxu0 0
      %1620 = vmatprep.mubr.bf16.mxu0 0
      %1621 = vmatmul.mubr.bf16.gmra.mxu0 %v1531
      %v1622 = vpop.f32.mrf.mxu0
      %v1623 = vadd.f32 0.0, %v1622
      %v1624 = vpop.f32.mrf.mxu0
      %v1625 = vadd.f32 0.0, %v1624
      %v1626 = vpop.f32.mrf.mxu0
      %v1627 = vadd.f32 0.0, %v1626
      %v1628 = vpop.f32.mrf.mxu0
      %v1629 = vadd.f32 0.0, %v1628
      %1630 = vdwg.mxu0
      %v1631 = vadd.f32 %v1400, %v1580
      %v1632 = vadd.f32 %v1402, %v1582
      %v1633 = vadd.f32 %v1451, %v1623
      %v1634 = vadd.f32 %v1453, %v1625
      %v1635 = vxor.u32 %v1631, 2147483648
      %v1636 = vxor.u32 %v1632, 2147483648
      %v1637 = vxor.u32 %v1633, 2147483648
      %v1638 = vxor.u32 %v1634, 2147483648
      %v1639 = vmul.f32 %v1635, 1.442695
      %v1640 = vpow.pop %v1639
      %v1641 = vmul.f32 %v1636, 1.442695
      %v1642 = vpow.pop %v1641
      %v1643 = vmul.f32 %v1637, 1.442695
      %v1644 = vpow.pop %v1643
      %v1645 = vmul.f32 %v1638, 1.442695
      %v1646 = vpow.pop %v1645
      %v1647 = vadd.f32 %v1640, 1.0
      %v1648 = vadd.f32 %v1642, 1.0
      %v1649 = vadd.f32 %v1644, 1.0
      %v1650 = vadd.f32 %v1646, 1.0
      %v1651 = vrcp.pop %v1647
      %v1652 = vmul.f32 1.0, %v1651
      %v1653 = vrcp.pop %v1648
      %v1654 = vmul.f32 1.0, %v1653
      %v1655 = vrcp.pop %v1649
      %v1656 = vmul.f32 1.0, %v1655
      %v1657 = vrcp.pop %v1650
      %v1658 = vmul.f32 1.0, %v1657
      %v1659 = vadd.f32 %v1404, %v1584
      %v1660 = vadd.f32 %v1406, %v1586
      %v1661 = vadd.f32 %v1455, %v1627
      %v1662 = vadd.f32 %v1457, %v1629
      %v1663 = vxor.u32 %v1659, 2147483648
      %v1664 = vxor.u32 %v1660, 2147483648
      %v1665 = vxor.u32 %v1661, 2147483648
      %v1666 = vxor.u32 %v1662, 2147483648
      %v1667 = vmul.f32 %v1663, 1.442695
      %v1668 = vpow.pop %v1667
      %v1669 = vmul.f32 %v1664, 1.442695
      %v1670 = vpow.pop %v1669
      %v1671 = vmul.f32 %v1665, 1.442695
      %v1672 = vpow.pop %v1671
      %v1673 = vmul.f32 %v1666, 1.442695
      %v1674 = vpow.pop %v1673
      %v1675 = vadd.f32 %v1668, 1.0
      %v1676 = vadd.f32 %v1670, 1.0
      %v1677 = vadd.f32 %v1672, 1.0
      %v1678 = vadd.f32 %v1674, 1.0
      %v1679 = vrcp.pop %v1675
      %v1680 = vmul.f32 1.0, %v1679
      %v1681 = vrcp.pop %v1676
      %v1682 = vmul.f32 1.0, %v1681
      %v1683 = vrcp.pop %v1677
      %v1684 = vmul.f32 1.0, %v1683
      %v1685 = vrcp.pop %v1678
      %v1686 = vmul.f32 1.0, %v1685
      %v1687 = vsub.f32 1.0, %v1680
      %v1688 = vsub.f32 1.0, %v1682
      %v1689 = vsub.f32 1.0, %v1684
      %v1690 = vsub.f32 1.0, %v1686
      %v1691 = vmul.f32 %v1687, %v489
      %v1692 = vmul.f32 %v1688, %v490
      %v1693 = vmul.f32 %v1689, %v491
      %v1694 = vmul.f32 %v1690, %v492
      %1699 = vrot.lane.b32.xlu0 %v1691, 17
      %v1700 = vpop.permute.xlu0 %1699
      %1701 = vrot.lane.b32.xlu0 %v1692, 17
      %v1702 = vpop.permute.xlu0 %1701
      %1703 = vrot.lane.b32.xlu0 %v1693, 17
      %v1704 = vpop.permute.xlu0 %1703
      %1705 = vrot.lane.b32.xlu0 %v1694, 17
      %v1706 = vpop.permute.xlu0 %1705
      %v1707 = vsel %vm505, %v1700, %v1702
      %v1708 = vsel %vm505, %v1702, %v1704
      %v1709 = vsel %vm505, %v1704, %v1706
      %v1714 = vsel %vm505, 0.0, %v1700
      %v1715 = vld [vmem:[%s1] ss:$8 sm:$0xf]
      %v1717 = vlaneseq
      %v1718 = vshrl.u32 %v1717, 7
      %v1719 = vsub.s32 0, %v1718
      %v1720 = vrot.slane %v1715, %v1719
      %v1721 = vlaneseq
      %v1722 = vshrl.u32 %v1721, 7
      %v1723 = vsub.s32 1, %v1722
      %v1724 = vrot.slane %v1715, %v1723
      %v1725 = vlaneseq
      %v1726 = vshrl.u32 %v1725, 7
      %v1727 = vsub.s32 2, %v1726
      %v1728 = vrot.slane %v1715, %v1727
      %v1729 = vlaneseq
      %v1730 = vshrl.u32 %v1729, 7
      %v1731 = vsub.s32 3, %v1730
      %v1732 = vrot.slane %v1715, %v1731
      %v1737 = vmul.f32 %v1714, %v1720
      %v1738 = vmul.f32 %v1707, %v1724
      %v1739 = vmul.f32 %v1708, %v1728
      %v1740 = vmul.f32 %v1709, %v1732
      %1741 = vst [vmem:[#allocation3] sm:$0xff] %v1737
      %1742 = vst [vmem:[#allocation3 + $0x8] sm:$0xff] %v1738
      %1743 = vst [vmem:[#allocation3 + $0x10] sm:$0xff] %v1739
      %1744 = vst [vmem:[#allocation3 + $0x18] sm:$0xff] %v1740
      %1745 = vrot.lane.b32.xlu0 %v1691, 16
      %v1746 = vpop.permute.xlu0 %1745
      %1747 = vrot.lane.b32.xlu0 %v1692, 16
      %v1748 = vpop.permute.xlu0 %1747
      %1749 = vrot.lane.b32.xlu0 %v1693, 16
      %v1750 = vpop.permute.xlu0 %1749
      %1751 = vrot.lane.b32.xlu0 %v1694, 16
      %v1752 = vpop.permute.xlu0 %1751
      %v1753 = vsel %vm552, %v1746, %v1748
      %v1754 = vsel %vm552, %v1748, %v1750
      %v1755 = vsel %vm552, %v1750, %v1752
      %v1760 = vsel %vm552, 0.0, %v1746
      %v1761 = vld [vmem:[%s561] ss:$8 sm:$0xf]
      %v1763 = vlaneseq
      %v1764 = vshrl.u32 %v1763, 7
      %v1765 = vsub.s32 0, %v1764
      %v1766 = vrot.slane %v1761, %v1765
      %v1767 = vlaneseq
      %v1768 = vshrl.u32 %v1767, 7
      %v1769 = vsub.s32 1, %v1768
      %v1770 = vrot.slane %v1761, %v1769
      %v1771 = vlaneseq
      %v1772 = vshrl.u32 %v1771, 7
      %v1773 = vsub.s32 2, %v1772
      %v1774 = vrot.slane %v1761, %v1773
      %v1775 = vlaneseq
      %v1776 = vshrl.u32 %v1775, 7
      %v1777 = vsub.s32 3, %v1776
      %v1778 = vrot.slane %v1761, %v1777
      %v1783 = vmul.f32 %v1760, %v1766
      %v1784 = vmul.f32 %v1753, %v1770
      %v1785 = vmul.f32 %v1754, %v1774
      %v1786 = vmul.f32 %v1755, %v1778
      %1787 = vst [vmem:[#allocation3 + $0x20] sm:$0xff] %v1783
      %1788 = vst [vmem:[#allocation3 + $0x28] sm:$0xff] %v1784
      %1789 = vst [vmem:[#allocation3 + $0x30] sm:$0xff] %v1785
      %1790 = vst [vmem:[#allocation3 + $0x38] sm:$0xff] %v1786
      %1791 = vrot.lane.b32.xlu0 %v1691, 15
      %v1792 = vpop.permute.xlu0 %1791
      %1793 = vrot.lane.b32.xlu0 %v1692, 15
      %v1794 = vpop.permute.xlu0 %1793
      %1795 = vrot.lane.b32.xlu0 %v1693, 15
      %v1796 = vpop.permute.xlu0 %1795
      %1797 = vrot.lane.b32.xlu0 %v1694, 15
      %v1798 = vpop.permute.xlu0 %1797
      %v1799 = vsel %vm600, %v1792, %v1794
      %v1800 = vsel %vm600, %v1794, %v1796
      %v1801 = vsel %vm600, %v1796, %v1798
      %v1806 = vsel %vm600, 0.0, %v1792
      %v1807 = vld [vmem:[%s609] ss:$8 sm:$0xf]
      %v1809 = vlaneseq
      %v1810 = vshrl.u32 %v1809, 7
      %v1811 = vsub.s32 0, %v1810
      %v1812 = vrot.slane %v1807, %v1811
      %v1813 = vlaneseq
      %v1814 = vshrl.u32 %v1813, 7
      %v1815 = vsub.s32 1, %v1814
      %v1816 = vrot.slane %v1807, %v1815
      %v1817 = vlaneseq
      %v1818 = vshrl.u32 %v1817, 7
      %v1819 = vsub.s32 2, %v1818
      %v1820 = vrot.slane %v1807, %v1819
      %v1821 = vlaneseq
      %v1822 = vshrl.u32 %v1821, 7
      %v1823 = vsub.s32 3, %v1822
      %v1824 = vrot.slane %v1807, %v1823
      %v1829 = vmul.f32 %v1806, %v1812
      %v1830 = vmul.f32 %v1799, %v1816
      %v1831 = vmul.f32 %v1800, %v1820
      %v1832 = vmul.f32 %v1801, %v1824
      %1833 = vst [vmem:[#allocation3 + $0x40] sm:$0xff] %v1829
      %1834 = vst [vmem:[#allocation3 + $0x48] sm:$0xff] %v1830
      %1835 = vst [vmem:[#allocation3 + $0x50] sm:$0xff] %v1831
      %1836 = vst [vmem:[#allocation3 + $0x58] sm:$0xff] %v1832
      %1837 = vrot.lane.b32.xlu0 %v1691, 1
      %v1838 = vpop.permute.xlu0 %1837
      %1839 = vrot.lane.b32.xlu0 %v1692, 1
      %v1840 = vpop.permute.xlu0 %1839
      %1841 = vrot.lane.b32.xlu0 %v1693, 1
      %v1842 = vpop.permute.xlu0 %1841
      %1843 = vrot.lane.b32.xlu0 %v1694, 1
      %v1844 = vpop.permute.xlu0 %1843
      %v1845 = vsel %vm648, %v1838, %v1840
      %v1846 = vsel %vm648, %v1840, %v1842
      %v1847 = vsel %vm648, %v1842, %v1844
      %v1852 = vsel %vm648, 0.0, %v1838
      %v1853 = vld [vmem:[%s657] ss:$8 sm:$0xf]
      %v1855 = vlaneseq
      %v1856 = vshrl.u32 %v1855, 7
      %v1857 = vsub.s32 0, %v1856
      %v1858 = vrot.slane %v1853, %v1857
      %v1859 = vlaneseq
      %v1860 = vshrl.u32 %v1859, 7
      %v1861 = vsub.s32 1, %v1860
      %v1862 = vrot.slane %v1853, %v1861
      %v1863 = vlaneseq
      %v1864 = vshrl.u32 %v1863, 7
      %v1865 = vsub.s32 2, %v1864
      %v1866 = vrot.slane %v1853, %v1865
      %v1867 = vlaneseq
      %v1868 = vshrl.u32 %v1867, 7
      %v1869 = vsub.s32 3, %v1868
      %v1870 = vrot.slane %v1853, %v1869
      %v1875 = vmul.f32 %v1852, %v1858
      %v1876 = vmul.f32 %v1845, %v1862
      %v1877 = vmul.f32 %v1846, %v1866
      %v1878 = vmul.f32 %v1847, %v1870
      %1879 = vst [vmem:[#allocation3 + $0x60] sm:$0xff] %v1875
      %1880 = vst [vmem:[#allocation3 + $0x68] sm:$0xff] %v1876
      %1881 = vst [vmem:[#allocation3 + $0x70] sm:$0xff] %v1877
      %1882 = vst [vmem:[#allocation3 + $0x78] sm:$0xff] %v1878
      %1883 = vst [vmem:[#allocation3 + $0x80] sm:$0xff] %v1691
      %1884 = vst [vmem:[#allocation3 + $0x88] sm:$0xff] %v1692
      %1885 = vst [vmem:[#allocation3 + $0x90] sm:$0xff] %v1693
      %1886 = vst [vmem:[#allocation3 + $0x98] sm:$0xff] %v1694
      %1887 = vrot.lane.b32.xlu0 %v1691, 127
      %v1888 = vpop.permute.xlu0 %1887
      %1889 = vrot.lane.b32.xlu0 %v1692, 127
      %v1890 = vpop.permute.xlu0 %1889
      %1891 = vrot.lane.b32.xlu0 %v1693, 127
      %v1892 = vpop.permute.xlu0 %1891
      %1893 = vrot.lane.b32.xlu0 %v1694, 127
      %v1894 = vpop.permute.xlu0 %1893
      %v1895 = vsel %vm700, %v1888, %v1890
      %v1896 = vsel %vm700, %v1890, %v1892
      %v1897 = vsel %vm700, %v1892, %v1894
      %v1902 = vsel %vm700, %v1894, 0.0
      %v1903 = vld [vmem:[%s709] ss:$8 sm:$0xf]
      %v1905 = vlaneseq
      %v1906 = vshrl.u32 %v1905, 7
      %v1907 = vsub.s32 0, %v1906
      %v1908 = vrot.slane %v1903, %v1907
      %v1909 = vlaneseq
      %v1910 = vshrl.u32 %v1909, 7
      %v1911 = vsub.s32 1, %v1910
      %v1912 = vrot.slane %v1903, %v1911
      %v1913 = vlaneseq
      %v1914 = vshrl.u32 %v1913, 7
      %v1915 = vsub.s32 2, %v1914
      %v1916 = vrot.slane %v1903, %v1915
      %v1917 = vlaneseq
      %v1918 = vshrl.u32 %v1917, 7
      %v1919 = vsub.s32 3, %v1918
      %v1920 = vrot.slane %v1903, %v1919
      %v1925 = vmul.f32 %v1895, %v1908
      %v1926 = vmul.f32 %v1896, %v1912
      %v1927 = vmul.f32 %v1897, %v1916
      %v1928 = vmul.f32 %v1902, %v1920
      %1929 = vst [vmem:[#allocation3 + $0xa0] sm:$0xff] %v1925
      %1930 = vst [vmem:[#allocation3 + $0xa8] sm:$0xff] %v1926
      %1931 = vst [vmem:[#allocation3 + $0xb0] sm:$0xff] %v1927
      %1932 = vst [vmem:[#allocation3 + $0xb8] sm:$0xff] %v1928
      %1933 = vrot.lane.b32.xlu0 %v1691, 113
      %v1934 = vpop.permute.xlu0 %1933
      %1935 = vrot.lane.b32.xlu0 %v1692, 113
      %v1936 = vpop.permute.xlu0 %1935
      %1937 = vrot.lane.b32.xlu0 %v1693, 113
      %v1938 = vpop.permute.xlu0 %1937
      %1939 = vrot.lane.b32.xlu0 %v1694, 113
      %v1940 = vpop.permute.xlu0 %1939
      %v1941 = vsel %vm748, %v1934, %v1936
      %v1942 = vsel %vm748, %v1936, %v1938
      %v1943 = vsel %vm748, %v1938, %v1940
      %v1948 = vsel %vm748, %v1940, 0.0
      %v1949 = vld [vmem:[%s757] ss:$8 sm:$0xf]
      %v1951 = vlaneseq
      %v1952 = vshrl.u32 %v1951, 7
      %v1953 = vsub.s32 0, %v1952
      %v1954 = vrot.slane %v1949, %v1953
      %v1955 = vlaneseq
      %v1956 = vshrl.u32 %v1955, 7
      %v1957 = vsub.s32 1, %v1956
      %v1958 = vrot.slane %v1949, %v1957
      %v1959 = vlaneseq
      %v1960 = vshrl.u32 %v1959, 7
      %v1961 = vsub.s32 2, %v1960
      %v1962 = vrot.slane %v1949, %v1961
      %v1963 = vlaneseq
      %v1964 = vshrl.u32 %v1963, 7
      %v1965 = vsub.s32 3, %v1964
      %v1966 = vrot.slane %v1949, %v1965
      %v1971 = vmul.f32 %v1941, %v1954
      %v1972 = vmul.f32 %v1942, %v1958
      %v1973 = vmul.f32 %v1943, %v1962
      %v1974 = vmul.f32 %v1948, %v1966
      %1975 = vst [vmem:[#allocation3 + $0xc0] sm:$0xff] %v1971
      %1976 = vst [vmem:[#allocation3 + $0xc8] sm:$0xff] %v1972
      %1977 = vst [vmem:[#allocation3 + $0xd0] sm:$0xff] %v1973
      %1978 = vst [vmem:[#allocation3 + $0xd8] sm:$0xff] %v1974
      %1979 = vrot.lane.b32.xlu0 %v1691, 112
      %v1980 = vpop.permute.xlu0 %1979
      %1981 = vrot.lane.b32.xlu0 %v1692, 112
      %v1982 = vpop.permute.xlu0 %1981
      %1983 = vrot.lane.b32.xlu0 %v1693, 112
      %v1984 = vpop.permute.xlu0 %1983
      %1985 = vrot.lane.b32.xlu0 %v1694, 112
      %v1986 = vpop.permute.xlu0 %1985
      %v1987 = vsel %vm796, %v1980, %v1982
      %v1988 = vsel %vm796, %v1982, %v1984
      %v1989 = vsel %vm796, %v1984, %v1986
      %v1994 = vsel %vm796, %v1986, 0.0
      %v1995 = vld [vmem:[%s805] ss:$8 sm:$0xf]
      %v1997 = vlaneseq
      %v1998 = vshrl.u32 %v1997, 7
      %v1999 = vsub.s32 0, %v1998
      %v2000 = vrot.slane %v1995, %v1999
      %v2001 = vlaneseq
      %v2002 = vshrl.u32 %v2001, 7
      %v2003 = vsub.s32 1, %v2002
      %v2004 = vrot.slane %v1995, %v2003
      %v2005 = vlaneseq
      %v2006 = vshrl.u32 %v2005, 7
      %v2007 = vsub.s32 2, %v2006
      %v2008 = vrot.slane %v1995, %v2007
      %v2009 = vlaneseq
      %v2010 = vshrl.u32 %v2009, 7
      %v2011 = vsub.s32 3, %v2010
      %v2012 = vrot.slane %v1995, %v2011
      %v2017 = vmul.f32 %v1987, %v2000
      %v2018 = vmul.f32 %v1988, %v2004
      %v2019 = vmul.f32 %v1989, %v2008
      %v2020 = vmul.f32 %v1994, %v2012
      %2021 = vst [vmem:[#allocation3 + $0xe0] sm:$0xff] %v2017
      %2022 = vst [vmem:[#allocation3 + $0xe8] sm:$0xff] %v2018
      %2023 = vst [vmem:[#allocation3 + $0xf0] sm:$0xff] %v2019
      %2024 = vst [vmem:[#allocation3 + $0xf8] sm:$0xff] %v2020
      %2025 = vrot.lane.b32.xlu0 %v1691, 111
      %v2026 = vpop.permute.xlu0 %2025
      %2027 = vrot.lane.b32.xlu0 %v1692, 111
      %v2028 = vpop.permute.xlu0 %2027
      %2029 = vrot.lane.b32.xlu0 %v1693, 111
      %v2030 = vpop.permute.xlu0 %2029
      %2031 = vrot.lane.b32.xlu0 %v1694, 111
      %v2032 = vpop.permute.xlu0 %2031
      %v2033 = vsel %vm844, %v2026, %v2028
      %v2034 = vsel %vm844, %v2028, %v2030
      %v2035 = vsel %vm844, %v2030, %v2032
      %v2040 = vsel %vm844, %v2032, 0.0
      %v2041 = vld [vmem:[%s853] ss:$8 sm:$0xf]
      %v2043 = vlaneseq
      %v2044 = vshrl.u32 %v2043, 7
      %v2045 = vsub.s32 0, %v2044
      %v2046 = vrot.slane %v2041, %v2045
      %v2047 = vlaneseq
      %v2048 = vshrl.u32 %v2047, 7
      %v2049 = vsub.s32 1, %v2048
      %v2050 = vrot.slane %v2041, %v2049
      %v2051 = vlaneseq
      %v2052 = vshrl.u32 %v2051, 7
      %v2053 = vsub.s32 2, %v2052
      %v2054 = vrot.slane %v2041, %v2053
      %v2055 = vlaneseq
      %v2056 = vshrl.u32 %v2055, 7
      %v2057 = vsub.s32 3, %v2056
      %v2058 = vrot.slane %v2041, %v2057
      %v2063 = vmul.f32 %v2033, %v2046
      %v2064 = vmul.f32 %v2034, %v2050
      %v2065 = vmul.f32 %v2035, %v2054
      %v2066 = vmul.f32 %v2040, %v2058
      %2067 = vst [vmem:[#allocation3 + $0x100] sm:$0xff] %v2063
      %2068 = vst [vmem:[#allocation3 + $0x108] sm:$0xff] %v2064
      %2069 = vst [vmem:[#allocation3 + $0x110] sm:$0xff] %v2065
      %2070 = vst [vmem:[#allocation3 + $0x118] sm:$0xff] %v2066
      %v2071 = vld [vmem:[%s5] sm:$0xf]
      %v2072 = vld [vmem:[#allocation3] sm:$0xff]
      %v2073 = vld [vmem:[#allocation3 + $0x8] sm:$0xff]
      %v2074 = vld [vmem:[#allocation3 + $0x10] sm:$0xff]
      %v2075 = vld [vmem:[#allocation3 + $0x18] sm:$0xff]
      %v2076 = vld [vmem:[#allocation3 + $0x20] sm:$0xff]
      %v2077 = vld [vmem:[#allocation3 + $0x28] sm:$0xff]
      %v2078 = vld [vmem:[#allocation3 + $0x30] sm:$0xff]
      %v2079 = vld [vmem:[#allocation3 + $0x38] sm:$0xff]
      %v2080 = vld [vmem:[#allocation3 + $0x40] sm:$0xff]
      %v2081 = vld [vmem:[#allocation3 + $0x48] sm:$0xff]
      %v2082 = vld [vmem:[#allocation3 + $0x50] sm:$0xff]
      %v2083 = vld [vmem:[#allocation3 + $0x58] sm:$0xff]
      %v2084 = vld [vmem:[#allocation3 + $0x60] sm:$0xff]
      %v2085 = vld [vmem:[#allocation3 + $0x68] sm:$0xff]
      %v2086 = vld [vmem:[#allocation3 + $0x70] sm:$0xff]
      %v2087 = vld [vmem:[#allocation3 + $0x78] sm:$0xff]
      %v2088 = vld [vmem:[#allocation3 + $0x80] sm:$0xff]
      %v2089 = vld [vmem:[#allocation3 + $0x88] sm:$0xff]
      %v2090 = vld [vmem:[#allocation3 + $0x90] sm:$0xff]
      %v2091 = vld [vmem:[#allocation3 + $0x98] sm:$0xff]
      %v2092 = vld [vmem:[#allocation3 + $0xa0] sm:$0xff]
      %v2093 = vld [vmem:[#allocation3 + $0xa8] sm:$0xff]
      %v2094 = vld [vmem:[#allocation3 + $0xb0] sm:$0xff]
      %v2095 = vld [vmem:[#allocation3 + $0xb8] sm:$0xff]
      %v2096 = vld [vmem:[#allocation3 + $0xc0] sm:$0xff]
      %v2097 = vld [vmem:[#allocation3 + $0xc8] sm:$0xff]
      %v2098 = vld [vmem:[#allocation3 + $0xd0] sm:$0xff]
      %v2099 = vld [vmem:[#allocation3 + $0xd8] sm:$0xff]
      %v2100 = vld [vmem:[#allocation3 + $0xe0] sm:$0xff]
      %v2101 = vld [vmem:[#allocation3 + $0xe8] sm:$0xff]
      %v2102 = vld [vmem:[#allocation3 + $0xf0] sm:$0xff]
      %v2103 = vld [vmem:[#allocation3 + $0xf8] sm:$0xff]
      %v2104 = vld [vmem:[#allocation3 + $0x100] sm:$0xff]
      %v2105 = vld [vmem:[#allocation3 + $0x108] sm:$0xff]
      %v2106 = vld [vmem:[#allocation3 + $0x110] sm:$0xff]
      %v2107 = vld [vmem:[#allocation3 + $0x118] sm:$0xff]
      %v2108 = vpack.c.bf16 %v2076, %v2072
      %v2109 = vpack.c.bf16 %v2077, %v2073
      %v2110 = vpack.c.bf16 %v2078, %v2074
      %v2111 = vpack.c.bf16 %v2079, %v2075
      %v2112 = vpack.c.bf16 %v2084, %v2080
      %v2113 = vpack.c.bf16 %v2085, %v2081
      %v2114 = vpack.c.bf16 %v2086, %v2082
      %v2115 = vpack.c.bf16 %v2087, %v2083
      %v2116 = vpack.c.bf16 %v2092, %v2088
      %v2117 = vpack.c.bf16 %v2093, %v2089
      %v2118 = vpack.c.bf16 %v2094, %v2090
      %v2119 = vpack.c.bf16 %v2095, %v2091
      %v2120 = vpack.c.bf16 %v2100, %v2096
      %v2121 = vpack.c.bf16 %v2101, %v2097
      %v2122 = vpack.c.bf16 %v2102, %v2098
      %v2123 = vpack.c.bf16 %v2103, %v2099
      %v2124 = vpack.c.bf16 %v2104, %v2104
      %v2125 = vpack.c.bf16 %v2105, %v2105
      %v2126 = vpack.c.bf16 %v2106, %v2106
      %v2127 = vpack.c.bf16 %v2107, %v2107
      %v2129 = vsel %vm1345, %v2071, 0
      %v2132 = vsel %vm1352, %v2124, 0
      %v2135 = vsel %vm1352, %v2125, 0
      %v2138 = vsel %vm1352, %v2126, 0
      %v2141 = vsel %vm1352, %v2127, 0
      %2143 = vmatprep.subr.bf16.mxu0 0
      %2144 = vmatpush1.bf16.msra.mxu0 0
      %2145 = vmatprep.subr.bf16.mxu0 0
      %2146 = vmatpush1.bf16.msra.mxu0 0
      %2147 = vmatprep.subr.bf16.mxu0 0
      %2148 = vmatpush1.bf16.msra.mxu0 0
      %2149 = vmatprep.subr.bf16.mxu0 %v2135
      %2150 = vmatpush1.bf16.msra.mxu0 %v2132
      %2151 = vmatprep.subr.bf16.mxu0 %v2121
      %2152 = vmatpush1.bf16.msra.mxu0 %v2120
      %2153 = vmatprep.subr.bf16.mxu0 %v2117
      %2154 = vmatpush1.bf16.msra.mxu0 %v2116
      %2155 = vmatprep.subr.bf16.mxu0 %v2113
      %2156 = vmatpush1.bf16.msra.mxu0 %v2112
      %2157 = vmatprep.subr.bf16.mxu0 %v2109
      %2158 = vmatpush1.bf16.msra.mxu0 %v2108
      %2159 = vmatprep.subr.bf16.mxu0 0
      %2160 = vmatpush2.bf16.msra.mxu0 0
      %2161 = vmatprep.subr.bf16.mxu0 0
      %2162 = vmatpush2.bf16.msra.mxu0 0
      %2163 = vmatprep.subr.bf16.mxu0 0
      %2164 = vmatpush2.bf16.msra.mxu0 0
      %2165 = vmatprep.subr.bf16.mxu0 0
      %2166 = vmatpush2.bf16.msra.mxu0 0
      %2167 = vmatprep.subr.bf16.mxu0 0
      %2168 = vmatpush2.bf16.msra.mxu0 0
      %2169 = vmatprep.subr.bf16.mxu0 0
      %2170 = vmatpush2.bf16.msra.mxu0 0
      %2171 = vmatprep.subr.bf16.mxu0 0
      %2172 = vmatpush2.bf16.msra.mxu0 0
      %2173 = vmatprep.subr.bf16.mxu0 0
      %2174 = vmatpush2.bf16.msra.mxu0 0
      %2175 = vmatprep.mubr.bf16.mxu0 0
      %2176 = vmatmul.mubr.bf16.gmra.mxu0 %v2129
      %v2177 = vpop.f32.mrf.mxu0
      %v2178 = vadd.f32 0.0, %v2177
      %v2179 = vpop.f32.mrf.mxu0
      %v2180 = vadd.f32 0.0, %v2179
      %v2181 = vpop.f32.mrf.mxu0
      %v2182 = vpop.f32.mrf.mxu0
      %2183 = vdwg.mxu0
      %2184 = vmatprep.subr.bf16.mxu0 0
      %2185 = vmatpush1.bf16.msra.mxu0 0
      %2186 = vmatprep.subr.bf16.mxu0 0
      %2187 = vmatpush1.bf16.msra.mxu0 0
      %2188 = vmatprep.subr.bf16.mxu0 0
      %2189 = vmatpush1.bf16.msra.mxu0 0
      %2190 = vmatprep.subr.bf16.mxu0 %v2141
      %2191 = vmatpush1.bf16.msra.mxu0 %v2138
      %2192 = vmatprep.subr.bf16.mxu0 %v2123
      %2193 = vmatpush1.bf16.msra.mxu0 %v2122
      %2194 = vmatprep.subr.bf16.mxu0 %v2119
      %2195 = vmatpush1.bf16.msra.mxu0 %v2118
      %2196 = vmatprep.subr.bf16.mxu0 %v2115
      %2197 = vmatpush1.bf16.msra.mxu0 %v2114
      %2198 = vmatprep.subr.bf16.mxu0 %v2111
      %2199 = vmatpush1.bf16.msra.mxu0 %v2110
      %2200 = vmatprep.subr.bf16.mxu0 0
      %2201 = vmatpush2.bf16.msra.mxu0 0
      %2202 = vmatprep.subr.bf16.mxu0 0
      %2203 = vmatpush2.bf16.msra.mxu0 0
      %2204 = vmatprep.subr.bf16.mxu0 0
      %2205 = vmatpush2.bf16.msra.mxu0 0
      %2206 = vmatprep.subr.bf16.mxu0 0
      %2207 = vmatpush2.bf16.msra.mxu0 0
      %2208 = vmatprep.subr.bf16.mxu0 0
      %2209 = vmatpush2.bf16.msra.mxu0 0
      %2210 = vmatprep.subr.bf16.mxu0 0
      %2211 = vmatpush2.bf16.msra.mxu0 0
      %2212 = vmatprep.subr.bf16.mxu0 0
      %2213 = vmatpush2.bf16.msra.mxu0 0
      %2214 = vmatprep.subr.bf16.mxu0 0
      %2215 = vmatpush2.bf16.msra.mxu0 0
      %2216 = vmatprep.mubr.bf16.mxu0 0
      %2217 = vmatmul.mubr.bf16.gmra.mxu0 %v2129
      %v2218 = vpop.f32.mrf.mxu0
      %v2219 = vadd.f32 0.0, %v2218
      %v2220 = vpop.f32.mrf.mxu0
      %v2221 = vadd.f32 0.0, %v2220
      %v2222 = vpop.f32.mrf.mxu0
      %v2223 = vpop.f32.mrf.mxu0
      %2224 = vdwg.mxu0
      %v2225 = vadd.f32 %v1410, %v2178
      %v2226 = vadd.f32 %v1412, %v2180
      %v2227 = vadd.f32 %v1461, %v2219
      %v2228 = vadd.f32 %v1463, %v2221
      %v2229 = vmax.f32 %v2225, 0.0
      %v2230 = vmax.f32 %v2226, 0.0
      %v2231 = vmax.f32 %v2227, 0.0
      %v2232 = vmax.f32 %v2228, 0.0
      %v2233 = vsub.f32 1.0, %v1652
      %v2234 = vsub.f32 1.0, %v1654
      %v2235 = vsub.f32 1.0, %v1656
      %v2236 = vsub.f32 1.0, %v1658
      %v2237 = vmul.f32 %v2233, %v489
      %v2238 = vmul.f32 %v2234, %v490
      %v2239 = vmul.f32 %v2235, %v491
      %v2240 = vmul.f32 %v2236, %v492
      %v2241 = vmul.f32 %v1652, %v2229
      %v2242 = vmul.f32 %v1654, %v2230
      %v2243 = vmul.f32 %v1656, %v2231
      %v2244 = vmul.f32 %v1658, %v2232
      %v2245 = vadd.f32 %v2237, %v2241
      %v2246 = vadd.f32 %v2238, %v2242
      %v2247 = vadd.f32 %v2239, %v2243
      %v2248 = vadd.f32 %v2240, %v2244
      %2249 = vst [vmem:[#allocation4] sm:$0xff] %v2245
      %2250 = vst [vmem:[#allocation4 + $0x8] sm:$0xff] %v2246
      %2251 = vst [vmem:[#allocation4 + $0x10] sm:$0xff] %v2247
      %2252 = vst [vmem:[#allocation4 + $0x18] sm:$0xff] %v2248
      %v2253 = vld [vmem:[#allocation5] sm:$0xff]
      %v2254 = vld [vmem:[#allocation5 + $0x8] sm:$0xff]
      %v2255 = vld [vmem:[#allocation5 + $0x10] sm:$0xff]
      %v2256 = vld [vmem:[#allocation5 + $0x18] sm:$0xff]
      %2261 = vrot.lane.b32.xlu0 %v2245, 17
      %v2262 = vpop.permute.xlu0 %2261
      %2263 = vrot.lane.b32.xlu0 %v2246, 17
      %v2264 = vpop.permute.xlu0 %2263
      %2265 = vrot.lane.b32.xlu0 %v2247, 17
      %v2266 = vpop.permute.xlu0 %2265
      %2267 = vrot.lane.b32.xlu0 %v2248, 17
      %v2268 = vpop.permute.xlu0 %2267
      %v2269 = vsel %vm505, %v2262, %v2264
      %v2270 = vsel %vm505, %v2264, %v2266
      %v2271 = vsel %vm505, %v2266, %v2268
      %v2276 = vsel %vm505, 0.0, %v2262
      %v2277 = vld [vmem:[%s1] ss:$8 sm:$0xf]
      %v2279 = vlaneseq
      %v2280 = vshrl.u32 %v2279, 7
      %v2281 = vsub.s32 0, %v2280
      %v2282 = vrot.slane %v2277, %v2281
      %v2283 = vlaneseq
      %v2284 = vshrl.u32 %v2283, 7
      %v2285 = vsub.s32 1, %v2284
      %v2286 = vrot.slane %v2277, %v2285
      %v2287 = vlaneseq
      %v2288 = vshrl.u32 %v2287, 7
      %v2289 = vsub.s32 2, %v2288
      %v2290 = vrot.slane %v2277, %v2289
      %v2291 = vlaneseq
      %v2292 = vshrl.u32 %v2291, 7
      %v2293 = vsub.s32 3, %v2292
      %v2294 = vrot.slane %v2277, %v2293
      %v2299 = vmul.f32 %v2276, %v2282
      %v2300 = vmul.f32 %v2269, %v2286
      %v2301 = vmul.f32 %v2270, %v2290
      %v2302 = vmul.f32 %v2271, %v2294
      %2303 = vst [vmem:[#allocation2] sm:$0xff] %v2299
      %2304 = vst [vmem:[#allocation2 + $0x8] sm:$0xff] %v2300
      %2305 = vst [vmem:[#allocation2 + $0x10] sm:$0xff] %v2301
      %2306 = vst [vmem:[#allocation2 + $0x18] sm:$0xff] %v2302
      %2307 = vrot.lane.b32.xlu0 %v2245, 16
      %v2308 = vpop.permute.xlu0 %2307
      %2309 = vrot.lane.b32.xlu0 %v2246, 16
      %v2310 = vpop.permute.xlu0 %2309
      %2311 = vrot.lane.b32.xlu0 %v2247, 16
      %v2312 = vpop.permute.xlu0 %2311
      %2313 = vrot.lane.b32.xlu0 %v2248, 16
      %v2314 = vpop.permute.xlu0 %2313
      %v2315 = vsel %vm552, %v2308, %v2310
      %v2316 = vsel %vm552, %v2310, %v2312
      %v2317 = vsel %vm552, %v2312, %v2314
      %v2322 = vsel %vm552, 0.0, %v2308
      %v2323 = vld [vmem:[%s561] ss:$8 sm:$0xf]
      %v2325 = vlaneseq
      %v2326 = vshrl.u32 %v2325, 7
      %v2327 = vsub.s32 0, %v2326
      %v2328 = vrot.slane %v2323, %v2327
      %v2329 = vlaneseq
      %v2330 = vshrl.u32 %v2329, 7
      %v2331 = vsub.s32 1, %v2330
      %v2332 = vrot.slane %v2323, %v2331
      %v2333 = vlaneseq
      %v2334 = vshrl.u32 %v2333, 7
      %v2335 = vsub.s32 2, %v2334
      %v2336 = vrot.slane %v2323, %v2335
      %v2337 = vlaneseq
      %v2338 = vshrl.u32 %v2337, 7
      %v2339 = vsub.s32 3, %v2338
      %v2340 = vrot.slane %v2323, %v2339
      %v2345 = vmul.f32 %v2322, %v2328
      %v2346 = vmul.f32 %v2315, %v2332
      %v2347 = vmul.f32 %v2316, %v2336
      %v2348 = vmul.f32 %v2317, %v2340
      %2349 = vst [vmem:[#allocation2 + $0x20] sm:$0xff] %v2345
      %2350 = vst [vmem:[#allocation2 + $0x28] sm:$0xff] %v2346
      %2351 = vst [vmem:[#allocation2 + $0x30] sm:$0xff] %v2347
      %2352 = vst [vmem:[#allocation2 + $0x38] sm:$0xff] %v2348
      %2353 = vrot.lane.b32.xlu0 %v2245, 15
      %v2354 = vpop.permute.xlu0 %2353
      %2355 = vrot.lane.b32.xlu0 %v2246, 15
      %v2356 = vpop.permute.xlu0 %2355
      %2357 = vrot.lane.b32.xlu0 %v2247, 15
      %v2358 = vpop.permute.xlu0 %2357
      %2359 = vrot.lane.b32.xlu0 %v2248, 15
      %v2360 = vpop.permute.xlu0 %2359
      %v2361 = vsel %vm600, %v2354, %v2356
      %v2362 = vsel %vm600, %v2356, %v2358
      %v2363 = vsel %vm600, %v2358, %v2360
      %v2368 = vsel %vm600, 0.0, %v2354
      %v2369 = vld [vmem:[%s609] ss:$8 sm:$0xf]
      %v2371 = vlaneseq
      %v2372 = vshrl.u32 %v2371, 7
      %v2373 = vsub.s32 0, %v2372
      %v2374 = vrot.slane %v2369, %v2373
      %v2375 = vlaneseq
      %v2376 = vshrl.u32 %v2375, 7
      %v2377 = vsub.s32 1, %v2376
      %v2378 = vrot.slane %v2369, %v2377
      %v2379 = vlaneseq
      %v2380 = vshrl.u32 %v2379, 7
      %v2381 = vsub.s32 2, %v2380
      %v2382 = vrot.slane %v2369, %v2381
      %v2383 = vlaneseq
      %v2384 = vshrl.u32 %v2383, 7
      %v2385 = vsub.s32 3, %v2384
      %v2386 = vrot.slane %v2369, %v2385
      %v2391 = vmul.f32 %v2368, %v2374
      %v2392 = vmul.f32 %v2361, %v2378
      %v2393 = vmul.f32 %v2362, %v2382
      %v2394 = vmul.f32 %v2363, %v2386
      %2395 = vst [vmem:[#allocation2 + $0x40] sm:$0xff] %v2391
      %2396 = vst [vmem:[#allocation2 + $0x48] sm:$0xff] %v2392
      %2397 = vst [vmem:[#allocation2 + $0x50] sm:$0xff] %v2393
      %2398 = vst [vmem:[#allocation2 + $0x58] sm:$0xff] %v2394
      %2399 = vrot.lane.b32.xlu0 %v2245, 1
      %v2400 = vpop.permute.xlu0 %2399
      %2401 = vrot.lane.b32.xlu0 %v2246, 1
      %v2402 = vpop.permute.xlu0 %2401
      %2403 = vrot.lane.b32.xlu0 %v2247, 1
      %v2404 = vpop.permute.xlu0 %2403
      %2405 = vrot.lane.b32.xlu0 %v2248, 1
      %v2406 = vpop.permute.xlu0 %2405
      %v2407 = vsel %vm648, %v2400, %v2402
      %v2408 = vsel %vm648, %v2402, %v2404
      %v2409 = vsel %vm648, %v2404, %v2406
      %v2414 = vsel %vm648, 0.0, %v2400
      %v2415 = vld [vmem:[%s657] ss:$8 sm:$0xf]
      %v2417 = vlaneseq
      %v2418 = vshrl.u32 %v2417, 7
      %v2419 = vsub.s32 0, %v2418
      %v2420 = vrot.slane %v2415, %v2419
      %v2421 = vlaneseq
      %v2422 = vshrl.u32 %v2421, 7
      %v2423 = vsub.s32 1, %v2422
      %v2424 = vrot.slane %v2415, %v2423
      %v2425 = vlaneseq
      %v2426 = vshrl.u32 %v2425, 7
      %v2427 = vsub.s32 2, %v2426
      %v2428 = vrot.slane %v2415, %v2427
      %v2429 = vlaneseq
      %v2430 = vshrl.u32 %v2429, 7
      %v2431 = vsub.s32 3, %v2430
      %v2432 = vrot.slane %v2415, %v2431
      %v2437 = vmul.f32 %v2414, %v2420
      %v2438 = vmul.f32 %v2407, %v2424
      %v2439 = vmul.f32 %v2408, %v2428
      %v2440 = vmul.f32 %v2409, %v2432
      %2441 = vst [vmem:[#allocation2 + $0x60] sm:$0xff] %v2437
      %2442 = vst [vmem:[#allocation2 + $0x68] sm:$0xff] %v2438
      %2443 = vst [vmem:[#allocation2 + $0x70] sm:$0xff] %v2439
      %2444 = vst [vmem:[#allocation2 + $0x78] sm:$0xff] %v2440
      %2445 = vst [vmem:[#allocation2 + $0x80] sm:$0xff] %v2245
      %2446 = vst [vmem:[#allocation2 + $0x88] sm:$0xff] %v2246
      %2447 = vst [vmem:[#allocation2 + $0x90] sm:$0xff] %v2247
      %2448 = vst [vmem:[#allocation2 + $0x98] sm:$0xff] %v2248
      %2449 = vrot.lane.b32.xlu0 %v2245, 127
      %v2450 = vpop.permute.xlu0 %2449
      %2451 = vrot.lane.b32.xlu0 %v2246, 127
      %v2452 = vpop.permute.xlu0 %2451
      %2453 = vrot.lane.b32.xlu0 %v2247, 127
      %v2454 = vpop.permute.xlu0 %2453
      %2455 = vrot.lane.b32.xlu0 %v2248, 127
      %v2456 = vpop.permute.xlu0 %2455
      %v2457 = vsel %vm700, %v2450, %v2452
      %v2458 = vsel %vm700, %v2452, %v2454
      %v2459 = vsel %vm700, %v2454, %v2456
      %v2464 = vsel %vm700, %v2456, 0.0
      %v2465 = vld [vmem:[%s709] ss:$8 sm:$0xf]
      %v2467 = vlaneseq
      %v2468 = vshrl.u32 %v2467, 7
      %v2469 = vsub.s32 0, %v2468
      %v2470 = vrot.slane %v2465, %v2469
      %v2471 = vlaneseq
      %v2472 = vshrl.u32 %v2471, 7
      %v2473 = vsub.s32 1, %v2472
      %v2474 = vrot.slane %v2465, %v2473
      %v2475 = vlaneseq
      %v2476 = vshrl.u32 %v2475, 7
      %v2477 = vsub.s32 2, %v2476
      %v2478 = vrot.slane %v2465, %v2477
      %v2479 = vlaneseq
      %v2480 = vshrl.u32 %v2479, 7
      %v2481 = vsub.s32 3, %v2480
      %v2482 = vrot.slane %v2465, %v2481
      %v2487 = vmul.f32 %v2457, %v2470
      %v2488 = vmul.f32 %v2458, %v2474
      %v2489 = vmul.f32 %v2459, %v2478
      %v2490 = vmul.f32 %v2464, %v2482
      %2491 = vst [vmem:[#allocation2 + $0xa0] sm:$0xff] %v2487
      %2492 = vst [vmem:[#allocation2 + $0xa8] sm:$0xff] %v2488
      %2493 = vst [vmem:[#allocation2 + $0xb0] sm:$0xff] %v2489
      %2494 = vst [vmem:[#allocation2 + $0xb8] sm:$0xff] %v2490
      %2495 = vrot.lane.b32.xlu0 %v2245, 113
      %v2496 = vpop.permute.xlu0 %2495
      %2497 = vrot.lane.b32.xlu0 %v2246, 113
      %v2498 = vpop.permute.xlu0 %2497
      %2499 = vrot.lane.b32.xlu0 %v2247, 113
      %v2500 = vpop.permute.xlu0 %2499
      %2501 = vrot.lane.b32.xlu0 %v2248, 113
      %v2502 = vpop.permute.xlu0 %2501
      %v2503 = vsel %vm748, %v2496, %v2498
      %v2504 = vsel %vm748, %v2498, %v2500
      %v2505 = vsel %vm748, %v2500, %v2502
      %v2510 = vsel %vm748, %v2502, 0.0
      %v2511 = vld [vmem:[%s757] ss:$8 sm:$0xf]
      %v2513 = vlaneseq
      %v2514 = vshrl.u32 %v2513, 7
      %v2515 = vsub.s32 0, %v2514
      %v2516 = vrot.slane %v2511, %v2515
      %v2517 = vlaneseq
      %v2518 = vshrl.u32 %v2517, 7
      %v2519 = vsub.s32 1, %v2518
      %v2520 = vrot.slane %v2511, %v2519
      %v2521 = vlaneseq
      %v2522 = vshrl.u32 %v2521, 7
      %v2523 = vsub.s32 2, %v2522
      %v2524 = vrot.slane %v2511, %v2523
      %v2525 = vlaneseq
      %v2526 = vshrl.u32 %v2525, 7
      %v2527 = vsub.s32 3, %v2526
      %v2528 = vrot.slane %v2511, %v2527
      %v2533 = vmul.f32 %v2503, %v2516
      %v2534 = vmul.f32 %v2504, %v2520
      %v2535 = vmul.f32 %v2505, %v2524
      %v2536 = vmul.f32 %v2510, %v2528
      %2537 = vst [vmem:[#allocation2 + $0xc0] sm:$0xff] %v2533
      %2538 = vst [vmem:[#allocation2 + $0xc8] sm:$0xff] %v2534
      %2539 = vst [vmem:[#allocation2 + $0xd0] sm:$0xff] %v2535
      %2540 = vst [vmem:[#allocation2 + $0xd8] sm:$0xff] %v2536
      %2541 = vrot.lane.b32.xlu0 %v2245, 112
      %v2542 = vpop.permute.xlu0 %2541
      %2543 = vrot.lane.b32.xlu0 %v2246, 112
      %v2544 = vpop.permute.xlu0 %2543
      %2545 = vrot.lane.b32.xlu0 %v2247, 112
      %v2546 = vpop.permute.xlu0 %2545
      %2547 = vrot.lane.b32.xlu0 %v2248, 112
      %v2548 = vpop.permute.xlu0 %2547
      %v2549 = vsel %vm796, %v2542, %v2544
      %v2550 = vsel %vm796, %v2544, %v2546
      %v2551 = vsel %vm796, %v2546, %v2548
      %v2556 = vsel %vm796, %v2548, 0.0
      %v2557 = vld [vmem:[%s805] ss:$8 sm:$0xf]
      %v2559 = vlaneseq
      %v2560 = vshrl.u32 %v2559, 7
      %v2561 = vsub.s32 0, %v2560
      %v2562 = vrot.slane %v2557, %v2561
      %v2563 = vlaneseq
      %v2564 = vshrl.u32 %v2563, 7
      %v2565 = vsub.s32 1, %v2564
      %v2566 = vrot.slane %v2557, %v2565
      %v2567 = vlaneseq
      %v2568 = vshrl.u32 %v2567, 7
      %v2569 = vsub.s32 2, %v2568
      %v2570 = vrot.slane %v2557, %v2569
      %v2571 = vlaneseq
      %v2572 = vshrl.u32 %v2571, 7
      %v2573 = vsub.s32 3, %v2572
      %v2574 = vrot.slane %v2557, %v2573
      %v2579 = vmul.f32 %v2549, %v2562
      %v2580 = vmul.f32 %v2550, %v2566
      %v2581 = vmul.f32 %v2551, %v2570
      %v2582 = vmul.f32 %v2556, %v2574
      %2583 = vst [vmem:[#allocation2 + $0xe0] sm:$0xff] %v2579
      %2584 = vst [vmem:[#allocation2 + $0xe8] sm:$0xff] %v2580
      %2585 = vst [vmem:[#allocation2 + $0xf0] sm:$0xff] %v2581
      %2586 = vst [vmem:[#allocation2 + $0xf8] sm:$0xff] %v2582
      %2587 = vrot.lane.b32.xlu0 %v2245, 111
      %v2588 = vpop.permute.xlu0 %2587
      %2589 = vrot.lane.b32.xlu0 %v2246, 111
      %v2590 = vpop.permute.xlu0 %2589
      %2591 = vrot.lane.b32.xlu0 %v2247, 111
      %v2592 = vpop.permute.xlu0 %2591
      %2593 = vrot.lane.b32.xlu0 %v2248, 111
      %v2594 = vpop.permute.xlu0 %2593
      %v2595 = vsel %vm844, %v2588, %v2590
      %v2596 = vsel %vm844, %v2590, %v2592
      %v2597 = vsel %vm844, %v2592, %v2594
      %v2602 = vsel %vm844, %v2594, 0.0
      %v2603 = vld [vmem:[%s853] ss:$8 sm:$0xf]
      %v2605 = vlaneseq
      %v2606 = vshrl.u32 %v2605, 7
      %v2607 = vsub.s32 0, %v2606
      %v2608 = vrot.slane %v2603, %v2607
      %v2609 = vlaneseq
      %v2610 = vshrl.u32 %v2609, 7
      %v2611 = vsub.s32 1, %v2610
      %v2612 = vrot.slane %v2603, %v2611
      %v2613 = vlaneseq
      %v2614 = vshrl.u32 %v2613, 7
      %v2615 = vsub.s32 2, %v2614
      %v2616 = vrot.slane %v2603, %v2615
      %v2617 = vlaneseq
      %v2618 = vshrl.u32 %v2617, 7
      %v2619 = vsub.s32 3, %v2618
      %v2620 = vrot.slane %v2603, %v2619
      %v2625 = vmul.f32 %v2595, %v2608
      %v2626 = vmul.f32 %v2596, %v2612
      %v2627 = vmul.f32 %v2597, %v2616
      %v2628 = vmul.f32 %v2602, %v2620
      %2629 = vst [vmem:[#allocation2 + $0x100] sm:$0xff] %v2625
      %2630 = vst [vmem:[#allocation2 + $0x108] sm:$0xff] %v2626
      %2631 = vst [vmem:[#allocation2 + $0x110] sm:$0xff] %v2627
      %2632 = vst [vmem:[#allocation2 + $0x118] sm:$0xff] %v2628
      %2637 = vrot.lane.b32.xlu0 %v2253, 17
      %v2638 = vpop.permute.xlu0 %2637
      %2639 = vrot.lane.b32.xlu0 %v2254, 17
      %v2640 = vpop.permute.xlu0 %2639
      %2641 = vrot.lane.b32.xlu0 %v2255, 17
      %v2642 = vpop.permute.xlu0 %2641
      %2643 = vrot.lane.b32.xlu0 %v2256, 17
      %v2644 = vpop.permute.xlu0 %2643
      %v2645 = vsel %vm505, %v2638, %v2640
      %v2646 = vsel %vm505, %v2640, %v2642
      %v2647 = vsel %vm505, %v2642, %v2644
      %v2652 = vsel %vm505, 0.0, %v2638
      %v2653 = vld [vmem:[%s1] ss:$8 sm:$0xf]
      %v2655 = vlaneseq
      %v2656 = vshrl.u32 %v2655, 7
      %v2657 = vsub.s32 0, %v2656
      %v2658 = vrot.slane %v2653, %v2657
      %v2659 = vlaneseq
      %v2660 = vshrl.u32 %v2659, 7
      %v2661 = vsub.s32 1, %v2660
      %v2662 = vrot.slane %v2653, %v2661
      %v2663 = vlaneseq
      %v2664 = vshrl.u32 %v2663, 7
      %v2665 = vsub.s32 2, %v2664
      %v2666 = vrot.slane %v2653, %v2665
      %v2667 = vlaneseq
      %v2668 = vshrl.u32 %v2667, 7
      %v2669 = vsub.s32 3, %v2668
      %v2670 = vrot.slane %v2653, %v2669
      %v2675 = vmul.f32 %v2652, %v2658
      %v2676 = vmul.f32 %v2645, %v2662
      %v2677 = vmul.f32 %v2646, %v2666
      %v2678 = vmul.f32 %v2647, %v2670
      %2679 = vst [vmem:[#allocation3] sm:$0xff] %v2675
      %2680 = vst [vmem:[#allocation3 + $0x8] sm:$0xff] %v2676
      %2681 = vst [vmem:[#allocation3 + $0x10] sm:$0xff] %v2677
      %2682 = vst [vmem:[#allocation3 + $0x18] sm:$0xff] %v2678
      %2683 = vrot.lane.b32.xlu0 %v2253, 16
      %v2684 = vpop.permute.xlu0 %2683
      %2685 = vrot.lane.b32.xlu0 %v2254, 16
      %v2686 = vpop.permute.xlu0 %2685
      %2687 = vrot.lane.b32.xlu0 %v2255, 16
      %v2688 = vpop.permute.xlu0 %2687
      %2689 = vrot.lane.b32.xlu0 %v2256, 16
      %v2690 = vpop.permute.xlu0 %2689
      %v2691 = vsel %vm552, %v2684, %v2686
      %v2692 = vsel %vm552, %v2686, %v2688
      %v2693 = vsel %vm552, %v2688, %v2690
      %v2698 = vsel %vm552, 0.0, %v2684
      %v2699 = vld [vmem:[%s561] ss:$8 sm:$0xf]
      %v2701 = vlaneseq
      %v2702 = vshrl.u32 %v2701, 7
      %v2703 = vsub.s32 0, %v2702
      %v2704 = vrot.slane %v2699, %v2703
      %v2705 = vlaneseq
      %v2706 = vshrl.u32 %v2705, 7
      %v2707 = vsub.s32 1, %v2706
      %v2708 = vrot.slane %v2699, %v2707
      %v2709 = vlaneseq
      %v2710 = vshrl.u32 %v2709, 7
      %v2711 = vsub.s32 2, %v2710
      %v2712 = vrot.slane %v2699, %v2711
      %v2713 = vlaneseq
      %v2714 = vshrl.u32 %v2713, 7
      %v2715 = vsub.s32 3, %v2714
      %v2716 = vrot.slane %v2699, %v2715
      %v2721 = vmul.f32 %v2698, %v2704
      %v2722 = vmul.f32 %v2691, %v2708
      %v2723 = vmul.f32 %v2692, %v2712
      %v2724 = vmul.f32 %v2693, %v2716
      %2725 = vst [vmem:[#allocation3 + $0x20] sm:$0xff] %v2721
      %2726 = vst [vmem:[#allocation3 + $0x28] sm:$0xff] %v2722
      %2727 = vst [vmem:[#allocation3 + $0x30] sm:$0xff] %v2723
      %2728 = vst [vmem:[#allocation3 + $0x38] sm:$0xff] %v2724
      %2729 = vrot.lane.b32.xlu0 %v2253, 15
      %v2730 = vpop.permute.xlu0 %2729
      %2731 = vrot.lane.b32.xlu0 %v2254, 15
      %v2732 = vpop.permute.xlu0 %2731
      %2733 = vrot.lane.b32.xlu0 %v2255, 15
      %v2734 = vpop.permute.xlu0 %2733
      %2735 = vrot.lane.b32.xlu0 %v2256, 15
      %v2736 = vpop.permute.xlu0 %2735
      %v2737 = vsel %vm600, %v2730, %v2732
      %v2738 = vsel %vm600, %v2732, %v2734
      %v2739 = vsel %vm600, %v2734, %v2736
      %v2744 = vsel %vm600, 0.0, %v2730
      %v2745 = vld [vmem:[%s609] ss:$8 sm:$0xf]
      %v2747 = vlaneseq
      %v2748 = vshrl.u32 %v2747, 7
      %v2749 = vsub.s32 0, %v2748
      %v2750 = vrot.slane %v2745, %v2749
      %v2751 = vlaneseq
      %v2752 = vshrl.u32 %v2751, 7
      %v2753 = vsub.s32 1, %v2752
      %v2754 = vrot.slane %v2745, %v2753
      %v2755 = vlaneseq
      %v2756 = vshrl.u32 %v2755, 7
      %v2757 = vsub.s32 2, %v2756
      %v2758 = vrot.slane %v2745, %v2757
      %v2759 = vlaneseq
      %v2760 = vshrl.u32 %v2759, 7
      %v2761 = vsub.s32 3, %v2760
      %v2762 = vrot.slane %v2745, %v2761
      %v2767 = vmul.f32 %v2744, %v2750
      %v2768 = vmul.f32 %v2737, %v2754
      %v2769 = vmul.f32 %v2738, %v2758
      %v2770 = vmul.f32 %v2739, %v2762
      %2771 = vst [vmem:[#allocation3 + $0x40] sm:$0xff] %v2767
      %2772 = vst [vmem:[#allocation3 + $0x48] sm:$0xff] %v2768
      %2773 = vst [vmem:[#allocation3 + $0x50] sm:$0xff] %v2769
      %2774 = vst [vmem:[#allocation3 + $0x58] sm:$0xff] %v2770
      %2775 = vrot.lane.b32.xlu0 %v2253, 1
      %v2776 = vpop.permute.xlu0 %2775
      %2777 = vrot.lane.b32.xlu0 %v2254, 1
      %v2778 = vpop.permute.xlu0 %2777
      %2779 = vrot.lane.b32.xlu0 %v2255, 1
      %v2780 = vpop.permute.xlu0 %2779
      %2781 = vrot.lane.b32.xlu0 %v2256, 1
      %v2782 = vpop.permute.xlu0 %2781
      %v2783 = vsel %vm648, %v2776, %v2778
      %v2784 = vsel %vm648, %v2778, %v2780
      %v2785 = vsel %vm648, %v2780, %v2782
      %v2790 = vsel %vm648, 0.0, %v2776
      %v2791 = vld [vmem:[%s657] ss:$8 sm:$0xf]
      %v2793 = vlaneseq
      %v2794 = vshrl.u32 %v2793, 7
      %v2795 = vsub.s32 0, %v2794
      %v2796 = vrot.slane %v2791, %v2795
      %v2797 = vlaneseq
      %v2798 = vshrl.u32 %v2797, 7
      %v2799 = vsub.s32 1, %v2798
      %v2800 = vrot.slane %v2791, %v2799
      %v2801 = vlaneseq
      %v2802 = vshrl.u32 %v2801, 7
      %v2803 = vsub.s32 2, %v2802
      %v2804 = vrot.slane %v2791, %v2803
      %v2805 = vlaneseq
      %v2806 = vshrl.u32 %v2805, 7
      %v2807 = vsub.s32 3, %v2806
      %v2808 = vrot.slane %v2791, %v2807
      %v2813 = vmul.f32 %v2790, %v2796
      %v2814 = vmul.f32 %v2783, %v2800
      %v2815 = vmul.f32 %v2784, %v2804
      %v2816 = vmul.f32 %v2785, %v2808
      %2817 = vst [vmem:[#allocation3 + $0x60] sm:$0xff] %v2813
      %2818 = vst [vmem:[#allocation3 + $0x68] sm:$0xff] %v2814
      %2819 = vst [vmem:[#allocation3 + $0x70] sm:$0xff] %v2815
      %2820 = vst [vmem:[#allocation3 + $0x78] sm:$0xff] %v2816
      %2821 = vst [vmem:[#allocation3 + $0x80] sm:$0xff] %v2253
      %2822 = vst [vmem:[#allocation3 + $0x88] sm:$0xff] %v2254
      %2823 = vst [vmem:[#allocation3 + $0x90] sm:$0xff] %v2255
      %2824 = vst [vmem:[#allocation3 + $0x98] sm:$0xff] %v2256
      %2825 = vrot.lane.b32.xlu0 %v2253, 127
      %v2826 = vpop.permute.xlu0 %2825
      %2827 = vrot.lane.b32.xlu0 %v2254, 127
      %v2828 = vpop.permute.xlu0 %2827
      %2829 = vrot.lane.b32.xlu0 %v2255, 127
      %v2830 = vpop.permute.xlu0 %2829
      %2831 = vrot.lane.b32.xlu0 %v2256, 127
      %v2832 = vpop.permute.xlu0 %2831
      %v2833 = vsel %vm700, %v2826, %v2828
      %v2834 = vsel %vm700, %v2828, %v2830
      %v2835 = vsel %vm700, %v2830, %v2832
      %v2840 = vsel %vm700, %v2832, 0.0
      %v2841 = vld [vmem:[%s709] ss:$8 sm:$0xf]
      %v2843 = vlaneseq
      %v2844 = vshrl.u32 %v2843, 7
      %v2845 = vsub.s32 0, %v2844
      %v2846 = vrot.slane %v2841, %v2845
      %v2847 = vlaneseq
      %v2848 = vshrl.u32 %v2847, 7
      %v2849 = vsub.s32 1, %v2848
      %v2850 = vrot.slane %v2841, %v2849
      %v2851 = vlaneseq
      %v2852 = vshrl.u32 %v2851, 7
      %v2853 = vsub.s32 2, %v2852
      %v2854 = vrot.slane %v2841, %v2853
      %v2855 = vlaneseq
      %v2856 = vshrl.u32 %v2855, 7
      %v2857 = vsub.s32 3, %v2856
      %v2858 = vrot.slane %v2841, %v2857
      %v2863 = vmul.f32 %v2833, %v2846
      %v2864 = vmul.f32 %v2834, %v2850
      %v2865 = vmul.f32 %v2835, %v2854
      %v2866 = vmul.f32 %v2840, %v2858
      %2867 = vst [vmem:[#allocation3 + $0xa0] sm:$0xff] %v2863
      %2868 = vst [vmem:[#allocation3 + $0xa8] sm:$0xff] %v2864
      %2869 = vst [vmem:[#allocation3 + $0xb0] sm:$0xff] %v2865
      %2870 = vst [vmem:[#allocation3 + $0xb8] sm:$0xff] %v2866
      %2871 = vrot.lane.b32.xlu0 %v2253, 113
      %v2872 = vpop.permute.xlu0 %2871
      %2873 = vrot.lane.b32.xlu0 %v2254, 113
      %v2874 = vpop.permute.xlu0 %2873
      %2875 = vrot.lane.b32.xlu0 %v2255, 113
      %v2876 = vpop.permute.xlu0 %2875
      %2877 = vrot.lane.b32.xlu0 %v2256, 113
      %v2878 = vpop.permute.xlu0 %2877
      %v2879 = vsel %vm748, %v2872, %v2874
      %v2880 = vsel %vm748, %v2874, %v2876
      %v2881 = vsel %vm748, %v2876, %v2878
      %v2886 = vsel %vm748, %v2878, 0.0
      %v2887 = vld [vmem:[%s757] ss:$8 sm:$0xf]
      %v2889 = vlaneseq
      %v2890 = vshrl.u32 %v2889, 7
      %v2891 = vsub.s32 0, %v2890
      %v2892 = vrot.slane %v2887, %v2891
      %v2893 = vlaneseq
      %v2894 = vshrl.u32 %v2893, 7
      %v2895 = vsub.s32 1, %v2894
      %v2896 = vrot.slane %v2887, %v2895
      %v2897 = vlaneseq
      %v2898 = vshrl.u32 %v2897, 7
      %v2899 = vsub.s32 2, %v2898
      %v2900 = vrot.slane %v2887, %v2899
      %v2901 = vlaneseq
      %v2902 = vshrl.u32 %v2901, 7
      %v2903 = vsub.s32 3, %v2902
      %v2904 = vrot.slane %v2887, %v2903
      %v2909 = vmul.f32 %v2879, %v2892
      %v2910 = vmul.f32 %v2880, %v2896
      %v2911 = vmul.f32 %v2881, %v2900
      %v2912 = vmul.f32 %v2886, %v2904
      %2913 = vst [vmem:[#allocation3 + $0xc0] sm:$0xff] %v2909
      %2914 = vst [vmem:[#allocation3 + $0xc8] sm:$0xff] %v2910
      %2915 = vst [vmem:[#allocation3 + $0xd0] sm:$0xff] %v2911
      %2916 = vst [vmem:[#allocation3 + $0xd8] sm:$0xff] %v2912
      %2917 = vrot.lane.b32.xlu0 %v2253, 112
      %v2918 = vpop.permute.xlu0 %2917
      %2919 = vrot.lane.b32.xlu0 %v2254, 112
      %v2920 = vpop.permute.xlu0 %2919
      %2921 = vrot.lane.b32.xlu0 %v2255, 112
      %v2922 = vpop.permute.xlu0 %2921
      %2923 = vrot.lane.b32.xlu0 %v2256, 112
      %v2924 = vpop.permute.xlu0 %2923
      %v2925 = vsel %vm796, %v2918, %v2920
      %v2926 = vsel %vm796, %v2920, %v2922
      %v2927 = vsel %vm796, %v2922, %v2924
      %v2932 = vsel %vm796, %v2924, 0.0
      %v2933 = vld [vmem:[%s805] ss:$8 sm:$0xf]
      %v2935 = vlaneseq
      %v2936 = vshrl.u32 %v2935, 7
      %v2937 = vsub.s32 0, %v2936
      %v2938 = vrot.slane %v2933, %v2937
      %v2939 = vlaneseq
      %v2940 = vshrl.u32 %v2939, 7
      %v2941 = vsub.s32 1, %v2940
      %v2942 = vrot.slane %v2933, %v2941
      %v2943 = vlaneseq
      %v2944 = vshrl.u32 %v2943, 7
      %v2945 = vsub.s32 2, %v2944
      %v2946 = vrot.slane %v2933, %v2945
      %v2947 = vlaneseq
      %v2948 = vshrl.u32 %v2947, 7
      %v2949 = vsub.s32 3, %v2948
      %v2950 = vrot.slane %v2933, %v2949
      %v2955 = vmul.f32 %v2925, %v2938
      %v2956 = vmul.f32 %v2926, %v2942
      %v2957 = vmul.f32 %v2927, %v2946
      %v2958 = vmul.f32 %v2932, %v2950
      %2959 = vst [vmem:[#allocation3 + $0xe0] sm:$0xff] %v2955
      %2960 = vst [vmem:[#allocation3 + $0xe8] sm:$0xff] %v2956
      %2961 = vst [vmem:[#allocation3 + $0xf0] sm:$0xff] %v2957
      %2962 = vst [vmem:[#allocation3 + $0xf8] sm:$0xff] %v2958
      %2963 = vrot.lane.b32.xlu0 %v2253, 111
      %v2964 = vpop.permute.xlu0 %2963
      %2965 = vrot.lane.b32.xlu0 %v2254, 111
      %v2966 = vpop.permute.xlu0 %2965
      %2967 = vrot.lane.b32.xlu0 %v2255, 111
      %v2968 = vpop.permute.xlu0 %2967
      %2969 = vrot.lane.b32.xlu0 %v2256, 111
      %v2970 = vpop.permute.xlu0 %2969
      %v2971 = vsel %vm844, %v2964, %v2966
      %v2972 = vsel %vm844, %v2966, %v2968
      %v2973 = vsel %vm844, %v2968, %v2970
      %v2978 = vsel %vm844, %v2970, 0.0
      %v2979 = vld [vmem:[%s853] ss:$8 sm:$0xf]
      %v2981 = vlaneseq
      %v2982 = vshrl.u32 %v2981, 7
      %v2983 = vsub.s32 0, %v2982
      %v2984 = vrot.slane %v2979, %v2983
      %v2985 = vlaneseq
      %v2986 = vshrl.u32 %v2985, 7
      %v2987 = vsub.s32 1, %v2986
      %v2988 = vrot.slane %v2979, %v2987
      %v2989 = vlaneseq
      %v2990 = vshrl.u32 %v2989, 7
      %v2991 = vsub.s32 2, %v2990
      %v2992 = vrot.slane %v2979, %v2991
      %v2993 = vlaneseq
      %v2994 = vshrl.u32 %v2993, 7
      %v2995 = vsub.s32 3, %v2994
      %v2996 = vrot.slane %v2979, %v2995
      %v3001 = vmul.f32 %v2971, %v2984
      %v3002 = vmul.f32 %v2972, %v2988
      %v3003 = vmul.f32 %v2973, %v2992
      %v3004 = vmul.f32 %v2978, %v2996
      %3005 = vst [vmem:[#allocation3 + $0x100] sm:$0xff] %v3001
      %3006 = vst [vmem:[#allocation3 + $0x108] sm:$0xff] %v3002
      %3007 = vst [vmem:[#allocation3 + $0x110] sm:$0xff] %v3003
      %3008 = vst [vmem:[#allocation3 + $0x118] sm:$0xff] %v3004
      %v3009 = vld [vmem:[%s6] sm:$0xf]
      %v3010 = vld [vmem:[%s6 + $0x4] sm:$0xf]
      %v3011 = vld [vmem:[%s6 + $0x8] sm:$0xf]
      %v3012 = vld [vmem:[#allocation2] sm:$0xff]
      %v3013 = vld [vmem:[#allocation2 + $0x8] sm:$0xff]
      %v3014 = vld [vmem:[#allocation2 + $0x10] sm:$0xff]
      %v3015 = vld [vmem:[#allocation2 + $0x18] sm:$0xff]
      %v3016 = vld [vmem:[#allocation2 + $0x20] sm:$0xff]
      %v3017 = vld [vmem:[#allocation2 + $0x28] sm:$0xff]
      %v3018 = vld [vmem:[#allocation2 + $0x30] sm:$0xff]
      %v3019 = vld [vmem:[#allocation2 + $0x38] sm:$0xff]
      %v3020 = vld [vmem:[#allocation2 + $0x40] sm:$0xff]
      %v3021 = vld [vmem:[#allocation2 + $0x48] sm:$0xff]
      %v3022 = vld [vmem:[#allocation2 + $0x50] sm:$0xff]
      %v3023 = vld [vmem:[#allocation2 + $0x58] sm:$0xff]
      %v3024 = vld [vmem:[#allocation2 + $0x60] sm:$0xff]
      %v3025 = vld [vmem:[#allocation2 + $0x68] sm:$0xff]
      %v3026 = vld [vmem:[#allocation2 + $0x70] sm:$0xff]
      %v3027 = vld [vmem:[#allocation2 + $0x78] sm:$0xff]
      %v3028 = vld [vmem:[#allocation2 + $0x80] sm:$0xff]
      %v3029 = vld [vmem:[#allocation2 + $0x88] sm:$0xff]
      %v3030 = vld [vmem:[#allocation2 + $0x90] sm:$0xff]
      %v3031 = vld [vmem:[#allocation2 + $0x98] sm:$0xff]
      %v3032 = vld [vmem:[#allocation2 + $0xa0] sm:$0xff]
      %v3033 = vld [vmem:[#allocation2 + $0xa8] sm:$0xff]
      %v3034 = vld [vmem:[#allocation2 + $0xb0] sm:$0xff]
      %v3035 = vld [vmem:[#allocation2 + $0xb8] sm:$0xff]
      %v3036 = vld [vmem:[#allocation2 + $0xc0] sm:$0xff]
      %v3037 = vld [vmem:[#allocation2 + $0xc8] sm:$0xff]
      %v3038 = vld [vmem:[#allocation2 + $0xd0] sm:$0xff]
      %v3039 = vld [vmem:[#allocation2 + $0xd8] sm:$0xff]
      %v3040 = vld [vmem:[#allocation2 + $0xe0] sm:$0xff]
      %v3041 = vld [vmem:[#allocation2 + $0xe8] sm:$0xff]
      %v3042 = vld [vmem:[#allocation2 + $0xf0] sm:$0xff]
      %v3043 = vld [vmem:[#allocation2 + $0xf8] sm:$0xff]
      %v3044 = vld [vmem:[#allocation2 + $0x100] sm:$0xff]
      %v3045 = vld [vmem:[#allocation2 + $0x108] sm:$0xff]
      %v3046 = vld [vmem:[#allocation2 + $0x110] sm:$0xff]
      %v3047 = vld [vmem:[#allocation2 + $0x118] sm:$0xff]
      %v3048 = vpack.c.bf16 %v3016, %v3012
      %v3049 = vpack.c.bf16 %v3017, %v3013
      %v3050 = vpack.c.bf16 %v3018, %v3014
      %v3051 = vpack.c.bf16 %v3019, %v3015
      %v3052 = vpack.c.bf16 %v3024, %v3020
      %v3053 = vpack.c.bf16 %v3025, %v3021
      %v3054 = vpack.c.bf16 %v3026, %v3022
      %v3055 = vpack.c.bf16 %v3027, %v3023
      %v3056 = vpack.c.bf16 %v3032, %v3028
      %v3057 = vpack.c.bf16 %v3033, %v3029
      %v3058 = vpack.c.bf16 %v3034, %v3030
      %v3059 = vpack.c.bf16 %v3035, %v3031
      %v3060 = vpack.c.bf16 %v3040, %v3036
      %v3061 = vpack.c.bf16 %v3041, %v3037
      %v3062 = vpack.c.bf16 %v3042, %v3038
      %v3063 = vpack.c.bf16 %v3043, %v3039
      %v3064 = vpack.c.bf16 %v3044, %v3044
      %v3065 = vpack.c.bf16 %v3045, %v3045
      %v3066 = vpack.c.bf16 %v3046, %v3046
      %v3067 = vpack.c.bf16 %v3047, %v3047
      %v3068 = vld [vmem:[%s7] sm:$0xff]
      %v3069 = vld [vmem:[%s7 + $0x8] sm:$0xff]
      %v3070 = vld [vmem:[%s7 + $0x10] sm:$0xff]
      %3072 = vset.pattern.permute.xlu0 0
      %3073 = vperm.xlu0 %3072, %v3068
      %v3074 = vpop.permute.xlu0 %3073
      %3077 = vset.pattern.permute.xlu0 0
      %3078 = vperm.xlu0 %3077, %v3069
      %v3079 = vpop.permute.xlu0 %3078
      %3082 = vset.pattern.permute.xlu0 0
      %3083 = vperm.xlu0 %3082, %v3070
      %v3084 = vpop.permute.xlu0 %3083
      %v3089 = vunpack.c.l.b16 %v3009
      %v3090 = vunpack.c.l.b16 %v3010
      %v3091 = vunpack.c.l.b16 %v3011
      %v3092 = vpack.c.b16 %v3090, %v3089
      %v3093 = vpack.c.b16 %v3091, %v3091
      %v3095 = vsel %vm1345, %v3092, 0
      %v3098 = vsel %vm1345, %v3093, 0
      %v3101 = vsel %vm1352, %v3064, 0
      %v3104 = vsel %vm1352, %v3065, 0
      %v3107 = vsel %vm1352, %v3066, 0
      %v3110 = vsel %vm1352, %v3067, 0
      %3112 = vmatprep.subr.bf16.mxu0 0
      %3113 = vmatpush1.bf16.msra.mxu0 0
      %3114 = vmatprep.subr.bf16.mxu0 0
      %3115 = vmatpush1.bf16.msra.mxu0 0
      %3116 = vmatprep.subr.bf16.mxu0 0
      %3117 = vmatpush1.bf16.msra.mxu0 0
      %3118 = vmatprep.subr.bf16.mxu0 %v3104
      %3119 = vmatpush1.bf16.msra.mxu0 %v3101
      %3120 = vmatprep.subr.bf16.mxu0 %v3061
      %3121 = vmatpush1.bf16.msra.mxu0 %v3060
      %3122 = vmatprep.subr.bf16.mxu0 %v3057
      %3123 = vmatpush1.bf16.msra.mxu0 %v3056
      %3124 = vmatprep.subr.bf16.mxu0 %v3053
      %3125 = vmatpush1.bf16.msra.mxu0 %v3052
      %3126 = vmatprep.subr.bf16.mxu0 %v3049
      %3127 = vmatpush1.bf16.msra.mxu0 %v3048
      %3128 = vmatprep.subr.bf16.mxu0 0
      %3129 = vmatpush2.bf16.msra.mxu0 0
      %3130 = vmatprep.subr.bf16.mxu0 0
      %3131 = vmatpush2.bf16.msra.mxu0 0
      %3132 = vmatprep.subr.bf16.mxu0 0
      %3133 = vmatpush2.bf16.msra.mxu0 0
      %3134 = vmatprep.subr.bf16.mxu0 0
      %3135 = vmatpush2.bf16.msra.mxu0 0
      %3136 = vmatprep.subr.bf16.mxu0 0
      %3137 = vmatpush2.bf16.msra.mxu0 0
      %3138 = vmatprep.subr.bf16.mxu0 0
      %3139 = vmatpush2.bf16.msra.mxu0 0
      %3140 = vmatprep.subr.bf16.mxu0 0
      %3141 = vmatpush2.bf16.msra.mxu0 0
      %3142 = vmatprep.subr.bf16.mxu0 0
      %3143 = vmatpush2.bf16.msra.mxu0 0
      %3144 = vmatprep.mubr.bf16.mxu0 0
      %3145 = vmatmul.mubr.bf16.gmra.mxu0 %v3095
      %v3146 = vpop.f32.mrf.mxu0
      %v3147 = vadd.f32 %v3074, %v3146
      %v3148 = vpop.f32.mrf.mxu0
      %v3149 = vadd.f32 %v3074, %v3148
      %v3150 = vpop.f32.mrf.mxu0
      %v3151 = vadd.f32 %v3079, %v3150
      %v3152 = vpop.f32.mrf.mxu0
      %v3153 = vadd.f32 %v3079, %v3152
      %3154 = vmatprep.mubr.bf16.mxu0 0
      %3155 = vmatmul.mubr.bf16.gmra.mxu0 %v3098
      %v3156 = vpop.f32.mrf.mxu0
      %v3157 = vadd.f32 %v3084, %v3156
      %v3158 = vpop.f32.mrf.mxu0
      %v3159 = vadd.f32 %v3084, %v3158
      %v3160 = vpop.f32.mrf.mxu0
      %v3161 = vpop.f32.mrf.mxu0
      %3162 = vdwg.mxu0
      %3163 = vmatprep.subr.bf16.mxu0 0
      %3164 = vmatpush1.bf16.msra.mxu0 0
      %3165 = vmatprep.subr.bf16.mxu0 0
      %3166 = vmatpush1.bf16.msra.mxu0 0
      %3167 = vmatprep.subr.bf16.mxu0 0
      %3168 = vmatpush1.bf16.msra.mxu0 0
      %3169 = vmatprep.subr.bf16.mxu0 %v3110
      %3170 = vmatpush1.bf16.msra.mxu0 %v3107
      %3171 = vmatprep.subr.bf16.mxu0 %v3063
      %3172 = vmatpush1.bf16.msra.mxu0 %v3062
      %3173 = vmatprep.subr.bf16.mxu0 %v3059
      %3174 = vmatpush1.bf16.msra.mxu0 %v3058
      %3175 = vmatprep.subr.bf16.mxu0 %v3055
      %3176 = vmatpush1.bf16.msra.mxu0 %v3054
      %3177 = vmatprep.subr.bf16.mxu0 %v3051
      %3178 = vmatpush1.bf16.msra.mxu0 %v3050
      %3179 = vmatprep.subr.bf16.mxu0 0
      %3180 = vmatpush2.bf16.msra.mxu0 0
      %3181 = vmatprep.subr.bf16.mxu0 0
      %3182 = vmatpush2.bf16.msra.mxu0 0
      %3183 = vmatprep.subr.bf16.mxu0 0
      %3184 = vmatpush2.bf16.msra.mxu0 0
      %3185 = vmatprep.subr.bf16.mxu0 0
      %3186 = vmatpush2.bf16.msra.mxu0 0
      %3187 = vmatprep.subr.bf16.mxu0 0
      %3188 = vmatpush2.bf16.msra.mxu0 0
      %3189 = vmatprep.subr.bf16.mxu0 0
      %3190 = vmatpush2.bf16.msra.mxu0 0
      %3191 = vmatprep.subr.bf16.mxu0 0
      %3192 = vmatpush2.bf16.msra.mxu0 0
      %3193 = vmatprep.subr.bf16.mxu0 0
      %3194 = vmatpush2.bf16.msra.mxu0 0
      %3195 = vmatprep.mubr.bf16.mxu0 0
      %3196 = vmatmul.mubr.bf16.gmra.mxu0 %v3095
      %v3197 = vpop.f32.mrf.mxu0
      %v3198 = vadd.f32 %v3074, %v3197
      %v3199 = vpop.f32.mrf.mxu0
      %v3200 = vadd.f32 %v3074, %v3199
      %v3201 = vpop.f32.mrf.mxu0
      %v3202 = vadd.f32 %v3079, %v3201
      %v3203 = vpop.f32.mrf.mxu0
      %v3204 = vadd.f32 %v3079, %v3203
      %3205 = vmatprep.mubr.bf16.mxu0 0
      %3206 = vmatmul.mubr.bf16.gmra.mxu0 %v3098
      %v3207 = vpop.f32.mrf.mxu0
      %v3208 = vadd.f32 %v3084, %v3207
      %v3209 = vpop.f32.mrf.mxu0
      %v3210 = vadd.f32 %v3084, %v3209
      %v3211 = vpop.f32.mrf.mxu0
      %v3212 = vpop.f32.mrf.mxu0
      %3213 = vdwg.mxu0
      %v3214 = vld [vmem:[%s8] sm:$0xf]
      %v3215 = vld [vmem:[%s8 + $0x4] sm:$0xf]
      %v3216 = vld [vmem:[#allocation3] sm:$0xff]
      %v3217 = vld [vmem:[#allocation3 + $0x8] sm:$0xff]
      %v3218 = vld [vmem:[#allocation3 + $0x10] sm:$0xff]
      %v3219 = vld [vmem:[#allocation3 + $0x18] sm:$0xff]
      %v3220 = vld [vmem:[#allocation3 + $0x20] sm:$0xff]
      %v3221 = vld [vmem:[#allocation3 + $0x28] sm:$0xff]
      %v3222 = vld [vmem:[#allocation3 + $0x30] sm:$0xff]
      %v3223 = vld [vmem:[#allocation3 + $0x38] sm:$0xff]
      %v3224 = vld [vmem:[#allocation3 + $0x40] sm:$0xff]
      %v3225 = vld [vmem:[#allocation3 + $0x48] sm:$0xff]
      %v3226 = vld [vmem:[#allocation3 + $0x50] sm:$0xff]
      %v3227 = vld [vmem:[#allocation3 + $0x58] sm:$0xff]
      %v3228 = vld [vmem:[#allocation3 + $0x60] sm:$0xff]
      %v3229 = vld [vmem:[#allocation3 + $0x68] sm:$0xff]
      %v3230 = vld [vmem:[#allocation3 + $0x70] sm:$0xff]
      %v3231 = vld [vmem:[#allocation3 + $0x78] sm:$0xff]
      %v3232 = vld [vmem:[#allocation3 + $0x80] sm:$0xff]
      %v3233 = vld [vmem:[#allocation3 + $0x88] sm:$0xff]
      %v3234 = vld [vmem:[#allocation3 + $0x90] sm:$0xff]
      %v3235 = vld [vmem:[#allocation3 + $0x98] sm:$0xff]
      %v3236 = vld [vmem:[#allocation3 + $0xa0] sm:$0xff]
      %v3237 = vld [vmem:[#allocation3 + $0xa8] sm:$0xff]
      %v3238 = vld [vmem:[#allocation3 + $0xb0] sm:$0xff]
      %v3239 = vld [vmem:[#allocation3 + $0xb8] sm:$0xff]
      %v3240 = vld [vmem:[#allocation3 + $0xc0] sm:$0xff]
      %v3241 = vld [vmem:[#allocation3 + $0xc8] sm:$0xff]
      %v3242 = vld [vmem:[#allocation3 + $0xd0] sm:$0xff]
      %v3243 = vld [vmem:[#allocation3 + $0xd8] sm:$0xff]
      %v3244 = vld [vmem:[#allocation3 + $0xe0] sm:$0xff]
      %v3245 = vld [vmem:[#allocation3 + $0xe8] sm:$0xff]
      %v3246 = vld [vmem:[#allocation3 + $0xf0] sm:$0xff]
      %v3247 = vld [vmem:[#allocation3 + $0xf8] sm:$0xff]
      %v3248 = vld [vmem:[#allocation3 + $0x100] sm:$0xff]
      %v3249 = vld [vmem:[#allocation3 + $0x108] sm:$0xff]
      %v3250 = vld [vmem:[#allocation3 + $0x110] sm:$0xff]
      %v3251 = vld [vmem:[#allocation3 + $0x118] sm:$0xff]
      %v3252 = vpack.c.bf16 %v3220, %v3216
      %v3253 = vpack.c.bf16 %v3221, %v3217
      %v3254 = vpack.c.bf16 %v3222, %v3218
      %v3255 = vpack.c.bf16 %v3223, %v3219
      %v3256 = vpack.c.bf16 %v3228, %v3224
      %v3257 = vpack.c.bf16 %v3229, %v3225
      %v3258 = vpack.c.bf16 %v3230, %v3226
      %v3259 = vpack.c.bf16 %v3231, %v3227
      %v3260 = vpack.c.bf16 %v3236, %v3232
      %v3261 = vpack.c.bf16 %v3237, %v3233
      %v3262 = vpack.c.bf16 %v3238, %v3234
      %v3263 = vpack.c.bf16 %v3239, %v3235
      %v3264 = vpack.c.bf16 %v3244, %v3240
      %v3265 = vpack.c.bf16 %v3245, %v3241
      %v3266 = vpack.c.bf16 %v3246, %v3242
      %v3267 = vpack.c.bf16 %v3247, %v3243
      %v3268 = vpack.c.bf16 %v3248, %v3248
      %v3269 = vpack.c.bf16 %v3249, %v3249
      %v3270 = vpack.c.bf16 %v3250, %v3250
      %v3271 = vpack.c.bf16 %v3251, %v3251
      %v3274 = vunpack.c.l.b16 %v3214
      %v3275 = vunpack.c.l.b16 %v3215
      %v3276 = vpack.c.b16 %v3275, %v3274
      %v3278 = vsel %vm1345, %v3276, 0
      %v3281 = vsel %vm1352, %v3268, 0
      %v3284 = vsel %vm1352, %v3269, 0
      %v3287 = vsel %vm1352, %v3270, 0
      %v3290 = vsel %vm1352, %v3271, 0
      %3292 = vmatprep.subr.bf16.mxu0 0
      %3293 = vmatpush1.bf16.msra.mxu0 0
      %3294 = vmatprep.subr.bf16.mxu0 0
      %3295 = vmatpush1.bf16.msra.mxu0 0
      %3296 = vmatprep.subr.bf16.mxu0 0
      %3297 = vmatpush1.bf16.msra.mxu0 0
      %3298 = vmatprep.subr.bf16.mxu0 %v3284
      %3299 = vmatpush1.bf16.msra.mxu0 %v3281
      %3300 = vmatprep.subr.bf16.mxu0 %v3265
      %3301 = vmatpush1.bf16.msra.mxu0 %v3264
      %3302 = vmatprep.subr.bf16.mxu0 %v3261
      %3303 = vmatpush1.bf16.msra.mxu0 %v3260
      %3304 = vmatprep.subr.bf16.mxu0 %v3257
      %3305 = vmatpush1.bf16.msra.mxu0 %v3256
      %3306 = vmatprep.subr.bf16.mxu0 %v3253
      %3307 = vmatpush1.bf16.msra.mxu0 %v3252
      %3308 = vmatprep.subr.bf16.mxu0 0
      %3309 = vmatpush2.bf16.msra.mxu0 0
      %3310 = vmatprep.subr.bf16.mxu0 0
      %3311 = vmatpush2.bf16.msra.mxu0 0
      %3312 = vmatprep.subr.bf16.mxu0 0
      %3313 = vmatpush2.bf16.msra.mxu0 0
      %3314 = vmatprep.subr.bf16.mxu0 0
      %3315 = vmatpush2.bf16.msra.mxu0 0
      %3316 = vmatprep.subr.bf16.mxu0 0
      %3317 = vmatpush2.bf16.msra.mxu0 0
      %3318 = vmatprep.subr.bf16.mxu0 0
      %3319 = vmatpush2.bf16.msra.mxu0 0
      %3320 = vmatprep.subr.bf16.mxu0 0
      %3321 = vmatpush2.bf16.msra.mxu0 0
      %3322 = vmatprep.subr.bf16.mxu0 0
      %3323 = vmatpush2.bf16.msra.mxu0 0
      %3324 = vmatprep.mubr.bf16.mxu0 0
      %3325 = vmatmul.mubr.bf16.gmra.mxu0 %v3278
      %v3326 = vpop.f32.mrf.mxu0
      %v3327 = vadd.f32 0.0, %v3326
      %v3328 = vpop.f32.mrf.mxu0
      %v3329 = vadd.f32 0.0, %v3328
      %v3330 = vpop.f32.mrf.mxu0
      %v3331 = vadd.f32 0.0, %v3330
      %v3332 = vpop.f32.mrf.mxu0
      %v3333 = vadd.f32 0.0, %v3332
      %3334 = vdwg.mxu0
      %3335 = vmatprep.subr.bf16.mxu0 0
      %3336 = vmatpush1.bf16.msra.mxu0 0
      %3337 = vmatprep.subr.bf16.mxu0 0
      %3338 = vmatpush1.bf16.msra.mxu0 0
      %3339 = vmatprep.subr.bf16.mxu0 0
      %3340 = vmatpush1.bf16.msra.mxu0 0
      %3341 = vmatprep.subr.bf16.mxu0 %v3290
      %3342 = vmatpush1.bf16.msra.mxu0 %v3287
      %3343 = vmatprep.subr.bf16.mxu0 %v3267
      %3344 = vmatpush1.bf16.msra.mxu0 %v3266
      %3345 = vmatprep.subr.bf16.mxu0 %v3263
      %3346 = vmatpush1.bf16.msra.mxu0 %v3262
      %3347 = vmatprep.subr.bf16.mxu0 %v3259
      %3348 = vmatpush1.bf16.msra.mxu0 %v3258
      %3349 = vmatprep.subr.bf16.mxu0 %v3255
      %3350 = vmatpush1.bf16.msra.mxu0 %v3254
      %3351 = vmatprep.subr.bf16.mxu0 0
      %3352 = vmatpush2.bf16.msra.mxu0 0
      %3353 = vmatprep.subr.bf16.mxu0 0
      %3354 = vmatpush2.bf16.msra.mxu0 0
      %3355 = vmatprep.subr.bf16.mxu0 0
      %3356 = vmatpush2.bf16.msra.mxu0 0
      %3357 = vmatprep.subr.bf16.mxu0 0
      %3358 = vmatpush2.bf16.msra.mxu0 0
      %3359 = vmatprep.subr.bf16.mxu0 0
      %3360 = vmatpush2.bf16.msra.mxu0 0
      %3361 = vmatprep.subr.bf16.mxu0 0
      %3362 = vmatpush2.bf16.msra.mxu0 0
      %3363 = vmatprep.subr.bf16.mxu0 0
      %3364 = vmatpush2.bf16.msra.mxu0 0
      %3365 = vmatprep.subr.bf16.mxu0 0
      %3366 = vmatpush2.bf16.msra.mxu0 0
      %3367 = vmatprep.mubr.bf16.mxu0 0
      %3368 = vmatmul.mubr.bf16.gmra.mxu0 %v3278
      %v3369 = vpop.f32.mrf.mxu0
      %v3370 = vadd.f32 0.0, %v3369
      %v3371 = vpop.f32.mrf.mxu0
      %v3372 = vadd.f32 0.0, %v3371
      %v3373 = vpop.f32.mrf.mxu0
      %v3374 = vadd.f32 0.0, %v3373
      %v3375 = vpop.f32.mrf.mxu0
      %v3376 = vadd.f32 0.0, %v3375
      %3377 = vdwg.mxu0
      %v3378 = vadd.f32 %v3147, %v3327
      %v3379 = vadd.f32 %v3149, %v3329
      %v3380 = vadd.f32 %v3198, %v3370
      %v3381 = vadd.f32 %v3200, %v3372
      %v3382 = vxor.u32 %v3378, 2147483648
      %v3383 = vxor.u32 %v3379, 2147483648
      %v3384 = vxor.u32 %v3380, 2147483648
      %v3385 = vxor.u32 %v3381, 2147483648
      %v3386 = vmul.f32 %v3382, 1.442695
      %v3387 = vpow.pop %v3386
      %v3388 = vmul.f32 %v3383, 1.442695
      %v3389 = vpow.pop %v3388
      %v3390 = vmul.f32 %v3384, 1.442695
      %v3391 = vpow.pop %v3390
      %v3392 = vmul.f32 %v3385, 1.442695
      %v3393 = vpow.pop %v3392
      %v3394 = vadd.f32 %v3387, 1.0
      %v3395 = vadd.f32 %v3389, 1.0
      %v3396 = vadd.f32 %v3391, 1.0
      %v3397 = vadd.f32 %v3393, 1.0
      %v3398 = vrcp.pop %v3394
      %v3399 = vmul.f32 1.0, %v3398
      %v3400 = vrcp.pop %v3395
      %v3401 = vmul.f32 1.0, %v3400
      %v3402 = vrcp.pop %v3396
      %v3403 = vmul.f32 1.0, %v3402
      %v3404 = vrcp.pop %v3397
      %v3405 = vmul.f32 1.0, %v3404
      %v3406 = vadd.f32 %v3151, %v3331
      %v3407 = vadd.f32 %v3153, %v3333
      %v3408 = vadd.f32 %v3202, %v3374
      %v3409 = vadd.f32 %v3204, %v3376
      %v3410 = vxor.u32 %v3406, 2147483648
      %v3411 = vxor.u32 %v3407, 2147483648
      %v3412 = vxor.u32 %v3408, 2147483648
      %v3413 = vxor.u32 %v3409, 2147483648
      %v3414 = vmul.f32 %v3410, 1.442695
      %v3415 = vpow.pop %v3414
      %v3416 = vmul.f32 %v3411, 1.442695
      %v3417 = vpow.pop %v3416
      %v3418 = vmul.f32 %v3412, 1.442695
      %v3419 = vpow.pop %v3418
      %v3420 = vmul.f32 %v3413, 1.442695
      %v3421 = vpow.pop %v3420
      %v3422 = vadd.f32 %v3415, 1.0
      %v3423 = vadd.f32 %v3417, 1.0
      %v3424 = vadd.f32 %v3419, 1.0
      %v3425 = vadd.f32 %v3421, 1.0
      %v3426 = vrcp.pop %v3422
      %v3427 = vmul.f32 1.0, %v3426
      %v3428 = vrcp.pop %v3423
      %v3429 = vmul.f32 1.0, %v3428
      %v3430 = vrcp.pop %v3424
      %v3431 = vmul.f32 1.0, %v3430
      %v3432 = vrcp.pop %v3425
      %v3433 = vmul.f32 1.0, %v3432
      %v3434 = vsub.f32 1.0, %v3427
      %v3435 = vsub.f32 1.0, %v3429
      %v3436 = vsub.f32 1.0, %v3431
      %v3437 = vsub.f32 1.0, %v3433
      %v3438 = vmul.f32 %v3434, %v2253
      %v3439 = vmul.f32 %v3435, %v2254
      %v3440 = vmul.f32 %v3436, %v2255
      %v3441 = vmul.f32 %v3437, %v2256
      %3446 = vrot.lane.b32.xlu0 %v3438, 17
      %v3447 = vpop.permute.xlu0 %3446
      %3448 = vrot.lane.b32.xlu0 %v3439, 17
      %v3449 = vpop.permute.xlu0 %3448
      %3450 = vrot.lane.b32.xlu0 %v3440, 17
      %v3451 = vpop.permute.xlu0 %3450
      %3452 = vrot.lane.b32.xlu0 %v3441, 17
      %v3453 = vpop.permute.xlu0 %3452
      %v3454 = vsel %vm505, %v3447, %v3449
      %v3455 = vsel %vm505, %v3449, %v3451
      %v3456 = vsel %vm505, %v3451, %v3453
      %v3461 = vsel %vm505, 0.0, %v3447
      %v3462 = vld [vmem:[%s1] ss:$8 sm:$0xf]
      %v3464 = vlaneseq
      %v3465 = vshrl.u32 %v3464, 7
      %v3466 = vsub.s32 0, %v3465
      %v3467 = vrot.slane %v3462, %v3466
      %v3468 = vlaneseq
      %v3469 = vshrl.u32 %v3468, 7
      %v3470 = vsub.s32 1, %v3469
      %v3471 = vrot.slane %v3462, %v3470
      %v3472 = vlaneseq
      %v3473 = vshrl.u32 %v3472, 7
      %v3474 = vsub.s32 2, %v3473
      %v3475 = vrot.slane %v3462, %v3474
      %v3476 = vlaneseq
      %v3477 = vshrl.u32 %v3476, 7
      %v3478 = vsub.s32 3, %v3477
      %v3479 = vrot.slane %v3462, %v3478
      %v3484 = vmul.f32 %v3461, %v3467
      %v3485 = vmul.f32 %v3454, %v3471
      %v3486 = vmul.f32 %v3455, %v3475
      %v3487 = vmul.f32 %v3456, %v3479
      %3488 = vst [vmem:[#allocation3] sm:$0xff] %v3484
      %3489 = vst [vmem:[#allocation3 + $0x8] sm:$0xff] %v3485
      %3490 = vst [vmem:[#allocation3 + $0x10] sm:$0xff] %v3486
      %3491 = vst [vmem:[#allocation3 + $0x18] sm:$0xff] %v3487
      %3492 = vrot.lane.b32.xlu0 %v3438, 16
      %v3493 = vpop.permute.xlu0 %3492
      %3494 = vrot.lane.b32.xlu0 %v3439, 16
      %v3495 = vpop.permute.xlu0 %3494
      %3496 = vrot.lane.b32.xlu0 %v3440, 16
      %v3497 = vpop.permute.xlu0 %3496
      %3498 = vrot.lane.b32.xlu0 %v3441, 16
      %v3499 = vpop.permute.xlu0 %3498
      %v3500 = vsel %vm552, %v3493, %v3495
      %v3501 = vsel %vm552, %v3495, %v3497
      %v3502 = vsel %vm552, %v3497, %v3499
      %v3507 = vsel %vm552, 0.0, %v3493
      %v3508 = vld [vmem:[%s561] ss:$8 sm:$0xf]
      %v3510 = vlaneseq
      %v3511 = vshrl.u32 %v3510, 7
      %v3512 = vsub.s32 0, %v3511
      %v3513 = vrot.slane %v3508, %v3512
      %v3514 = vlaneseq
      %v3515 = vshrl.u32 %v3514, 7
      %v3516 = vsub.s32 1, %v3515
      %v3517 = vrot.slane %v3508, %v3516
      %v3518 = vlaneseq
      %v3519 = vshrl.u32 %v3518, 7
      %v3520 = vsub.s32 2, %v3519
      %v3521 = vrot.slane %v3508, %v3520
      %v3522 = vlaneseq
      %v3523 = vshrl.u32 %v3522, 7
      %v3524 = vsub.s32 3, %v3523
      %v3525 = vrot.slane %v3508, %v3524
      %v3530 = vmul.f32 %v3507, %v3513
      %v3531 = vmul.f32 %v3500, %v3517
      %v3532 = vmul.f32 %v3501, %v3521
      %v3533 = vmul.f32 %v3502, %v3525
      %3534 = vst [vmem:[#allocation3 + $0x20] sm:$0xff] %v3530
      %3535 = vst [vmem:[#allocation3 + $0x28] sm:$0xff] %v3531
      %3536 = vst [vmem:[#allocation3 + $0x30] sm:$0xff] %v3532
      %3537 = vst [vmem:[#allocation3 + $0x38] sm:$0xff] %v3533
      %3538 = vrot.lane.b32.xlu0 %v3438, 15
      %v3539 = vpop.permute.xlu0 %3538
      %3540 = vrot.lane.b32.xlu0 %v3439, 15
      %v3541 = vpop.permute.xlu0 %3540
      %3542 = vrot.lane.b32.xlu0 %v3440, 15
      %v3543 = vpop.permute.xlu0 %3542
      %3544 = vrot.lane.b32.xlu0 %v3441, 15
      %v3545 = vpop.permute.xlu0 %3544
      %v3546 = vsel %vm600, %v3539, %v3541
      %v3547 = vsel %vm600, %v3541, %v3543
      %v3548 = vsel %vm600, %v3543, %v3545
      %v3553 = vsel %vm600, 0.0, %v3539
      %v3554 = vld [vmem:[%s609] ss:$8 sm:$0xf]
      %v3556 = vlaneseq
      %v3557 = vshrl.u32 %v3556, 7
      %v3558 = vsub.s32 0, %v3557
      %v3559 = vrot.slane %v3554, %v3558
      %v3560 = vlaneseq
      %v3561 = vshrl.u32 %v3560, 7
      %v3562 = vsub.s32 1, %v3561
      %v3563 = vrot.slane %v3554, %v3562
      %v3564 = vlaneseq
      %v3565 = vshrl.u32 %v3564, 7
      %v3566 = vsub.s32 2, %v3565
      %v3567 = vrot.slane %v3554, %v3566
      %v3568 = vlaneseq
      %v3569 = vshrl.u32 %v3568, 7
      %v3570 = vsub.s32 3, %v3569
      %v3571 = vrot.slane %v3554, %v3570
      %v3576 = vmul.f32 %v3553, %v3559
      %v3577 = vmul.f32 %v3546, %v3563
      %v3578 = vmul.f32 %v3547, %v3567
      %v3579 = vmul.f32 %v3548, %v3571
      %3580 = vst [vmem:[#allocation3 + $0x40] sm:$0xff] %v3576
      %3581 = vst [vmem:[#allocation3 + $0x48] sm:$0xff] %v3577
      %3582 = vst [vmem:[#allocation3 + $0x50] sm:$0xff] %v3578
      %3583 = vst [vmem:[#allocation3 + $0x58] sm:$0xff] %v3579
      %3584 = vrot.lane.b32.xlu0 %v3438, 1
      %v3585 = vpop.permute.xlu0 %3584
      %3586 = vrot.lane.b32.xlu0 %v3439, 1
      %v3587 = vpop.permute.xlu0 %3586
      %3588 = vrot.lane.b32.xlu0 %v3440, 1
      %v3589 = vpop.permute.xlu0 %3588
      %3590 = vrot.lane.b32.xlu0 %v3441, 1
      %v3591 = vpop.permute.xlu0 %3590
      %v3592 = vsel %vm648, %v3585, %v3587
      %v3593 = vsel %vm648, %v3587, %v3589
      %v3594 = vsel %vm648, %v3589, %v3591
      %v3599 = vsel %vm648, 0.0, %v3585
      %v3600 = vld [vmem:[%s657] ss:$8 sm:$0xf]
      %v3602 = vlaneseq
      %v3603 = vshrl.u32 %v3602, 7
      %v3604 = vsub.s32 0, %v3603
      %v3605 = vrot.slane %v3600, %v3604
      %v3606 = vlaneseq
      %v3607 = vshrl.u32 %v3606, 7
      %v3608 = vsub.s32 1, %v3607
      %v3609 = vrot.slane %v3600, %v3608
      %v3610 = vlaneseq
      %v3611 = vshrl.u32 %v3610, 7
      %v3612 = vsub.s32 2, %v3611
      %v3613 = vrot.slane %v3600, %v3612
      %v3614 = vlaneseq
      %v3615 = vshrl.u32 %v3614, 7
      %v3616 = vsub.s32 3, %v3615
      %v3617 = vrot.slane %v3600, %v3616
      %v3622 = vmul.f32 %v3599, %v3605
      %v3623 = vmul.f32 %v3592, %v3609
      %v3624 = vmul.f32 %v3593, %v3613
      %v3625 = vmul.f32 %v3594, %v3617
      %3626 = vst [vmem:[#allocation3 + $0x60] sm:$0xff] %v3622
      %3627 = vst [vmem:[#allocation3 + $0x68] sm:$0xff] %v3623
      %3628 = vst [vmem:[#allocation3 + $0x70] sm:$0xff] %v3624
      %3629 = vst [vmem:[#allocation3 + $0x78] sm:$0xff] %v3625
      %3630 = vst [vmem:[#allocation3 + $0x80] sm:$0xff] %v3438
      %3631 = vst [vmem:[#allocation3 + $0x88] sm:$0xff] %v3439
      %3632 = vst [vmem:[#allocation3 + $0x90] sm:$0xff] %v3440
      %3633 = vst [vmem:[#allocation3 + $0x98] sm:$0xff] %v3441
      %3634 = vrot.lane.b32.xlu0 %v3438, 127
      %v3635 = vpop.permute.xlu0 %3634
      %3636 = vrot.lane.b32.xlu0 %v3439, 127
      %v3637 = vpop.permute.xlu0 %3636
      %3638 = vrot.lane.b32.xlu0 %v3440, 127
      %v3639 = vpop.permute.xlu0 %3638
      %3640 = vrot.lane.b32.xlu0 %v3441, 127
      %v3641 = vpop.permute.xlu0 %3640
      %v3642 = vsel %vm700, %v3635, %v3637
      %v3643 = vsel %vm700, %v3637, %v3639
      %v3644 = vsel %vm700, %v3639, %v3641
      %v3649 = vsel %vm700, %v3641, 0.0
      %v3650 = vld [vmem:[%s709] ss:$8 sm:$0xf]
      %v3652 = vlaneseq
      %v3653 = vshrl.u32 %v3652, 7
      %v3654 = vsub.s32 0, %v3653
      %v3655 = vrot.slane %v3650, %v3654
      %v3656 = vlaneseq
      %v3657 = vshrl.u32 %v3656, 7
      %v3658 = vsub.s32 1, %v3657
      %v3659 = vrot.slane %v3650, %v3658
      %v3660 = vlaneseq
      %v3661 = vshrl.u32 %v3660, 7
      %v3662 = vsub.s32 2, %v3661
      %v3663 = vrot.slane %v3650, %v3662
      %v3664 = vlaneseq
      %v3665 = vshrl.u32 %v3664, 7
      %v3666 = vsub.s32 3, %v3665
      %v3667 = vrot.slane %v3650, %v3666
      %v3672 = vmul.f32 %v3642, %v3655
      %v3673 = vmul.f32 %v3643, %v3659
      %v3674 = vmul.f32 %v3644, %v3663
      %v3675 = vmul.f32 %v3649, %v3667
      %3676 = vst [vmem:[#allocation3 + $0xa0] sm:$0xff] %v3672
      %3677 = vst [vmem:[#allocation3 + $0xa8] sm:$0xff] %v3673
      %3678 = vst [vmem:[#allocation3 + $0xb0] sm:$0xff] %v3674
      %3679 = vst [vmem:[#allocation3 + $0xb8] sm:$0xff] %v3675
      %3680 = vrot.lane.b32.xlu0 %v3438, 113
      %v3681 = vpop.permute.xlu0 %3680
      %3682 = vrot.lane.b32.xlu0 %v3439, 113
      %v3683 = vpop.permute.xlu0 %3682
      %3684 = vrot.lane.b32.xlu0 %v3440, 113
      %v3685 = vpop.permute.xlu0 %3684
      %3686 = vrot.lane.b32.xlu0 %v3441, 113
      %v3687 = vpop.permute.xlu0 %3686
      %v3688 = vsel %vm748, %v3681, %v3683
      %v3689 = vsel %vm748, %v3683, %v3685
      %v3690 = vsel %vm748, %v3685, %v3687
      %v3695 = vsel %vm748, %v3687, 0.0
      %v3696 = vld [vmem:[%s757] ss:$8 sm:$0xf]
      %v3698 = vlaneseq
      %v3699 = vshrl.u32 %v3698, 7
      %v3700 = vsub.s32 0, %v3699
      %v3701 = vrot.slane %v3696, %v3700
      %v3702 = vlaneseq
      %v3703 = vshrl.u32 %v3702, 7
      %v3704 = vsub.s32 1, %v3703
      %v3705 = vrot.slane %v3696, %v3704
      %v3706 = vlaneseq
      %v3707 = vshrl.u32 %v3706, 7
      %v3708 = vsub.s32 2, %v3707
      %v3709 = vrot.slane %v3696, %v3708
      %v3710 = vlaneseq
      %v3711 = vshrl.u32 %v3710, 7
      %v3712 = vsub.s32 3, %v3711
      %v3713 = vrot.slane %v3696, %v3712
      %v3718 = vmul.f32 %v3688, %v3701
      %v3719 = vmul.f32 %v3689, %v3705
      %v3720 = vmul.f32 %v3690, %v3709
      %v3721 = vmul.f32 %v3695, %v3713
      %3722 = vst [vmem:[#allocation3 + $0xc0] sm:$0xff] %v3718
      %3723 = vst [vmem:[#allocation3 + $0xc8] sm:$0xff] %v3719
      %3724 = vst [vmem:[#allocation3 + $0xd0] sm:$0xff] %v3720
      %3725 = vst [vmem:[#allocation3 + $0xd8] sm:$0xff] %v3721
      %3726 = vrot.lane.b32.xlu0 %v3438, 112
      %v3727 = vpop.permute.xlu0 %3726
      %3728 = vrot.lane.b32.xlu0 %v3439, 112
      %v3729 = vpop.permute.xlu0 %3728
      %3730 = vrot.lane.b32.xlu0 %v3440, 112
      %v3731 = vpop.permute.xlu0 %3730
      %3732 = vrot.lane.b32.xlu0 %v3441, 112
      %v3733 = vpop.permute.xlu0 %3732
      %v3734 = vsel %vm796, %v3727, %v3729
      %v3735 = vsel %vm796, %v3729, %v3731
      %v3736 = vsel %vm796, %v3731, %v3733
      %v3741 = vsel %vm796, %v3733, 0.0
      %v3742 = vld [vmem:[%s805] ss:$8 sm:$0xf]
      %v3744 = vlaneseq
      %v3745 = vshrl.u32 %v3744, 7
      %v3746 = vsub.s32 0, %v3745
      %v3747 = vrot.slane %v3742, %v3746
      %v3748 = vlaneseq
      %v3749 = vshrl.u32 %v3748, 7
      %v3750 = vsub.s32 1, %v3749
      %v3751 = vrot.slane %v3742, %v3750
      %v3752 = vlaneseq
      %v3753 = vshrl.u32 %v3752, 7
      %v3754 = vsub.s32 2, %v3753
      %v3755 = vrot.slane %v3742, %v3754
      %v3756 = vlaneseq
      %v3757 = vshrl.u32 %v3756, 7
      %v3758 = vsub.s32 3, %v3757
      %v3759 = vrot.slane %v3742, %v3758
      %v3764 = vmul.f32 %v3734, %v3747
      %v3765 = vmul.f32 %v3735, %v3751
      %v3766 = vmul.f32 %v3736, %v3755
      %v3767 = vmul.f32 %v3741, %v3759
      %3768 = vst [vmem:[#allocation3 + $0xe0] sm:$0xff] %v3764
      %3769 = vst [vmem:[#allocation3 + $0xe8] sm:$0xff] %v3765
      %3770 = vst [vmem:[#allocation3 + $0xf0] sm:$0xff] %v3766
      %3771 = vst [vmem:[#allocation3 + $0xf8] sm:$0xff] %v3767
      %3772 = vrot.lane.b32.xlu0 %v3438, 111
      %v3773 = vpop.permute.xlu0 %3772
      %3774 = vrot.lane.b32.xlu0 %v3439, 111
      %v3775 = vpop.permute.xlu0 %3774
      %3776 = vrot.lane.b32.xlu0 %v3440, 111
      %v3777 = vpop.permute.xlu0 %3776
      %3778 = vrot.lane.b32.xlu0 %v3441, 111
      %v3779 = vpop.permute.xlu0 %3778
      %v3780 = vsel %vm844, %v3773, %v3775
      %v3781 = vsel %vm844, %v3775, %v3777
      %v3782 = vsel %vm844, %v3777, %v3779
      %v3787 = vsel %vm844, %v3779, 0.0
      %v3788 = vld [vmem:[%s853] ss:$8 sm:$0xf]
      %v3790 = vlaneseq
      %v3791 = vshrl.u32 %v3790, 7
      %v3792 = vsub.s32 0, %v3791
      %v3793 = vrot.slane %v3788, %v3792
      %v3794 = vlaneseq
      %v3795 = vshrl.u32 %v3794, 7
      %v3796 = vsub.s32 1, %v3795
      %v3797 = vrot.slane %v3788, %v3796
      %v3798 = vlaneseq
      %v3799 = vshrl.u32 %v3798, 7
      %v3800 = vsub.s32 2, %v3799
      %v3801 = vrot.slane %v3788, %v3800
      %v3802 = vlaneseq
      %v3803 = vshrl.u32 %v3802, 7
      %v3804 = vsub.s32 3, %v3803
      %v3805 = vrot.slane %v3788, %v3804
      %v3810 = vmul.f32 %v3780, %v3793
      %v3811 = vmul.f32 %v3781, %v3797
      %v3812 = vmul.f32 %v3782, %v3801
      %v3813 = vmul.f32 %v3787, %v3805
      %3814 = vst [vmem:[#allocation3 + $0x100] sm:$0xff] %v3810
      %3815 = vst [vmem:[#allocation3 + $0x108] sm:$0xff] %v3811
      %3816 = vst [vmem:[#allocation3 + $0x110] sm:$0xff] %v3812
      %3817 = vst [vmem:[#allocation3 + $0x118] sm:$0xff] %v3813
      %v3818 = vld [vmem:[%s9] sm:$0xf]
      %v3819 = vld [vmem:[#allocation3] sm:$0xff]
      %v3820 = vld [vmem:[#allocation3 + $0x8] sm:$0xff]
      %v3821 = vld [vmem:[#allocation3 + $0x10] sm:$0xff]
      %v3822 = vld [vmem:[#allocation3 + $0x18] sm:$0xff]
      %v3823 = vld [vmem:[#allocation3 + $0x20] sm:$0xff]
      %v3824 = vld [vmem:[#allocation3 + $0x28] sm:$0xff]
      %v3825 = vld [vmem:[#allocation3 + $0x30] sm:$0xff]
      %v3826 = vld [vmem:[#allocation3 + $0x38] sm:$0xff]
      %v3827 = vld [vmem:[#allocation3 + $0x40] sm:$0xff]
      %v3828 = vld [vmem:[#allocation3 + $0x48] sm:$0xff]
      %v3829 = vld [vmem:[#allocation3 + $0x50] sm:$0xff]
      %v3830 = vld [vmem:[#allocation3 + $0x58] sm:$0xff]
      %v3831 = vld [vmem:[#allocation3 + $0x60] sm:$0xff]
      %v3832 = vld [vmem:[#allocation3 + $0x68] sm:$0xff]
      %v3833 = vld [vmem:[#allocation3 + $0x70] sm:$0xff]
      %v3834 = vld [vmem:[#allocation3 + $0x78] sm:$0xff]
      %v3835 = vld [vmem:[#allocation3 + $0x80] sm:$0xff]
      %v3836 = vld [vmem:[#allocation3 + $0x88] sm:$0xff]
      %v3837 = vld [vmem:[#allocation3 + $0x90] sm:$0xff]
      %v3838 = vld [vmem:[#allocation3 + $0x98] sm:$0xff]
      %v3839 = vld [vmem:[#allocation3 + $0xa0] sm:$0xff]
      %v3840 = vld [vmem:[#allocation3 + $0xa8] sm:$0xff]
      %v3841 = vld [vmem:[#allocation3 + $0xb0] sm:$0xff]
      %v3842 = vld [vmem:[#allocation3 + $0xb8] sm:$0xff]
      %v3843 = vld [vmem:[#allocation3 + $0xc0] sm:$0xff]
      %v3844 = vld [vmem:[#allocation3 + $0xc8] sm:$0xff]
      %v3845 = vld [vmem:[#allocation3 + $0xd0] sm:$0xff]
      %v3846 = vld [vmem:[#allocation3 + $0xd8] sm:$0xff]
      %v3847 = vld [vmem:[#allocation3 + $0xe0] sm:$0xff]
      %v3848 = vld [vmem:[#allocation3 + $0xe8] sm:$0xff]
      %v3849 = vld [vmem:[#allocation3 + $0xf0] sm:$0xff]
      %v3850 = vld [vmem:[#allocation3 + $0xf8] sm:$0xff]
      %v3851 = vld [vmem:[#allocation3 + $0x100] sm:$0xff]
      %v3852 = vld [vmem:[#allocation3 + $0x108] sm:$0xff]
      %v3853 = vld [vmem:[#allocation3 + $0x110] sm:$0xff]
      %v3854 = vld [vmem:[#allocation3 + $0x118] sm:$0xff]
      %v3855 = vpack.c.bf16 %v3823, %v3819
      %v3856 = vpack.c.bf16 %v3824, %v3820
      %v3857 = vpack.c.bf16 %v3825, %v3821
      %v3858 = vpack.c.bf16 %v3826, %v3822
      %v3859 = vpack.c.bf16 %v3831, %v3827
      %v3860 = vpack.c.bf16 %v3832, %v3828
      %v3861 = vpack.c.bf16 %v3833, %v3829
      %v3862 = vpack.c.bf16 %v3834, %v3830
      %v3863 = vpack.c.bf16 %v3839, %v3835
      %v3864 = vpack.c.bf16 %v3840, %v3836
      %v3865 = vpack.c.bf16 %v3841, %v3837
      %v3866 = vpack.c.bf16 %v3842, %v3838
      %v3867 = vpack.c.bf16 %v3847, %v3843
      %v3868 = vpack.c.bf16 %v3848, %v3844
      %v3869 = vpack.c.bf16 %v3849, %v3845
      %v3870 = vpack.c.bf16 %v3850, %v3846
      %v3871 = vpack.c.bf16 %v3851, %v3851
      %v3872 = vpack.c.bf16 %v3852, %v3852
      %v3873 = vpack.c.bf16 %v3853, %v3853
      %v3874 = vpack.c.bf16 %v3854, %v3854
      %v3876 = vsel %vm1345, %v3818, 0
      %v3879 = vsel %vm1352, %v3871, 0
      %v3882 = vsel %vm1352, %v3872, 0
      %v3885 = vsel %vm1352, %v3873, 0
      %v3888 = vsel %vm1352, %v3874, 0
      %3890 = vmatprep.subr.bf16.mxu0 0
      %3891 = vmatpush1.bf16.msra.mxu0 0
      %3892 = vmatprep.subr.bf16.mxu0 0
      %3893 = vmatpush1.bf16.msra.mxu0 0
      %3894 = vmatprep.subr.bf16.mxu0 0
      %3895 = vmatpush1.bf16.msra.mxu0 0
      %3896 = vmatprep.subr.bf16.mxu0 %v3882
      %3897 = vmatpush1.bf16.msra.mxu0 %v3879
      %3898 = vmatprep.subr.bf16.mxu0 %v3868
      %3899 = vmatpush1.bf16.msra.mxu0 %v3867
      %3900 = vmatprep.subr.bf16.mxu0 %v3864
      %3901 = vmatpush1.bf16.msra.mxu0 %v3863
      %3902 = vmatprep.subr.bf16.mxu0 %v3860
      %3903 = vmatpush1.bf16.msra.mxu0 %v3859
      %3904 = vmatprep.subr.bf16.mxu0 %v3856
      %3905 = vmatpush1.bf16.msra.mxu0 %v3855
      %3906 = vmatprep.subr.bf16.mxu0 0
      %3907 = vmatpush2.bf16.msra.mxu0 0
      %3908 = vmatprep.subr.bf16.mxu0 0
      %3909 = vmatpush2.bf16.msra.mxu0 0
      %3910 = vmatprep.subr.bf16.mxu0 0
      %3911 = vmatpush2.bf16.msra.mxu0 0
      %3912 = vmatprep.subr.bf16.mxu0 0
      %3913 = vmatpush2.bf16.msra.mxu0 0
      %3914 = vmatprep.subr.bf16.mxu0 0
      %3915 = vmatpush2.bf16.msra.mxu0 0
      %3916 = vmatprep.subr.bf16.mxu0 0
      %3917 = vmatpush2.bf16.msra.mxu0 0
      %3918 = vmatprep.subr.bf16.mxu0 0
      %3919 = vmatpush2.bf16.msra.mxu0 0
      %3920 = vmatprep.subr.bf16.mxu0 0
      %3921 = vmatpush2.bf16.msra.mxu0 0
      %3922 = vmatprep.mubr.bf16.mxu0 0
      %3923 = vmatmul.mubr.bf16.gmra.mxu0 %v3876
      %v3924 = vpop.f32.mrf.mxu0
      %v3925 = vadd.f32 0.0, %v3924
      %v3926 = vpop.f32.mrf.mxu0
      %v3927 = vadd.f32 0.0, %v3926
      %v3928 = vpop.f32.mrf.mxu0
      %v3929 = vpop.f32.mrf.mxu0
      %3930 = vdwg.mxu0
      %3931 = vmatprep.subr.bf16.mxu0 0
      %3932 = vmatpush1.bf16.msra.mxu0 0
      %3933 = vmatprep.subr.bf16.mxu0 0
      %3934 = vmatpush1.bf16.msra.mxu0 0
      %3935 = vmatprep.subr.bf16.mxu0 0
      %3936 = vmatpush1.bf16.msra.mxu0 0
      %3937 = vmatprep.subr.bf16.mxu0 %v3888
      %3938 = vmatpush1.bf16.msra.mxu0 %v3885
      %3939 = vmatprep.subr.bf16.mxu0 %v3870
      %3940 = vmatpush1.bf16.msra.mxu0 %v3869
      %3941 = vmatprep.subr.bf16.mxu0 %v3866
      %3942 = vmatpush1.bf16.msra.mxu0 %v3865
      %3943 = vmatprep.subr.bf16.mxu0 %v3862
      %3944 = vmatpush1.bf16.msra.mxu0 %v3861
      %3945 = vmatprep.subr.bf16.mxu0 %v3858
      %3946 = vmatpush1.bf16.msra.mxu0 %v3857
      %3947 = vmatprep.subr.bf16.mxu0 0
      %3948 = vmatpush2.bf16.msra.mxu0 0
      %3949 = vmatprep.subr.bf16.mxu0 0
      %3950 = vmatpush2.bf16.msra.mxu0 0
      %3951 = vmatprep.subr.bf16.mxu0 0
      %3952 = vmatpush2.bf16.msra.mxu0 0
      %3953 = vmatprep.subr.bf16.mxu0 0
      %3954 = vmatpush2.bf16.msra.mxu0 0
      %3955 = vmatprep.subr.bf16.mxu0 0
      %3956 = vmatpush2.bf16.msra.mxu0 0
      %3957 = vmatprep.subr.bf16.mxu0 0
      %3958 = vmatpush2.bf16.msra.mxu0 0
      %3959 = vmatprep.subr.bf16.mxu0 0
      %3960 = vmatpush2.bf16.msra.mxu0 0
      %3961 = vmatprep.subr.bf16.mxu0 0
      %3962 = vmatpush2.bf16.msra.mxu0 0
      %3963 = vmatprep.mubr.bf16.mxu0 0
      %3964 = vmatmul.mubr.bf16.gmra.mxu0 %v3876
      %v3965 = vpop.f32.mrf.mxu0
      %v3966 = vadd.f32 0.0, %v3965
      %v3967 = vpop.f32.mrf.mxu0
      %v3968 = vadd.f32 0.0, %v3967
      %v3969 = vpop.f32.mrf.mxu0
      %v3970 = vpop.f32.mrf.mxu0
      %3971 = vdwg.mxu0
      %v3972 = vadd.f32 %v3157, %v3925
      %v3973 = vadd.f32 %v3159, %v3927
      %v3974 = vadd.f32 %v3208, %v3966
      %v3975 = vadd.f32 %v3210, %v3968
      %v3976 = vmax.f32 %v3972, 0.0
      %v3977 = vmax.f32 %v3973, 0.0
      %v3978 = vmax.f32 %v3974, 0.0
      %v3979 = vmax.f32 %v3975, 0.0
      %v3980 = vsub.f32 1.0, %v3399
      %v3981 = vsub.f32 1.0, %v3401
      %v3982 = vsub.f32 1.0, %v3403
      %v3983 = vsub.f32 1.0, %v3405
      %v3984 = vmul.f32 %v3980, %v2253
      %v3985 = vmul.f32 %v3981, %v2254
      %v3986 = vmul.f32 %v3982, %v2255
      %v3987 = vmul.f32 %v3983, %v2256
      %v3988 = vmul.f32 %v3399, %v3976
      %v3989 = vmul.f32 %v3401, %v3977
      %v3990 = vmul.f32 %v3403, %v3978
      %v3991 = vmul.f32 %v3405, %v3979
      %v3992 = vadd.f32 %v3984, %v3988
      %v3993 = vadd.f32 %v3985, %v3989
      %v3994 = vadd.f32 %v3986, %v3990
      %v3995 = vadd.f32 %v3987, %v3991
      %3996 = vst [vmem:[#allocation5] sm:$0xff] %v3992
      %3997 = vst [vmem:[#allocation5 + $0x8] sm:$0xff] %v3993
      %3998 = vst [vmem:[#allocation5 + $0x10] sm:$0xff] %v3994
      %3999 = vst [vmem:[#allocation5 + $0x18] sm:$0xff] %v3995
      %v4000 = vld [vmem:[#allocation6] sm:$0xff]
      %v4001 = vld [vmem:[#allocation6 + $0x8] sm:$0xff]
      %v4002 = vld [vmem:[#allocation6 + $0x10] sm:$0xff]
      %v4003 = vld [vmem:[#allocation6 + $0x18] sm:$0xff]
      %4008 = vrot.lane.b32.xlu0 %v3992, 17
      %v4009 = vpop.permute.xlu0 %4008
      %4010 = vrot.lane.b32.xlu0 %v3993, 17
      %v4011 = vpop.permute.xlu0 %4010
      %4012 = vrot.lane.b32.xlu0 %v3994, 17
      %v4013 = vpop.permute.xlu0 %4012
      %4014 = vrot.lane.b32.xlu0 %v3995, 17
      %v4015 = vpop.permute.xlu0 %4014
      %v4016 = vsel %vm505, %v4009, %v4011
      %v4017 = vsel %vm505, %v4011, %v4013
      %v4018 = vsel %vm505, %v4013, %v4015
      %v4023 = vsel %vm505, 0.0, %v4009
      %v4024 = vld [vmem:[%s1] ss:$8 sm:$0xf]
      %v4026 = vlaneseq
      %v4027 = vshrl.u32 %v4026, 7
      %v4028 = vsub.s32 0, %v4027
      %v4029 = vrot.slane %v4024, %v4028
      %v4030 = vlaneseq
      %v4031 = vshrl.u32 %v4030, 7
      %v4032 = vsub.s32 1, %v4031
      %v4033 = vrot.slane %v4024, %v4032
      %v4034 = vlaneseq
      %v4035 = vshrl.u32 %v4034, 7
      %v4036 = vsub.s32 2, %v4035
      %v4037 = vrot.slane %v4024, %v4036
      %v4038 = vlaneseq
      %v4039 = vshrl.u32 %v4038, 7
      %v4040 = vsub.s32 3, %v4039
      %v4041 = vrot.slane %v4024, %v4040
      %v4046 = vmul.f32 %v4023, %v4029
      %v4047 = vmul.f32 %v4016, %v4033
      %v4048 = vmul.f32 %v4017, %v4037
      %v4049 = vmul.f32 %v4018, %v4041
      %4050 = vst [vmem:[#allocation2] sm:$0xff] %v4046
      %4051 = vst [vmem:[#allocation2 + $0x8] sm:$0xff] %v4047
      %4052 = vst [vmem:[#allocation2 + $0x10] sm:$0xff] %v4048
      %4053 = vst [vmem:[#allocation2 + $0x18] sm:$0xff] %v4049
      %4054 = vrot.lane.b32.xlu0 %v3992, 16
      %v4055 = vpop.permute.xlu0 %4054
      %4056 = vrot.lane.b32.xlu0 %v3993, 16
      %v4057 = vpop.permute.xlu0 %4056
      %4058 = vrot.lane.b32.xlu0 %v3994, 16
      %v4059 = vpop.permute.xlu0 %4058
      %4060 = vrot.lane.b32.xlu0 %v3995, 16
      %v4061 = vpop.permute.xlu0 %4060
      %v4062 = vsel %vm552, %v4055, %v4057
      %v4063 = vsel %vm552, %v4057, %v4059
      %v4064 = vsel %vm552, %v4059, %v4061
      %v4069 = vsel %vm552, 0.0, %v4055
      %v4070 = vld [vmem:[%s561] ss:$8 sm:$0xf]
      %v4072 = vlaneseq
      %v4073 = vshrl.u32 %v4072, 7
      %v4074 = vsub.s32 0, %v4073
      %v4075 = vrot.slane %v4070, %v4074
      %v4076 = vlaneseq
      %v4077 = vshrl.u32 %v4076, 7
      %v4078 = vsub.s32 1, %v4077
      %v4079 = vrot.slane %v4070, %v4078
      %v4080 = vlaneseq
      %v4081 = vshrl.u32 %v4080, 7
      %v4082 = vsub.s32 2, %v4081
      %v4083 = vrot.slane %v4070, %v4082
      %v4084 = vlaneseq
      %v4085 = vshrl.u32 %v4084, 7
      %v4086 = vsub.s32 3, %v4085
      %v4087 = vrot.slane %v4070, %v4086
      %v4092 = vmul.f32 %v4069, %v4075
      %v4093 = vmul.f32 %v4062, %v4079
      %v4094 = vmul.f32 %v4063, %v4083
      %v4095 = vmul.f32 %v4064, %v4087
      %4096 = vst [vmem:[#allocation2 + $0x20] sm:$0xff] %v4092
      %4097 = vst [vmem:[#allocation2 + $0x28] sm:$0xff] %v4093
      %4098 = vst [vmem:[#allocation2 + $0x30] sm:$0xff] %v4094
      %4099 = vst [vmem:[#allocation2 + $0x38] sm:$0xff] %v4095
      %4100 = vrot.lane.b32.xlu0 %v3992, 15
      %v4101 = vpop.permute.xlu0 %4100
      %4102 = vrot.lane.b32.xlu0 %v3993, 15
      %v4103 = vpop.permute.xlu0 %4102
      %4104 = vrot.lane.b32.xlu0 %v3994, 15
      %v4105 = vpop.permute.xlu0 %4104
      %4106 = vrot.lane.b32.xlu0 %v3995, 15
      %v4107 = vpop.permute.xlu0 %4106
      %v4108 = vsel %vm600, %v4101, %v4103
      %v4109 = vsel %vm600, %v4103, %v4105
      %v4110 = vsel %vm600, %v4105, %v4107
      %v4115 = vsel %vm600, 0.0, %v4101
      %v4116 = vld [vmem:[%s609] ss:$8 sm:$0xf]
      %v4118 = vlaneseq
      %v4119 = vshrl.u32 %v4118, 7
      %v4120 = vsub.s32 0, %v4119
      %v4121 = vrot.slane %v4116, %v4120
      %v4122 = vlaneseq
      %v4123 = vshrl.u32 %v4122, 7
      %v4124 = vsub.s32 1, %v4123
      %v4125 = vrot.slane %v4116, %v4124
      %v4126 = vlaneseq
      %v4127 = vshrl.u32 %v4126, 7
      %v4128 = vsub.s32 2, %v4127
      %v4129 = vrot.slane %v4116, %v4128
      %v4130 = vlaneseq
      %v4131 = vshrl.u32 %v4130, 7
      %v4132 = vsub.s32 3, %v4131
      %v4133 = vrot.slane %v4116, %v4132
      %v4138 = vmul.f32 %v4115, %v4121
      %v4139 = vmul.f32 %v4108, %v4125
      %v4140 = vmul.f32 %v4109, %v4129
      %v4141 = vmul.f32 %v4110, %v4133
      %4142 = vst [vmem:[#allocation2 + $0x40] sm:$0xff] %v4138
      %4143 = vst [vmem:[#allocation2 + $0x48] sm:$0xff] %v4139
      %4144 = vst [vmem:[#allocation2 + $0x50] sm:$0xff] %v4140
      %4145 = vst [vmem:[#allocation2 + $0x58] sm:$0xff] %v4141
      %4146 = vrot.lane.b32.xlu0 %v3992, 1
      %v4147 = vpop.permute.xlu0 %4146
      %4148 = vrot.lane.b32.xlu0 %v3993, 1
      %v4149 = vpop.permute.xlu0 %4148
      %4150 = vrot.lane.b32.xlu0 %v3994, 1
      %v4151 = vpop.permute.xlu0 %4150
      %4152 = vrot.lane.b32.xlu0 %v3995, 1
      %v4153 = vpop.permute.xlu0 %4152
      %v4154 = vsel %vm648, %v4147, %v4149
      %v4155 = vsel %vm648, %v4149, %v4151
      %v4156 = vsel %vm648, %v4151, %v4153
      %v4161 = vsel %vm648, 0.0, %v4147
      %v4162 = vld [vmem:[%s657] ss:$8 sm:$0xf]
      %v4164 = vlaneseq
      %v4165 = vshrl.u32 %v4164, 7
      %v4166 = vsub.s32 0, %v4165
      %v4167 = vrot.slane %v4162, %v4166
      %v4168 = vlaneseq
      %v4169 = vshrl.u32 %v4168, 7
      %v4170 = vsub.s32 1, %v4169
      %v4171 = vrot.slane %v4162, %v4170
      %v4172 = vlaneseq
      %v4173 = vshrl.u32 %v4172, 7
      %v4174 = vsub.s32 2, %v4173
      %v4175 = vrot.slane %v4162, %v4174
      %v4176 = vlaneseq
      %v4177 = vshrl.u32 %v4176, 7
      %v4178 = vsub.s32 3, %v4177
      %v4179 = vrot.slane %v4162, %v4178
      %v4184 = vmul.f32 %v4161, %v4167
      %v4185 = vmul.f32 %v4154, %v4171
      %v4186 = vmul.f32 %v4155, %v4175
      %v4187 = vmul.f32 %v4156, %v4179
      %4188 = vst [vmem:[#allocation2 + $0x60] sm:$0xff] %v4184
      %4189 = vst [vmem:[#allocation2 + $0x68] sm:$0xff] %v4185
      %4190 = vst [vmem:[#allocation2 + $0x70] sm:$0xff] %v4186
      %4191 = vst [vmem:[#allocation2 + $0x78] sm:$0xff] %v4187
      %4192 = vst [vmem:[#allocation2 + $0x80] sm:$0xff] %v3992
      %4193 = vst [vmem:[#allocation2 + $0x88] sm:$0xff] %v3993
      %4194 = vst [vmem:[#allocation2 + $0x90] sm:$0xff] %v3994
      %4195 = vst [vmem:[#allocation2 + $0x98] sm:$0xff] %v3995
      %4196 = vrot.lane.b32.xlu0 %v3992, 127
      %v4197 = vpop.permute.xlu0 %4196
      %4198 = vrot.lane.b32.xlu0 %v3993, 127
      %v4199 = vpop.permute.xlu0 %4198
      %4200 = vrot.lane.b32.xlu0 %v3994, 127
      %v4201 = vpop.permute.xlu0 %4200
      %4202 = vrot.lane.b32.xlu0 %v3995, 127
      %v4203 = vpop.permute.xlu0 %4202
      %v4204 = vsel %vm700, %v4197, %v4199
      %v4205 = vsel %vm700, %v4199, %v4201
      %v4206 = vsel %vm700, %v4201, %v4203
      %v4211 = vsel %vm700, %v4203, 0.0
      %v4212 = vld [vmem:[%s709] ss:$8 sm:$0xf]
      %v4214 = vlaneseq
      %v4215 = vshrl.u32 %v4214, 7
      %v4216 = vsub.s32 0, %v4215
      %v4217 = vrot.slane %v4212, %v4216
      %v4218 = vlaneseq
      %v4219 = vshrl.u32 %v4218, 7
      %v4220 = vsub.s32 1, %v4219
      %v4221 = vrot.slane %v4212, %v4220
      %v4222 = vlaneseq
      %v4223 = vshrl.u32 %v4222, 7
      %v4224 = vsub.s32 2, %v4223
      %v4225 = vrot.slane %v4212, %v4224
      %v4226 = vlaneseq
      %v4227 = vshrl.u32 %v4226, 7
      %v4228 = vsub.s32 3, %v4227
      %v4229 = vrot.slane %v4212, %v4228
      %v4234 = vmul.f32 %v4204, %v4217
      %v4235 = vmul.f32 %v4205, %v4221
      %v4236 = vmul.f32 %v4206, %v4225
      %v4237 = vmul.f32 %v4211, %v4229
      %4238 = vst [vmem:[#allocation2 + $0xa0] sm:$0xff] %v4234
      %4239 = vst [vmem:[#allocation2 + $0xa8] sm:$0xff] %v4235
      %4240 = vst [vmem:[#allocation2 + $0xb0] sm:$0xff] %v4236
      %4241 = vst [vmem:[#allocation2 + $0xb8] sm:$0xff] %v4237
      %4242 = vrot.lane.b32.xlu0 %v3992, 113
      %v4243 = vpop.permute.xlu0 %4242
      %4244 = vrot.lane.b32.xlu0 %v3993, 113
      %v4245 = vpop.permute.xlu0 %4244
      %4246 = vrot.lane.b32.xlu0 %v3994, 113
      %v4247 = vpop.permute.xlu0 %4246
      %4248 = vrot.lane.b32.xlu0 %v3995, 113
      %v4249 = vpop.permute.xlu0 %4248
      %v4250 = vsel %vm748, %v4243, %v4245
      %v4251 = vsel %vm748, %v4245, %v4247
      %v4252 = vsel %vm748, %v4247, %v4249
      %v4257 = vsel %vm748, %v4249, 0.0
      %v4258 = vld [vmem:[%s757] ss:$8 sm:$0xf]
      %v4260 = vlaneseq
      %v4261 = vshrl.u32 %v4260, 7
      %v4262 = vsub.s32 0, %v4261
      %v4263 = vrot.slane %v4258, %v4262
      %v4264 = vlaneseq
      %v4265 = vshrl.u32 %v4264, 7
      %v4266 = vsub.s32 1, %v4265
      %v4267 = vrot.slane %v4258, %v4266
      %v4268 = vlaneseq
      %v4269 = vshrl.u32 %v4268, 7
      %v4270 = vsub.s32 2, %v4269
      %v4271 = vrot.slane %v4258, %v4270
      %v4272 = vlaneseq
      %v4273 = vshrl.u32 %v4272, 7
      %v4274 = vsub.s32 3, %v4273
      %v4275 = vrot.slane %v4258, %v4274
      %v4280 = vmul.f32 %v4250, %v4263
      %v4281 = vmul.f32 %v4251, %v4267
      %v4282 = vmul.f32 %v4252, %v4271
      %v4283 = vmul.f32 %v4257, %v4275
      %4284 = vst [vmem:[#allocation2 + $0xc0] sm:$0xff] %v4280
      %4285 = vst [vmem:[#allocation2 + $0xc8] sm:$0xff] %v4281
      %4286 = vst [vmem:[#allocation2 + $0xd0] sm:$0xff] %v4282
      %4287 = vst [vmem:[#allocation2 + $0xd8] sm:$0xff] %v4283
      %4288 = vrot.lane.b32.xlu0 %v3992, 112
      %v4289 = vpop.permute.xlu0 %4288
      %4290 = vrot.lane.b32.xlu0 %v3993, 112
      %v4291 = vpop.permute.xlu0 %4290
      %4292 = vrot.lane.b32.xlu0 %v3994, 112
      %v4293 = vpop.permute.xlu0 %4292
      %4294 = vrot.lane.b32.xlu0 %v3995, 112
      %v4295 = vpop.permute.xlu0 %4294
      %v4296 = vsel %vm796, %v4289, %v4291
      %v4297 = vsel %vm796, %v4291, %v4293
      %v4298 = vsel %vm796, %v4293, %v4295
      %v4303 = vsel %vm796, %v4295, 0.0
      %v4304 = vld [vmem:[%s805] ss:$8 sm:$0xf]
      %v4306 = vlaneseq
      %v4307 = vshrl.u32 %v4306, 7
      %v4308 = vsub.s32 0, %v4307
      %v4309 = vrot.slane %v4304, %v4308
      %v4310 = vlaneseq
      %v4311 = vshrl.u32 %v4310, 7
      %v4312 = vsub.s32 1, %v4311
      %v4313 = vrot.slane %v4304, %v4312
      %v4314 = vlaneseq
      %v4315 = vshrl.u32 %v4314, 7
      %v4316 = vsub.s32 2, %v4315
      %v4317 = vrot.slane %v4304, %v4316
      %v4318 = vlaneseq
      %v4319 = vshrl.u32 %v4318, 7
      %v4320 = vsub.s32 3, %v4319
      %v4321 = vrot.slane %v4304, %v4320
      %v4326 = vmul.f32 %v4296, %v4309
      %v4327 = vmul.f32 %v4297, %v4313
      %v4328 = vmul.f32 %v4298, %v4317
      %v4329 = vmul.f32 %v4303, %v4321
      %4330 = vst [vmem:[#allocation2 + $0xe0] sm:$0xff] %v4326
      %4331 = vst [vmem:[#allocation2 + $0xe8] sm:$0xff] %v4327
      %4332 = vst [vmem:[#allocation2 + $0xf0] sm:$0xff] %v4328
      %4333 = vst [vmem:[#allocation2 + $0xf8] sm:$0xff] %v4329
      %4334 = vrot.lane.b32.xlu0 %v3992, 111
      %v4335 = vpop.permute.xlu0 %4334
      %4336 = vrot.lane.b32.xlu0 %v3993, 111
      %v4337 = vpop.permute.xlu0 %4336
      %4338 = vrot.lane.b32.xlu0 %v3994, 111
      %v4339 = vpop.permute.xlu0 %4338
      %4340 = vrot.lane.b32.xlu0 %v3995, 111
      %v4341 = vpop.permute.xlu0 %4340
      %v4342 = vsel %vm844, %v4335, %v4337
      %v4343 = vsel %vm844, %v4337, %v4339
      %v4344 = vsel %vm844, %v4339, %v4341
      %v4349 = vsel %vm844, %v4341, 0.0
      %v4350 = vld [vmem:[%s853] ss:$8 sm:$0xf]
      %v4352 = vlaneseq
      %v4353 = vshrl.u32 %v4352, 7
      %v4354 = vsub.s32 0, %v4353
      %v4355 = vrot.slane %v4350, %v4354
      %v4356 = vlaneseq
      %v4357 = vshrl.u32 %v4356, 7
      %v4358 = vsub.s32 1, %v4357
      %v4359 = vrot.slane %v4350, %v4358
      %v4360 = vlaneseq
      %v4361 = vshrl.u32 %v4360, 7
      %v4362 = vsub.s32 2, %v4361
      %v4363 = vrot.slane %v4350, %v4362
      %v4364 = vlaneseq
      %v4365 = vshrl.u32 %v4364, 7
      %v4366 = vsub.s32 3, %v4365
      %v4367 = vrot.slane %v4350, %v4366
      %v4372 = vmul.f32 %v4342, %v4355
      %v4373 = vmul.f32 %v4343, %v4359
      %v4374 = vmul.f32 %v4344, %v4363
      %v4375 = vmul.f32 %v4349, %v4367
      %4376 = vst [vmem:[#allocation2 + $0x100] sm:$0xff] %v4372
      %4377 = vst [vmem:[#allocation2 + $0x108] sm:$0xff] %v4373
      %4378 = vst [vmem:[#allocation2 + $0x110] sm:$0xff] %v4374
      %4379 = vst [vmem:[#allocation2 + $0x118] sm:$0xff] %v4375
      %4384 = vrot.lane.b32.xlu0 %v4000, 17
      %v4385 = vpop.permute.xlu0 %4384
      %4386 = vrot.lane.b32.xlu0 %v4001, 17
      %v4387 = vpop.permute.xlu0 %4386
      %4388 = vrot.lane.b32.xlu0 %v4002, 17
      %v4389 = vpop.permute.xlu0 %4388
      %4390 = vrot.lane.b32.xlu0 %v4003, 17
      %v4391 = vpop.permute.xlu0 %4390
      %v4392 = vsel %vm505, %v4385, %v4387
      %v4393 = vsel %vm505, %v4387, %v4389
      %v4394 = vsel %vm505, %v4389, %v4391
      %v4399 = vsel %vm505, 0.0, %v4385
      %v4400 = vld [vmem:[%s1] ss:$8 sm:$0xf]
      %v4402 = vlaneseq
      %v4403 = vshrl.u32 %v4402, 7
      %v4404 = vsub.s32 0, %v4403
      %v4405 = vrot.slane %v4400, %v4404
      %v4406 = vlaneseq
      %v4407 = vshrl.u32 %v4406, 7
      %v4408 = vsub.s32 1, %v4407
      %v4409 = vrot.slane %v4400, %v4408
      %v4410 = vlaneseq
      %v4411 = vshrl.u32 %v4410, 7
      %v4412 = vsub.s32 2, %v4411
      %v4413 = vrot.slane %v4400, %v4412
      %v4414 = vlaneseq
      %v4415 = vshrl.u32 %v4414, 7
      %v4416 = vsub.s32 3, %v4415
      %v4417 = vrot.slane %v4400, %v4416
      %v4422 = vmul.f32 %v4399, %v4405
      %v4423 = vmul.f32 %v4392, %v4409
      %v4424 = vmul.f32 %v4393, %v4413
      %v4425 = vmul.f32 %v4394, %v4417
      %4426 = vst [vmem:[#allocation3] sm:$0xff] %v4422
      %4427 = vst [vmem:[#allocation3 + $0x8] sm:$0xff] %v4423
      %4428 = vst [vmem:[#allocation3 + $0x10] sm:$0xff] %v4424
      %4429 = vst [vmem:[#allocation3 + $0x18] sm:$0xff] %v4425
      %4430 = vrot.lane.b32.xlu0 %v4000, 16
      %v4431 = vpop.permute.xlu0 %4430
      %4432 = vrot.lane.b32.xlu0 %v4001, 16
      %v4433 = vpop.permute.xlu0 %4432
      %4434 = vrot.lane.b32.xlu0 %v4002, 16
      %v4435 = vpop.permute.xlu0 %4434
      %4436 = vrot.lane.b32.xlu0 %v4003, 16
      %v4437 = vpop.permute.xlu0 %4436
      %v4438 = vsel %vm552, %v4431, %v4433
      %v4439 = vsel %vm552, %v4433, %v4435
      %v4440 = vsel %vm552, %v4435, %v4437
      %v4445 = vsel %vm552, 0.0, %v4431
      %v4446 = vld [vmem:[%s561] ss:$8 sm:$0xf]
      %v4448 = vlaneseq
      %v4449 = vshrl.u32 %v4448, 7
      %v4450 = vsub.s32 0, %v4449
      %v4451 = vrot.slane %v4446, %v4450
      %v4452 = vlaneseq
      %v4453 = vshrl.u32 %v4452, 7
      %v4454 = vsub.s32 1, %v4453
      %v4455 = vrot.slane %v4446, %v4454
      %v4456 = vlaneseq
      %v4457 = vshrl.u32 %v4456, 7
      %v4458 = vsub.s32 2, %v4457
      %v4459 = vrot.slane %v4446, %v4458
      %v4460 = vlaneseq
      %v4461 = vshrl.u32 %v4460, 7
      %v4462 = vsub.s32 3, %v4461
      %v4463 = vrot.slane %v4446, %v4462
      %v4468 = vmul.f32 %v4445, %v4451
      %v4469 = vmul.f32 %v4438, %v4455
      %v4470 = vmul.f32 %v4439, %v4459
      %v4471 = vmul.f32 %v4440, %v4463
      %4472 = vst [vmem:[#allocation3 + $0x20] sm:$0xff] %v4468
      %4473 = vst [vmem:[#allocation3 + $0x28] sm:$0xff] %v4469
      %4474 = vst [vmem:[#allocation3 + $0x30] sm:$0xff] %v4470
      %4475 = vst [vmem:[#allocation3 + $0x38] sm:$0xff] %v4471
      %4476 = vrot.lane.b32.xlu0 %v4000, 15
      %v4477 = vpop.permute.xlu0 %4476
      %4478 = vrot.lane.b32.xlu0 %v4001, 15
      %v4479 = vpop.permute.xlu0 %4478
      %4480 = vrot.lane.b32.xlu0 %v4002, 15
      %v4481 = vpop.permute.xlu0 %4480
      %4482 = vrot.lane.b32.xlu0 %v4003, 15
      %v4483 = vpop.permute.xlu0 %4482
      %v4484 = vsel %vm600, %v4477, %v4479
      %v4485 = vsel %vm600, %v4479, %v4481
      %v4486 = vsel %vm600, %v4481, %v4483
      %v4491 = vsel %vm600, 0.0, %v4477
      %v4492 = vld [vmem:[%s609] ss:$8 sm:$0xf]
      %v4494 = vlaneseq
      %v4495 = vshrl.u32 %v4494, 7
      %v4496 = vsub.s32 0, %v4495
      %v4497 = vrot.slane %v4492, %v4496
      %v4498 = vlaneseq
      %v4499 = vshrl.u32 %v4498, 7
      %v4500 = vsub.s32 1, %v4499
      %v4501 = vrot.slane %v4492, %v4500
      %v4502 = vlaneseq
      %v4503 = vshrl.u32 %v4502, 7
      %v4504 = vsub.s32 2, %v4503
      %v4505 = vrot.slane %v4492, %v4504
      %v4506 = vlaneseq
      %v4507 = vshrl.u32 %v4506, 7
      %v4508 = vsub.s32 3, %v4507
      %v4509 = vrot.slane %v4492, %v4508
      %v4514 = vmul.f32 %v4491, %v4497
      %v4515 = vmul.f32 %v4484, %v4501
      %v4516 = vmul.f32 %v4485, %v4505
      %v4517 = vmul.f32 %v4486, %v4509
      %4518 = vst [vmem:[#allocation3 + $0x40] sm:$0xff] %v4514
      %4519 = vst [vmem:[#allocation3 + $0x48] sm:$0xff] %v4515
      %4520 = vst [vmem:[#allocation3 + $0x50] sm:$0xff] %v4516
      %4521 = vst [vmem:[#allocation3 + $0x58] sm:$0xff] %v4517
      %4522 = vrot.lane.b32.xlu0 %v4000, 1
      %v4523 = vpop.permute.xlu0 %4522
      %4524 = vrot.lane.b32.xlu0 %v4001, 1
      %v4525 = vpop.permute.xlu0 %4524
      %4526 = vrot.lane.b32.xlu0 %v4002, 1
      %v4527 = vpop.permute.xlu0 %4526
      %4528 = vrot.lane.b32.xlu0 %v4003, 1
      %v4529 = vpop.permute.xlu0 %4528
      %v4530 = vsel %vm648, %v4523, %v4525
      %v4531 = vsel %vm648, %v4525, %v4527
      %v4532 = vsel %vm648, %v4527, %v4529
      %v4537 = vsel %vm648, 0.0, %v4523
      %v4538 = vld [vmem:[%s657] ss:$8 sm:$0xf]
      %v4540 = vlaneseq
      %v4541 = vshrl.u32 %v4540, 7
      %v4542 = vsub.s32 0, %v4541
      %v4543 = vrot.slane %v4538, %v4542
      %v4544 = vlaneseq
      %v4545 = vshrl.u32 %v4544, 7
      %v4546 = vsub.s32 1, %v4545
      %v4547 = vrot.slane %v4538, %v4546
      %v4548 = vlaneseq
      %v4549 = vshrl.u32 %v4548, 7
      %v4550 = vsub.s32 2, %v4549
      %v4551 = vrot.slane %v4538, %v4550
      %v4552 = vlaneseq
      %v4553 = vshrl.u32 %v4552, 7
      %v4554 = vsub.s32 3, %v4553
      %v4555 = vrot.slane %v4538, %v4554
      %v4560 = vmul.f32 %v4537, %v4543
      %v4561 = vmul.f32 %v4530, %v4547
      %v4562 = vmul.f32 %v4531, %v4551
      %v4563 = vmul.f32 %v4532, %v4555
      %4564 = vst [vmem:[#allocation3 + $0x60] sm:$0xff] %v4560
      %4565 = vst [vmem:[#allocation3 + $0x68] sm:$0xff] %v4561
      %4566 = vst [vmem:[#allocation3 + $0x70] sm:$0xff] %v4562
      %4567 = vst [vmem:[#allocation3 + $0x78] sm:$0xff] %v4563
      %4568 = vst [vmem:[#allocation3 + $0x80] sm:$0xff] %v4000
      %4569 = vst [vmem:[#allocation3 + $0x88] sm:$0xff] %v4001
      %4570 = vst [vmem:[#allocation3 + $0x90] sm:$0xff] %v4002
      %4571 = vst [vmem:[#allocation3 + $0x98] sm:$0xff] %v4003
      %4572 = vrot.lane.b32.xlu0 %v4000, 127
      %v4573 = vpop.permute.xlu0 %4572
      %4574 = vrot.lane.b32.xlu0 %v4001, 127
      %v4575 = vpop.permute.xlu0 %4574
      %4576 = vrot.lane.b32.xlu0 %v4002, 127
      %v4577 = vpop.permute.xlu0 %4576
      %4578 = vrot.lane.b32.xlu0 %v4003, 127
      %v4579 = vpop.permute.xlu0 %4578
      %v4580 = vsel %vm700, %v4573, %v4575
      %v4581 = vsel %vm700, %v4575, %v4577
      %v4582 = vsel %vm700, %v4577, %v4579
      %v4587 = vsel %vm700, %v4579, 0.0
      %v4588 = vld [vmem:[%s709] ss:$8 sm:$0xf]
      %v4590 = vlaneseq
      %v4591 = vshrl.u32 %v4590, 7
      %v4592 = vsub.s32 0, %v4591
      %v4593 = vrot.slane %v4588, %v4592
      %v4594 = vlaneseq
      %v4595 = vshrl.u32 %v4594, 7
      %v4596 = vsub.s32 1, %v4595
      %v4597 = vrot.slane %v4588, %v4596
      %v4598 = vlaneseq
      %v4599 = vshrl.u32 %v4598, 7
      %v4600 = vsub.s32 2, %v4599
      %v4601 = vrot.slane %v4588, %v4600
      %v4602 = vlaneseq
      %v4603 = vshrl.u32 %v4602, 7
      %v4604 = vsub.s32 3, %v4603
      %v4605 = vrot.slane %v4588, %v4604
      %v4610 = vmul.f32 %v4580, %v4593
      %v4611 = vmul.f32 %v4581, %v4597
      %v4612 = vmul.f32 %v4582, %v4601
      %v4613 = vmul.f32 %v4587, %v4605
      %4614 = vst [vmem:[#allocation3 + $0xa0] sm:$0xff] %v4610
      %4615 = vst [vmem:[#allocation3 + $0xa8] sm:$0xff] %v4611
      %4616 = vst [vmem:[#allocation3 + $0xb0] sm:$0xff] %v4612
      %4617 = vst [vmem:[#allocation3 + $0xb8] sm:$0xff] %v4613
      %4618 = vrot.lane.b32.xlu0 %v4000, 113
      %v4619 = vpop.permute.xlu0 %4618
      %4620 = vrot.lane.b32.xlu0 %v4001, 113
      %v4621 = vpop.permute.xlu0 %4620
      %4622 = vrot.lane.b32.xlu0 %v4002, 113
      %v4623 = vpop.permute.xlu0 %4622
      %4624 = vrot.lane.b32.xlu0 %v4003, 113
      %v4625 = vpop.permute.xlu0 %4624
      %v4626 = vsel %vm748, %v4619, %v4621
      %v4627 = vsel %vm748, %v4621, %v4623
      %v4628 = vsel %vm748, %v4623, %v4625
      %v4633 = vsel %vm748, %v4625, 0.0
      %v4634 = vld [vmem:[%s757] ss:$8 sm:$0xf]
      %v4636 = vlaneseq
      %v4637 = vshrl.u32 %v4636, 7
      %v4638 = vsub.s32 0, %v4637
      %v4639 = vrot.slane %v4634, %v4638
      %v4640 = vlaneseq
      %v4641 = vshrl.u32 %v4640, 7
      %v4642 = vsub.s32 1, %v4641
      %v4643 = vrot.slane %v4634, %v4642
      %v4644 = vlaneseq
      %v4645 = vshrl.u32 %v4644, 7
      %v4646 = vsub.s32 2, %v4645
      %v4647 = vrot.slane %v4634, %v4646
      %v4648 = vlaneseq
      %v4649 = vshrl.u32 %v4648, 7
      %v4650 = vsub.s32 3, %v4649
      %v4651 = vrot.slane %v4634, %v4650
      %v4656 = vmul.f32 %v4626, %v4639
      %v4657 = vmul.f32 %v4627, %v4643
      %v4658 = vmul.f32 %v4628, %v4647
      %v4659 = vmul.f32 %v4633, %v4651
      %4660 = vst [vmem:[#allocation3 + $0xc0] sm:$0xff] %v4656
      %4661 = vst [vmem:[#allocation3 + $0xc8] sm:$0xff] %v4657
      %4662 = vst [vmem:[#allocation3 + $0xd0] sm:$0xff] %v4658
      %4663 = vst [vmem:[#allocation3 + $0xd8] sm:$0xff] %v4659
      %4664 = vrot.lane.b32.xlu0 %v4000, 112
      %v4665 = vpop.permute.xlu0 %4664
      %4666 = vrot.lane.b32.xlu0 %v4001, 112
      %v4667 = vpop.permute.xlu0 %4666
      %4668 = vrot.lane.b32.xlu0 %v4002, 112
      %v4669 = vpop.permute.xlu0 %4668
      %4670 = vrot.lane.b32.xlu0 %v4003, 112
      %v4671 = vpop.permute.xlu0 %4670
      %v4672 = vsel %vm796, %v4665, %v4667
      %v4673 = vsel %vm796, %v4667, %v4669
      %v4674 = vsel %vm796, %v4669, %v4671
      %v4679 = vsel %vm796, %v4671, 0.0
      %v4680 = vld [vmem:[%s805] ss:$8 sm:$0xf]
      %v4682 = vlaneseq
      %v4683 = vshrl.u32 %v4682, 7
      %v4684 = vsub.s32 0, %v4683
      %v4685 = vrot.slane %v4680, %v4684
      %v4686 = vlaneseq
      %v4687 = vshrl.u32 %v4686, 7
      %v4688 = vsub.s32 1, %v4687
      %v4689 = vrot.slane %v4680, %v4688
      %v4690 = vlaneseq
      %v4691 = vshrl.u32 %v4690, 7
      %v4692 = vsub.s32 2, %v4691
      %v4693 = vrot.slane %v4680, %v4692
      %v4694 = vlaneseq
      %v4695 = vshrl.u32 %v4694, 7
      %v4696 = vsub.s32 3, %v4695
      %v4697 = vrot.slane %v4680, %v4696
      %v4702 = vmul.f32 %v4672, %v4685
      %v4703 = vmul.f32 %v4673, %v4689
      %v4704 = vmul.f32 %v4674, %v4693
      %v4705 = vmul.f32 %v4679, %v4697
      %4706 = vst [vmem:[#allocation3 + $0xe0] sm:$0xff] %v4702
      %4707 = vst [vmem:[#allocation3 + $0xe8] sm:$0xff] %v4703
      %4708 = vst [vmem:[#allocation3 + $0xf0] sm:$0xff] %v4704
      %4709 = vst [vmem:[#allocation3 + $0xf8] sm:$0xff] %v4705
      %4710 = vrot.lane.b32.xlu0 %v4000, 111
      %v4711 = vpop.permute.xlu0 %4710
      %4712 = vrot.lane.b32.xlu0 %v4001, 111
      %v4713 = vpop.permute.xlu0 %4712
      %4714 = vrot.lane.b32.xlu0 %v4002, 111
      %v4715 = vpop.permute.xlu0 %4714
      %4716 = vrot.lane.b32.xlu0 %v4003, 111
      %v4717 = vpop.permute.xlu0 %4716
      %v4718 = vsel %vm844, %v4711, %v4713
      %v4719 = vsel %vm844, %v4713, %v4715
      %v4720 = vsel %vm844, %v4715, %v4717
      %v4725 = vsel %vm844, %v4717, 0.0
      %v4726 = vld [vmem:[%s853] ss:$8 sm:$0xf]
      %v4728 = vlaneseq
      %v4729 = vshrl.u32 %v4728, 7
      %v4730 = vsub.s32 0, %v4729
      %v4731 = vrot.slane %v4726, %v4730
      %v4732 = vlaneseq
      %v4733 = vshrl.u32 %v4732, 7
      %v4734 = vsub.s32 1, %v4733
      %v4735 = vrot.slane %v4726, %v4734
      %v4736 = vlaneseq
      %v4737 = vshrl.u32 %v4736, 7
      %v4738 = vsub.s32 2, %v4737
      %v4739 = vrot.slane %v4726, %v4738
      %v4740 = vlaneseq
      %v4741 = vshrl.u32 %v4740, 7
      %v4742 = vsub.s32 3, %v4741
      %v4743 = vrot.slane %v4726, %v4742
      %v4748 = vmul.f32 %v4718, %v4731
      %v4749 = vmul.f32 %v4719, %v4735
      %v4750 = vmul.f32 %v4720, %v4739
      %v4751 = vmul.f32 %v4725, %v4743
      %4752 = vst [vmem:[#allocation3 + $0x100] sm:$0xff] %v4748
      %4753 = vst [vmem:[#allocation3 + $0x108] sm:$0xff] %v4749
      %4754 = vst [vmem:[#allocation3 + $0x110] sm:$0xff] %v4750
      %4755 = vst [vmem:[#allocation3 + $0x118] sm:$0xff] %v4751
      %v4756 = vld [vmem:[%s10] sm:$0xf]
      %v4757 = vld [vmem:[%s10 + $0x4] sm:$0xf]
      %v4758 = vld [vmem:[%s10 + $0x8] sm:$0xf]
      %v4759 = vld [vmem:[#allocation2] sm:$0xff]
      %v4760 = vld [vmem:[#allocation2 + $0x8] sm:$0xff]
      %v4761 = vld [vmem:[#allocation2 + $0x10] sm:$0xff]
      %v4762 = vld [vmem:[#allocation2 + $0x18] sm:$0xff]
      %v4763 = vld [vmem:[#allocation2 + $0x20] sm:$0xff]
      %v4764 = vld [vmem:[#allocation2 + $0x28] sm:$0xff]
      %v4765 = vld [vmem:[#allocation2 + $0x30] sm:$0xff]
      %v4766 = vld [vmem:[#allocation2 + $0x38] sm:$0xff]
      %v4767 = vld [vmem:[#allocation2 + $0x40] sm:$0xff]
      %v4768 = vld [vmem:[#allocation2 + $0x48] sm:$0xff]
      %v4769 = vld [vmem:[#allocation2 + $0x50] sm:$0xff]
      %v4770 = vld [vmem:[#allocation2 + $0x58] sm:$0xff]
      %v4771 = vld [vmem:[#allocation2 + $0x60] sm:$0xff]
      %v4772 = vld [vmem:[#allocation2 + $0x68] sm:$0xff]
      %v4773 = vld [vmem:[#allocation2 + $0x70] sm:$0xff]
      %v4774 = vld [vmem:[#allocation2 + $0x78] sm:$0xff]
      %v4775 = vld [vmem:[#allocation2 + $0x80] sm:$0xff]
      %v4776 = vld [vmem:[#allocation2 + $0x88] sm:$0xff]
      %v4777 = vld [vmem:[#allocation2 + $0x90] sm:$0xff]
      %v4778 = vld [vmem:[#allocation2 + $0x98] sm:$0xff]
      %v4779 = vld [vmem:[#allocation2 + $0xa0] sm:$0xff]
      %v4780 = vld [vmem:[#allocation2 + $0xa8] sm:$0xff]
      %v4781 = vld [vmem:[#allocation2 + $0xb0] sm:$0xff]
      %v4782 = vld [vmem:[#allocation2 + $0xb8] sm:$0xff]
      %v4783 = vld [vmem:[#allocation2 + $0xc0] sm:$0xff]
      %v4784 = vld [vmem:[#allocation2 + $0xc8] sm:$0xff]
      %v4785 = vld [vmem:[#allocation2 + $0xd0] sm:$0xff]
      %v4786 = vld [vmem:[#allocation2 + $0xd8] sm:$0xff]
      %v4787 = vld [vmem:[#allocation2 + $0xe0] sm:$0xff]
      %v4788 = vld [vmem:[#allocation2 + $0xe8] sm:$0xff]
      %v4789 = vld [vmem:[#allocation2 + $0xf0] sm:$0xff]
      %v4790 = vld [vmem:[#allocation2 + $0xf8] sm:$0xff]
      %v4791 = vld [vmem:[#allocation2 + $0x100] sm:$0xff]
      %v4792 = vld [vmem:[#allocation2 + $0x108] sm:$0xff]
      %v4793 = vld [vmem:[#allocation2 + $0x110] sm:$0xff]
      %v4794 = vld [vmem:[#allocation2 + $0x118] sm:$0xff]
      %v4795 = vpack.c.bf16 %v4763, %v4759
      %v4796 = vpack.c.bf16 %v4764, %v4760
      %v4797 = vpack.c.bf16 %v4765, %v4761
      %v4798 = vpack.c.bf16 %v4766, %v4762
      %v4799 = vpack.c.bf16 %v4771, %v4767
      %v4800 = vpack.c.bf16 %v4772, %v4768
      %v4801 = vpack.c.bf16 %v4773, %v4769
      %v4802 = vpack.c.bf16 %v4774, %v4770
      %v4803 = vpack.c.bf16 %v4779, %v4775
      %v4804 = vpack.c.bf16 %v4780, %v4776
      %v4805 = vpack.c.bf16 %v4781, %v4777
      %v4806 = vpack.c.bf16 %v4782, %v4778
      %v4807 = vpack.c.bf16 %v4787, %v4783
      %v4808 = vpack.c.bf16 %v4788, %v4784
      %v4809 = vpack.c.bf16 %v4789, %v4785
      %v4810 = vpack.c.bf16 %v4790, %v4786
      %v4811 = vpack.c.bf16 %v4791, %v4791
      %v4812 = vpack.c.bf16 %v4792, %v4792
      %v4813 = vpack.c.bf16 %v4793, %v4793
      %v4814 = vpack.c.bf16 %v4794, %v4794
      %v4815 = vld [vmem:[%s11] sm:$0xff]
      %v4816 = vld [vmem:[%s11 + $0x8] sm:$0xff]
      %v4817 = vld [vmem:[%s11 + $0x10] sm:$0xff]
      %4819 = vset.pattern.permute.xlu0 0
      %4820 = vperm.xlu0 %4819, %v4815
      %v4821 = vpop.permute.xlu0 %4820
      %4824 = vset.pattern.permute.xlu0 0
      %4825 = vperm.xlu0 %4824, %v4816
      %v4826 = vpop.permute.xlu0 %4825
      %4829 = vset.pattern.permute.xlu0 0
      %4830 = vperm.xlu0 %4829, %v4817
      %v4831 = vpop.permute.xlu0 %4830
      %v4836 = vunpack.c.l.b16 %v4756
      %v4837 = vunpack.c.l.b16 %v4757
      %v4838 = vunpack.c.l.b16 %v4758
      %v4839 = vpack.c.b16 %v4837, %v4836
      %v4840 = vpack.c.b16 %v4838, %v4838
      %v4842 = vsel %vm1345, %v4839, 0
      %v4845 = vsel %vm1345, %v4840, 0
      %v4848 = vsel %vm1352, %v4811, 0
      %v4851 = vsel %vm1352, %v4812, 0
      %v4854 = vsel %vm1352, %v4813, 0
      %v4857 = vsel %vm1352, %v4814, 0
      %4859 = vmatprep.subr.bf16.mxu0 0
      %4860 = vmatpush1.bf16.msra.mxu0 0
      %4861 = vmatprep.subr.bf16.mxu0 0
      %4862 = vmatpush1.bf16.msra.mxu0 0
      %4863 = vmatprep.subr.bf16.mxu0 0
      %4864 = vmatpush1.bf16.msra.mxu0 0
      %4865 = vmatprep.subr.bf16.mxu0 %v4851
      %4866 = vmatpush1.bf16.msra.mxu0 %v4848
      %4867 = vmatprep.subr.bf16.mxu0 %v4808
      %4868 = vmatpush1.bf16.msra.mxu0 %v4807
      %4869 = vmatprep.subr.bf16.mxu0 %v4804
      %4870 = vmatpush1.bf16.msra.mxu0 %v4803
      %4871 = vmatprep.subr.bf16.mxu0 %v4800
      %4872 = vmatpush1.bf16.msra.mxu0 %v4799
      %4873 = vmatprep.subr.bf16.mxu0 %v4796
      %4874 = vmatpush1.bf16.msra.mxu0 %v4795
      %4875 = vmatprep.subr.bf16.mxu0 0
      %4876 = vmatpush2.bf16.msra.mxu0 0
      %4877 = vmatprep.subr.bf16.mxu0 0
      %4878 = vmatpush2.bf16.msra.mxu0 0
      %4879 = vmatprep.subr.bf16.mxu0 0
      %4880 = vmatpush2.bf16.msra.mxu0 0
      %4881 = vmatprep.subr.bf16.mxu0 0
      %4882 = vmatpush2.bf16.msra.mxu0 0
      %4883 = vmatprep.subr.bf16.mxu0 0
      %4884 = vmatpush2.bf16.msra.mxu0 0
      %4885 = vmatprep.subr.bf16.mxu0 0
      %4886 = vmatpush2.bf16.msra.mxu0 0
      %4887 = vmatprep.subr.bf16.mxu0 0
      %4888 = vmatpush2.bf16.msra.mxu0 0
      %4889 = vmatprep.subr.bf16.mxu0 0
      %4890 = vmatpush2.bf16.msra.mxu0 0
      %4891 = vmatprep.mubr.bf16.mxu0 0
      %4892 = vmatmul.mubr.bf16.gmra.mxu0 %v4842
      %v4893 = vpop.f32.mrf.mxu0
      %v4894 = vadd.f32 %v4821, %v4893
      %v4895 = vpop.f32.mrf.mxu0
      %v4896 = vadd.f32 %v4821, %v4895
      %v4897 = vpop.f32.mrf.mxu0
      %v4898 = vadd.f32 %v4826, %v4897
      %v4899 = vpop.f32.mrf.mxu0
      %v4900 = vadd.f32 %v4826, %v4899
      %4901 = vmatprep.mubr.bf16.mxu0 0
      %4902 = vmatmul.mubr.bf16.gmra.mxu0 %v4845
      %v4903 = vpop.f32.mrf.mxu0
      %v4904 = vadd.f32 %v4831, %v4903
      %v4905 = vpop.f32.mrf.mxu0
      %v4906 = vadd.f32 %v4831, %v4905
      %v4907 = vpop.f32.mrf.mxu0
      %v4908 = vpop.f32.mrf.mxu0
      %4909 = vdwg.mxu0
      %4910 = vmatprep.subr.bf16.mxu0 0
      %4911 = vmatpush1.bf16.msra.mxu0 0
      %4912 = vmatprep.subr.bf16.mxu0 0
      %4913 = vmatpush1.bf16.msra.mxu0 0
      %4914 = vmatprep.subr.bf16.mxu0 0
      %4915 = vmatpush1.bf16.msra.mxu0 0
      %4916 = vmatprep.subr.bf16.mxu0 %v4857
      %4917 = vmatpush1.bf16.msra.mxu0 %v4854
      %4918 = vmatprep.subr.bf16.mxu0 %v4810
      %4919 = vmatpush1.bf16.msra.mxu0 %v4809
      %4920 = vmatprep.subr.bf16.mxu0 %v4806
      %4921 = vmatpush1.bf16.msra.mxu0 %v4805
      %4922 = vmatprep.subr.bf16.mxu0 %v4802
      %4923 = vmatpush1.bf16.msra.mxu0 %v4801
      %4924 = vmatprep.subr.bf16.mxu0 %v4798
      %4925 = vmatpush1.bf16.msra.mxu0 %v4797
      %4926 = vmatprep.subr.bf16.mxu0 0
      %4927 = vmatpush2.bf16.msra.mxu0 0
      %4928 = vmatprep.subr.bf16.mxu0 0
      %4929 = vmatpush2.bf16.msra.mxu0 0
      %4930 = vmatprep.subr.bf16.mxu0 0
      %4931 = vmatpush2.bf16.msra.mxu0 0
      %4932 = vmatprep.subr.bf16.mxu0 0
      %4933 = vmatpush2.bf16.msra.mxu0 0
      %4934 = vmatprep.subr.bf16.mxu0 0
      %4935 = vmatpush2.bf16.msra.mxu0 0
      %4936 = vmatprep.subr.bf16.mxu0 0
      %4937 = vmatpush2.bf16.msra.mxu0 0
      %4938 = vmatprep.subr.bf16.mxu0 0
      %4939 = vmatpush2.bf16.msra.mxu0 0
      %4940 = vmatprep.subr.bf16.mxu0 0
      %4941 = vmatpush2.bf16.msra.mxu0 0
      %4942 = vmatprep.mubr.bf16.mxu0 0
      %4943 = vmatmul.mubr.bf16.gmra.mxu0 %v4842
      %v4944 = vpop.f32.mrf.mxu0
      %v4945 = vadd.f32 %v4821, %v4944
      %v4946 = vpop.f32.mrf.mxu0
      %v4947 = vadd.f32 %v4821, %v4946
      %v4948 = vpop.f32.mrf.mxu0
      %v4949 = vadd.f32 %v4826, %v4948
      %v4950 = vpop.f32.mrf.mxu0
      %v4951 = vadd.f32 %v4826, %v4950
      %4952 = vmatprep.mubr.bf16.mxu0 0
      %4953 = vmatmul.mubr.bf16.gmra.mxu0 %v4845
      %v4954 = vpop.f32.mrf.mxu0
      %v4955 = vadd.f32 %v4831, %v4954
      %v4956 = vpop.f32.mrf.mxu0
      %v4957 = vadd.f32 %v4831, %v4956
      %v4958 = vpop.f32.mrf.mxu0
      %v4959 = vpop.f32.mrf.mxu0
      %4960 = vdwg.mxu0
      %v4961 = vld [vmem:[%s12] sm:$0xf]
      %v4962 = vld [vmem:[%s12 + $0x4] sm:$0xf]
      %v4963 = vld [vmem:[#allocation3] sm:$0xff]
      %v4964 = vld [vmem:[#allocation3 + $0x8] sm:$0xff]
      %v4965 = vld [vmem:[#allocation3 + $0x10] sm:$0xff]
      %v4966 = vld [vmem:[#allocation3 + $0x18] sm:$0xff]
      %v4967 = vld [vmem:[#allocation3 + $0x20] sm:$0xff]
      %v4968 = vld [vmem:[#allocation3 + $0x28] sm:$0xff]
      %v4969 = vld [vmem:[#allocation3 + $0x30] sm:$0xff]
      %v4970 = vld [vmem:[#allocation3 + $0x38] sm:$0xff]
      %v4971 = vld [vmem:[#allocation3 + $0x40] sm:$0xff]
      %v4972 = vld [vmem:[#allocation3 + $0x48] sm:$0xff]
      %v4973 = vld [vmem:[#allocation3 + $0x50] sm:$0xff]
      %v4974 = vld [vmem:[#allocation3 + $0x58] sm:$0xff]
      %v4975 = vld [vmem:[#allocation3 + $0x60] sm:$0xff]
      %v4976 = vld [vmem:[#allocation3 + $0x68] sm:$0xff]
      %v4977 = vld [vmem:[#allocation3 + $0x70] sm:$0xff]
      %v4978 = vld [vmem:[#allocation3 + $0x78] sm:$0xff]
      %v4979 = vld [vmem:[#allocation3 + $0x80] sm:$0xff]
      %v4980 = vld [vmem:[#allocation3 + $0x88] sm:$0xff]
      %v4981 = vld [vmem:[#allocation3 + $0x90] sm:$0xff]
      %v4982 = vld [vmem:[#allocation3 + $0x98] sm:$0xff]
      %v4983 = vld [vmem:[#allocation3 + $0xa0] sm:$0xff]
      %v4984 = vld [vmem:[#allocation3 + $0xa8] sm:$0xff]
      %v4985 = vld [vmem:[#allocation3 + $0xb0] sm:$0xff]
      %v4986 = vld [vmem:[#allocation3 + $0xb8] sm:$0xff]
      %v4987 = vld [vmem:[#allocation3 + $0xc0] sm:$0xff]
      %v4988 = vld [vmem:[#allocation3 + $0xc8] sm:$0xff]
      %v4989 = vld [vmem:[#allocation3 + $0xd0] sm:$0xff]
      %v4990 = vld [vmem:[#allocation3 + $0xd8] sm:$0xff]
      %v4991 = vld [vmem:[#allocation3 + $0xe0] sm:$0xff]
      %v4992 = vld [vmem:[#allocation3 + $0xe8] sm:$0xff]
      %v4993 = vld [vmem:[#allocation3 + $0xf0] sm:$0xff]
      %v4994 = vld [vmem:[#allocation3 + $0xf8] sm:$0xff]
      %v4995 = vld [vmem:[#allocation3 + $0x100] sm:$0xff]
      %v4996 = vld [vmem:[#allocation3 + $0x108] sm:$0xff]
      %v4997 = vld [vmem:[#allocation3 + $0x110] sm:$0xff]
      %v4998 = vld [vmem:[#allocation3 + $0x118] sm:$0xff]
      %v4999 = vpack.c.bf16 %v4967, %v4963
      %v5000 = vpack.c.bf16 %v4968, %v4964
      %v5001 = vpack.c.bf16 %v4969, %v4965
      %v5002 = vpack.c.bf16 %v4970, %v4966
      %v5003 = vpack.c.bf16 %v4975, %v4971
      %v5004 = vpack.c.bf16 %v4976, %v4972
      %v5005 = vpack.c.bf16 %v4977, %v4973
      %v5006 = vpack.c.bf16 %v4978, %v4974
      %v5007 = vpack.c.bf16 %v4983, %v4979
      %v5008 = vpack.c.bf16 %v4984, %v4980
      %v5009 = vpack.c.bf16 %v4985, %v4981
      %v5010 = vpack.c.bf16 %v4986, %v4982
      %v5011 = vpack.c.bf16 %v4991, %v4987
      %v5012 = vpack.c.bf16 %v4992, %v4988
      %v5013 = vpack.c.bf16 %v4993, %v4989
      %v5014 = vpack.c.bf16 %v4994, %v4990
      %v5015 = vpack.c.bf16 %v4995, %v4995
      %v5016 = vpack.c.bf16 %v4996, %v4996
      %v5017 = vpack.c.bf16 %v4997, %v4997
      %v5018 = vpack.c.bf16 %v4998, %v4998
      %v5021 = vunpack.c.l.b16 %v4961
      %v5022 = vunpack.c.l.b16 %v4962
      %v5023 = vpack.c.b16 %v5022, %v5021
      %v5025 = vsel %vm1345, %v5023, 0
      %v5028 = vsel %vm1352, %v5015, 0
      %v5031 = vsel %vm1352, %v5016, 0
      %v5034 = vsel %vm1352, %v5017, 0
      %v5037 = vsel %vm1352, %v5018, 0
      %5039 = vmatprep.subr.bf16.mxu0 0
      %5040 = vmatpush1.bf16.msra.mxu0 0
      %5041 = vmatprep.subr.bf16.mxu0 0
      %5042 = vmatpush1.bf16.msra.mxu0 0
      %5043 = vmatprep.subr.bf16.mxu0 0
      %5044 = vmatpush1.bf16.msra.mxu0 0
      %5045 = vmatprep.subr.bf16.mxu0 %v5031
      %5046 = vmatpush1.bf16.msra.mxu0 %v5028
      %5047 = vmatprep.subr.bf16.mxu0 %v5012
      %5048 = vmatpush1.bf16.msra.mxu0 %v5011
      %5049 = vmatprep.subr.bf16.mxu0 %v5008
      %5050 = vmatpush1.bf16.msra.mxu0 %v5007
      %5051 = vmatprep.subr.bf16.mxu0 %v5004
      %5052 = vmatpush1.bf16.msra.mxu0 %v5003
      %5053 = vmatprep.subr.bf16.mxu0 %v5000
      %5054 = vmatpush1.bf16.msra.mxu0 %v4999
      %5055 = vmatprep.subr.bf16.mxu0 0
      %5056 = vmatpush2.bf16.msra.mxu0 0
      %5057 = vmatprep.subr.bf16.mxu0 0
      %5058 = vmatpush2.bf16.msra.mxu0 0
      %5059 = vmatprep.subr.bf16.mxu0 0
      %5060 = vmatpush2.bf16.msra.mxu0 0
      %5061 = vmatprep.subr.bf16.mxu0 0
      %5062 = vmatpush2.bf16.msra.mxu0 0
      %5063 = vmatprep.subr.bf16.mxu0 0
      %5064 = vmatpush2.bf16.msra.mxu0 0
      %5065 = vmatprep.subr.bf16.mxu0 0
      %5066 = vmatpush2.bf16.msra.mxu0 0
      %5067 = vmatprep.subr.bf16.mxu0 0
      %5068 = vmatpush2.bf16.msra.mxu0 0
      %5069 = vmatprep.subr.bf16.mxu0 0
      %5070 = vmatpush2.bf16.msra.mxu0 0
      %5071 = vmatprep.mubr.bf16.mxu0 0
      %5072 = vmatmul.mubr.bf16.gmra.mxu0 %v5025
      %v5073 = vpop.f32.mrf.mxu0
      %v5074 = vadd.f32 0.0, %v5073
      %v5075 = vpop.f32.mrf.mxu0
      %v5076 = vadd.f32 0.0, %v5075
      %v5077 = vpop.f32.mrf.mxu0
      %v5078 = vadd.f32 0.0, %v5077
      %v5079 = vpop.f32.mrf.mxu0
      %v5080 = vadd.f32 0.0, %v5079
      %5081 = vdwg.mxu0
      %5082 = vmatprep.subr.bf16.mxu0 0
      %5083 = vmatpush1.bf16.msra.mxu0 0
      %5084 = vmatprep.subr.bf16.mxu0 0
      %5085 = vmatpush1.bf16.msra.mxu0 0
      %5086 = vmatprep.subr.bf16.mxu0 0
      %5087 = vmatpush1.bf16.msra.mxu0 0
      %5088 = vmatprep.subr.bf16.mxu0 %v5037
      %5089 = vmatpush1.bf16.msra.mxu0 %v5034
      %5090 = vmatprep.subr.bf16.mxu0 %v5014
      %5091 = vmatpush1.bf16.msra.mxu0 %v5013
      %5092 = vmatprep.subr.bf16.mxu0 %v5010
      %5093 = vmatpush1.bf16.msra.mxu0 %v5009
      %5094 = vmatprep.subr.bf16.mxu0 %v5006
      %5095 = vmatpush1.bf16.msra.mxu0 %v5005
      %5096 = vmatprep.subr.bf16.mxu0 %v5002
      %5097 = vmatpush1.bf16.msra.mxu0 %v5001
      %5098 = vmatprep.subr.bf16.mxu0 0
      %5099 = vmatpush2.bf16.msra.mxu0 0
      %5100 = vmatprep.subr.bf16.mxu0 0
      %5101 = vmatpush2.bf16.msra.mxu0 0
      %5102 = vmatprep.subr.bf16.mxu0 0
      %5103 = vmatpush2.bf16.msra.mxu0 0
      %5104 = vmatprep.subr.bf16.mxu0 0
      %5105 = vmatpush2.bf16.msra.mxu0 0
      %5106 = vmatprep.subr.bf16.mxu0 0
      %5107 = vmatpush2.bf16.msra.mxu0 0
      %5108 = vmatprep.subr.bf16.mxu0 0
      %5109 = vmatpush2.bf16.msra.mxu0 0
      %5110 = vmatprep.subr.bf16.mxu0 0
      %5111 = vmatpush2.bf16.msra.mxu0 0
      %5112 = vmatprep.subr.bf16.mxu0 0
      %5113 = vmatpush2.bf16.msra.mxu0 0
      %5114 = vmatprep.mubr.bf16.mxu0 0
      %5115 = vmatmul.mubr.bf16.gmra.mxu0 %v5025
      %v5116 = vpop.f32.mrf.mxu0
      %v5117 = vadd.f32 0.0, %v5116
      %v5118 = vpop.f32.mrf.mxu0
      %v5119 = vadd.f32 0.0, %v5118
      %v5120 = vpop.f32.mrf.mxu0
      %v5121 = vadd.f32 0.0, %v5120
      %v5122 = vpop.f32.mrf.mxu0
      %v5123 = vadd.f32 0.0, %v5122
      %5124 = vdwg.mxu0
      %v5125 = vadd.f32 %v4894, %v5074
      %v5126 = vadd.f32 %v4896, %v5076
      %v5127 = vadd.f32 %v4945, %v5117
      %v5128 = vadd.f32 %v4947, %v5119
      %v5129 = vxor.u32 %v5125, 2147483648
      %v5130 = vxor.u32 %v5126, 2147483648
      %v5131 = vxor.u32 %v5127, 2147483648
      %v5132 = vxor.u32 %v5128, 2147483648
      %v5133 = vmul.f32 %v5129, 1.442695
      %v5134 = vpow.pop %v5133
      %v5135 = vmul.f32 %v5130, 1.442695
      %v5136 = vpow.pop %v5135
      %v5137 = vmul.f32 %v5131, 1.442695
      %v5138 = vpow.pop %v5137
      %v5139 = vmul.f32 %v5132, 1.442695
      %v5140 = vpow.pop %v5139
      %v5141 = vadd.f32 %v5134, 1.0
      %v5142 = vadd.f32 %v5136, 1.0
      %v5143 = vadd.f32 %v5138, 1.0
      %v5144 = vadd.f32 %v5140, 1.0
      %v5145 = vrcp.pop %v5141
      %v5146 = vmul.f32 1.0, %v5145
      %v5147 = vrcp.pop %v5142
      %v5148 = vmul.f32 1.0, %v5147
      %v5149 = vrcp.pop %v5143
      %v5150 = vmul.f32 1.0, %v5149
      %v5151 = vrcp.pop %v5144
      %v5152 = vmul.f32 1.0, %v5151
      %v5153 = vadd.f32 %v4898, %v5078
      %v5154 = vadd.f32 %v4900, %v5080
      %v5155 = vadd.f32 %v4949, %v5121
      %v5156 = vadd.f32 %v4951, %v5123
      %v5157 = vxor.u32 %v5153, 2147483648
      %v5158 = vxor.u32 %v5154, 2147483648
      %v5159 = vxor.u32 %v5155, 2147483648
      %v5160 = vxor.u32 %v5156, 2147483648
      %v5161 = vmul.f32 %v5157, 1.442695
      %v5162 = vpow.pop %v5161
      %v5163 = vmul.f32 %v5158, 1.442695
      %v5164 = vpow.pop %v5163
      %v5165 = vmul.f32 %v5159, 1.442695
      %v5166 = vpow.pop %v5165
      %v5167 = vmul.f32 %v5160, 1.442695
      %v5168 = vpow.pop %v5167
      %v5169 = vadd.f32 %v5162, 1.0
      %v5170 = vadd.f32 %v5164, 1.0
      %v5171 = vadd.f32 %v5166, 1.0
      %v5172 = vadd.f32 %v5168, 1.0
      %v5173 = vrcp.pop %v5169
      %v5174 = vmul.f32 1.0, %v5173
      %v5175 = vrcp.pop %v5170
      %v5176 = vmul.f32 1.0, %v5175
      %v5177 = vrcp.pop %v5171
      %v5178 = vmul.f32 1.0, %v5177
      %v5179 = vrcp.pop %v5172
      %v5180 = vmul.f32 1.0, %v5179
      %v5181 = vsub.f32 1.0, %v5174
      %v5182 = vsub.f32 1.0, %v5176
      %v5183 = vsub.f32 1.0, %v5178
      %v5184 = vsub.f32 1.0, %v5180
      %v5185 = vmul.f32 %v5181, %v4000
      %v5186 = vmul.f32 %v5182, %v4001
      %v5187 = vmul.f32 %v5183, %v4002
      %v5188 = vmul.f32 %v5184, %v4003
      %5193 = vrot.lane.b32.xlu0 %v5185, 17
      %v5194 = vpop.permute.xlu0 %5193
      %5195 = vrot.lane.b32.xlu0 %v5186, 17
      %v5196 = vpop.permute.xlu0 %5195
      %5197 = vrot.lane.b32.xlu0 %v5187, 17
      %v5198 = vpop.permute.xlu0 %5197
      %5199 = vrot.lane.b32.xlu0 %v5188, 17
      %v5200 = vpop.permute.xlu0 %5199
      %v5201 = vsel %vm505, %v5194, %v5196
      %v5202 = vsel %vm505, %v5196, %v5198
      %v5203 = vsel %vm505, %v5198, %v5200
      %v5208 = vsel %vm505, 0.0, %v5194
      %v5209 = vld [vmem:[%s1] ss:$8 sm:$0xf]
      %v5211 = vlaneseq
      %v5212 = vshrl.u32 %v5211, 7
      %v5213 = vsub.s32 0, %v5212
      %v5214 = vrot.slane %v5209, %v5213
      %v5215 = vlaneseq
      %v5216 = vshrl.u32 %v5215, 7
      %v5217 = vsub.s32 1, %v5216
      %v5218 = vrot.slane %v5209, %v5217
      %v5219 = vlaneseq
      %v5220 = vshrl.u32 %v5219, 7
      %v5221 = vsub.s32 2, %v5220
      %v5222 = vrot.slane %v5209, %v5221
      %v5223 = vlaneseq
      %v5224 = vshrl.u32 %v5223, 7
      %v5225 = vsub.s32 3, %v5224
      %v5226 = vrot.slane %v5209, %v5225
      %v5231 = vmul.f32 %v5208, %v5214
      %v5232 = vmul.f32 %v5201, %v5218
      %v5233 = vmul.f32 %v5202, %v5222
      %v5234 = vmul.f32 %v5203, %v5226
      %5235 = vst [vmem:[#allocation3] sm:$0xff] %v5231
      %5236 = vst [vmem:[#allocation3 + $0x8] sm:$0xff] %v5232
      %5237 = vst [vmem:[#allocation3 + $0x10] sm:$0xff] %v5233
      %5238 = vst [vmem:[#allocation3 + $0x18] sm:$0xff] %v5234
      %5239 = vrot.lane.b32.xlu0 %v5185, 16
      %v5240 = vpop.permute.xlu0 %5239
      %5241 = vrot.lane.b32.xlu0 %v5186, 16
      %v5242 = vpop.permute.xlu0 %5241
      %5243 = vrot.lane.b32.xlu0 %v5187, 16
      %v5244 = vpop.permute.xlu0 %5243
      %5245 = vrot.lane.b32.xlu0 %v5188, 16
      %v5246 = vpop.permute.xlu0 %5245
      %v5247 = vsel %vm552, %v5240, %v5242
      %v5248 = vsel %vm552, %v5242, %v5244
      %v5249 = vsel %vm552, %v5244, %v5246
      %v5254 = vsel %vm552, 0.0, %v5240
      %v5255 = vld [vmem:[%s561] ss:$8 sm:$0xf]
      %v5257 = vlaneseq
      %v5258 = vshrl.u32 %v5257, 7
      %v5259 = vsub.s32 0, %v5258
      %v5260 = vrot.slane %v5255, %v5259
      %v5261 = vlaneseq
      %v5262 = vshrl.u32 %v5261, 7
      %v5263 = vsub.s32 1, %v5262
      %v5264 = vrot.slane %v5255, %v5263
      %v5265 = vlaneseq
      %v5266 = vshrl.u32 %v5265, 7
      %v5267 = vsub.s32 2, %v5266
      %v5268 = vrot.slane %v5255, %v5267
      %v5269 = vlaneseq
      %v5270 = vshrl.u32 %v5269, 7
      %v5271 = vsub.s32 3, %v5270
      %v5272 = vrot.slane %v5255, %v5271
      %v5277 = vmul.f32 %v5254, %v5260
      %v5278 = vmul.f32 %v5247, %v5264
      %v5279 = vmul.f32 %v5248, %v5268
      %v5280 = vmul.f32 %v5249, %v5272
      %5281 = vst [vmem:[#allocation3 + $0x20] sm:$0xff] %v5277
      %5282 = vst [vmem:[#allocation3 + $0x28] sm:$0xff] %v5278
      %5283 = vst [vmem:[#allocation3 + $0x30] sm:$0xff] %v5279
      %5284 = vst [vmem:[#allocation3 + $0x38] sm:$0xff] %v5280
      %5285 = vrot.lane.b32.xlu0 %v5185, 15
      %v5286 = vpop.permute.xlu0 %5285
      %5287 = vrot.lane.b32.xlu0 %v5186, 15
      %v5288 = vpop.permute.xlu0 %5287
      %5289 = vrot.lane.b32.xlu0 %v5187, 15
      %v5290 = vpop.permute.xlu0 %5289
      %5291 = vrot.lane.b32.xlu0 %v5188, 15
      %v5292 = vpop.permute.xlu0 %5291
      %v5293 = vsel %vm600, %v5286, %v5288
      %v5294 = vsel %vm600, %v5288, %v5290
      %v5295 = vsel %vm600, %v5290, %v5292
      %v5300 = vsel %vm600, 0.0, %v5286
      %v5301 = vld [vmem:[%s609] ss:$8 sm:$0xf]
      %v5303 = vlaneseq
      %v5304 = vshrl.u32 %v5303, 7
      %v5305 = vsub.s32 0, %v5304
      %v5306 = vrot.slane %v5301, %v5305
      %v5307 = vlaneseq
      %v5308 = vshrl.u32 %v5307, 7
      %v5309 = vsub.s32 1, %v5308
      %v5310 = vrot.slane %v5301, %v5309
      %v5311 = vlaneseq
      %v5312 = vshrl.u32 %v5311, 7
      %v5313 = vsub.s32 2, %v5312
      %v5314 = vrot.slane %v5301, %v5313
      %v5315 = vlaneseq
      %v5316 = vshrl.u32 %v5315, 7
      %v5317 = vsub.s32 3, %v5316
      %v5318 = vrot.slane %v5301, %v5317
      %v5323 = vmul.f32 %v5300, %v5306
      %v5324 = vmul.f32 %v5293, %v5310
      %v5325 = vmul.f32 %v5294, %v5314
      %v5326 = vmul.f32 %v5295, %v5318
      %5327 = vst [vmem:[#allocation3 + $0x40] sm:$0xff] %v5323
      %5328 = vst [vmem:[#allocation3 + $0x48] sm:$0xff] %v5324
      %5329 = vst [vmem:[#allocation3 + $0x50] sm:$0xff] %v5325
      %5330 = vst [vmem:[#allocation3 + $0x58] sm:$0xff] %v5326
      %5331 = vrot.lane.b32.xlu0 %v5185, 1
      %v5332 = vpop.permute.xlu0 %5331
      %5333 = vrot.lane.b32.xlu0 %v5186, 1
      %v5334 = vpop.permute.xlu0 %5333
      %5335 = vrot.lane.b32.xlu0 %v5187, 1
      %v5336 = vpop.permute.xlu0 %5335
      %5337 = vrot.lane.b32.xlu0 %v5188, 1
      %v5338 = vpop.permute.xlu0 %5337
      %v5339 = vsel %vm648, %v5332, %v5334
      %v5340 = vsel %vm648, %v5334, %v5336
      %v5341 = vsel %vm648, %v5336, %v5338
      %v5346 = vsel %vm648, 0.0, %v5332
      %v5347 = vld [vmem:[%s657] ss:$8 sm:$0xf]
      %v5349 = vlaneseq
      %v5350 = vshrl.u32 %v5349, 7
      %v5351 = vsub.s32 0, %v5350
      %v5352 = vrot.slane %v5347, %v5351
      %v5353 = vlaneseq
      %v5354 = vshrl.u32 %v5353, 7
      %v5355 = vsub.s32 1, %v5354
      %v5356 = vrot.slane %v5347, %v5355
      %v5357 = vlaneseq
      %v5358 = vshrl.u32 %v5357, 7
      %v5359 = vsub.s32 2, %v5358
      %v5360 = vrot.slane %v5347, %v5359
      %v5361 = vlaneseq
      %v5362 = vshrl.u32 %v5361, 7
      %v5363 = vsub.s32 3, %v5362
      %v5364 = vrot.slane %v5347, %v5363
      %v5369 = vmul.f32 %v5346, %v5352
      %v5370 = vmul.f32 %v5339, %v5356
      %v5371 = vmul.f32 %v5340, %v5360
      %v5372 = vmul.f32 %v5341, %v5364
      %5373 = vst [vmem:[#allocation3 + $0x60] sm:$0xff] %v5369
      %5374 = vst [vmem:[#allocation3 + $0x68] sm:$0xff] %v5370
      %5375 = vst [vmem:[#allocation3 + $0x70] sm:$0xff] %v5371
      %5376 = vst [vmem:[#allocation3 + $0x78] sm:$0xff] %v5372
      %5377 = vst [vmem:[#allocation3 + $0x80] sm:$0xff] %v5185
      %5378 = vst [vmem:[#allocation3 + $0x88] sm:$0xff] %v5186
      %5379 = vst [vmem:[#allocation3 + $0x90] sm:$0xff] %v5187
      %5380 = vst [vmem:[#allocation3 + $0x98] sm:$0xff] %v5188
      %5381 = vrot.lane.b32.xlu0 %v5185, 127
      %v5382 = vpop.permute.xlu0 %5381
      %5383 = vrot.lane.b32.xlu0 %v5186, 127
      %v5384 = vpop.permute.xlu0 %5383
      %5385 = vrot.lane.b32.xlu0 %v5187, 127
      %v5386 = vpop.permute.xlu0 %5385
      %5387 = vrot.lane.b32.xlu0 %v5188, 127
      %v5388 = vpop.permute.xlu0 %5387
      %v5389 = vsel %vm700, %v5382, %v5384
      %v5390 = vsel %vm700, %v5384, %v5386
      %v5391 = vsel %vm700, %v5386, %v5388
      %v5396 = vsel %vm700, %v5388, 0.0
      %v5397 = vld [vmem:[%s709] ss:$8 sm:$0xf]
      %v5399 = vlaneseq
      %v5400 = vshrl.u32 %v5399, 7
      %v5401 = vsub.s32 0, %v5400
      %v5402 = vrot.slane %v5397, %v5401
      %v5403 = vlaneseq
      %v5404 = vshrl.u32 %v5403, 7
      %v5405 = vsub.s32 1, %v5404
      %v5406 = vrot.slane %v5397, %v5405
      %v5407 = vlaneseq
      %v5408 = vshrl.u32 %v5407, 7
      %v5409 = vsub.s32 2, %v5408
      %v5410 = vrot.slane %v5397, %v5409
      %v5411 = vlaneseq
      %v5412 = vshrl.u32 %v5411, 7
      %v5413 = vsub.s32 3, %v5412
      %v5414 = vrot.slane %v5397, %v5413
      %v5419 = vmul.f32 %v5389, %v5402
      %v5420 = vmul.f32 %v5390, %v5406
      %v5421 = vmul.f32 %v5391, %v5410
      %v5422 = vmul.f32 %v5396, %v5414
      %5423 = vst [vmem:[#allocation3 + $0xa0] sm:$0xff] %v5419
      %5424 = vst [vmem:[#allocation3 + $0xa8] sm:$0xff] %v5420
      %5425 = vst [vmem:[#allocation3 + $0xb0] sm:$0xff] %v5421
      %5426 = vst [vmem:[#allocation3 + $0xb8] sm:$0xff] %v5422
      %5427 = vrot.lane.b32.xlu0 %v5185, 113
      %v5428 = vpop.permute.xlu0 %5427
      %5429 = vrot.lane.b32.xlu0 %v5186, 113
      %v5430 = vpop.permute.xlu0 %5429
      %5431 = vrot.lane.b32.xlu0 %v5187, 113
      %v5432 = vpop.permute.xlu0 %5431
      %5433 = vrot.lane.b32.xlu0 %v5188, 113
      %v5434 = vpop.permute.xlu0 %5433
      %v5435 = vsel %vm748, %v5428, %v5430
      %v5436 = vsel %vm748, %v5430, %v5432
      %v5437 = vsel %vm748, %v5432, %v5434
      %v5442 = vsel %vm748, %v5434, 0.0
      %v5443 = vld [vmem:[%s757] ss:$8 sm:$0xf]
      %v5445 = vlaneseq
      %v5446 = vshrl.u32 %v5445, 7
      %v5447 = vsub.s32 0, %v5446
      %v5448 = vrot.slane %v5443, %v5447
      %v5449 = vlaneseq
      %v5450 = vshrl.u32 %v5449, 7
      %v5451 = vsub.s32 1, %v5450
      %v5452 = vrot.slane %v5443, %v5451
      %v5453 = vlaneseq
      %v5454 = vshrl.u32 %v5453, 7
      %v5455 = vsub.s32 2, %v5454
      %v5456 = vrot.slane %v5443, %v5455
      %v5457 = vlaneseq
      %v5458 = vshrl.u32 %v5457, 7
      %v5459 = vsub.s32 3, %v5458
      %v5460 = vrot.slane %v5443, %v5459
      %v5465 = vmul.f32 %v5435, %v5448
      %v5466 = vmul.f32 %v5436, %v5452
      %v5467 = vmul.f32 %v5437, %v5456
      %v5468 = vmul.f32 %v5442, %v5460
      %5469 = vst [vmem:[#allocation3 + $0xc0] sm:$0xff] %v5465
      %5470 = vst [vmem:[#allocation3 + $0xc8] sm:$0xff] %v5466
      %5471 = vst [vmem:[#allocation3 + $0xd0] sm:$0xff] %v5467
      %5472 = vst [vmem:[#allocation3 + $0xd8] sm:$0xff] %v5468
      %5473 = vrot.lane.b32.xlu0 %v5185, 112
      %v5474 = vpop.permute.xlu0 %5473
      %5475 = vrot.lane.b32.xlu0 %v5186, 112
      %v5476 = vpop.permute.xlu0 %5475
      %5477 = vrot.lane.b32.xlu0 %v5187, 112
      %v5478 = vpop.permute.xlu0 %5477
      %5479 = vrot.lane.b32.xlu0 %v5188, 112
      %v5480 = vpop.permute.xlu0 %5479
      %v5481 = vsel %vm796, %v5474, %v5476
      %v5482 = vsel %vm796, %v5476, %v5478
      %v5483 = vsel %vm796, %v5478, %v5480
      %v5488 = vsel %vm796, %v5480, 0.0
      %v5489 = vld [vmem:[%s805] ss:$8 sm:$0xf]
      %v5491 = vlaneseq
      %v5492 = vshrl.u32 %v5491, 7
      %v5493 = vsub.s32 0, %v5492
      %v5494 = vrot.slane %v5489, %v5493
      %v5495 = vlaneseq
      %v5496 = vshrl.u32 %v5495, 7
      %v5497 = vsub.s32 1, %v5496
      %v5498 = vrot.slane %v5489, %v5497
      %v5499 = vlaneseq
      %v5500 = vshrl.u32 %v5499, 7
      %v5501 = vsub.s32 2, %v5500
      %v5502 = vrot.slane %v5489, %v5501
      %v5503 = vlaneseq
      %v5504 = vshrl.u32 %v5503, 7
      %v5505 = vsub.s32 3, %v5504
      %v5506 = vrot.slane %v5489, %v5505
      %v5511 = vmul.f32 %v5481, %v5494
      %v5512 = vmul.f32 %v5482, %v5498
      %v5513 = vmul.f32 %v5483, %v5502
      %v5514 = vmul.f32 %v5488, %v5506
      %5515 = vst [vmem:[#allocation3 + $0xe0] sm:$0xff] %v5511
      %5516 = vst [vmem:[#allocation3 + $0xe8] sm:$0xff] %v5512
      %5517 = vst [vmem:[#allocation3 + $0xf0] sm:$0xff] %v5513
      %5518 = vst [vmem:[#allocation3 + $0xf8] sm:$0xff] %v5514
      %5519 = vrot.lane.b32.xlu0 %v5185, 111
      %v5520 = vpop.permute.xlu0 %5519
      %5521 = vrot.lane.b32.xlu0 %v5186, 111
      %v5522 = vpop.permute.xlu0 %5521
      %5523 = vrot.lane.b32.xlu0 %v5187, 111
      %v5524 = vpop.permute.xlu0 %5523
      %5525 = vrot.lane.b32.xlu0 %v5188, 111
      %v5526 = vpop.permute.xlu0 %5525
      %v5527 = vsel %vm844, %v5520, %v5522
      %v5528 = vsel %vm844, %v5522, %v5524
      %v5529 = vsel %vm844, %v5524, %v5526
      %v5534 = vsel %vm844, %v5526, 0.0
      %v5535 = vld [vmem:[%s853] ss:$8 sm:$0xf]
      %v5537 = vlaneseq
      %v5538 = vshrl.u32 %v5537, 7
      %v5539 = vsub.s32 0, %v5538
      %v5540 = vrot.slane %v5535, %v5539
      %v5541 = vlaneseq
      %v5542 = vshrl.u32 %v5541, 7
      %v5543 = vsub.s32 1, %v5542
      %v5544 = vrot.slane %v5535, %v5543
      %v5545 = vlaneseq
      %v5546 = vshrl.u32 %v5545, 7
      %v5547 = vsub.s32 2, %v5546
      %v5548 = vrot.slane %v5535, %v5547
      %v5549 = vlaneseq
      %v5550 = vshrl.u32 %v5549, 7
      %v5551 = vsub.s32 3, %v5550
      %v5552 = vrot.slane %v5535, %v5551
      %v5557 = vmul.f32 %v5527, %v5540
      %v5558 = vmul.f32 %v5528, %v5544
      %v5559 = vmul.f32 %v5529, %v5548
      %v5560 = vmul.f32 %v5534, %v5552
      %5561 = vst [vmem:[#allocation3 + $0x100] sm:$0xff] %v5557
      %5562 = vst [vmem:[#allocation3 + $0x108] sm:$0xff] %v5558
      %5563 = vst [vmem:[#allocation3 + $0x110] sm:$0xff] %v5559
      %5564 = vst [vmem:[#allocation3 + $0x118] sm:$0xff] %v5560
      %v5565 = vld [vmem:[%s13] sm:$0xf]
      %v5566 = vld [vmem:[#allocation3] sm:$0xff]
      %v5567 = vld [vmem:[#allocation3 + $0x8] sm:$0xff]
      %v5568 = vld [vmem:[#allocation3 + $0x10] sm:$0xff]
      %v5569 = vld [vmem:[#allocation3 + $0x18] sm:$0xff]
      %v5570 = vld [vmem:[#allocation3 + $0x20] sm:$0xff]
      %v5571 = vld [vmem:[#allocation3 + $0x28] sm:$0xff]
      %v5572 = vld [vmem:[#allocation3 + $0x30] sm:$0xff]
      %v5573 = vld [vmem:[#allocation3 + $0x38] sm:$0xff]
      %v5574 = vld [vmem:[#allocation3 + $0x40] sm:$0xff]
      %v5575 = vld [vmem:[#allocation3 + $0x48] sm:$0xff]
      %v5576 = vld [vmem:[#allocation3 + $0x50] sm:$0xff]
      %v5577 = vld [vmem:[#allocation3 + $0x58] sm:$0xff]
      %v5578 = vld [vmem:[#allocation3 + $0x60] sm:$0xff]
      %v5579 = vld [vmem:[#allocation3 + $0x68] sm:$0xff]
      %v5580 = vld [vmem:[#allocation3 + $0x70] sm:$0xff]
      %v5581 = vld [vmem:[#allocation3 + $0x78] sm:$0xff]
      %v5582 = vld [vmem:[#allocation3 + $0x80] sm:$0xff]
      %v5583 = vld [vmem:[#allocation3 + $0x88] sm:$0xff]
      %v5584 = vld [vmem:[#allocation3 + $0x90] sm:$0xff]
      %v5585 = vld [vmem:[#allocation3 + $0x98] sm:$0xff]
      %v5586 = vld [vmem:[#allocation3 + $0xa0] sm:$0xff]
      %v5587 = vld [vmem:[#allocation3 + $0xa8] sm:$0xff]
      %v5588 = vld [vmem:[#allocation3 + $0xb0] sm:$0xff]
      %v5589 = vld [vmem:[#allocation3 + $0xb8] sm:$0xff]
      %v5590 = vld [vmem:[#allocation3 + $0xc0] sm:$0xff]
      %v5591 = vld [vmem:[#allocation3 + $0xc8] sm:$0xff]
      %v5592 = vld [vmem:[#allocation3 + $0xd0] sm:$0xff]
      %v5593 = vld [vmem:[#allocation3 + $0xd8] sm:$0xff]
      %v5594 = vld [vmem:[#allocation3 + $0xe0] sm:$0xff]
      %v5595 = vld [vmem:[#allocation3 + $0xe8] sm:$0xff]
      %v5596 = vld [vmem:[#allocation3 + $0xf0] sm:$0xff]
      %v5597 = vld [vmem:[#allocation3 + $0xf8] sm:$0xff]
      %v5598 = vld [vmem:[#allocation3 + $0x100] sm:$0xff]
      %v5599 = vld [vmem:[#allocation3 + $0x108] sm:$0xff]
      %v5600 = vld [vmem:[#allocation3 + $0x110] sm:$0xff]
      %v5601 = vld [vmem:[#allocation3 + $0x118] sm:$0xff]
      %v5602 = vpack.c.bf16 %v5570, %v5566
      %v5603 = vpack.c.bf16 %v5571, %v5567
      %v5604 = vpack.c.bf16 %v5572, %v5568
      %v5605 = vpack.c.bf16 %v5573, %v5569
      %v5606 = vpack.c.bf16 %v5578, %v5574
      %v5607 = vpack.c.bf16 %v5579, %v5575
      %v5608 = vpack.c.bf16 %v5580, %v5576
      %v5609 = vpack.c.bf16 %v5581, %v5577
      %v5610 = vpack.c.bf16 %v5586, %v5582
      %v5611 = vpack.c.bf16 %v5587, %v5583
      %v5612 = vpack.c.bf16 %v5588, %v5584
      %v5613 = vpack.c.bf16 %v5589, %v5585
      %v5614 = vpack.c.bf16 %v5594, %v5590
      %v5615 = vpack.c.bf16 %v5595, %v5591
      %v5616 = vpack.c.bf16 %v5596, %v5592
      %v5617 = vpack.c.bf16 %v5597, %v5593
      %v5618 = vpack.c.bf16 %v5598, %v5598
      %v5619 = vpack.c.bf16 %v5599, %v5599
      %v5620 = vpack.c.bf16 %v5600, %v5600
      %v5621 = vpack.c.bf16 %v5601, %v5601
      %v5623 = vsel %vm1345, %v5565, 0
      %v5626 = vsel %vm1352, %v5618, 0
      %v5629 = vsel %vm1352, %v5619, 0
      %v5632 = vsel %vm1352, %v5620, 0
      %v5635 = vsel %vm1352, %v5621, 0
      %5637 = vmatprep.subr.bf16.mxu0 0
      %5638 = vmatpush1.bf16.msra.mxu0 0
      %5639 = vmatprep.subr.bf16.mxu0 0
      %5640 = vmatpush1.bf16.msra.mxu0 0
      %5641 = vmatprep.subr.bf16.mxu0 0
      %5642 = vmatpush1.bf16.msra.mxu0 0
      %5643 = vmatprep.subr.bf16.mxu0 %v5629
      %5644 = vmatpush1.bf16.msra.mxu0 %v5626
      %5645 = vmatprep.subr.bf16.mxu0 %v5615
      %5646 = vmatpush1.bf16.msra.mxu0 %v5614
      %5647 = vmatprep.subr.bf16.mxu0 %v5611
      %5648 = vmatpush1.bf16.msra.mxu0 %v5610
      %5649 = vmatprep.subr.bf16.mxu0 %v5607
      %5650 = vmatpush1.bf16.msra.mxu0 %v5606
      %5651 = vmatprep.subr.bf16.mxu0 %v5603
      %5652 = vmatpush1.bf16.msra.mxu0 %v5602
      %5653 = vmatprep.subr.bf16.mxu0 0
      %5654 = vmatpush2.bf16.msra.mxu0 0
      %5655 = vmatprep.subr.bf16.mxu0 0
      %5656 = vmatpush2.bf16.msra.mxu0 0
      %5657 = vmatprep.subr.bf16.mxu0 0
      %5658 = vmatpush2.bf16.msra.mxu0 0
      %5659 = vmatprep.subr.bf16.mxu0 0
      %5660 = vmatpush2.bf16.msra.mxu0 0
      %5661 = vmatprep.subr.bf16.mxu0 0
      %5662 = vmatpush2.bf16.msra.mxu0 0
      %5663 = vmatprep.subr.bf16.mxu0 0
      %5664 = vmatpush2.bf16.msra.mxu0 0
      %5665 = vmatprep.subr.bf16.mxu0 0
      %5666 = vmatpush2.bf16.msra.mxu0 0
      %5667 = vmatprep.subr.bf16.mxu0 0
      %5668 = vmatpush2.bf16.msra.mxu0 0
      %5669 = vmatprep.mubr.bf16.mxu0 0
      %5670 = vmatmul.mubr.bf16.gmra.mxu0 %v5623
      %v5671 = vpop.f32.mrf.mxu0
      %v5672 = vadd.f32 0.0, %v5671
      %v5673 = vpop.f32.mrf.mxu0
      %v5674 = vadd.f32 0.0, %v5673
      %v5675 = vpop.f32.mrf.mxu0
      %v5676 = vpop.f32.mrf.mxu0
      %5677 = vdwg.mxu0
      %5678 = vmatprep.subr.bf16.mxu0 0
      %5679 = vmatpush1.bf16.msra.mxu0 0
      %5680 = vmatprep.subr.bf16.mxu0 0
      %5681 = vmatpush1.bf16.msra.mxu0 0
      %5682 = vmatprep.subr.bf16.mxu0 0
      %5683 = vmatpush1.bf16.msra.mxu0 0
      %5684 = vmatprep.subr.bf16.mxu0 %v5635
      %5685 = vmatpush1.bf16.msra.mxu0 %v5632
      %5686 = vmatprep.subr.bf16.mxu0 %v5617
      %5687 = vmatpush1.bf16.msra.mxu0 %v5616
      %5688 = vmatprep.subr.bf16.mxu0 %v5613
      %5689 = vmatpush1.bf16.msra.mxu0 %v5612
      %5690 = vmatprep.subr.bf16.mxu0 %v5609
      %5691 = vmatpush1.bf16.msra.mxu0 %v5608
      %5692 = vmatprep.subr.bf16.mxu0 %v5605
      %5693 = vmatpush1.bf16.msra.mxu0 %v5604
      %5694 = vmatprep.subr.bf16.mxu0 0
      %5695 = vmatpush2.bf16.msra.mxu0 0
      %5696 = vmatprep.subr.bf16.mxu0 0
      %5697 = vmatpush2.bf16.msra.mxu0 0
      %5698 = vmatprep.subr.bf16.mxu0 0
      %5699 = vmatpush2.bf16.msra.mxu0 0
      %5700 = vmatprep.subr.bf16.mxu0 0
      %5701 = vmatpush2.bf16.msra.mxu0 0
      %5702 = vmatprep.subr.bf16.mxu0 0
      %5703 = vmatpush2.bf16.msra.mxu0 0
      %5704 = vmatprep.subr.bf16.mxu0 0
      %5705 = vmatpush2.bf16.msra.mxu0 0
      %5706 = vmatprep.subr.bf16.mxu0 0
      %5707 = vmatpush2.bf16.msra.mxu0 0
      %5708 = vmatprep.subr.bf16.mxu0 0
      %5709 = vmatpush2.bf16.msra.mxu0 0
      %5710 = vmatprep.mubr.bf16.mxu0 0
      %5711 = vmatmul.mubr.bf16.gmra.mxu0 %v5623
      %v5712 = vpop.f32.mrf.mxu0
      %v5713 = vadd.f32 0.0, %v5712
      %v5714 = vpop.f32.mrf.mxu0
      %v5715 = vadd.f32 0.0, %v5714
      %v5716 = vpop.f32.mrf.mxu0
      %v5717 = vpop.f32.mrf.mxu0
      %5718 = vdwg.mxu0
      %v5719 = vadd.f32 %v4904, %v5672
      %v5720 = vadd.f32 %v4906, %v5674
      %v5721 = vadd.f32 %v4955, %v5713
      %v5722 = vadd.f32 %v4957, %v5715
      %v5723 = vmax.f32 %v5719, 0.0
      %v5724 = vmax.f32 %v5720, 0.0
      %v5725 = vmax.f32 %v5721, 0.0
      %v5726 = vmax.f32 %v5722, 0.0
      %v5727 = vsub.f32 1.0, %v5146
      %v5728 = vsub.f32 1.0, %v5148
      %v5729 = vsub.f32 1.0, %v5150
      %v5730 = vsub.f32 1.0, %v5152
      %v5731 = vmul.f32 %v5727, %v4000
      %v5732 = vmul.f32 %v5728, %v4001
      %v5733 = vmul.f32 %v5729, %v4002
      %v5734 = vmul.f32 %v5730, %v4003
      %v5735 = vmul.f32 %v5146, %v5723
      %v5736 = vmul.f32 %v5148, %v5724
      %v5737 = vmul.f32 %v5150, %v5725
      %v5738 = vmul.f32 %v5152, %v5726
      %v5739 = vadd.f32 %v5731, %v5735
      %v5740 = vadd.f32 %v5732, %v5736
      %v5741 = vadd.f32 %v5733, %v5737
      %v5742 = vadd.f32 %v5734, %v5738
      %5743 = vst [vmem:[#allocation6] sm:$0xff] %v5739
      %5744 = vst [vmem:[#allocation6 + $0x8] sm:$0xff] %v5740
      %5745 = vst [vmem:[#allocation6 + $0x10] sm:$0xff] %v5741
      %5746 = vst [vmem:[#allocation6 + $0x18] sm:$0xff] %v5742
      %5747 = vst [vmem:[%s467] sm:$0xff] %v5739
      %5748 = vst [vmem:[%s467 + $0x8] sm:$0xff] %v5740
      %5749 = vst [vmem:[%s467 + $0x10] sm:$0xff] %v5741
      %5750 = vst [vmem:[%s467 + $0x18] sm:$0xff] %v5742
      %p5751 = scmp.lt.s32.totalorder %s25, 3
      %s5752 = scalar_select %p5751, %s25, 3
      %s5753 = smul.addr %s5752, 4
      %s5754 = smul.addr %s5753, 8
      %s5755 = scalar_lea.vmem %s14, %s5754
      // Predicated region
      $region81: #{temporal_model_forward.1} parent=75 // pred_check
        %p5756 = pneg %p342
      $region82: #{temporal_model_forward.1} parent=75 // pred_check_branch
        %5758 = sbr.rel (%p5756) target = $region84
      $region83: #{temporal_model_forward.1} parent=75 // pred_region
        _
      $region84: #{temporal_model_forward.1} parent=75 // pred_fallthru
        _
    $region76: #{temporal_model_forward.1} parent=5 // pred_fallthru
      _
    %p5759 = scmp.le.s32.totalorder 2, %s20
    // Predicated region
    $region85: #{temporal_model_forward.1} parent=5 // pred_check
      %p5760 = pneg %p5759
    $region86: #{temporal_model_forward.1} parent=5 // pred_check_branch
      %5762 = sbr.rel (%p5760) target = $region88
    $region87: #{temporal_model_forward.1} parent=5 // pred_region
      %s5763 = ssub.s32 %s20, 2
      // Predicated region
      $region89: #{temporal_model_forward.1} parent=87 // pred_check
        %p5764 = pneg %p348
      $region90: #{temporal_model_forward.1} parent=87 // pred_check_branch
        %5766 = sbr.rel (%p5764) target = $region92
      $region91: #{temporal_model_forward.1} parent=87 // pred_region
        %p5767 = scmp.lt.s32.totalorder %s26, 3
        %s5768 = scalar_select %p5767, %s26, 3
        %s5769 = smul.addr %s5768, 4
        %s5770 = smul.addr %s5769, 8
        %s5771 = scalar_lea.vmem %s14, %s5770
      $region92: #{temporal_model_forward.1} parent=87 // pred_fallthru
        _
    $region88: #{temporal_model_forward.1} parent=5 // pred_fallthru
      _
  $region6: #{temporal_model_forward.1} parent=0 // loop_footer
    %s24 = sadd.s32 1, %s20
  $region7: #{temporal_model_forward.1} parent=0 // loop_footer_branch
    %19 = sbr.rel target = $region3
  $region8: #{temporal_model_forward.1} parent=0 // loop_exit
    _

</llo_original>
